<compile_context>
chip_gen: v5e
topology: v5e:2x2
jax: 0.10.0
libtpu: 0.0.40
codegen_flags: <defaults>
</compile_context>

<pallas_src>
import math
import numpy as np
import jax
import jax.numpy as jnp
from jax import lax
from jax.experimental import pallas as pl
from jax.experimental.pallas import tpu as pltpu

# ----------------------------- config (small shapes) -----------------------------
B = 2                        # batch
N_SEQ = 32                   # number of input Fourier coefficients (seq len)
N_HEADS = 4
D_QUERY = 8
D_MODEL = N_HEADS * D_QUERY  # 32
D_HALF = D_MODEL // 2        # 16
D_FF = N_HEADS * D_QUERY * 4 # 128
N_LAYERS = 2
D_CONV = 4
IMG = 16
RCOLS = IMG // 2 + 1         # 9
M_FULL = IMG * RCOLS         # 144
BN = B * N_SEQ               # 64
LN_EPS = 1e-5
ATTN_EPS = 1e-6
BN_EPS = 1e-5


def full_spec(shape):
    # whole-array block, same block regardless of grid position
    return pl.BlockSpec(shape, lambda *_: (0,) * len(shape))


# ----------------------------- kernel 1: fused embed + encoder + predictor + scatter ---------
def trec_fused_kernel(fbp_ref, pe_ref, ew_ref, eb_ref,
                      wqkv_ref, bqkv_ref, wo_ref, bo_ref, g1_ref, be1_ref,
                      w1_ref, b1_ref, w2_ref, b2_ref, g2_ref, be2_ref,
                      gf_ref, bf_ref, wp_ref, bp_ref,
                      hmask_ref, satt_ref, scal_ref,
                      y_ref, re_ref, im_ref):
    # ---- embedding + positional encoding (pre-padded to D_MODEL lanes in glue) ----
    x2 = fbp_ref[...]                                                    # (BN, 2)
    h = (x2[:, 0:1] * ew_ref[0:1, :] + x2[:, 1:2] * ew_ref[1:2, :]
         + eb_ref[...] + pe_ref[...])                                    # (BN, D)

    hmask = hmask_ref[...]                                               # (D, D) head block-diag

    # ---- linear-attention transformer encoder, layers unrolled ----
    for l in range(N_LAYERS):
        qkv = jnp.dot(h, wqkv_ref[l], preferred_element_type=jnp.float32) + bqkv_ref[l]
        q = qkv[:, 0:D_MODEL]
        k = qkv[:, D_MODEL:2 * D_MODEL]
        v = qkv[:, 2 * D_MODEL:3 * D_MODEL]
        # elu feature map: elu(x) + 1
        q = jnp.where(q > 0, q + 1.0, jnp.exp(q))
        k = jnp.where(k > 0, k + 1.0, jnp.exp(k))
        # per-batch linear attention; heads handled via block-diagonal mask on K^T V
        outs = []
        for b in range(B):
            sl = slice(b * N_SEQ, (b + 1) * N_SEQ)
            qb, kb, vb = q[sl], k[sl], v[sl]
            kv = lax.dot_general(kb, vb, (((0,), (0,)), ((), ())),
                                 preferred_element_type=jnp.float32) * hmask   # (D, D)
            num = jnp.dot(qb, kv, preferred_element_type=jnp.float32)          # (N, D)
            ksum = jnp.sum(kb, axis=0, keepdims=True)                          # (1, D)
            den = jnp.dot(qb * ksum, hmask,
                          preferred_element_type=jnp.float32) + ATTN_EPS       # (N, D)
            outs.append(num / den)
        attn = jnp.concatenate(outs, axis=0)                                   # (BN, D)
        attn = jnp.dot(attn, wo_ref[l], preferred_element_type=jnp.float32) + bo_ref[l]
        # post-norm transformer layer (fast_transformers TransformerEncoderLayer)
        h = h + attn
        mu = jnp.mean(h, axis=-1, keepdims=True)
        var = jnp.mean((h - mu) ** 2, axis=-1, keepdims=True)
        h = (h - mu) * lax.rsqrt(var + LN_EPS) * g1_ref[l] + be1_ref[l]
        y = jnp.maximum(jnp.dot(h, w1_ref[l], preferred_element_type=jnp.float32)
                        + b1_ref[l], 0.0)
        y = jnp.dot(y, w2_ref[l], preferred_element_type=jnp.float32) + b2_ref[l]
        z = h + y
        mu2 = jnp.mean(z, axis=-1, keepdims=True)
        var2 = jnp.mean((z - mu2) ** 2, axis=-1, keepdims=True)
        h = (z - mu2) * lax.rsqrt(var2 + LN_EPS) * g2_ref[l] + be2_ref[l]

    # ---- final LayerNorm of the encoder ----
    mu = jnp.mean(h, axis=-1, keepdims=True)
    var = jnp.mean((h - mu) ** 2, axis=-1, keepdims=True)
    h = (h - mu) * lax.rsqrt(var + LN_EPS) * gf_ref[...] + bf_ref[...]

    # ---- predictors (amp | tanh(phase)) packed into one lane-dense store ----
    ap = jnp.dot(h, wp_ref[...], preferred_element_type=jnp.float32) + bp_ref[...]  # (BN, 2)
    col = lax.broadcasted_iota(jnp.int32, ap.shape, 1)
    y_out = jnp.where(col == 0, ap, jnp.tanh(ap))
    y_ref[...] = y_out

    # ---- convert2DFT denormalization + scatter(dst_flatten_coords) + attenuation ----
    a = y_out[:, 0:1]                                                    # (BN, 1) amp (raw)
    p = y_out[:, 1:2]                                                    # (BN, 1) tanh(phase)
    mag_min = scal_ref[0, 0]
    mag_max = scal_ref[0, 1]
    amp = jnp.exp(0.5 * (a + 1.0) * (mag_max - mag_min) + mag_min)
    phi = p * jnp.pi
    # satt[r, m] = attenuation[m] if m == dst_flatten_coords[r % N_SEQ] else 0
    re_w = (amp * jnp.cos(phi)) * satt_ref[...]                          # (BN, M_FULL)
    im_w = (amp * jnp.sin(phi)) * satt_ref[...]
    for b in range(B):
        sl = slice(b * N_SEQ, (b + 1) * N_SEQ)
        re_ref[b:b + 1, :] = jnp.sum(re_w[sl], axis=0, keepdims=True)    # (1, M_FULL)
        im_ref[b:b + 1, :] = jnp.sum(im_w[sl], axis=0, keepdims=True)


def trec_fused_call(fbp2, consts, params, scal):
    p = params
    L = N_LAYERS
    return pl.pallas_call(
        trec_fused_kernel,
        out_shape=(jax.ShapeDtypeStruct((BN, 2), jnp.float32),
                   jax.ShapeDtypeStruct((B, M_FULL), jnp.float32),
                   jax.ShapeDtypeStruct((B, M_FULL), jnp.float32)),
        grid=(1,),
        in_specs=[
            full_spec((BN, 2)),                       # fbp
            full_spec((BN, D_MODEL)),                 # pe (padded)
            full_spec((2, D_MODEL)),                  # embed W (padded)
            full_spec((1, D_MODEL)),                  # embed b (padded)
            full_spec((L, D_MODEL, 3 * D_MODEL)),     # wqkv
            full_spec((L, 1, 3 * D_MODEL)),           # bqkv
            full_spec((L, D_MODEL, D_MODEL)),         # wo
            full_spec((L, 1, D_MODEL)),               # bo
            full_spec((L, 1, D_MODEL)),               # g1
            full_spec((L, 1, D_MODEL)),               # be1
            full_spec((L, D_MODEL, D_FF)),            # w1
            full_spec((L, 1, D_FF)),                  # b1
            full_spec((L, D_FF, D_MODEL)),            # w2
            full_spec((L, 1, D_MODEL)),               # b2
            full_spec((L, 1, D_MODEL)),               # g2
            full_spec((L, 1, D_MODEL)),               # be2
            full_spec((1, D_MODEL)),                  # gf
            full_spec((1, D_MODEL)),                  # bf
            full_spec((D_MODEL, 2)),                  # w_pred
            full_spec((1, 2)),                        # b_pred
            full_spec((D_MODEL, D_MODEL)),            # head block-diag mask
            full_spec((BN, M_FULL)),                  # scatter * attenuation matrix
            pl.BlockSpec(memory_space=pltpu.MemorySpace.SMEM),   # [mag_min, mag_max]
        ],
        out_specs=(full_spec((BN, 2)),
                   full_spec((B, M_FULL)),
                   full_spec((B, M_FULL))),
        compiler_params=pltpu.CompilerParams(dimension_semantics=("arbitrary",)),
    )(fbp2, consts["pe_pad"], p["embed_w_pad"], p["embed_b_pad"],
      p["wqkv"], p["bqkv"], p["wo"], p["bo"], p["g1"], p["be1"],
      p["w1"], p["b1"], p["w2"], p["b2"], p["g2"], p["be2"],
      p["gf"], p["bf"], p["w_pred"], p["b_pred"],
      consts["head_mask"], consts["satt"], scal)


# ----------------------------- kernel 2: conv block (3x3 -> ReLU -> BN -> 1x1) + residual ------
def conv_block_kernel(taps_ref, x_ref, w1_ref, p_ref, out_ref):
    # taps_ref: (9, B*IMG, IMG) pre-shifted 3x3 taps (padding=1 halo done in glue)
    # w1_ref  : SMEM (D_CONV, 9)  Conv2d(1, d_conv, 3) taps
    # p_ref   : SMEM (5, D_CONV)  rows [conv1 bias, bn gamma, bn beta, conv2 weight, conv2 bias@[4,0]]
    inv_n = 1.0 / float(B * IMG * IMG)
    out = x_ref[...] + p_ref[4, 0]                       # residual + conv2 bias
    for c in range(D_CONV):
        acc = w1_ref[c, 0] * taps_ref[0]                 # init from first tap (no zeros+bias bcast)
        for t in range(1, 9):
            acc = acc + w1_ref[c, t] * taps_ref[t]
        hid = jnp.maximum(acc + p_ref[0, c], 0.0)        # ReLU
        # BatchNorm2d (training-mode forward): biased var via E[x^2] - E[x]^2 (single pass)
        mu = jnp.sum(hid) * inv_n
        ms = jnp.sum(hid * hid) * inv_n
        var = ms - mu * mu
        hn = (hid - mu) * lax.rsqrt(var + BN_EPS) * p_ref[1, c] + p_ref[2, c]
        out = out + p_ref[3, c] * hn                     # 1x1 conv (d_conv -> 1)
    out_ref[...] = out


def conv_block_call(taps, x_flat, w1s, pvec):
    return pl.pallas_call(
        conv_block_kernel,
        out_shape=jax.ShapeDtypeStruct((B * IMG, IMG), jnp.float32),
        grid=(1,),
        in_specs=[
            full_spec((9, B * IMG, IMG)),
            full_spec((B * IMG, IMG)),
            pl.BlockSpec(memory_space=pltpu.MemorySpace.SMEM),
            pl.BlockSpec(memory_space=pltpu.MemorySpace.SMEM),
        ],
        out_specs=full_spec((B * IMG, IMG)),
        compiler_params=pltpu.CompilerParams(dimension_semantics=("arbitrary",)),
    )(taps, x_flat, w1s, pvec)


# ----------------------------- glue: pos encoding, params, forward -----------------------------
def positional_encoding_2d(d_enc, r, phi, flatten_order):
    pe = np.zeros((flatten_order.shape[0], d_enc), np.float32)
    d = d_enc // 2
    div_term = np.exp(np.arange(0.0, d, 2) * -(math.log(10000.0) / d))
    ro = r[flatten_order][:, None]
    po = phi[flatten_order][:, None]
    pe[:, 0:d:2] = np.sin(ro * div_term)
    pe[:, 1:d:2] = np.cos(ro * div_term)
    pe[:, d::2] = np.sin(po * div_term)
    pe[:, d + 1::2] = np.cos(po * div_term)
    return pe


def init_params(key):
    keys = iter(jax.random.split(key, 64))

    def rnd(shape, scale=0.1):
        return scale * jax.random.normal(next(keys), shape, dtype=jnp.float32)

    embed_w = rnd((2, D_HALF))
    embed_b = rnd((1, D_HALF), 0.01)
    params = {
        # embedding weights zero-padded to D_MODEL lanes so that
        # cat([x @ W + b, pe], -1) becomes a pure lane-dense add in the kernel.
        "embed_w_pad": jnp.pad(embed_w, ((0, 0), (0, D_MODEL - D_HALF))),
        "embed_b_pad": jnp.pad(embed_b, ((0, 0), (0, D_MODEL - D_HALF))),
        # stacked per-layer params (leading dim = layer)
        "wqkv": rnd((N_LAYERS, D_MODEL, 3 * D_MODEL)),
        "bqkv": rnd((N_LAYERS, 1, 3 * D_MODEL), 0.01),
        "wo": rnd((N_LAYERS, D_MODEL, D_MODEL)),
        "bo": rnd((N_LAYERS, 1, D_MODEL), 0.01),
        "g1": jnp.ones((N_LAYERS, 1, D_MODEL), jnp.float32),
        "be1": jnp.zeros((N_LAYERS, 1, D_MODEL), jnp.float32),
        "w1": rnd((N_LAYERS, D_MODEL, D_FF)),
        "b1": rnd((N_LAYERS, 1, D_FF), 0.01),
        "w2": rnd((N_LAYERS, D_FF, D_MODEL)),
        "b2": rnd((N_LAYERS, 1, D_MODEL), 0.01),
        "g2": jnp.ones((N_LAYERS, 1, D_MODEL), jnp.float32),
        "be2": jnp.zeros((N_LAYERS, 1, D_MODEL), jnp.float32),
        # final encoder LayerNorm
        "gf": jnp.ones((1, D_MODEL), jnp.float32),
        "bf": jnp.zeros((1, D_MODEL), jnp.float32),
        # predictors (amp | phase) fused into one (D, 2) weight
        "w_pred": rnd((D_MODEL, 2)),
        "b_pred": rnd((1, 2), 0.01),
        # conv block
        "conv_w1s": rnd((D_CONV, 9)),
        "conv_pvec": jnp.stack([
            rnd((D_CONV,)),
            jnp.ones((D_CONV,), jnp.float32),
            jnp.zeros((D_CONV,), jnp.float32),
            rnd((D_CONV,)),
            jnp.concatenate([rnd((1,)), jnp.zeros((D_CONV - 1,), jnp.float32)]),
        ]),
    }
    return params


def forward(params, consts, fbp, mag_min, mag_max):
    fbp2 = fbp.reshape(BN, 2)
    scal = jnp.stack([jnp.asarray(mag_min, jnp.float32),
                      jnp.asarray(mag_max, jnp.float32)]).reshape(1, 2)
    # 1-3) embedding + encoder + predictors + convert2DFT + scatter + attenuation (ONE Pallas call)
    y_flat, re_slab, im_slab = trec_fused_call(fbp2, consts, params, scal)
    y_hat = y_flat.reshape(B, N_SEQ, 2)
    # 4) inverse rFFT + roll (glue)
    # TODO(synk): torch.fft.irfftn (complex C2R FFT) has no Pallas/Mosaic equivalent
    # (no complex dtype on TPU vector units) -- done in plain JAX here.
    dft_img = lax.complex(re_slab, im_slab).reshape(B, IMG, RCOLS)
    img = jnp.fft.irfftn(dft_img, s=(IMG, IMG), axes=(1, 2)).astype(jnp.float32)
    img_hat = jnp.roll(img, (IMG // 2, IMG // 2), axis=(1, 2))              # (B, IMG, IMG)
    # 5) conv block + residual (Pallas); padding=1 handled by pre-shifted taps built here
    img_pad = jnp.pad(img_hat, ((0, 0), (1, 1), (1, 1)))
    taps = jnp.stack([img_pad[:, dy:dy + IMG, dx:dx + IMG]
                      for dy in range(3) for dx in range(3)],
                     axis=0).reshape(9, B * IMG, IMG)
    img_post = conv_block_call(taps, img_hat.reshape(B * IMG, IMG),
                               params["conv_w1s"], params["conv_pvec"]).reshape(B, IMG, IMG)
    return y_hat, img_post


# ----------------------------- main -----------------------------
if __name__ == "__main__":
    key = jax.random.PRNGKey(0)
    k_param, k_fbp = jax.random.split(key)

    params = init_params(k_param)

    # Fourier-space coordinates of the rfft grid (coords_target / flatten_order_target)
    ys, xs = np.meshgrid(np.arange(IMG), np.arange(RCOLS), indexing="ij")
    yy = ((ys + IMG // 2) % IMG) - IMG // 2
    r = np.sqrt(yy.astype(np.float32) ** 2 + xs.astype(np.float32) ** 2).reshape(-1)
    phi = np.arctan2(yy, xs).astype(np.float32).reshape(-1)
    flatten_order = np.argsort(r, kind="stable").astype(np.int32)   # low->high frequency order
    pe = positional_encoding_2d(D_HALF, r, phi, flatten_order)      # (M_FULL, D_HALF)
    # tile over batch and left-pad so it lands on lanes [D_HALF:D_MODEL] of the embedding
    pe_pad = np.pad(np.tile(pe[:N_SEQ], (B, 1)), ((0, 0), (D_HALF, 0))).astype(np.float32)

    # scatter (dst_flatten_coords) fused with attenuation: one-hot rows scaled by attenuation
    att_flat = (1.0 / (1.0 + np.sqrt(yy ** 2 + xs ** 2))).reshape(-1).astype(np.float32)
    scat = np.zeros((N_SEQ, M_FULL), np.float32)
    scat[np.arange(N_SEQ), flatten_order[:N_SEQ]] = att_flat[flatten_order[:N_SEQ]]
    satt = np.tile(scat, (B, 1)).astype(np.float32)                 # (BN, M_FULL)

    # block-diagonal head mask for the fused linear-attention formulation
    head_mask = np.kron(np.eye(N_HEADS, dtype=np.float32),
                        np.ones((D_QUERY, D_QUERY), np.float32))    # (D_MODEL, D_MODEL)

    consts = {
        "pe_pad": jnp.asarray(pe_pad),
        "satt": jnp.asarray(satt),
        "head_mask": jnp.asarray(head_mask),
    }

    fbp = jax.random.normal(k_fbp, (B, N_SEQ, 2), dtype=jnp.float32)   # (amp_norm, phi_norm)
    mag_min = jnp.float32(-4.0)
    mag_max = jnp.float32(3.0)

    fwd = jax.jit(forward)
    y_hat, img_post = fwd(params, consts, fbp, mag_min, mag_max)
    jax.block_until_ready((y_hat, img_post))

    assert y_hat.shape == (B, N_SEQ, 2) and img_post.shape == (B, IMG, IMG)
    assert bool(jnp.all(jnp.isfinite(y_hat))) and bool(jnp.all(jnp.isfinite(img_post)))
    print("KERNEL_OK")
</pallas_src>

<mosaic_0001>
module attributes {stable_mosaic.version = 11 : i64} {
  func.func @trec_fused_kernel(%arg0: i32, %arg1: memref<64x2xf32, #tpu.memory_space<vmem>>, %arg2: memref<64x32xf32, #tpu.memory_space<vmem>>, %arg3: memref<2x32xf32, #tpu.memory_space<vmem>>, %arg4: memref<1x32xf32, #tpu.memory_space<vmem>>, %arg5: memref<2x32x96xf32, #tpu.memory_space<vmem>>, %arg6: memref<2x1x96xf32, #tpu.memory_space<vmem>>, %arg7: memref<2x32x32xf32, #tpu.memory_space<vmem>>, %arg8: memref<2x1x32xf32, #tpu.memory_space<vmem>>, %arg9: memref<2x1x32xf32, #tpu.memory_space<vmem>>, %arg10: memref<2x1x32xf32, #tpu.memory_space<vmem>>, %arg11: memref<2x32x128xf32, #tpu.memory_space<vmem>>, %arg12: memref<2x1x128xf32, #tpu.memory_space<vmem>>, %arg13: memref<2x128x32xf32, #tpu.memory_space<vmem>>, %arg14: memref<2x1x32xf32, #tpu.memory_space<vmem>>, %arg15: memref<2x1x32xf32, #tpu.memory_space<vmem>>, %arg16: memref<2x1x32xf32, #tpu.memory_space<vmem>>, %arg17: memref<1x32xf32, #tpu.memory_space<vmem>>, %arg18: memref<1x32xf32, #tpu.memory_space<vmem>>, %arg19: memref<32x2xf32, #tpu.memory_space<vmem>>, %arg20: memref<1x2xf32, #tpu.memory_space<vmem>>, %arg21: memref<32x32xf32, #tpu.memory_space<vmem>>, %arg22: memref<64x144xf32, #tpu.memory_space<vmem>>, %arg23: memref<1x2xf32, #tpu.memory_space<smem>>, %arg24: memref<64x2xf32, #tpu.memory_space<vmem>>, %arg25: memref<2x144xf32, #tpu.memory_space<vmem>>, %arg26: memref<2x144xf32, #tpu.memory_space<vmem>>) attributes {dimension_semantics = [#tpu.dimension_semantics<arbitrary>], iteration_bounds = array<i64: 1>, scalar_prefetch = 0 : i64, scratch_operands = 0 : i64, tpu.core_type = #tpu.core_type<tc>, window_params = [{pipeline_mode = #tpu.pipeline_mode<synchronous>, transform_indices = @transform_0, window_bounds = array<i64: 64, 2>}, {pipeline_mode = #tpu.pipeline_mode<synchronous>, transform_indices = @transform_1, window_bounds = array<i64: 64, 32>}, {pipeline_mode = #tpu.pipeline_mode<synchronous>, transform_indices = @transform_2, window_bounds = array<i64: 2, 32>}, {pipeline_mode = #tpu.pipeline_mode<synchronous>, transform_indices = @transform_3, window_bounds = array<i64: 1, 32>}, {pipeline_mode = #tpu.pipeline_mode<synchronous>, transform_indices = @transform_4, window_bounds = array<i64: 2, 32, 96>}, {pipeline_mode = #tpu.pipeline_mode<synchronous>, transform_indices = @transform_5, window_bounds = array<i64: 2, 1, 96>}, {pipeline_mode = #tpu.pipeline_mode<synchronous>, transform_indices = @transform_6, window_bounds = array<i64: 2, 32, 32>}, {pipeline_mode = #tpu.pipeline_mode<synchronous>, transform_indices = @transform_7, window_bounds = array<i64: 2, 1, 32>}, {pipeline_mode = #tpu.pipeline_mode<synchronous>, transform_indices = @transform_8, window_bounds = array<i64: 2, 1, 32>}, {pipeline_mode = #tpu.pipeline_mode<synchronous>, transform_indices = @transform_9, window_bounds = array<i64: 2, 1, 32>}, {pipeline_mode = #tpu.pipeline_mode<synchronous>, transform_indices = @transform_10, window_bounds = array<i64: 2, 32, 128>}, {pipeline_mode = #tpu.pipeline_mode<synchronous>, transform_indices = @transform_11, window_bounds = array<i64: 2, 1, 128>}, {pipeline_mode = #tpu.pipeline_mode<synchronous>, transform_indices = @transform_12, window_bounds = array<i64: 2, 128, 32>}, {pipeline_mode = #tpu.pipeline_mode<synchronous>, transform_indices = @transform_13, window_bounds = array<i64: 2, 1, 32>}, {pipeline_mode = #tpu.pipeline_mode<synchronous>, transform_indices = @transform_14, window_bounds = array<i64: 2, 1, 32>}, {pipeline_mode = #tpu.pipeline_mode<synchronous>, transform_indices = @transform_15, window_bounds = array<i64: 2, 1, 32>}, {pipeline_mode = #tpu.pipeline_mode<synchronous>, transform_indices = @transform_16, window_bounds = array<i64: 1, 32>}, {pipeline_mode = #tpu.pipeline_mode<synchronous>, transform_indices = @transform_17, window_bounds = array<i64: 1, 32>}, {pipeline_mode = #tpu.pipeline_mode<synchronous>, transform_indices = @transform_18, window_bounds = array<i64: 32, 2>}, {pipeline_mode = #tpu.pipeline_mode<synchronous>, transform_indices = @transform_19, window_bounds = array<i64: 1, 2>}, {pipeline_mode = #tpu.pipeline_mode<synchronous>, transform_indices = @transform_20, window_bounds = array<i64: 32, 32>}, {pipeline_mode = #tpu.pipeline_mode<synchronous>, transform_indices = @transform_21, window_bounds = array<i64: 64, 144>}, {transform_indices = @transform_22, window_bounds = array<i64: 1, 2>}, {pipeline_mode = #tpu.pipeline_mode<synchronous>, transform_indices = @transform_23, window_bounds = array<i64: 64, 2>}, {pipeline_mode = #tpu.pipeline_mode<synchronous>, transform_indices = @transform_24, window_bounds = array<i64: 2, 144>}, {pipeline_mode = #tpu.pipeline_mode<synchronous>, transform_indices = @transform_25, window_bounds = array<i64: 2, 144>}]} {
    %c0 = arith.constant 0 : index
    %c0_0 = arith.constant 0 : index
    %0 = vector.load %arg1[%c0, %c0_0] : memref<64x2xf32, #tpu.memory_space<vmem>>, vector<64x2xf32>
    %1 = vector.extract_strided_slice %0 {offsets = [0, 0], sizes = [64, 1], strides = [1, 1]} : vector<64x2xf32> to vector<64x1xf32>
    %c0_1 = arith.constant 0 : index
    %c0_2 = arith.constant 0 : index
    %2 = vector.load %arg3[%c0_1, %c0_2] : memref<2x32xf32, #tpu.memory_space<vmem>>, vector<1x32xf32>
    %3 = vector.broadcast %1 : vector<64x1xf32> to vector<64x32xf32>
    %4 = vector.broadcast %2 : vector<1x32xf32> to vector<64x32xf32>
    %5 = arith.mulf %3, %4 : vector<64x32xf32>
    %6 = vector.extract_strided_slice %0 {offsets = [0, 1], sizes = [64, 1], strides = [1, 1]} : vector<64x2xf32> to vector<64x1xf32>
    %c1 = arith.constant 1 : index
    %c0_3 = arith.constant 0 : index
    %7 = vector.load %arg3[%c1, %c0_3] : memref<2x32xf32, #tpu.memory_space<vmem>>, vector<1x32xf32>
    %8 = vector.broadcast %6 : vector<64x1xf32> to vector<64x32xf32>
    %9 = vector.broadcast %7 : vector<1x32xf32> to vector<64x32xf32>
    %10 = arith.mulf %8, %9 : vector<64x32xf32>
    %11 = arith.addf %5, %10 : vector<64x32xf32>
    %c0_4 = arith.constant 0 : index
    %c0_5 = arith.constant 0 : index
    %12 = vector.load %arg4[%c0_4, %c0_5] : memref<1x32xf32, #tpu.memory_space<vmem>>, vector<1x32xf32>
    %13 = vector.broadcast %12 : vector<1x32xf32> to vector<64x32xf32>
    %14 = arith.addf %11, %13 : vector<64x32xf32>
    %c0_6 = arith.constant 0 : index
    %c0_7 = arith.constant 0 : index
    %15 = vector.load %arg2[%c0_6, %c0_7] : memref<64x32xf32, #tpu.memory_space<vmem>>, vector<64x32xf32>
    %16 = arith.addf %14, %15 : vector<64x32xf32>
    %c0_8 = arith.constant 0 : index
    %c0_9 = arith.constant 0 : index
    %17 = vector.load %arg21[%c0_8, %c0_9] : memref<32x32xf32, #tpu.memory_space<vmem>>, vector<32x32xf32>
    %c0_10 = arith.constant 0 : index
    %c0_11 = arith.constant 0 : index
    %c0_12 = arith.constant 0 : index
    %18 = vector.load %arg5[%c0_10, %c0_11, %c0_12] : memref<2x32x96xf32, #tpu.memory_space<vmem>>, vector<1x32x96xf32>
    %19 = vector.shape_cast %18 : vector<1x32x96xf32> to vector<32x96xf32>
    %cst = arith.constant dense<0.000000e+00> : vector<64x96xf32>
    %20 = tpu.matmul %16, %19, %cst {dimension_numbers = #tpu.dot_dimension_numbers<[1], [0], [0], [1], [0, 0, 1, 1], [], []>} : vector<64x32xf32>, vector<32x96xf32>, vector<64x96xf32> -> vector<64x96xf32>
    %c0_13 = arith.constant 0 : index
    %c0_14 = arith.constant 0 : index
    %c0_15 = arith.constant 0 : index
    %21 = vector.load %arg6[%c0_13, %c0_14, %c0_15] : memref<2x1x96xf32, #tpu.memory_space<vmem>>, vector<1x1x96xf32>
    %22 = vector.shape_cast %21 : vector<1x1x96xf32> to vector<1x96xf32>
    %23 = vector.broadcast %22 : vector<1x96xf32> to vector<64x96xf32>
    %24 = arith.addf %20, %23 : vector<64x96xf32>
    %25 = vector.extract_strided_slice %24 {offsets = [0, 0], sizes = [64, 32], strides = [1, 1]} : vector<64x96xf32> to vector<64x32xf32>
    %26 = vector.extract_strided_slice %24 {offsets = [0, 32], sizes = [64, 32], strides = [1, 1]} : vector<64x96xf32> to vector<64x32xf32>
    %27 = vector.extract_strided_slice %24 {offsets = [0, 64], sizes = [64, 32], strides = [1, 1]} : vector<64x96xf32> to vector<64x32xf32>
    %cst_16 = arith.constant 0.000000e+00 : f32
    %28 = vector.broadcast %cst_16 : f32 to vector<64x32xf32>
    %29 = arith.cmpf ogt, %25, %28 : vector<64x32xf32>
    %cst_17 = arith.constant 1.000000e+00 : f32
    %30 = vector.broadcast %cst_17 : f32 to vector<64x32xf32>
    %31 = arith.addf %25, %30 : vector<64x32xf32>
    %32 = math.exp %25 : vector<64x32xf32>
    %33 = arith.select %29, %31, %32 : vector<64x32xi1>, vector<64x32xf32>
    %cst_18 = arith.constant 0.000000e+00 : f32
    %34 = vector.broadcast %cst_18 : f32 to vector<64x32xf32>
    %35 = arith.cmpf ogt, %26, %34 : vector<64x32xf32>
    %cst_19 = arith.constant 1.000000e+00 : f32
    %36 = vector.broadcast %cst_19 : f32 to vector<64x32xf32>
    %37 = arith.addf %26, %36 : vector<64x32xf32>
    %38 = math.exp %26 : vector<64x32xf32>
    %39 = arith.select %35, %37, %38 : vector<64x32xi1>, vector<64x32xf32>
    %40 = vector.extract_strided_slice %33 {offsets = [0, 0], sizes = [32, 32], strides = [1, 1]} : vector<64x32xf32> to vector<32x32xf32>
    %41 = vector.extract_strided_slice %39 {offsets = [0, 0], sizes = [32, 32], strides = [1, 1]} : vector<64x32xf32> to vector<32x32xf32>
    %42 = vector.extract_strided_slice %27 {offsets = [0, 0], sizes = [32, 32], strides = [1, 1]} : vector<64x32xf32> to vector<32x32xf32>
    %cst_20 = arith.constant dense<0.000000e+00> : vector<32x32xf32>
    %43 = tpu.matmul %41, %42, %cst_20 {dimension_numbers = #tpu.dot_dimension_numbers<[0], [0], [1], [1], [0, 1, 1, 1], [], []>} : vector<32x32xf32>, vector<32x32xf32>, vector<32x32xf32> -> vector<32x32xf32>
    %44 = arith.mulf %43, %17 : vector<32x32xf32>
    %cst_21 = arith.constant dense<0.000000e+00> : vector<32x32xf32>
    %45 = tpu.matmul %40, %44, %cst_21 {dimension_numbers = #tpu.dot_dimension_numbers<[1], [0], [0], [1], [0, 0, 1, 1], [], []>} : vector<32x32xf32>, vector<32x32xf32>, vector<32x32xf32> -> vector<32x32xf32>
    %cst_22 = arith.constant dense<0.000000e+00> : vector<32xf32>
    %46 = vector.multi_reduction <add>, %41, %cst_22 [0] : vector<32x32xf32> to vector<32xf32>
    %47 = vector.shape_cast %46 : vector<32xf32> to vector<1x32xf32>
    %48 = vector.broadcast %47 : vector<1x32xf32> to vector<32x32xf32>
    %49 = arith.mulf %40, %48 : vector<32x32xf32>
    %cst_23 = arith.constant dense<0.000000e+00> : vector<32x32xf32>
    %50 = tpu.matmul %49, %17, %cst_23 {dimension_numbers = #tpu.dot_dimension_numbers<[1], [0], [0], [1], [0, 0, 1, 1], [], []>} : vector<32x32xf32>, vector<32x32xf32>, vector<32x32xf32> -> vector<32x32xf32>
    %cst_24 = arith.constant 9.99999997E-7 : f32
    %51 = vector.broadcast %cst_24 : f32 to vector<32x32xf32>
    %52 = arith.addf %50, %51 : vector<32x32xf32>
    %53 = arith.divf %45, %52 : vector<32x32xf32>
    %54 = vector.extract_strided_slice %33 {offsets = [32, 0], sizes = [32, 32], strides = [1, 1]} : vector<64x32xf32> to vector<32x32xf32>
    %55 = vector.extract_strided_slice %39 {offsets = [32, 0], sizes = [32, 32], strides = [1, 1]} : vector<64x32xf32> to vector<32x32xf32>
    %56 = vector.extract_strided_slice %27 {offsets = [32, 0], sizes = [32, 32], strides = [1, 1]} : vector<64x32xf32> to vector<32x32xf32>
    %cst_25 = arith.constant dense<0.000000e+00> : vector<32x32xf32>
    %57 = tpu.matmul %55, %56, %cst_25 {dimension_numbers = #tpu.dot_dimension_numbers<[0], [0], [1], [1], [0, 1, 1, 1], [], []>} : vector<32x32xf32>, vector<32x32xf32>, vector<32x32xf32> -> vector<32x32xf32>
    %58 = arith.mulf %57, %17 : vector<32x32xf32>
    %cst_26 = arith.constant dense<0.000000e+00> : vector<32x32xf32>
    %59 = tpu.matmul %54, %58, %cst_26 {dimension_numbers = #tpu.dot_dimension_numbers<[1], [0], [0], [1], [0, 0, 1, 1], [], []>} : vector<32x32xf32>, vector<32x32xf32>, vector<32x32xf32> -> vector<32x32xf32>
    %cst_27 = arith.constant dense<0.000000e+00> : vector<32xf32>
    %60 = vector.multi_reduction <add>, %55, %cst_27 [0] : vector<32x32xf32> to vector<32xf32>
    %61 = vector.shape_cast %60 : vector<32xf32> to vector<1x32xf32>
    %62 = vector.broadcast %61 : vector<1x32xf32> to vector<32x32xf32>
    %63 = arith.mulf %54, %62 : vector<32x32xf32>
    %cst_28 = arith.constant dense<0.000000e+00> : vector<32x32xf32>
    %64 = tpu.matmul %63, %17, %cst_28 {dimension_numbers = #tpu.dot_dimension_numbers<[1], [0], [0], [1], [0, 0, 1, 1], [], []>} : vector<32x32xf32>, vector<32x32xf32>, vector<32x32xf32> -> vector<32x32xf32>
    %cst_29 = arith.constant 9.99999997E-7 : f32
    %65 = vector.broadcast %cst_29 : f32 to vector<32x32xf32>
    %66 = arith.addf %64, %65 : vector<32x32xf32>
    %67 = arith.divf %59, %66 : vector<32x32xf32>
    %68 = tpu.concatenate %53, %67 in 0 : vector<32x32xf32>, vector<32x32xf32> -> vector<64x32xf32>
    %c0_30 = arith.constant 0 : index
    %c0_31 = arith.constant 0 : index
    %c0_32 = arith.constant 0 : index
    %69 = vector.load %arg7[%c0_30, %c0_31, %c0_32] : memref<2x32x32xf32, #tpu.memory_space<vmem>>, vector<1x32x32xf32>
    %70 = vector.shape_cast %69 : vector<1x32x32xf32> to vector<32x32xf32>
    %cst_33 = arith.constant dense<0.000000e+00> : vector<64x32xf32>
    %71 = tpu.matmul %68, %70, %cst_33 {dimension_numbers = #tpu.dot_dimension_numbers<[1], [0], [0], [1], [0, 0, 1, 1], [], []>} : vector<64x32xf32>, vector<32x32xf32>, vector<64x32xf32> -> vector<64x32xf32>
    %c0_34 = arith.constant 0 : index
    %c0_35 = arith.constant 0 : index
    %c0_36 = arith.constant 0 : index
    %72 = vector.load %arg8[%c0_34, %c0_35, %c0_36] : memref<2x1x32xf32, #tpu.memory_space<vmem>>, vector<1x1x32xf32>
    %73 = vector.shape_cast %72 : vector<1x1x32xf32> to vector<1x32xf32>
    %74 = vector.broadcast %73 : vector<1x32xf32> to vector<64x32xf32>
    %75 = arith.addf %71, %74 : vector<64x32xf32>
    %76 = arith.addf %16, %75 : vector<64x32xf32>
    %cst_37 = arith.constant dense<0.000000e+00> : vector<64xf32>
    %77 = vector.multi_reduction <add>, %76, %cst_37 [1] : vector<64x32xf32> to vector<64xf32>
    %78 = vector.shape_cast %77 : vector<64xf32> to vector<64x1xf32>
    %cst_38 = arith.constant 3.200000e+01 : f32
    %79 = vector.broadcast %cst_38 : f32 to vector<64x1xf32>
    %80 = arith.divf %78, %79 : vector<64x1xf32>
    %81 = vector.broadcast %80 : vector<64x1xf32> to vector<64x32xf32>
    %82 = arith.subf %76, %81 : vector<64x32xf32>
    %83 = arith.mulf %82, %82 : vector<64x32xf32>
    %cst_39 = arith.constant dense<0.000000e+00> : vector<64xf32>
    %84 = vector.multi_reduction <add>, %83, %cst_39 [1] : vector<64x32xf32> to vector<64xf32>
    %85 = vector.shape_cast %84 : vector<64xf32> to vector<64x1xf32>
    %cst_40 = arith.constant 3.200000e+01 : f32
    %86 = vector.broadcast %cst_40 : f32 to vector<64x1xf32>
    %87 = arith.divf %85, %86 : vector<64x1xf32>
    %88 = vector.broadcast %80 : vector<64x1xf32> to vector<64x32xf32>
    %89 = arith.subf %76, %88 : vector<64x32xf32>
    %cst_41 = arith.constant 9.99999974E-6 : f32
    %90 = vector.broadcast %cst_41 : f32 to vector<64x1xf32>
    %91 = arith.addf %87, %90 : vector<64x1xf32>
    %92 = math.rsqrt %91 : vector<64x1xf32>
    %93 = vector.broadcast %92 : vector<64x1xf32> to vector<64x32xf32>
    %94 = arith.mulf %89, %93 : vector<64x32xf32>
    %c0_42 = arith.constant 0 : index
    %c0_43 = arith.constant 0 : index
    %c0_44 = arith.constant 0 : index
    %95 = vector.load %arg9[%c0_42, %c0_43, %c0_44] : memref<2x1x32xf32, #tpu.memory_space<vmem>>, vector<1x1x32xf32>
    %96 = vector.shape_cast %95 : vector<1x1x32xf32> to vector<1x32xf32>
    %97 = vector.broadcast %96 : vector<1x32xf32> to vector<64x32xf32>
    %98 = arith.mulf %94, %97 : vector<64x32xf32>
    %c0_45 = arith.constant 0 : index
    %c0_46 = arith.constant 0 : index
    %c0_47 = arith.constant 0 : index
    %99 = vector.load %arg10[%c0_45, %c0_46, %c0_47] : memref<2x1x32xf32, #tpu.memory_space<vmem>>, vector<1x1x32xf32>
    %100 = vector.shape_cast %99 : vector<1x1x32xf32> to vector<1x32xf32>
    %101 = vector.broadcast %100 : vector<1x32xf32> to vector<64x32xf32>
    %102 = arith.addf %98, %101 : vector<64x32xf32>
    %c0_48 = arith.constant 0 : index
    %c0_49 = arith.constant 0 : index
    %c0_50 = arith.constant 0 : index
    %103 = vector.load %arg11[%c0_48, %c0_49, %c0_50] : memref<2x32x128xf32, #tpu.memory_space<vmem>>, vector<1x32x128xf32>
    %104 = vector.shape_cast %103 : vector<1x32x128xf32> to vector<32x128xf32>
    %cst_51 = arith.constant dense<0.000000e+00> : vector<64x128xf32>
    %105 = tpu.matmul %102, %104, %cst_51 {dimension_numbers = #tpu.dot_dimension_numbers<[1], [0], [0], [1], [0, 0, 1, 1], [], []>} : vector<64x32xf32>, vector<32x128xf32>, vector<64x128xf32> -> vector<64x128xf32>
    %c0_52 = arith.constant 0 : index
    %c0_53 = arith.constant 0 : index
    %c0_54 = arith.constant 0 : index
    %106 = vector.load %arg12[%c0_52, %c0_53, %c0_54] : memref<2x1x128xf32, #tpu.memory_space<vmem>>, vector<1x1x128xf32>
    %107 = vector.shape_cast %106 : vector<1x1x128xf32> to vector<1x128xf32>
    %108 = vector.broadcast %107 : vector<1x128xf32> to vector<64x128xf32>
    %109 = arith.addf %105, %108 : vector<64x128xf32>
    %cst_55 = arith.constant 0.000000e+00 : f32
    %110 = vector.broadcast %cst_55 : f32 to vector<64x128xf32>
    %111 = arith.maximumf %109, %110 : vector<64x128xf32>
    %c0_56 = arith.constant 0 : index
    %c0_57 = arith.constant 0 : index
    %c0_58 = arith.constant 0 : index
    %112 = vector.load %arg13[%c0_56, %c0_57, %c0_58] : memref<2x128x32xf32, #tpu.memory_space<vmem>>, vector<1x128x32xf32>
    %113 = vector.shape_cast %112 : vector<1x128x32xf32> to vector<128x32xf32>
    %cst_59 = arith.constant dense<0.000000e+00> : vector<64x32xf32>
    %114 = tpu.matmul %111, %113, %cst_59 {dimension_numbers = #tpu.dot_dimension_numbers<[1], [0], [0], [1], [0, 0, 1, 1], [], []>} : vector<64x128xf32>, vector<128x32xf32>, vector<64x32xf32> -> vector<64x32xf32>
    %c0_60 = arith.constant 0 : index
    %c0_61 = arith.constant 0 : index
    %c0_62 = arith.constant 0 : index
    %115 = vector.load %arg14[%c0_60, %c0_61, %c0_62] : memref<2x1x32xf32, #tpu.memory_space<vmem>>, vector<1x1x32xf32>
    %116 = vector.shape_cast %115 : vector<1x1x32xf32> to vector<1x32xf32>
    %117 = vector.broadcast %116 : vector<1x32xf32> to vector<64x32xf32>
    %118 = arith.addf %114, %117 : vector<64x32xf32>
    %119 = arith.addf %102, %118 : vector<64x32xf32>
    %cst_63 = arith.constant dense<0.000000e+00> : vector<64xf32>
    %120 = vector.multi_reduction <add>, %119, %cst_63 [1] : vector<64x32xf32> to vector<64xf32>
    %121 = vector.shape_cast %120 : vector<64xf32> to vector<64x1xf32>
    %cst_64 = arith.constant 3.200000e+01 : f32
    %122 = vector.broadcast %cst_64 : f32 to vector<64x1xf32>
    %123 = arith.divf %121, %122 : vector<64x1xf32>
    %124 = vector.broadcast %123 : vector<64x1xf32> to vector<64x32xf32>
    %125 = arith.subf %119, %124 : vector<64x32xf32>
    %126 = arith.mulf %125, %125 : vector<64x32xf32>
    %cst_65 = arith.constant dense<0.000000e+00> : vector<64xf32>
    %127 = vector.multi_reduction <add>, %126, %cst_65 [1] : vector<64x32xf32> to vector<64xf32>
    %128 = vector.shape_cast %127 : vector<64xf32> to vector<64x1xf32>
    %cst_66 = arith.constant 3.200000e+01 : f32
    %129 = vector.broadcast %cst_66 : f32 to vector<64x1xf32>
    %130 = arith.divf %128, %129 : vector<64x1xf32>
    %131 = vector.broadcast %123 : vector<64x1xf32> to vector<64x32xf32>
    %132 = arith.subf %119, %131 : vector<64x32xf32>
    %cst_67 = arith.constant 9.99999974E-6 : f32
    %133 = vector.broadcast %cst_67 : f32 to vector<64x1xf32>
    %134 = arith.addf %130, %133 : vector<64x1xf32>
    %135 = math.rsqrt %134 : vector<64x1xf32>
    %136 = vector.broadcast %135 : vector<64x1xf32> to vector<64x32xf32>
    %137 = arith.mulf %132, %136 : vector<64x32xf32>
    %c0_68 = arith.constant 0 : index
    %c0_69 = arith.constant 0 : index
    %c0_70 = arith.constant 0 : index
    %138 = vector.load %arg15[%c0_68, %c0_69, %c0_70] : memref<2x1x32xf32, #tpu.memory_space<vmem>>, vector<1x1x32xf32>
    %139 = vector.shape_cast %138 : vector<1x1x32xf32> to vector<1x32xf32>
    %140 = vector.broadcast %139 : vector<1x32xf32> to vector<64x32xf32>
    %141 = arith.mulf %137, %140 : vector<64x32xf32>
    %c0_71 = arith.constant 0 : index
    %c0_72 = arith.constant 0 : index
    %c0_73 = arith.constant 0 : index
    %142 = vector.load %arg16[%c0_71, %c0_72, %c0_73] : memref<2x1x32xf32, #tpu.memory_space<vmem>>, vector<1x1x32xf32>
    %143 = vector.shape_cast %142 : vector<1x1x32xf32> to vector<1x32xf32>
    %144 = vector.broadcast %143 : vector<1x32xf32> to vector<64x32xf32>
    %145 = arith.addf %141, %144 : vector<64x32xf32>
    %c1_74 = arith.constant 1 : index
    %c0_75 = arith.constant 0 : index
    %c0_76 = arith.constant 0 : index
    %146 = vector.load %arg5[%c1_74, %c0_75, %c0_76] : memref<2x32x96xf32, #tpu.memory_space<vmem>>, vector<1x32x96xf32>
    %147 = vector.shape_cast %146 : vector<1x32x96xf32> to vector<32x96xf32>
    %cst_77 = arith.constant dense<0.000000e+00> : vector<64x96xf32>
    %148 = tpu.matmul %145, %147, %cst_77 {dimension_numbers = #tpu.dot_dimension_numbers<[1], [0], [0], [1], [0, 0, 1, 1], [], []>} : vector<64x32xf32>, vector<32x96xf32>, vector<64x96xf32> -> vector<64x96xf32>
    %c1_78 = arith.constant 1 : index
    %c0_79 = arith.constant 0 : index
    %c0_80 = arith.constant 0 : index
    %149 = vector.load %arg6[%c1_78, %c0_79, %c0_80] : memref<2x1x96xf32, #tpu.memory_space<vmem>>, vector<1x1x96xf32>
    %150 = vector.shape_cast %149 : vector<1x1x96xf32> to vector<1x96xf32>
    %151 = vector.broadcast %150 : vector<1x96xf32> to vector<64x96xf32>
    %152 = arith.addf %148, %151 : vector<64x96xf32>
    %153 = vector.extract_strided_slice %152 {offsets = [0, 0], sizes = [64, 32], strides = [1, 1]} : vector<64x96xf32> to vector<64x32xf32>
    %154 = vector.extract_strided_slice %152 {offsets = [0, 32], sizes = [64, 32], strides = [1, 1]} : vector<64x96xf32> to vector<64x32xf32>
    %155 = vector.extract_strided_slice %152 {offsets = [0, 64], sizes = [64, 32], strides = [1, 1]} : vector<64x96xf32> to vector<64x32xf32>
    %cst_81 = arith.constant 0.000000e+00 : f32
    %156 = vector.broadcast %cst_81 : f32 to vector<64x32xf32>
    %157 = arith.cmpf ogt, %153, %156 : vector<64x32xf32>
    %cst_82 = arith.constant 1.000000e+00 : f32
    %158 = vector.broadcast %cst_82 : f32 to vector<64x32xf32>
    %159 = arith.addf %153, %158 : vector<64x32xf32>
    %160 = math.exp %153 : vector<64x32xf32>
    %161 = arith.select %157, %159, %160 : vector<64x32xi1>, vector<64x32xf32>
    %cst_83 = arith.constant 0.000000e+00 : f32
    %162 = vector.broadcast %cst_83 : f32 to vector<64x32xf32>
    %163 = arith.cmpf ogt, %154, %162 : vector<64x32xf32>
    %cst_84 = arith.constant 1.000000e+00 : f32
    %164 = vector.broadcast %cst_84 : f32 to vector<64x32xf32>
    %165 = arith.addf %154, %164 : vector<64x32xf32>
    %166 = math.exp %154 : vector<64x32xf32>
    %167 = arith.select %163, %165, %166 : vector<64x32xi1>, vector<64x32xf32>
    %168 = vector.extract_strided_slice %161 {offsets = [0, 0], sizes = [32, 32], strides = [1, 1]} : vector<64x32xf32> to vector<32x32xf32>
    %169 = vector.extract_strided_slice %167 {offsets = [0, 0], sizes = [32, 32], strides = [1, 1]} : vector<64x32xf32> to vector<32x32xf32>
    %170 = vector.extract_strided_slice %155 {offsets = [0, 0], sizes = [32, 32], strides = [1, 1]} : vector<64x32xf32> to vector<32x32xf32>
    %cst_85 = arith.constant dense<0.000000e+00> : vector<32x32xf32>
    %171 = tpu.matmul %169, %170, %cst_85 {dimension_numbers = #tpu.dot_dimension_numbers<[0], [0], [1], [1], [0, 1, 1, 1], [], []>} : vector<32x32xf32>, vector<32x32xf32>, vector<32x32xf32> -> vector<32x32xf32>
    %172 = arith.mulf %171, %17 : vector<32x32xf32>
    %cst_86 = arith.constant dense<0.000000e+00> : vector<32x32xf32>
    %173 = tpu.matmul %168, %172, %cst_86 {dimension_numbers = #tpu.dot_dimension_numbers<[1], [0], [0], [1], [0, 0, 1, 1], [], []>} : vector<32x32xf32>, vector<32x32xf32>, vector<32x32xf32> -> vector<32x32xf32>
    %cst_87 = arith.constant dense<0.000000e+00> : vector<32xf32>
    %174 = vector.multi_reduction <add>, %169, %cst_87 [0] : vector<32x32xf32> to vector<32xf32>
    %175 = vector.shape_cast %174 : vector<32xf32> to vector<1x32xf32>
    %176 = vector.broadcast %175 : vector<1x32xf32> to vector<32x32xf32>
    %177 = arith.mulf %168, %176 : vector<32x32xf32>
    %cst_88 = arith.constant dense<0.000000e+00> : vector<32x32xf32>
    %178 = tpu.matmul %177, %17, %cst_88 {dimension_numbers = #tpu.dot_dimension_numbers<[1], [0], [0], [1], [0, 0, 1, 1], [], []>} : vector<32x32xf32>, vector<32x32xf32>, vector<32x32xf32> -> vector<32x32xf32>
    %cst_89 = arith.constant 9.99999997E-7 : f32
    %179 = vector.broadcast %cst_89 : f32 to vector<32x32xf32>
    %180 = arith.addf %178, %179 : vector<32x32xf32>
    %181 = arith.divf %173, %180 : vector<32x32xf32>
    %182 = vector.extract_strided_slice %161 {offsets = [32, 0], sizes = [32, 32], strides = [1, 1]} : vector<64x32xf32> to vector<32x32xf32>
    %183 = vector.extract_strided_slice %167 {offsets = [32, 0], sizes = [32, 32], strides = [1, 1]} : vector<64x32xf32> to vector<32x32xf32>
    %184 = vector.extract_strided_slice %155 {offsets = [32, 0], sizes = [32, 32], strides = [1, 1]} : vector<64x32xf32> to vector<32x32xf32>
    %cst_90 = arith.constant dense<0.000000e+00> : vector<32x32xf32>
    %185 = tpu.matmul %183, %184, %cst_90 {dimension_numbers = #tpu.dot_dimension_numbers<[0], [0], [1], [1], [0, 1, 1, 1], [], []>} : vector<32x32xf32>, vector<32x32xf32>, vector<32x32xf32> -> vector<32x32xf32>
    %186 = arith.mulf %185, %17 : vector<32x32xf32>
    %cst_91 = arith.constant dense<0.000000e+00> : vector<32x32xf32>
    %187 = tpu.matmul %182, %186, %cst_91 {dimension_numbers = #tpu.dot_dimension_numbers<[1], [0], [0], [1], [0, 0, 1, 1], [], []>} : vector<32x32xf32>, vector<32x32xf32>, vector<32x32xf32> -> vector<32x32xf32>
    %cst_92 = arith.constant dense<0.000000e+00> : vector<32xf32>
    %188 = vector.multi_reduction <add>, %183, %cst_92 [0] : vector<32x32xf32> to vector<32xf32>
    %189 = vector.shape_cast %188 : vector<32xf32> to vector<1x32xf32>
    %190 = vector.broadcast %189 : vector<1x32xf32> to vector<32x32xf32>
    %191 = arith.mulf %182, %190 : vector<32x32xf32>
    %cst_93 = arith.constant dense<0.000000e+00> : vector<32x32xf32>
    %192 = tpu.matmul %191, %17, %cst_93 {dimension_numbers = #tpu.dot_dimension_numbers<[1], [0], [0], [1], [0, 0, 1, 1], [], []>} : vector<32x32xf32>, vector<32x32xf32>, vector<32x32xf32> -> vector<32x32xf32>
    %cst_94 = arith.constant 9.99999997E-7 : f32
    %193 = vector.broadcast %cst_94 : f32 to vector<32x32xf32>
    %194 = arith.addf %192, %193 : vector<32x32xf32>
    %195 = arith.divf %187, %194 : vector<32x32xf32>
    %196 = tpu.concatenate %181, %195 in 0 : vector<32x32xf32>, vector<32x32xf32> -> vector<64x32xf32>
    %c1_95 = arith.constant 1 : index
    %c0_96 = arith.constant 0 : index
    %c0_97 = arith.constant 0 : index
    %197 = vector.load %arg7[%c1_95, %c0_96, %c0_97] : memref<2x32x32xf32, #tpu.memory_space<vmem>>, vector<1x32x32xf32>
    %198 = vector.shape_cast %197 : vector<1x32x32xf32> to vector<32x32xf32>
    %cst_98 = arith.constant dense<0.000000e+00> : vector<64x32xf32>
    %199 = tpu.matmul %196, %198, %cst_98 {dimension_numbers = #tpu.dot_dimension_numbers<[1], [0], [0], [1], [0, 0, 1, 1], [], []>} : vector<64x32xf32>, vector<32x32xf32>, vector<64x32xf32> -> vector<64x32xf32>
    %c1_99 = arith.constant 1 : index
    %c0_100 = arith.constant 0 : index
    %c0_101 = arith.constant 0 : index
    %200 = vector.load %arg8[%c1_99, %c0_100, %c0_101] : memref<2x1x32xf32, #tpu.memory_space<vmem>>, vector<1x1x32xf32>
    %201 = vector.shape_cast %200 : vector<1x1x32xf32> to vector<1x32xf32>
    %202 = vector.broadcast %201 : vector<1x32xf32> to vector<64x32xf32>
    %203 = arith.addf %199, %202 : vector<64x32xf32>
    %204 = arith.addf %145, %203 : vector<64x32xf32>
    %cst_102 = arith.constant dense<0.000000e+00> : vector<64xf32>
    %205 = vector.multi_reduction <add>, %204, %cst_102 [1] : vector<64x32xf32> to vector<64xf32>
    %206 = vector.shape_cast %205 : vector<64xf32> to vector<64x1xf32>
    %cst_103 = arith.constant 3.200000e+01 : f32
    %207 = vector.broadcast %cst_103 : f32 to vector<64x1xf32>
    %208 = arith.divf %206, %207 : vector<64x1xf32>
    %209 = vector.broadcast %208 : vector<64x1xf32> to vector<64x32xf32>
    %210 = arith.subf %204, %209 : vector<64x32xf32>
    %211 = arith.mulf %210, %210 : vector<64x32xf32>
    %cst_104 = arith.constant dense<0.000000e+00> : vector<64xf32>
    %212 = vector.multi_reduction <add>, %211, %cst_104 [1] : vector<64x32xf32> to vector<64xf32>
    %213 = vector.shape_cast %212 : vector<64xf32> to vector<64x1xf32>
    %cst_105 = arith.constant 3.200000e+01 : f32
    %214 = vector.broadcast %cst_105 : f32 to vector<64x1xf32>
    %215 = arith.divf %213, %214 : vector<64x1xf32>
    %216 = vector.broadcast %208 : vector<64x1xf32> to vector<64x32xf32>
    %217 = arith.subf %204, %216 : vector<64x32xf32>
    %cst_106 = arith.constant 9.99999974E-6 : f32
    %218 = vector.broadcast %cst_106 : f32 to vector<64x1xf32>
    %219 = arith.addf %215, %218 : vector<64x1xf32>
    %220 = math.rsqrt %219 : vector<64x1xf32>
    %221 = vector.broadcast %220 : vector<64x1xf32> to vector<64x32xf32>
    %222 = arith.mulf %217, %221 : vector<64x32xf32>
    %c1_107 = arith.constant 1 : index
    %c0_108 = arith.constant 0 : index
    %c0_109 = arith.constant 0 : index
    %223 = vector.load %arg9[%c1_107, %c0_108, %c0_109] : memref<2x1x32xf32, #tpu.memory_space<vmem>>, vector<1x1x32xf32>
    %224 = vector.shape_cast %223 : vector<1x1x32xf32> to vector<1x32xf32>
    %225 = vector.broadcast %224 : vector<1x32xf32> to vector<64x32xf32>
    %226 = arith.mulf %222, %225 : vector<64x32xf32>
    %c1_110 = arith.constant 1 : index
    %c0_111 = arith.constant 0 : index
    %c0_112 = arith.constant 0 : index
    %227 = vector.load %arg10[%c1_110, %c0_111, %c0_112] : memref<2x1x32xf32, #tpu.memory_space<vmem>>, vector<1x1x32xf32>
    %228 = vector.shape_cast %227 : vector<1x1x32xf32> to vector<1x32xf32>
    %229 = vector.broadcast %228 : vector<1x32xf32> to vector<64x32xf32>
    %230 = arith.addf %226, %229 : vector<64x32xf32>
    %c1_113 = arith.constant 1 : index
    %c0_114 = arith.constant 0 : index
    %c0_115 = arith.constant 0 : index
    %231 = vector.load %arg11[%c1_113, %c0_114, %c0_115] : memref<2x32x128xf32, #tpu.memory_space<vmem>>, vector<1x32x128xf32>
    %232 = vector.shape_cast %231 : vector<1x32x128xf32> to vector<32x128xf32>
    %cst_116 = arith.constant dense<0.000000e+00> : vector<64x128xf32>
    %233 = tpu.matmul %230, %232, %cst_116 {dimension_numbers = #tpu.dot_dimension_numbers<[1], [0], [0], [1], [0, 0, 1, 1], [], []>} : vector<64x32xf32>, vector<32x128xf32>, vector<64x128xf32> -> vector<64x128xf32>
    %c1_117 = arith.constant 1 : index
    %c0_118 = arith.constant 0 : index
    %c0_119 = arith.constant 0 : index
    %234 = vector.load %arg12[%c1_117, %c0_118, %c0_119] : memref<2x1x128xf32, #tpu.memory_space<vmem>>, vector<1x1x128xf32>
    %235 = vector.shape_cast %234 : vector<1x1x128xf32> to vector<1x128xf32>
    %236 = vector.broadcast %235 : vector<1x128xf32> to vector<64x128xf32>
    %237 = arith.addf %233, %236 : vector<64x128xf32>
    %cst_120 = arith.constant 0.000000e+00 : f32
    %238 = vector.broadcast %cst_120 : f32 to vector<64x128xf32>
    %239 = arith.maximumf %237, %238 : vector<64x128xf32>
    %c1_121 = arith.constant 1 : index
    %c0_122 = arith.constant 0 : index
    %c0_123 = arith.constant 0 : index
    %240 = vector.load %arg13[%c1_121, %c0_122, %c0_123] : memref<2x128x32xf32, #tpu.memory_space<vmem>>, vector<1x128x32xf32>
    %241 = vector.shape_cast %240 : vector<1x128x32xf32> to vector<128x32xf32>
    %cst_124 = arith.constant dense<0.000000e+00> : vector<64x32xf32>
    %242 = tpu.matmul %239, %241, %cst_124 {dimension_numbers = #tpu.dot_dimension_numbers<[1], [0], [0], [1], [0, 0, 1, 1], [], []>} : vector<64x128xf32>, vector<128x32xf32>, vector<64x32xf32> -> vector<64x32xf32>
    %c1_125 = arith.constant 1 : index
    %c0_126 = arith.constant 0 : index
    %c0_127 = arith.constant 0 : index
    %243 = vector.load %arg14[%c1_125, %c0_126, %c0_127] : memref<2x1x32xf32, #tpu.memory_space<vmem>>, vector<1x1x32xf32>
    %244 = vector.shape_cast %243 : vector<1x1x32xf32> to vector<1x32xf32>
    %245 = vector.broadcast %244 : vector<1x32xf32> to vector<64x32xf32>
    %246 = arith.addf %242, %245 : vector<64x32xf32>
    %247 = arith.addf %230, %246 : vector<64x32xf32>
    %cst_128 = arith.constant dense<0.000000e+00> : vector<64xf32>
    %248 = vector.multi_reduction <add>, %247, %cst_128 [1] : vector<64x32xf32> to vector<64xf32>
    %249 = vector.shape_cast %248 : vector<64xf32> to vector<64x1xf32>
    %cst_129 = arith.constant 3.200000e+01 : f32
    %250 = vector.broadcast %cst_129 : f32 to vector<64x1xf32>
    %251 = arith.divf %249, %250 : vector<64x1xf32>
    %252 = vector.broadcast %251 : vector<64x1xf32> to vector<64x32xf32>
    %253 = arith.subf %247, %252 : vector<64x32xf32>
    %254 = arith.mulf %253, %253 : vector<64x32xf32>
    %cst_130 = arith.constant dense<0.000000e+00> : vector<64xf32>
    %255 = vector.multi_reduction <add>, %254, %cst_130 [1] : vector<64x32xf32> to vector<64xf32>
    %256 = vector.shape_cast %255 : vector<64xf32> to vector<64x1xf32>
    %cst_131 = arith.constant 3.200000e+01 : f32
    %257 = vector.broadcast %cst_131 : f32 to vector<64x1xf32>
    %258 = arith.divf %256, %257 : vector<64x1xf32>
    %259 = vector.broadcast %251 : vector<64x1xf32> to vector<64x32xf32>
    %260 = arith.subf %247, %259 : vector<64x32xf32>
    %cst_132 = arith.constant 9.99999974E-6 : f32
    %261 = vector.broadcast %cst_132 : f32 to vector<64x1xf32>
    %262 = arith.addf %258, %261 : vector<64x1xf32>
    %263 = math.rsqrt %262 : vector<64x1xf32>
    %264 = vector.broadcast %263 : vector<64x1xf32> to vector<64x32xf32>
    %265 = arith.mulf %260, %264 : vector<64x32xf32>
    %c1_133 = arith.constant 1 : index
    %c0_134 = arith.constant 0 : index
    %c0_135 = arith.constant 0 : index
    %266 = vector.load %arg15[%c1_133, %c0_134, %c0_135] : memref<2x1x32xf32, #tpu.memory_space<vmem>>, vector<1x1x32xf32>
    %267 = vector.shape_cast %266 : vector<1x1x32xf32> to vector<1x32xf32>
    %268 = vector.broadcast %267 : vector<1x32xf32> to vector<64x32xf32>
    %269 = arith.mulf %265, %268 : vector<64x32xf32>
    %c1_136 = arith.constant 1 : index
    %c0_137 = arith.constant 0 : index
    %c0_138 = arith.constant 0 : index
    %270 = vector.load %arg16[%c1_136, %c0_137, %c0_138] : memref<2x1x32xf32, #tpu.memory_space<vmem>>, vector<1x1x32xf32>
    %271 = vector.shape_cast %270 : vector<1x1x32xf32> to vector<1x32xf32>
    %272 = vector.broadcast %271 : vector<1x32xf32> to vector<64x32xf32>
    %273 = arith.addf %269, %272 : vector<64x32xf32>
    %cst_139 = arith.constant dense<0.000000e+00> : vector<64xf32>
    %274 = vector.multi_reduction <add>, %273, %cst_139 [1] : vector<64x32xf32> to vector<64xf32>
    %275 = vector.shape_cast %274 : vector<64xf32> to vector<64x1xf32>
    %cst_140 = arith.constant 3.200000e+01 : f32
    %276 = vector.broadcast %cst_140 : f32 to vector<64x1xf32>
    %277 = arith.divf %275, %276 : vector<64x1xf32>
    %278 = vector.broadcast %277 : vector<64x1xf32> to vector<64x32xf32>
    %279 = arith.subf %273, %278 : vector<64x32xf32>
    %280 = arith.mulf %279, %279 : vector<64x32xf32>
    %cst_141 = arith.constant dense<0.000000e+00> : vector<64xf32>
    %281 = vector.multi_reduction <add>, %280, %cst_141 [1] : vector<64x32xf32> to vector<64xf32>
    %282 = vector.shape_cast %281 : vector<64xf32> to vector<64x1xf32>
    %cst_142 = arith.constant 3.200000e+01 : f32
    %283 = vector.broadcast %cst_142 : f32 to vector<64x1xf32>
    %284 = arith.divf %282, %283 : vector<64x1xf32>
    %285 = vector.broadcast %277 : vector<64x1xf32> to vector<64x32xf32>
    %286 = arith.subf %273, %285 : vector<64x32xf32>
    %cst_143 = arith.constant 9.99999974E-6 : f32
    %287 = vector.broadcast %cst_143 : f32 to vector<64x1xf32>
    %288 = arith.addf %284, %287 : vector<64x1xf32>
    %289 = math.rsqrt %288 : vector<64x1xf32>
    %290 = vector.broadcast %289 : vector<64x1xf32> to vector<64x32xf32>
    %291 = arith.mulf %286, %290 : vector<64x32xf32>
    %c0_144 = arith.constant 0 : index
    %c0_145 = arith.constant 0 : index
    %292 = vector.load %arg17[%c0_144, %c0_145] : memref<1x32xf32, #tpu.memory_space<vmem>>, vector<1x32xf32>
    %293 = vector.broadcast %292 : vector<1x32xf32> to vector<64x32xf32>
    %294 = arith.mulf %291, %293 : vector<64x32xf32>
    %c0_146 = arith.constant 0 : index
    %c0_147 = arith.constant 0 : index
    %295 = vector.load %arg18[%c0_146, %c0_147] : memref<1x32xf32, #tpu.memory_space<vmem>>, vector<1x32xf32>
    %296 = vector.broadcast %295 : vector<1x32xf32> to vector<64x32xf32>
    %297 = arith.addf %294, %296 : vector<64x32xf32>
    %c0_148 = arith.constant 0 : index
    %c0_149 = arith.constant 0 : index
    %298 = vector.load %arg19[%c0_148, %c0_149] : memref<32x2xf32, #tpu.memory_space<vmem>>, vector<32x2xf32>
    %cst_150 = arith.constant dense<0.000000e+00> : vector<64x2xf32>
    %299 = tpu.matmul %297, %298, %cst_150 {dimension_numbers = #tpu.dot_dimension_numbers<[1], [0], [0], [1], [0, 0, 1, 1], [], []>} : vector<64x32xf32>, vector<32x2xf32>, vector<64x2xf32> -> vector<64x2xf32>
    %c0_151 = arith.constant 0 : index
    %c0_152 = arith.constant 0 : index
    %300 = vector.load %arg20[%c0_151, %c0_152] : memref<1x2xf32, #tpu.memory_space<vmem>>, vector<1x2xf32>
    %301 = vector.broadcast %300 : vector<1x2xf32> to vector<64x2xf32>
    %302 = arith.addf %299, %301 : vector<64x2xf32>
    %303 = tpu.iota {dimensions = array<i32: 1>} : vector<64x2xi32>
    %c0_i32 = arith.constant 0 : i32
    %304 = vector.broadcast %c0_i32 : i32 to vector<64x2xi32>
    %305 = arith.cmpi eq, %303, %304 : vector<64x2xi32>
    %306 = math.tanh %302 : vector<64x2xf32>
    %307 = arith.select %305, %302, %306 : vector<64x2xi1>, vector<64x2xf32>
    %c0_153 = arith.constant 0 : index
    %c0_154 = arith.constant 0 : index
    %308 = vector.load %arg24[%c0_153, %c0_154] : memref<64x2xf32, #tpu.memory_space<vmem>>, vector<64x2xf32>
    tpu.vector_store %arg24[%c0_153, %c0_154], %307 {strides = array<i32>} : memref<64x2xf32, #tpu.memory_space<vmem>>, vector<64x2xf32>,
    %309 = vector.extract_strided_slice %307 {offsets = [0, 0], sizes = [64, 1], strides = [1, 1]} : vector<64x2xf32> to vector<64x1xf32>
    %310 = vector.extract_strided_slice %307 {offsets = [0, 1], sizes = [64, 1], strides = [1, 1]} : vector<64x2xf32> to vector<64x1xf32>
    %c0_155 = arith.constant 0 : index
    %c0_156 = arith.constant 0 : index
    %311 = memref.load %arg23[%c0_155, %c0_156] : memref<1x2xf32, #tpu.memory_space<smem>>
    %c0_157 = arith.constant 0 : index
    %c1_158 = arith.constant 1 : index
    %312 = memref.load %arg23[%c0_157, %c1_158] : memref<1x2xf32, #tpu.memory_space<smem>>
    %cst_159 = arith.constant 1.000000e+00 : f32
    %313 = vector.broadcast %cst_159 : f32 to vector<64x1xf32>
    %314 = arith.addf %309, %313 : vector<64x1xf32>
    %cst_160 = arith.constant 5.000000e-01 : f32
    %315 = vector.broadcast %cst_160 : f32 to vector<64x1xf32>
    %316 = arith.mulf %315, %314 : vector<64x1xf32>
    %317 = arith.subf %312, %311 : f32
    %318 = vector.broadcast %317 : f32 to vector<64x1xf32>
    %319 = arith.mulf %316, %318 : vector<64x1xf32>
    %320 = vector.broadcast %311 : f32 to vector<64x1xf32>
    %321 = arith.addf %319, %320 : vector<64x1xf32>
    %322 = math.exp %321 : vector<64x1xf32>
    %cst_161 = arith.constant 3.14159274 : f32
    %323 = vector.broadcast %cst_161 : f32 to vector<64x1xf32>
    %324 = arith.mulf %310, %323 : vector<64x1xf32>
    %325 = math.cos %324 : vector<64x1xf32>
    %326 = arith.mulf %322, %325 : vector<64x1xf32>
    %c0_162 = arith.constant 0 : index
    %c0_163 = arith.constant 0 : index
    %327 = vector.load %arg22[%c0_162, %c0_163] : memref<64x144xf32, #tpu.memory_space<vmem>>, vector<64x144xf32>
    %328 = vector.broadcast %326 : vector<64x1xf32> to vector<64x144xf32>
    %329 = arith.mulf %328, %327 : vector<64x144xf32>
    %330 = math.sin %324 : vector<64x1xf32>
    %331 = arith.mulf %322, %330 : vector<64x1xf32>
    %c0_164 = arith.constant 0 : index
    %c0_165 = arith.constant 0 : index
    %332 = vector.load %arg22[%c0_164, %c0_165] : memref<64x144xf32, #tpu.memory_space<vmem>>, vector<64x144xf32>
    %333 = vector.broadcast %331 : vector<64x1xf32> to vector<64x144xf32>
    %334 = arith.mulf %333, %332 : vector<64x144xf32>
    %335 = vector.extract_strided_slice %329 {offsets = [0, 0], sizes = [32, 144], strides = [1, 1]} : vector<64x144xf32> to vector<32x144xf32>
    %cst_166 = arith.constant dense<0.000000e+00> : vector<144xf32>
    %336 = vector.multi_reduction <add>, %335, %cst_166 [0] : vector<32x144xf32> to vector<144xf32>
    %337 = vector.shape_cast %336 : vector<144xf32> to vector<1x144xf32>
    %c0_167 = arith.constant 0 : index
    %c0_168 = arith.constant 0 : index
    %338 = vector.load %arg25[%c0_167, %c0_168] : memref<2x144xf32, #tpu.memory_space<vmem>>, vector<1x144xf32>
    tpu.vector_store %arg25[%c0_167, %c0_168], %337 {strides = array<i32>} : memref<2x144xf32, #tpu.memory_space<vmem>>, vector<1x144xf32>,
    %339 = vector.extract_strided_slice %334 {offsets = [0, 0], sizes = [32, 144], strides = [1, 1]} : vector<64x144xf32> to vector<32x144xf32>
    %cst_169 = arith.constant dense<0.000000e+00> : vector<144xf32>
    %340 = vector.multi_reduction <add>, %339, %cst_169 [0] : vector<32x144xf32> to vector<144xf32>
    %341 = vector.shape_cast %340 : vector<144xf32> to vector<1x144xf32>
    %c0_170 = arith.constant 0 : index
    %c0_171 = arith.constant 0 : index
    %342 = vector.load %arg26[%c0_170, %c0_171] : memref<2x144xf32, #tpu.memory_space<vmem>>, vector<1x144xf32>
    tpu.vector_store %arg26[%c0_170, %c0_171], %341 {strides = array<i32>} : memref<2x144xf32, #tpu.memory_space<vmem>>, vector<1x144xf32>,
    %343 = vector.extract_strided_slice %329 {offsets = [32, 0], sizes = [32, 144], strides = [1, 1]} : vector<64x144xf32> to vector<32x144xf32>
    %cst_172 = arith.constant dense<0.000000e+00> : vector<144xf32>
    %344 = vector.multi_reduction <add>, %343, %cst_172 [0] : vector<32x144xf32> to vector<144xf32>
    %345 = vector.shape_cast %344 : vector<144xf32> to vector<1x144xf32>
    %c1_173 = arith.constant 1 : index
    %c0_174 = arith.constant 0 : index
    %346 = vector.load %arg25[%c1_173, %c0_174] : memref<2x144xf32, #tpu.memory_space<vmem>>, vector<1x144xf32>
    tpu.vector_store %arg25[%c1_173, %c0_174], %345 {strides = array<i32>} : memref<2x144xf32, #tpu.memory_space<vmem>>, vector<1x144xf32>,
    %347 = vector.extract_strided_slice %334 {offsets = [32, 0], sizes = [32, 144], strides = [1, 1]} : vector<64x144xf32> to vector<32x144xf32>
    %cst_175 = arith.constant dense<0.000000e+00> : vector<144xf32>
    %348 = vector.multi_reduction <add>, %347, %cst_175 [0] : vector<32x144xf32> to vector<144xf32>
    %349 = vector.shape_cast %348 : vector<144xf32> to vector<1x144xf32>
    %c1_176 = arith.constant 1 : index
    %c0_177 = arith.constant 0 : index
    %350 = vector.load %arg26[%c1_176, %c0_177] : memref<2x144xf32, #tpu.memory_space<vmem>>, vector<1x144xf32>
    tpu.vector_store %arg26[%c1_176, %c0_177], %349 {strides = array<i32>} : memref<2x144xf32, #tpu.memory_space<vmem>>, vector<1x144xf32>,
    return
  }
  func.func @transform_0(%arg0: i32) -> (i32, i32) {
    %c0_i32 = arith.constant 0 : i32
    %c0_i32_0 = arith.constant 0 : i32
    %c0_i32_1 = arith.constant 0 : i32
    return %c0_i32, %c0_i32_0 : i32, i32
  }
  func.func @transform_1(%arg0: i32) -> (i32, i32) {
    %c0_i32 = arith.constant 0 : i32
    %c0_i32_0 = arith.constant 0 : i32
    %c0_i32_1 = arith.constant 0 : i32
    return %c0_i32, %c0_i32_0 : i32, i32
  }
  func.func @transform_2(%arg0: i32) -> (i32, i32) {
    %c0_i32 = arith.constant 0 : i32
    %c0_i32_0 = arith.constant 0 : i32
    %c0_i32_1 = arith.constant 0 : i32
    return %c0_i32, %c0_i32_0 : i32, i32
  }
  func.func @transform_3(%arg0: i32) -> (i32, i32) {
    %c0_i32 = arith.constant 0 : i32
    %c0_i32_0 = arith.constant 0 : i32
    %c0_i32_1 = arith.constant 0 : i32
    return %c0_i32, %c0_i32_0 : i32, i32
  }
  func.func @transform_4(%arg0: i32) -> (i32, i32, i32) {
    %c0_i32 = arith.constant 0 : i32
    %c0_i32_0 = arith.constant 0 : i32
    %c0_i32_1 = arith.constant 0 : i32
    %c0_i32_2 = arith.constant 0 : i32
    return %c0_i32, %c0_i32_0, %c0_i32_1 : i32, i32, i32
  }
  func.func @transform_5(%arg0: i32) -> (i32, i32, i32) {
    %c0_i32 = arith.constant 0 : i32
    %c0_i32_0 = arith.constant 0 : i32
    %c0_i32_1 = arith.constant 0 : i32
    %c0_i32_2 = arith.constant 0 : i32
    return %c0_i32, %c0_i32_0, %c0_i32_1 : i32, i32, i32
  }
  func.func @transform_6(%arg0: i32) -> (i32, i32, i32) {
    %c0_i32 = arith.constant 0 : i32
    %c0_i32_0 = arith.constant 0 : i32
    %c0_i32_1 = arith.constant 0 : i32
    %c0_i32_2 = arith.constant 0 : i32
    return %c0_i32, %c0_i32_0, %c0_i32_1 : i32, i32, i32
  }
  func.func @transform_7(%arg0: i32) -> (i32, i32, i32) {
    %c0_i32 = arith.constant 0 : i32
    %c0_i32_0 = arith.constant 0 : i32
    %c0_i32_1 = arith.constant 0 : i32
    %c0_i32_2 = arith.constant 0 : i32
    return %c0_i32, %c0_i32_0, %c0_i32_1 : i32, i32, i32
  }
  func.func @transform_8(%arg0: i32) -> (i32, i32, i32) {
    %c0_i32 = arith.constant 0 : i32
    %c0_i32_0 = arith.constant 0 : i32
    %c0_i32_1 = arith.constant 0 : i32
    %c0_i32_2 = arith.constant 0 : i32
    return %c0_i32, %c0_i32_0, %c0_i32_1 : i32, i32, i32
  }
  func.func @transform_9(%arg0: i32) -> (i32, i32, i32) {
    %c0_i32 = arith.constant 0 : i32
    %c0_i32_0 = arith.constant 0 : i32
    %c0_i32_1 = arith.constant 0 : i32
    %c0_i32_2 = arith.constant 0 : i32
    return %c0_i32, %c0_i32_0, %c0_i32_1 : i32, i32, i32
  }
  func.func @transform_10(%arg0: i32) -> (i32, i32, i32) {
    %c0_i32 = arith.constant 0 : i32
    %c0_i32_0 = arith.constant 0 : i32
    %c0_i32_1 = arith.constant 0 : i32
    %c0_i32_2 = arith.constant 0 : i32
    return %c0_i32, %c0_i32_0, %c0_i32_1 : i32, i32, i32
  }
  func.func @transform_11(%arg0: i32) -> (i32, i32, i32) {
    %c0_i32 = arith.constant 0 : i32
    %c0_i32_0 = arith.constant 0 : i32
    %c0_i32_1 = arith.constant 0 : i32
    %c0_i32_2 = arith.constant 0 : i32
    return %c0_i32, %c0_i32_0, %c0_i32_1 : i32, i32, i32
  }
  func.func @transform_12(%arg0: i32) -> (i32, i32, i32) {
    %c0_i32 = arith.constant 0 : i32
    %c0_i32_0 = arith.constant 0 : i32
    %c0_i32_1 = arith.constant 0 : i32
    %c0_i32_2 = arith.constant 0 : i32
    return %c0_i32, %c0_i32_0, %c0_i32_1 : i32, i32, i32
  }
  func.func @transform_13(%arg0: i32) -> (i32, i32, i32) {
    %c0_i32 = arith.constant 0 : i32
    %c0_i32_0 = arith.constant 0 : i32
    %c0_i32_1 = arith.constant 0 : i32
    %c0_i32_2 = arith.constant 0 : i32
    return %c0_i32, %c0_i32_0, %c0_i32_1 : i32, i32, i32
  }
  func.func @transform_14(%arg0: i32) -> (i32, i32, i32) {
    %c0_i32 = arith.constant 0 : i32
    %c0_i32_0 = arith.constant 0 : i32
    %c0_i32_1 = arith.constant 0 : i32
    %c0_i32_2 = arith.constant 0 : i32
    return %c0_i32, %c0_i32_0, %c0_i32_1 : i32, i32, i32
  }
  func.func @transform_15(%arg0: i32) -> (i32, i32, i32) {
    %c0_i32 = arith.constant 0 : i32
    %c0_i32_0 = arith.constant 0 : i32
    %c0_i32_1 = arith.constant 0 : i32
    %c0_i32_2 = arith.constant 0 : i32
    return %c0_i32, %c0_i32_0, %c0_i32_1 : i32, i32, i32
  }
  func.func @transform_16(%arg0: i32) -> (i32, i32) {
    %c0_i32 = arith.constant 0 : i32
    %c0_i32_0 = arith.constant 0 : i32
    %c0_i32_1 = arith.constant 0 : i32
    return %c0_i32, %c0_i32_0 : i32, i32
  }
  func.func @transform_17(%arg0: i32) -> (i32, i32) {
    %c0_i32 = arith.constant 0 : i32
    %c0_i32_0 = arith.constant 0 : i32
    %c0_i32_1 = arith.constant 0 : i32
    return %c0_i32, %c0_i32_0 : i32, i32
  }
  func.func @transform_18(%arg0: i32) -> (i32, i32) {
    %c0_i32 = arith.constant 0 : i32
    %c0_i32_0 = arith.constant 0 : i32
    %c0_i32_1 = arith.constant 0 : i32
    return %c0_i32, %c0_i32_0 : i32, i32
  }
  func.func @transform_19(%arg0: i32) -> (i32, i32) {
    %c0_i32 = arith.constant 0 : i32
    %c0_i32_0 = arith.constant 0 : i32
    %c0_i32_1 = arith.constant 0 : i32
    return %c0_i32, %c0_i32_0 : i32, i32
  }
  func.func @transform_20(%arg0: i32) -> (i32, i32) {
    %c0_i32 = arith.constant 0 : i32
    %c0_i32_0 = arith.constant 0 : i32
    %c0_i32_1 = arith.constant 0 : i32
    return %c0_i32, %c0_i32_0 : i32, i32
  }
  func.func @transform_21(%arg0: i32) -> (i32, i32) {
    %c0_i32 = arith.constant 0 : i32
    %c0_i32_0 = arith.constant 0 : i32
    %c0_i32_1 = arith.constant 0 : i32
    return %c0_i32, %c0_i32_0 : i32, i32
  }
  func.func @transform_22(%arg0: i32) -> (i32, i32) {
    %c0_i32 = arith.constant 0 : i32
    %c0_i32_0 = arith.constant 0 : i32
    %c0_i32_1 = arith.constant 0 : i32
    return %c0_i32, %c0_i32_0 : i32, i32
  }
  func.func @transform_23(%arg0: i32) -> (i32, i32) {
    %c0_i32 = arith.constant 0 : i32
    %c0_i32_0 = arith.constant 0 : i32
    %c0_i32_1 = arith.constant 0 : i32
    return %c0_i32, %c0_i32_0 : i32, i32
  }
  func.func @transform_24(%arg0: i32) -> (i32, i32) {
    %c0_i32 = arith.constant 0 : i32
    %c0_i32_0 = arith.constant 0 : i32
    %c0_i32_1 = arith.constant 0 : i32
    return %c0_i32, %c0_i32_0 : i32, i32
  }
  func.func @transform_25(%arg0: i32) -> (i32, i32) {
    %c0_i32 = arith.constant 0 : i32
    %c0_i32_0 = arith.constant 0 : i32
    %c0_i32_1 = arith.constant 0 : i32
    return %c0_i32, %c0_i32_0 : i32, i32
  }
}

module attributes {stable_mosaic.version = 11 : i64} {
  func.func @conv_block_kernel(%arg0: i32, %arg1: memref<9x32x16xf32, #tpu.memory_space<vmem>>, %arg2: memref<32x16xf32, #tpu.memory_space<vmem>>, %arg3: memref<4x9xf32, #tpu.memory_space<smem>>, %arg4: memref<5x4xf32, #tpu.memory_space<smem>>, %arg5: memref<32x16xf32, #tpu.memory_space<vmem>>) attributes {dimension_semantics = [#tpu.dimension_semantics<arbitrary>], iteration_bounds = array<i64: 1>, scalar_prefetch = 0 : i64, scratch_operands = 0 : i64, tpu.core_type = #tpu.core_type<tc>, window_params = [{pipeline_mode = #tpu.pipeline_mode<synchronous>, transform_indices = @transform_0, window_bounds = array<i64: 9, 32, 16>}, {pipeline_mode = #tpu.pipeline_mode<synchronous>, transform_indices = @transform_1, window_bounds = array<i64: 32, 16>}, {transform_indices = @transform_2, window_bounds = array<i64: 4, 9>}, {transform_indices = @transform_3, window_bounds = array<i64: 5, 4>}, {pipeline_mode = #tpu.pipeline_mode<synchronous>, transform_indices = @transform_4, window_bounds = array<i64: 32, 16>}]} {
    %c0 = arith.constant 0 : index
    %c0_0 = arith.constant 0 : index
    %0 = vector.load %arg2[%c0, %c0_0] : memref<32x16xf32, #tpu.memory_space<vmem>>, vector<32x16xf32>
    %c4 = arith.constant 4 : index
    %c0_1 = arith.constant 0 : index
    %1 = memref.load %arg4[%c4, %c0_1] : memref<5x4xf32, #tpu.memory_space<smem>>
    %2 = vector.broadcast %1 : f32 to vector<32x16xf32>
    %3 = arith.addf %0, %2 : vector<32x16xf32>
    %c0_2 = arith.constant 0 : index
    %c0_3 = arith.constant 0 : index
    %4 = memref.load %arg3[%c0_2, %c0_3] : memref<4x9xf32, #tpu.memory_space<smem>>
    %c0_4 = arith.constant 0 : index
    %c0_5 = arith.constant 0 : index
    %c0_6 = arith.constant 0 : index
    %5 = vector.load %arg1[%c0_4, %c0_5, %c0_6] : memref<9x32x16xf32, #tpu.memory_space<vmem>>, vector<1x32x16xf32>
    %6 = vector.shape_cast %5 : vector<1x32x16xf32> to vector<32x16xf32>
    %7 = vector.broadcast %4 : f32 to vector<32x16xf32>
    %8 = arith.mulf %7, %6 : vector<32x16xf32>
    %c0_7 = arith.constant 0 : index
    %c1 = arith.constant 1 : index
    %9 = memref.load %arg3[%c0_7, %c1] : memref<4x9xf32, #tpu.memory_space<smem>>
    %c1_8 = arith.constant 1 : index
    %c0_9 = arith.constant 0 : index
    %c0_10 = arith.constant 0 : index
    %10 = vector.load %arg1[%c1_8, %c0_9, %c0_10] : memref<9x32x16xf32, #tpu.memory_space<vmem>>, vector<1x32x16xf32>
    %11 = vector.shape_cast %10 : vector<1x32x16xf32> to vector<32x16xf32>
    %12 = vector.broadcast %9 : f32 to vector<32x16xf32>
    %13 = arith.mulf %12, %11 : vector<32x16xf32>
    %14 = arith.addf %8, %13 : vector<32x16xf32>
    %c0_11 = arith.constant 0 : index
    %c2 = arith.constant 2 : index
    %15 = memref.load %arg3[%c0_11, %c2] : memref<4x9xf32, #tpu.memory_space<smem>>
    %c2_12 = arith.constant 2 : index
    %c0_13 = arith.constant 0 : index
    %c0_14 = arith.constant 0 : index
    %16 = vector.load %arg1[%c2_12, %c0_13, %c0_14] : memref<9x32x16xf32, #tpu.memory_space<vmem>>, vector<1x32x16xf32>
    %17 = vector.shape_cast %16 : vector<1x32x16xf32> to vector<32x16xf32>
    %18 = vector.broadcast %15 : f32 to vector<32x16xf32>
    %19 = arith.mulf %18, %17 : vector<32x16xf32>
    %20 = arith.addf %14, %19 : vector<32x16xf32>
    %c0_15 = arith.constant 0 : index
    %c3 = arith.constant 3 : index
    %21 = memref.load %arg3[%c0_15, %c3] : memref<4x9xf32, #tpu.memory_space<smem>>
    %c3_16 = arith.constant 3 : index
    %c0_17 = arith.constant 0 : index
    %c0_18 = arith.constant 0 : index
    %22 = vector.load %arg1[%c3_16, %c0_17, %c0_18] : memref<9x32x16xf32, #tpu.memory_space<vmem>>, vector<1x32x16xf32>
    %23 = vector.shape_cast %22 : vector<1x32x16xf32> to vector<32x16xf32>
    %24 = vector.broadcast %21 : f32 to vector<32x16xf32>
    %25 = arith.mulf %24, %23 : vector<32x16xf32>
    %26 = arith.addf %20, %25 : vector<32x16xf32>
    %c0_19 = arith.constant 0 : index
    %c4_20 = arith.constant 4 : index
    %27 = memref.load %arg3[%c0_19, %c4_20] : memref<4x9xf32, #tpu.memory_space<smem>>
    %c4_21 = arith.constant 4 : index
    %c0_22 = arith.constant 0 : index
    %c0_23 = arith.constant 0 : index
    %28 = vector.load %arg1[%c4_21, %c0_22, %c0_23] : memref<9x32x16xf32, #tpu.memory_space<vmem>>, vector<1x32x16xf32>
    %29 = vector.shape_cast %28 : vector<1x32x16xf32> to vector<32x16xf32>
    %30 = vector.broadcast %27 : f32 to vector<32x16xf32>
    %31 = arith.mulf %30, %29 : vector<32x16xf32>
    %32 = arith.addf %26, %31 : vector<32x16xf32>
    %c0_24 = arith.constant 0 : index
    %c5 = arith.constant 5 : index
    %33 = memref.load %arg3[%c0_24, %c5] : memref<4x9xf32, #tpu.memory_space<smem>>
    %c5_25 = arith.constant 5 : index
    %c0_26 = arith.constant 0 : index
    %c0_27 = arith.constant 0 : index
    %34 = vector.load %arg1[%c5_25, %c0_26, %c0_27] : memref<9x32x16xf32, #tpu.memory_space<vmem>>, vector<1x32x16xf32>
    %35 = vector.shape_cast %34 : vector<1x32x16xf32> to vector<32x16xf32>
    %36 = vector.broadcast %33 : f32 to vector<32x16xf32>
    %37 = arith.mulf %36, %35 : vector<32x16xf32>
    %38 = arith.addf %32, %37 : vector<32x16xf32>
    %c0_28 = arith.constant 0 : index
    %c6 = arith.constant 6 : index
    %39 = memref.load %arg3[%c0_28, %c6] : memref<4x9xf32, #tpu.memory_space<smem>>
    %c6_29 = arith.constant 6 : index
    %c0_30 = arith.constant 0 : index
    %c0_31 = arith.constant 0 : index
    %40 = vector.load %arg1[%c6_29, %c0_30, %c0_31] : memref<9x32x16xf32, #tpu.memory_space<vmem>>, vector<1x32x16xf32>
    %41 = vector.shape_cast %40 : vector<1x32x16xf32> to vector<32x16xf32>
    %42 = vector.broadcast %39 : f32 to vector<32x16xf32>
    %43 = arith.mulf %42, %41 : vector<32x16xf32>
    %44 = arith.addf %38, %43 : vector<32x16xf32>
    %c0_32 = arith.constant 0 : index
    %c7 = arith.constant 7 : index
    %45 = memref.load %arg3[%c0_32, %c7] : memref<4x9xf32, #tpu.memory_space<smem>>
    %c7_33 = arith.constant 7 : index
    %c0_34 = arith.constant 0 : index
    %c0_35 = arith.constant 0 : index
    %46 = vector.load %arg1[%c7_33, %c0_34, %c0_35] : memref<9x32x16xf32, #tpu.memory_space<vmem>>, vector<1x32x16xf32>
    %47 = vector.shape_cast %46 : vector<1x32x16xf32> to vector<32x16xf32>
    %48 = vector.broadcast %45 : f32 to vector<32x16xf32>
    %49 = arith.mulf %48, %47 : vector<32x16xf32>
    %50 = arith.addf %44, %49 : vector<32x16xf32>
    %c0_36 = arith.constant 0 : index
    %c8 = arith.constant 8 : index
    %51 = memref.load %arg3[%c0_36, %c8] : memref<4x9xf32, #tpu.memory_space<smem>>
    %c8_37 = arith.constant 8 : index
    %c0_38 = arith.constant 0 : index
    %c0_39 = arith.constant 0 : index
    %52 = vector.load %arg1[%c8_37, %c0_38, %c0_39] : memref<9x32x16xf32, #tpu.memory_space<vmem>>, vector<1x32x16xf32>
    %53 = vector.shape_cast %52 : vector<1x32x16xf32> to vector<32x16xf32>
    %54 = vector.broadcast %51 : f32 to vector<32x16xf32>
    %55 = arith.mulf %54, %53 : vector<32x16xf32>
    %56 = arith.addf %50, %55 : vector<32x16xf32>
    %c0_40 = arith.constant 0 : index
    %c0_41 = arith.constant 0 : index
    %57 = memref.load %arg4[%c0_40, %c0_41] : memref<5x4xf32, #tpu.memory_space<smem>>
    %58 = vector.broadcast %57 : f32 to vector<32x16xf32>
    %59 = arith.addf %56, %58 : vector<32x16xf32>
    %cst = arith.constant 0.000000e+00 : f32
    %60 = vector.broadcast %cst : f32 to vector<32x16xf32>
    %61 = arith.maximumf %59, %60 : vector<32x16xf32>
    %62 = vector.shape_cast %61 : vector<32x16xf32> to vector<1x32x16xf32>
    %cst_42 = arith.constant dense<0.000000e+00> : vector<1xf32>
    %63 = vector.multi_reduction <add>, %62, %cst_42 [1, 2] : vector<1x32x16xf32> to vector<1xf32>
    %64 = vector.shape_cast %63 : vector<1xf32> to vector<1x1x1xf32>
    %65 = vector.extract %64[0, 0, 0] : f32 from vector<1x1x1xf32>
    %cst_43 = arith.constant 0.001953125 : f32
    %66 = arith.mulf %65, %cst_43 : f32
    %67 = arith.mulf %61, %61 : vector<32x16xf32>
    %68 = vector.shape_cast %67 : vector<32x16xf32> to vector<1x32x16xf32>
    %cst_44 = arith.constant dense<0.000000e+00> : vector<1xf32>
    %69 = vector.multi_reduction <add>, %68, %cst_44 [1, 2] : vector<1x32x16xf32> to vector<1xf32>
    %70 = vector.shape_cast %69 : vector<1xf32> to vector<1x1x1xf32>
    %71 = vector.extract %70[0, 0, 0] : f32 from vector<1x1x1xf32>
    %cst_45 = arith.constant 0.001953125 : f32
    %72 = arith.mulf %71, %cst_45 : f32
    %73 = arith.mulf %66, %66 : f32
    %74 = arith.subf %72, %73 : f32
    %75 = vector.broadcast %66 : f32 to vector<32x16xf32>
    %76 = arith.subf %61, %75 : vector<32x16xf32>
    %cst_46 = arith.constant 9.99999974E-6 : f32
    %77 = arith.addf %74, %cst_46 : f32
    %78 = math.rsqrt %77 : f32
    %79 = vector.broadcast %78 : f32 to vector<32x16xf32>
    %80 = arith.mulf %76, %79 : vector<32x16xf32>
    %c1_47 = arith.constant 1 : index
    %c0_48 = arith.constant 0 : index
    %81 = memref.load %arg4[%c1_47, %c0_48] : memref<5x4xf32, #tpu.memory_space<smem>>
    %82 = vector.broadcast %81 : f32 to vector<32x16xf32>
    %83 = arith.mulf %80, %82 : vector<32x16xf32>
    %c2_49 = arith.constant 2 : index
    %c0_50 = arith.constant 0 : index
    %84 = memref.load %arg4[%c2_49, %c0_50] : memref<5x4xf32, #tpu.memory_space<smem>>
    %85 = vector.broadcast %84 : f32 to vector<32x16xf32>
    %86 = arith.addf %83, %85 : vector<32x16xf32>
    %c3_51 = arith.constant 3 : index
    %c0_52 = arith.constant 0 : index
    %87 = memref.load %arg4[%c3_51, %c0_52] : memref<5x4xf32, #tpu.memory_space<smem>>
    %88 = vector.broadcast %87 : f32 to vector<32x16xf32>
    %89 = arith.mulf %88, %86 : vector<32x16xf32>
    %90 = arith.addf %3, %89 : vector<32x16xf32>
    %c1_53 = arith.constant 1 : index
    %c0_54 = arith.constant 0 : index
    %91 = memref.load %arg3[%c1_53, %c0_54] : memref<4x9xf32, #tpu.memory_space<smem>>
    %c0_55 = arith.constant 0 : index
    %c0_56 = arith.constant 0 : index
    %c0_57 = arith.constant 0 : index
    %92 = vector.load %arg1[%c0_55, %c0_56, %c0_57] : memref<9x32x16xf32, #tpu.memory_space<vmem>>, vector<1x32x16xf32>
    %93 = vector.shape_cast %92 : vector<1x32x16xf32> to vector<32x16xf32>
    %94 = vector.broadcast %91 : f32 to vector<32x16xf32>
    %95 = arith.mulf %94, %93 : vector<32x16xf32>
    %c1_58 = arith.constant 1 : index
    %c1_59 = arith.constant 1 : index
    %96 = memref.load %arg3[%c1_58, %c1_59] : memref<4x9xf32, #tpu.memory_space<smem>>
    %c1_60 = arith.constant 1 : index
    %c0_61 = arith.constant 0 : index
    %c0_62 = arith.constant 0 : index
    %97 = vector.load %arg1[%c1_60, %c0_61, %c0_62] : memref<9x32x16xf32, #tpu.memory_space<vmem>>, vector<1x32x16xf32>
    %98 = vector.shape_cast %97 : vector<1x32x16xf32> to vector<32x16xf32>
    %99 = vector.broadcast %96 : f32 to vector<32x16xf32>
    %100 = arith.mulf %99, %98 : vector<32x16xf32>
    %101 = arith.addf %95, %100 : vector<32x16xf32>
    %c1_63 = arith.constant 1 : index
    %c2_64 = arith.constant 2 : index
    %102 = memref.load %arg3[%c1_63, %c2_64] : memref<4x9xf32, #tpu.memory_space<smem>>
    %c2_65 = arith.constant 2 : index
    %c0_66 = arith.constant 0 : index
    %c0_67 = arith.constant 0 : index
    %103 = vector.load %arg1[%c2_65, %c0_66, %c0_67] : memref<9x32x16xf32, #tpu.memory_space<vmem>>, vector<1x32x16xf32>
    %104 = vector.shape_cast %103 : vector<1x32x16xf32> to vector<32x16xf32>
    %105 = vector.broadcast %102 : f32 to vector<32x16xf32>
    %106 = arith.mulf %105, %104 : vector<32x16xf32>
    %107 = arith.addf %101, %106 : vector<32x16xf32>
    %c1_68 = arith.constant 1 : index
    %c3_69 = arith.constant 3 : index
    %108 = memref.load %arg3[%c1_68, %c3_69] : memref<4x9xf32, #tpu.memory_space<smem>>
    %c3_70 = arith.constant 3 : index
    %c0_71 = arith.constant 0 : index
    %c0_72 = arith.constant 0 : index
    %109 = vector.load %arg1[%c3_70, %c0_71, %c0_72] : memref<9x32x16xf32, #tpu.memory_space<vmem>>, vector<1x32x16xf32>
    %110 = vector.shape_cast %109 : vector<1x32x16xf32> to vector<32x16xf32>
    %111 = vector.broadcast %108 : f32 to vector<32x16xf32>
    %112 = arith.mulf %111, %110 : vector<32x16xf32>
    %113 = arith.addf %107, %112 : vector<32x16xf32>
    %c1_73 = arith.constant 1 : index
    %c4_74 = arith.constant 4 : index
    %114 = memref.load %arg3[%c1_73, %c4_74] : memref<4x9xf32, #tpu.memory_space<smem>>
    %c4_75 = arith.constant 4 : index
    %c0_76 = arith.constant 0 : index
    %c0_77 = arith.constant 0 : index
    %115 = vector.load %arg1[%c4_75, %c0_76, %c0_77] : memref<9x32x16xf32, #tpu.memory_space<vmem>>, vector<1x32x16xf32>
    %116 = vector.shape_cast %115 : vector<1x32x16xf32> to vector<32x16xf32>
    %117 = vector.broadcast %114 : f32 to vector<32x16xf32>
    %118 = arith.mulf %117, %116 : vector<32x16xf32>
    %119 = arith.addf %113, %118 : vector<32x16xf32>
    %c1_78 = arith.constant 1 : index
    %c5_79 = arith.constant 5 : index
    %120 = memref.load %arg3[%c1_78, %c5_79] : memref<4x9xf32, #tpu.memory_space<smem>>
    %c5_80 = arith.constant 5 : index
    %c0_81 = arith.constant 0 : index
    %c0_82 = arith.constant 0 : index
    %121 = vector.load %arg1[%c5_80, %c0_81, %c0_82] : memref<9x32x16xf32, #tpu.memory_space<vmem>>, vector<1x32x16xf32>
    %122 = vector.shape_cast %121 : vector<1x32x16xf32> to vector<32x16xf32>
    %123 = vector.broadcast %120 : f32 to vector<32x16xf32>
    %124 = arith.mulf %123, %122 : vector<32x16xf32>
    %125 = arith.addf %119, %124 : vector<32x16xf32>
    %c1_83 = arith.constant 1 : index
    %c6_84 = arith.constant 6 : index
    %126 = memref.load %arg3[%c1_83, %c6_84] : memref<4x9xf32, #tpu.memory_space<smem>>
    %c6_85 = arith.constant 6 : index
    %c0_86 = arith.constant 0 : index
    %c0_87 = arith.constant 0 : index
    %127 = vector.load %arg1[%c6_85, %c0_86, %c0_87] : memref<9x32x16xf32, #tpu.memory_space<vmem>>, vector<1x32x16xf32>
    %128 = vector.shape_cast %127 : vector<1x32x16xf32> to vector<32x16xf32>
    %129 = vector.broadcast %126 : f32 to vector<32x16xf32>
    %130 = arith.mulf %129, %128 : vector<32x16xf32>
    %131 = arith.addf %125, %130 : vector<32x16xf32>
    %c1_88 = arith.constant 1 : index
    %c7_89 = arith.constant 7 : index
    %132 = memref.load %arg3[%c1_88, %c7_89] : memref<4x9xf32, #tpu.memory_space<smem>>
    %c7_90 = arith.constant 7 : index
    %c0_91 = arith.constant 0 : index
    %c0_92 = arith.constant 0 : index
    %133 = vector.load %arg1[%c7_90, %c0_91, %c0_92] : memref<9x32x16xf32, #tpu.memory_space<vmem>>, vector<1x32x16xf32>
    %134 = vector.shape_cast %133 : vector<1x32x16xf32> to vector<32x16xf32>
    %135 = vector.broadcast %132 : f32 to vector<32x16xf32>
    %136 = arith.mulf %135, %134 : vector<32x16xf32>
    %137 = arith.addf %131, %136 : vector<32x16xf32>
    %c1_93 = arith.constant 1 : index
    %c8_94 = arith.constant 8 : index
    %138 = memref.load %arg3[%c1_93, %c8_94] : memref<4x9xf32, #tpu.memory_space<smem>>
    %c8_95 = arith.constant 8 : index
    %c0_96 = arith.constant 0 : index
    %c0_97 = arith.constant 0 : index
    %139 = vector.load %arg1[%c8_95, %c0_96, %c0_97] : memref<9x32x16xf32, #tpu.memory_space<vmem>>, vector<1x32x16xf32>
    %140 = vector.shape_cast %139 : vector<1x32x16xf32> to vector<32x16xf32>
    %141 = vector.broadcast %138 : f32 to vector<32x16xf32>
    %142 = arith.mulf %141, %140 : vector<32x16xf32>
    %143 = arith.addf %137, %142 : vector<32x16xf32>
    %c0_98 = arith.constant 0 : index
    %c1_99 = arith.constant 1 : index
    %144 = memref.load %arg4[%c0_98, %c1_99] : memref<5x4xf32, #tpu.memory_space<smem>>
    %145 = vector.broadcast %144 : f32 to vector<32x16xf32>
    %146 = arith.addf %143, %145 : vector<32x16xf32>
    %cst_100 = arith.constant 0.000000e+00 : f32
    %147 = vector.broadcast %cst_100 : f32 to vector<32x16xf32>
    %148 = arith.maximumf %146, %147 : vector<32x16xf32>
    %149 = vector.shape_cast %148 : vector<32x16xf32> to vector<1x32x16xf32>
    %cst_101 = arith.constant dense<0.000000e+00> : vector<1xf32>
    %150 = vector.multi_reduction <add>, %149, %cst_101 [1, 2] : vector<1x32x16xf32> to vector<1xf32>
    %151 = vector.shape_cast %150 : vector<1xf32> to vector<1x1x1xf32>
    %152 = vector.extract %151[0, 0, 0] : f32 from vector<1x1x1xf32>
    %cst_102 = arith.constant 0.001953125 : f32
    %153 = arith.mulf %152, %cst_102 : f32
    %154 = arith.mulf %148, %148 : vector<32x16xf32>
    %155 = vector.shape_cast %154 : vector<32x16xf32> to vector<1x32x16xf32>
    %cst_103 = arith.constant dense<0.000000e+00> : vector<1xf32>
    %156 = vector.multi_reduction <add>, %155, %cst_103 [1, 2] : vector<1x32x16xf32> to vector<1xf32>
    %157 = vector.shape_cast %156 : vector<1xf32> to vector<1x1x1xf32>
    %158 = vector.extract %157[0, 0, 0] : f32 from vector<1x1x1xf32>
    %cst_104 = arith.constant 0.001953125 : f32
    %159 = arith.mulf %158, %cst_104 : f32
    %160 = arith.mulf %153, %153 : f32
    %161 = arith.subf %159, %160 : f32
    %162 = vector.broadcast %153 : f32 to vector<32x16xf32>
    %163 = arith.subf %148, %162 : vector<32x16xf32>
    %cst_105 = arith.constant 9.99999974E-6 : f32
    %164 = arith.addf %161, %cst_105 : f32
    %165 = math.rsqrt %164 : f32
    %166 = vector.broadcast %165 : f32 to vector<32x16xf32>
    %167 = arith.mulf %163, %166 : vector<32x16xf32>
    %c1_106 = arith.constant 1 : index
    %c1_107 = arith.constant 1 : index
    %168 = memref.load %arg4[%c1_106, %c1_107] : memref<5x4xf32, #tpu.memory_space<smem>>
    %169 = vector.broadcast %168 : f32 to vector<32x16xf32>
    %170 = arith.mulf %167, %169 : vector<32x16xf32>
    %c2_108 = arith.constant 2 : index
    %c1_109 = arith.constant 1 : index
    %171 = memref.load %arg4[%c2_108, %c1_109] : memref<5x4xf32, #tpu.memory_space<smem>>
    %172 = vector.broadcast %171 : f32 to vector<32x16xf32>
    %173 = arith.addf %170, %172 : vector<32x16xf32>
    %c3_110 = arith.constant 3 : index
    %c1_111 = arith.constant 1 : index
    %174 = memref.load %arg4[%c3_110, %c1_111] : memref<5x4xf32, #tpu.memory_space<smem>>
    %175 = vector.broadcast %174 : f32 to vector<32x16xf32>
    %176 = arith.mulf %175, %173 : vector<32x16xf32>
    %177 = arith.addf %90, %176 : vector<32x16xf32>
    %c2_112 = arith.constant 2 : index
    %c0_113 = arith.constant 0 : index
    %178 = memref.load %arg3[%c2_112, %c0_113] : memref<4x9xf32, #tpu.memory_space<smem>>
    %c0_114 = arith.constant 0 : index
    %c0_115 = arith.constant 0 : index
    %c0_116 = arith.constant 0 : index
    %179 = vector.load %arg1[%c0_114, %c0_115, %c0_116] : memref<9x32x16xf32, #tpu.memory_space<vmem>>, vector<1x32x16xf32>
    %180 = vector.shape_cast %179 : vector<1x32x16xf32> to vector<32x16xf32>
    %181 = vector.broadcast %178 : f32 to vector<32x16xf32>
    %182 = arith.mulf %181, %180 : vector<32x16xf32>
    %c2_117 = arith.constant 2 : index
    %c1_118 = arith.constant 1 : index
    %183 = memref.load %arg3[%c2_117, %c1_118] : memref<4x9xf32, #tpu.memory_space<smem>>
    %c1_119 = arith.constant 1 : index
    %c0_120 = arith.constant 0 : index
    %c0_121 = arith.constant 0 : index
    %184 = vector.load %arg1[%c1_119, %c0_120, %c0_121] : memref<9x32x16xf32, #tpu.memory_space<vmem>>, vector<1x32x16xf32>
    %185 = vector.shape_cast %184 : vector<1x32x16xf32> to vector<32x16xf32>
    %186 = vector.broadcast %183 : f32 to vector<32x16xf32>
    %187 = arith.mulf %186, %185 : vector<32x16xf32>
    %188 = arith.addf %182, %187 : vector<32x16xf32>
    %c2_122 = arith.constant 2 : index
    %c2_123 = arith.constant 2 : index
    %189 = memref.load %arg3[%c2_122, %c2_123] : memref<4x9xf32, #tpu.memory_space<smem>>
    %c2_124 = arith.constant 2 : index
    %c0_125 = arith.constant 0 : index
    %c0_126 = arith.constant 0 : index
    %190 = vector.load %arg1[%c2_124, %c0_125, %c0_126] : memref<9x32x16xf32, #tpu.memory_space<vmem>>, vector<1x32x16xf32>
    %191 = vector.shape_cast %190 : vector<1x32x16xf32> to vector<32x16xf32>
    %192 = vector.broadcast %189 : f32 to vector<32x16xf32>
    %193 = arith.mulf %192, %191 : vector<32x16xf32>
    %194 = arith.addf %188, %193 : vector<32x16xf32>
    %c2_127 = arith.constant 2 : index
    %c3_128 = arith.constant 3 : index
    %195 = memref.load %arg3[%c2_127, %c3_128] : memref<4x9xf32, #tpu.memory_space<smem>>
    %c3_129 = arith.constant 3 : index
    %c0_130 = arith.constant 0 : index
    %c0_131 = arith.constant 0 : index
    %196 = vector.load %arg1[%c3_129, %c0_130, %c0_131] : memref<9x32x16xf32, #tpu.memory_space<vmem>>, vector<1x32x16xf32>
    %197 = vector.shape_cast %196 : vector<1x32x16xf32> to vector<32x16xf32>
    %198 = vector.broadcast %195 : f32 to vector<32x16xf32>
    %199 = arith.mulf %198, %197 : vector<32x16xf32>
    %200 = arith.addf %194, %199 : vector<32x16xf32>
    %c2_132 = arith.constant 2 : index
    %c4_133 = arith.constant 4 : index
    %201 = memref.load %arg3[%c2_132, %c4_133] : memref<4x9xf32, #tpu.memory_space<smem>>
    %c4_134 = arith.constant 4 : index
    %c0_135 = arith.constant 0 : index
    %c0_136 = arith.constant 0 : index
    %202 = vector.load %arg1[%c4_134, %c0_135, %c0_136] : memref<9x32x16xf32, #tpu.memory_space<vmem>>, vector<1x32x16xf32>
    %203 = vector.shape_cast %202 : vector<1x32x16xf32> to vector<32x16xf32>
    %204 = vector.broadcast %201 : f32 to vector<32x16xf32>
    %205 = arith.mulf %204, %203 : vector<32x16xf32>
    %206 = arith.addf %200, %205 : vector<32x16xf32>
    %c2_137 = arith.constant 2 : index
    %c5_138 = arith.constant 5 : index
    %207 = memref.load %arg3[%c2_137, %c5_138] : memref<4x9xf32, #tpu.memory_space<smem>>
    %c5_139 = arith.constant 5 : index
    %c0_140 = arith.constant 0 : index
    %c0_141 = arith.constant 0 : index
    %208 = vector.load %arg1[%c5_139, %c0_140, %c0_141] : memref<9x32x16xf32, #tpu.memory_space<vmem>>, vector<1x32x16xf32>
    %209 = vector.shape_cast %208 : vector<1x32x16xf32> to vector<32x16xf32>
    %210 = vector.broadcast %207 : f32 to vector<32x16xf32>
    %211 = arith.mulf %210, %209 : vector<32x16xf32>
    %212 = arith.addf %206, %211 : vector<32x16xf32>
    %c2_142 = arith.constant 2 : index
    %c6_143 = arith.constant 6 : index
    %213 = memref.load %arg3[%c2_142, %c6_143] : memref<4x9xf32, #tpu.memory_space<smem>>
    %c6_144 = arith.constant 6 : index
    %c0_145 = arith.constant 0 : index
    %c0_146 = arith.constant 0 : index
    %214 = vector.load %arg1[%c6_144, %c0_145, %c0_146] : memref<9x32x16xf32, #tpu.memory_space<vmem>>, vector<1x32x16xf32>
    %215 = vector.shape_cast %214 : vector<1x32x16xf32> to vector<32x16xf32>
    %216 = vector.broadcast %213 : f32 to vector<32x16xf32>
    %217 = arith.mulf %216, %215 : vector<32x16xf32>
    %218 = arith.addf %212, %217 : vector<32x16xf32>
    %c2_147 = arith.constant 2 : index
    %c7_148 = arith.constant 7 : index
    %219 = memref.load %arg3[%c2_147, %c7_148] : memref<4x9xf32, #tpu.memory_space<smem>>
    %c7_149 = arith.constant 7 : index
    %c0_150 = arith.constant 0 : index
    %c0_151 = arith.constant 0 : index
    %220 = vector.load %arg1[%c7_149, %c0_150, %c0_151] : memref<9x32x16xf32, #tpu.memory_space<vmem>>, vector<1x32x16xf32>
    %221 = vector.shape_cast %220 : vector<1x32x16xf32> to vector<32x16xf32>
    %222 = vector.broadcast %219 : f32 to vector<32x16xf32>
    %223 = arith.mulf %222, %221 : vector<32x16xf32>
    %224 = arith.addf %218, %223 : vector<32x16xf32>
    %c2_152 = arith.constant 2 : index
    %c8_153 = arith.constant 8 : index
    %225 = memref.load %arg3[%c2_152, %c8_153] : memref<4x9xf32, #tpu.memory_space<smem>>
    %c8_154 = arith.constant 8 : index
    %c0_155 = arith.constant 0 : index
    %c0_156 = arith.constant 0 : index
    %226 = vector.load %arg1[%c8_154, %c0_155, %c0_156] : memref<9x32x16xf32, #tpu.memory_space<vmem>>, vector<1x32x16xf32>
    %227 = vector.shape_cast %226 : vector<1x32x16xf32> to vector<32x16xf32>
    %228 = vector.broadcast %225 : f32 to vector<32x16xf32>
    %229 = arith.mulf %228, %227 : vector<32x16xf32>
    %230 = arith.addf %224, %229 : vector<32x16xf32>
    %c0_157 = arith.constant 0 : index
    %c2_158 = arith.constant 2 : index
    %231 = memref.load %arg4[%c0_157, %c2_158] : memref<5x4xf32, #tpu.memory_space<smem>>
    %232 = vector.broadcast %231 : f32 to vector<32x16xf32>
    %233 = arith.addf %230, %232 : vector<32x16xf32>
    %cst_159 = arith.constant 0.000000e+00 : f32
    %234 = vector.broadcast %cst_159 : f32 to vector<32x16xf32>
    %235 = arith.maximumf %233, %234 : vector<32x16xf32>
    %236 = vector.shape_cast %235 : vector<32x16xf32> to vector<1x32x16xf32>
    %cst_160 = arith.constant dense<0.000000e+00> : vector<1xf32>
    %237 = vector.multi_reduction <add>, %236, %cst_160 [1, 2] : vector<1x32x16xf32> to vector<1xf32>
    %238 = vector.shape_cast %237 : vector<1xf32> to vector<1x1x1xf32>
    %239 = vector.extract %238[0, 0, 0] : f32 from vector<1x1x1xf32>
    %cst_161 = arith.constant 0.001953125 : f32
    %240 = arith.mulf %239, %cst_161 : f32
    %241 = arith.mulf %235, %235 : vector<32x16xf32>
    %242 = vector.shape_cast %241 : vector<32x16xf32> to vector<1x32x16xf32>
    %cst_162 = arith.constant dense<0.000000e+00> : vector<1xf32>
    %243 = vector.multi_reduction <add>, %242, %cst_162 [1, 2] : vector<1x32x16xf32> to vector<1xf32>
    %244 = vector.shape_cast %243 : vector<1xf32> to vector<1x1x1xf32>
    %245 = vector.extract %244[0, 0, 0] : f32 from vector<1x1x1xf32>
    %cst_163 = arith.constant 0.001953125 : f32
    %246 = arith.mulf %245, %cst_163 : f32
    %247 = arith.mulf %240, %240 : f32
    %248 = arith.subf %246, %247 : f32
    %249 = vector.broadcast %240 : f32 to vector<32x16xf32>
    %250 = arith.subf %235, %249 : vector<32x16xf32>
    %cst_164 = arith.constant 9.99999974E-6 : f32
    %251 = arith.addf %248, %cst_164 : f32
    %252 = math.rsqrt %251 : f32
    %253 = vector.broadcast %252 : f32 to vector<32x16xf32>
    %254 = arith.mulf %250, %253 : vector<32x16xf32>
    %c1_165 = arith.constant 1 : index
    %c2_166 = arith.constant 2 : index
    %255 = memref.load %arg4[%c1_165, %c2_166] : memref<5x4xf32, #tpu.memory_space<smem>>
    %256 = vector.broadcast %255 : f32 to vector<32x16xf32>
    %257 = arith.mulf %254, %256 : vector<32x16xf32>
    %c2_167 = arith.constant 2 : index
    %c2_168 = arith.constant 2 : index
    %258 = memref.load %arg4[%c2_167, %c2_168] : memref<5x4xf32, #tpu.memory_space<smem>>
    %259 = vector.broadcast %258 : f32 to vector<32x16xf32>
    %260 = arith.addf %257, %259 : vector<32x16xf32>
    %c3_169 = arith.constant 3 : index
    %c2_170 = arith.constant 2 : index
    %261 = memref.load %arg4[%c3_169, %c2_170] : memref<5x4xf32, #tpu.memory_space<smem>>
    %262 = vector.broadcast %261 : f32 to vector<32x16xf32>
    %263 = arith.mulf %262, %260 : vector<32x16xf32>
    %264 = arith.addf %177, %263 : vector<32x16xf32>
    %c3_171 = arith.constant 3 : index
    %c0_172 = arith.constant 0 : index
    %265 = memref.load %arg3[%c3_171, %c0_172] : memref<4x9xf32, #tpu.memory_space<smem>>
    %c0_173 = arith.constant 0 : index
    %c0_174 = arith.constant 0 : index
    %c0_175 = arith.constant 0 : index
    %266 = vector.load %arg1[%c0_173, %c0_174, %c0_175] : memref<9x32x16xf32, #tpu.memory_space<vmem>>, vector<1x32x16xf32>
    %267 = vector.shape_cast %266 : vector<1x32x16xf32> to vector<32x16xf32>
    %268 = vector.broadcast %265 : f32 to vector<32x16xf32>
    %269 = arith.mulf %268, %267 : vector<32x16xf32>
    %c3_176 = arith.constant 3 : index
    %c1_177 = arith.constant 1 : index
    %270 = memref.load %arg3[%c3_176, %c1_177] : memref<4x9xf32, #tpu.memory_space<smem>>
    %c1_178 = arith.constant 1 : index
    %c0_179 = arith.constant 0 : index
    %c0_180 = arith.constant 0 : index
    %271 = vector.load %arg1[%c1_178, %c0_179, %c0_180] : memref<9x32x16xf32, #tpu.memory_space<vmem>>, vector<1x32x16xf32>
    %272 = vector.shape_cast %271 : vector<1x32x16xf32> to vector<32x16xf32>
    %273 = vector.broadcast %270 : f32 to vector<32x16xf32>
    %274 = arith.mulf %273, %272 : vector<32x16xf32>
    %275 = arith.addf %269, %274 : vector<32x16xf32>
    %c3_181 = arith.constant 3 : index
    %c2_182 = arith.constant 2 : index
    %276 = memref.load %arg3[%c3_181, %c2_182] : memref<4x9xf32, #tpu.memory_space<smem>>
    %c2_183 = arith.constant 2 : index
    %c0_184 = arith.constant 0 : index
    %c0_185 = arith.constant 0 : index
    %277 = vector.load %arg1[%c2_183, %c0_184, %c0_185] : memref<9x32x16xf32, #tpu.memory_space<vmem>>, vector<1x32x16xf32>
    %278 = vector.shape_cast %277 : vector<1x32x16xf32> to vector<32x16xf32>
    %279 = vector.broadcast %276 : f32 to vector<32x16xf32>
    %280 = arith.mulf %279, %278 : vector<32x16xf32>
    %281 = arith.addf %275, %280 : vector<32x16xf32>
    %c3_186 = arith.constant 3 : index
    %c3_187 = arith.constant 3 : index
    %282 = memref.load %arg3[%c3_186, %c3_187] : memref<4x9xf32, #tpu.memory_space<smem>>
    %c3_188 = arith.constant 3 : index
    %c0_189 = arith.constant 0 : index
    %c0_190 = arith.constant 0 : index
    %283 = vector.load %arg1[%c3_188, %c0_189, %c0_190] : memref<9x32x16xf32, #tpu.memory_space<vmem>>, vector<1x32x16xf32>
    %284 = vector.shape_cast %283 : vector<1x32x16xf32> to vector<32x16xf32>
    %285 = vector.broadcast %282 : f32 to vector<32x16xf32>
    %286 = arith.mulf %285, %284 : vector<32x16xf32>
    %287 = arith.addf %281, %286 : vector<32x16xf32>
    %c3_191 = arith.constant 3 : index
    %c4_192 = arith.constant 4 : index
    %288 = memref.load %arg3[%c3_191, %c4_192] : memref<4x9xf32, #tpu.memory_space<smem>>
    %c4_193 = arith.constant 4 : index
    %c0_194 = arith.constant 0 : index
    %c0_195 = arith.constant 0 : index
    %289 = vector.load %arg1[%c4_193, %c0_194, %c0_195] : memref<9x32x16xf32, #tpu.memory_space<vmem>>, vector<1x32x16xf32>
    %290 = vector.shape_cast %289 : vector<1x32x16xf32> to vector<32x16xf32>
    %291 = vector.broadcast %288 : f32 to vector<32x16xf32>
    %292 = arith.mulf %291, %290 : vector<32x16xf32>
    %293 = arith.addf %287, %292 : vector<32x16xf32>
    %c3_196 = arith.constant 3 : index
    %c5_197 = arith.constant 5 : index
    %294 = memref.load %arg3[%c3_196, %c5_197] : memref<4x9xf32, #tpu.memory_space<smem>>
    %c5_198 = arith.constant 5 : index
    %c0_199 = arith.constant 0 : index
    %c0_200 = arith.constant 0 : index
    %295 = vector.load %arg1[%c5_198, %c0_199, %c0_200] : memref<9x32x16xf32, #tpu.memory_space<vmem>>, vector<1x32x16xf32>
    %296 = vector.shape_cast %295 : vector<1x32x16xf32> to vector<32x16xf32>
    %297 = vector.broadcast %294 : f32 to vector<32x16xf32>
    %298 = arith.mulf %297, %296 : vector<32x16xf32>
    %299 = arith.addf %293, %298 : vector<32x16xf32>
    %c3_201 = arith.constant 3 : index
    %c6_202 = arith.constant 6 : index
    %300 = memref.load %arg3[%c3_201, %c6_202] : memref<4x9xf32, #tpu.memory_space<smem>>
    %c6_203 = arith.constant 6 : index
    %c0_204 = arith.constant 0 : index
    %c0_205 = arith.constant 0 : index
    %301 = vector.load %arg1[%c6_203, %c0_204, %c0_205] : memref<9x32x16xf32, #tpu.memory_space<vmem>>, vector<1x32x16xf32>
    %302 = vector.shape_cast %301 : vector<1x32x16xf32> to vector<32x16xf32>
    %303 = vector.broadcast %300 : f32 to vector<32x16xf32>
    %304 = arith.mulf %303, %302 : vector<32x16xf32>
    %305 = arith.addf %299, %304 : vector<32x16xf32>
    %c3_206 = arith.constant 3 : index
    %c7_207 = arith.constant 7 : index
    %306 = memref.load %arg3[%c3_206, %c7_207] : memref<4x9xf32, #tpu.memory_space<smem>>
    %c7_208 = arith.constant 7 : index
    %c0_209 = arith.constant 0 : index
    %c0_210 = arith.constant 0 : index
    %307 = vector.load %arg1[%c7_208, %c0_209, %c0_210] : memref<9x32x16xf32, #tpu.memory_space<vmem>>, vector<1x32x16xf32>
    %308 = vector.shape_cast %307 : vector<1x32x16xf32> to vector<32x16xf32>
    %309 = vector.broadcast %306 : f32 to vector<32x16xf32>
    %310 = arith.mulf %309, %308 : vector<32x16xf32>
    %311 = arith.addf %305, %310 : vector<32x16xf32>
    %c3_211 = arith.constant 3 : index
    %c8_212 = arith.constant 8 : index
    %312 = memref.load %arg3[%c3_211, %c8_212] : memref<4x9xf32, #tpu.memory_space<smem>>
    %c8_213 = arith.constant 8 : index
    %c0_214 = arith.constant 0 : index
    %c0_215 = arith.constant 0 : index
    %313 = vector.load %arg1[%c8_213, %c0_214, %c0_215] : memref<9x32x16xf32, #tpu.memory_space<vmem>>, vector<1x32x16xf32>
    %314 = vector.shape_cast %313 : vector<1x32x16xf32> to vector<32x16xf32>
    %315 = vector.broadcast %312 : f32 to vector<32x16xf32>
    %316 = arith.mulf %315, %314 : vector<32x16xf32>
    %317 = arith.addf %311, %316 : vector<32x16xf32>
    %c0_216 = arith.constant 0 : index
    %c3_217 = arith.constant 3 : index
    %318 = memref.load %arg4[%c0_216, %c3_217] : memref<5x4xf32, #tpu.memory_space<smem>>
    %319 = vector.broadcast %318 : f32 to vector<32x16xf32>
    %320 = arith.addf %317, %319 : vector<32x16xf32>
    %cst_218 = arith.constant 0.000000e+00 : f32
    %321 = vector.broadcast %cst_218 : f32 to vector<32x16xf32>
    %322 = arith.maximumf %320, %321 : vector<32x16xf32>
    %323 = vector.shape_cast %322 : vector<32x16xf32> to vector<1x32x16xf32>
    %cst_219 = arith.constant dense<0.000000e+00> : vector<1xf32>
    %324 = vector.multi_reduction <add>, %323, %cst_219 [1, 2] : vector<1x32x16xf32> to vector<1xf32>
    %325 = vector.shape_cast %324 : vector<1xf32> to vector<1x1x1xf32>
    %326 = vector.extract %325[0, 0, 0] : f32 from vector<1x1x1xf32>
    %cst_220 = arith.constant 0.001953125 : f32
    %327 = arith.mulf %326, %cst_220 : f32
    %328 = arith.mulf %322, %322 : vector<32x16xf32>
    %329 = vector.shape_cast %328 : vector<32x16xf32> to vector<1x32x16xf32>
    %cst_221 = arith.constant dense<0.000000e+00> : vector<1xf32>
    %330 = vector.multi_reduction <add>, %329, %cst_221 [1, 2] : vector<1x32x16xf32> to vector<1xf32>
    %331 = vector.shape_cast %330 : vector<1xf32> to vector<1x1x1xf32>
    %332 = vector.extract %331[0, 0, 0] : f32 from vector<1x1x1xf32>
    %cst_222 = arith.constant 0.001953125 : f32
    %333 = arith.mulf %332, %cst_222 : f32
    %334 = arith.mulf %327, %327 : f32
    %335 = arith.subf %333, %334 : f32
    %336 = vector.broadcast %327 : f32 to vector<32x16xf32>
    %337 = arith.subf %322, %336 : vector<32x16xf32>
    %cst_223 = arith.constant 9.99999974E-6 : f32
    %338 = arith.addf %335, %cst_223 : f32
    %339 = math.rsqrt %338 : f32
    %340 = vector.broadcast %339 : f32 to vector<32x16xf32>
    %341 = arith.mulf %337, %340 : vector<32x16xf32>
    %c1_224 = arith.constant 1 : index
    %c3_225 = arith.constant 3 : index
    %342 = memref.load %arg4[%c1_224, %c3_225] : memref<5x4xf32, #tpu.memory_space<smem>>
    %343 = vector.broadcast %342 : f32 to vector<32x16xf32>
    %344 = arith.mulf %341, %343 : vector<32x16xf32>
    %c2_226 = arith.constant 2 : index
    %c3_227 = arith.constant 3 : index
    %345 = memref.load %arg4[%c2_226, %c3_227] : memref<5x4xf32, #tpu.memory_space<smem>>
    %346 = vector.broadcast %345 : f32 to vector<32x16xf32>
    %347 = arith.addf %344, %346 : vector<32x16xf32>
    %c3_228 = arith.constant 3 : index
    %c3_229 = arith.constant 3 : index
    %348 = memref.load %arg4[%c3_228, %c3_229] : memref<5x4xf32, #tpu.memory_space<smem>>
    %349 = vector.broadcast %348 : f32 to vector<32x16xf32>
    %350 = arith.mulf %349, %347 : vector<32x16xf32>
    %351 = arith.addf %264, %350 : vector<32x16xf32>
    %c0_230 = arith.constant 0 : index
    %c0_231 = arith.constant 0 : index
    %352 = vector.load %arg5[%c0_230, %c0_231] : memref<32x16xf32, #tpu.memory_space<vmem>>, vector<32x16xf32>
    tpu.vector_store %arg5[%c0_230, %c0_231], %351 {strides = array<i32>} : memref<32x16xf32, #tpu.memory_space<vmem>>, vector<32x16xf32>,
    return
  }
  func.func @transform_0(%arg0: i32) -> (i32, i32, i32) {
    %c0_i32 = arith.constant 0 : i32
    %c0_i32_0 = arith.constant 0 : i32
    %c0_i32_1 = arith.constant 0 : i32
    %c0_i32_2 = arith.constant 0 : i32
    return %c0_i32, %c0_i32_0, %c0_i32_1 : i32, i32, i32
  }
  func.func @transform_1(%arg0: i32) -> (i32, i32) {
    %c0_i32 = arith.constant 0 : i32
    %c0_i32_0 = arith.constant 0 : i32
    %c0_i32_1 = arith.constant 0 : i32
    return %c0_i32, %c0_i32_0 : i32, i32
  }
  func.func @transform_2(%arg0: i32) -> (i32, i32) {
    %c0_i32 = arith.constant 0 : i32
    %c0_i32_0 = arith.constant 0 : i32
    %c0_i32_1 = arith.constant 0 : i32
    return %c0_i32, %c0_i32_0 : i32, i32
  }
  func.func @transform_3(%arg0: i32) -> (i32, i32) {
    %c0_i32 = arith.constant 0 : i32
    %c0_i32_0 = arith.constant 0 : i32
    %c0_i32_1 = arith.constant 0 : i32
    return %c0_i32, %c0_i32_0 : i32, i32
  }
  func.func @transform_4(%arg0: i32) -> (i32, i32) {
    %c0_i32 = arith.constant 0 : i32
    %c0_i32_0 = arith.constant 0 : i32
    %c0_i32_1 = arith.constant 0 : i32
    return %c0_i32, %c0_i32_0 : i32, i32
  }
}

</mosaic_0001>

<llo_original>
// kernel: reverse.0
$region0: #{reverse.0}
  %s0 = inlined_call_operand.vmem [shape: f32[2,16,7], index: 0, kind: input, shape index: {}]
  %s1 = inlined_call_operand.vmem [shape: f32[2,16,7], index: 1, kind: output, shape index: {}]
  $region1: #{reverse.0} parent=0
    #allocation0 [shape = 'u8[16384]{0}', space=vmem, size = 0x4000, scoped, tag = 'operand span for operand 0']
    #allocation1 [shape = 'u8[8192]{0}', space=vmem, size = 0x2000, scoped, tag = 'operand span for operand 1']
    %s2 = scalar_lea.vmem [#allocation0], 8
    // Predicated region
    $region2: #{reverse.0} parent=1 // pred_check
      _
    $region3: #{reverse.0} parent=1 // pred_check_branch
      %4 = sbr.rel (0) target = $region5
    $region4: #{reverse.0} parent=1 // pred_region
      // Predicated region
      $region6: #{reverse.0} parent=4 // pred_check
        _
      $region7: #{reverse.0} parent=4 // pred_check_branch
        %6 = sbr.rel (0) target = $region9
      $region8: #{reverse.0} parent=4 // pred_region
        // Predicated region
        $region21: #{reverse.0} parent=8 // pred_check
          _
        $region22: #{reverse.0} parent=8 // pred_check_branch
          %24 = sbr.rel (0) target = $region24
        $region23: #{reverse.0} parent=8 // pred_region
          loop: start=0, step=1, limit=1
          $region25: #{reverse.0} parent=23 // loop_pre_header
            _
          $region26: #{reverse.0} parent=23 // loop_header
            %s26 = sphi 0, %s30
            %p27 = scmp.ge.s32.totalorder %s26, 1
            %s31 = sphi %s0, %s0
            %s32 = sphi %s2, %s2
          $region27: #{reverse.0} parent=23 // loop_header_branch
            %29 = sbr.rel (%p27) target = $region31
          $region28: #{reverse.0} parent=23 // loop_body
            %v33 = vld [vmem:[%s31] sm:$0xff]
            %34 = vst [vmem:[%s32] sm:$0xff] %v33
            %v35 = vld [vmem:[%s31 + $0x8] sm:$0xff]
            %36 = vst [vmem:[%s32 + $0x10] sm:$0xff] %v35
          $region29: #{reverse.0} parent=23 // loop_footer
            %s30 = sadd.s32 1, %s26
          $region30: #{reverse.0} parent=23 // loop_footer_branch
            %25 = sbr.rel target = $region26
          $region31: #{reverse.0} parent=23 // loop_exit
            _
        $region24: #{reverse.0} parent=8 // pred_fallthru
          _
        // Predicated region
        $region32: #{reverse.0} parent=8 // pred_check
          _
        $region33: #{reverse.0} parent=8 // pred_check_branch
          %38 = sbr.rel target = $region35
        $region34: #{reverse.0} parent=8 // pred_region
          _
        $region35: #{reverse.0} parent=8 // pred_fallthru
          _
      $region9: #{reverse.0} parent=4 // pred_fallthru
        _
      // Predicated region
      $region10: #{reverse.0} parent=4 // pred_check
        _
      $region11: #{reverse.0} parent=4 // pred_check_branch
        %8 = sbr.rel target = $region13
      $region12: #{reverse.0} parent=4 // pred_region
        %s10 = ssub.s32 256, 1
        loop: start=0, step=1, limit=1
        $region14: #{reverse.0} parent=12 // loop_pre_header
          _
        $region15: #{reverse.0} parent=12 // loop_header
          %s12 = sphi 0, %s16
          %p13 = scmp.ge.s32.totalorder %s12, 1
          %s17 = sphi %s0, %s0
          %s18 = sphi %s2, %s2
        $region16: #{reverse.0} parent=12 // loop_header_branch
          %15 = sbr.rel (%p13) target = $region20
        $region17: #{reverse.0} parent=12 // loop_body
          %v19 = vld [vmem:[%s17] sm:%s10]
          %20 = vst [vmem:[%s18] sm:%s10] %v19
          %v21 = vld [vmem:[%s17 + $0x8] sm:%s10]
          %22 = vst [vmem:[%s18 + $0x10] sm:%s10] %v21
        $region18: #{reverse.0} parent=12 // loop_footer
          %s16 = sadd.s32 1, %s12
        $region19: #{reverse.0} parent=12 // loop_footer_branch
          %11 = sbr.rel target = $region15
        $region20: #{reverse.0} parent=12 // loop_exit
          _
      $region13: #{reverse.0} parent=4 // pred_fallthru
        _
    $region5: #{reverse.0} parent=1 // pred_fallthru
      _
    %39 = vnop
    %s40 = scalar_lea.vmem [#allocation0], 7
    %v41 = vld [vmem:[%s40] ss:$-1 sm:$0xff]
    %v42 = vrot.slane %v41, 1
    %43 = vst [vmem:[#allocation1] sm:$0xff] %v42
    %s44 = scalar_lea.vmem [#allocation0], 8
    %s45 = scalar_lea.vmem %s44, 7 [#allocation0]
    %v46 = vld [vmem:[%s45] ss:$-1 sm:$0xff]
    %v47 = vrot.slane %v46, 1
    %v48 = vlaneseq
    %v49 = vshrl.u32 %v48, 7
    %vm50 = vcmp.lt.s32.totalorder %v49, 7
    %51 = vst.msk [vmem:[#allocation1] sm:$0xff] %vm50, %v47
    %s52 = scalar_lea.vmem [#allocation1], 8
    %s53 = scalar_lea.vmem [#allocation0], 16
    %s54 = scalar_lea.vmem %s53, 7 [#allocation0]
    %v55 = vld [vmem:[%s54] ss:$-1 sm:$0xff]
    %v56 = vrot.slane %v55, 1
    %57 = vst [vmem:[%s52] sm:$0xff] %v56
    %s58 = scalar_lea.vmem %s53, 8 [#allocation0]
    %s59 = scalar_lea.vmem %s58, 7 [#allocation0]
    %v60 = vld [vmem:[%s59] ss:$-1 sm:$0xff]
    %v61 = vrot.slane %v60, 1
    %v62 = vlaneseq
    %v63 = vshrl.u32 %v62, 7
    %vm64 = vcmp.lt.s32.totalorder %v63, 7
    %65 = vst.msk [vmem:[%s52] sm:$0xff] %vm64, %v61
    // Predicated region
    $region36: #{reverse.0} parent=1 // pred_check
      _
    $region37: #{reverse.0} parent=1 // pred_check_branch
      %67 = sbr.rel (0) target = $region39
    $region38: #{reverse.0} parent=1 // pred_region
      // Predicated region
      $region40: #{reverse.0} parent=38 // pred_check
        _
      $region41: #{reverse.0} parent=38 // pred_check_branch
        %69 = sbr.rel (0) target = $region43
      $region42: #{reverse.0} parent=38 // pred_region
        // Predicated region
        $region55: #{reverse.0} parent=42 // pred_check
          _
        $region56: #{reverse.0} parent=42 // pred_check_branch
          %87 = sbr.rel (0) target = $region58
        $region57: #{reverse.0} parent=42 // pred_region
          loop: start=0, step=1, limit=1
          $region59: #{reverse.0} parent=57 // loop_pre_header
            _
          $region60: #{reverse.0} parent=57 // loop_header
            %s89 = sphi 0, %s93
            %p90 = scmp.ge.s32.totalorder %s89, 1
            %s94 = sphi [#allocation1], [#allocation1]
            %s95 = sphi %s1, %s1
          $region61: #{reverse.0} parent=57 // loop_header_branch
            %92 = sbr.rel (%p90) target = $region65
          $region62: #{reverse.0} parent=57 // loop_body
            %v96 = vld [vmem:[%s94] sm:$0xff]
            %97 = vst [vmem:[%s95] sm:$0xff] %v96
            %v98 = vld [vmem:[%s94 + $0x8] sm:$0xff]
            %99 = vst [vmem:[%s95 + $0x8] sm:$0xff] %v98
          $region63: #{reverse.0} parent=57 // loop_footer
            %s93 = sadd.s32 1, %s89
          $region64: #{reverse.0} parent=57 // loop_footer_branch
            %88 = sbr.rel target = $region60
          $region65: #{reverse.0} parent=57 // loop_exit
            _
        $region58: #{reverse.0} parent=42 // pred_fallthru
          _
        // Predicated region
        $region66: #{reverse.0} parent=42 // pred_check
          _
        $region67: #{reverse.0} parent=42 // pred_check_branch
          %101 = sbr.rel target = $region69
        $region68: #{reverse.0} parent=42 // pred_region
          _
        $region69: #{reverse.0} parent=42 // pred_fallthru
          _
      $region43: #{reverse.0} parent=38 // pred_fallthru
        _
      // Predicated region
      $region44: #{reverse.0} parent=38 // pred_check
        _
      $region45: #{reverse.0} parent=38 // pred_check_branch
        %71 = sbr.rel target = $region47
      $region46: #{reverse.0} parent=38 // pred_region
        %s73 = ssub.s32 256, 1
        loop: start=0, step=1, limit=1
        $region48: #{reverse.0} parent=46 // loop_pre_header
          _
        $region49: #{reverse.0} parent=46 // loop_header
          %s75 = sphi 0, %s79
          %p76 = scmp.ge.s32.totalorder %s75, 1
          %s80 = sphi [#allocation1], [#allocation1]
          %s81 = sphi %s1, %s1
        $region50: #{reverse.0} parent=46 // loop_header_branch
          %78 = sbr.rel (%p76) target = $region54
        $region51: #{reverse.0} parent=46 // loop_body
          %v82 = vld [vmem:[%s80] sm:%s73]
          %83 = vst [vmem:[%s81] sm:%s73] %v82
          %v84 = vld [vmem:[%s80 + $0x8] sm:%s73]
          %85 = vst [vmem:[%s81 + $0x8] sm:%s73] %v84
        $region52: #{reverse.0} parent=46 // loop_footer
          %s79 = sadd.s32 1, %s75
        $region53: #{reverse.0} parent=46 // loop_footer_branch
          %74 = sbr.rel target = $region49
        $region54: #{reverse.0} parent=46 // loop_exit
          _
      $region47: #{reverse.0} parent=38 // pred_fallthru
        _
    $region39: #{reverse.0} parent=1 // pred_fallthru
      _
    %102 = vnop

// kernel: forward.3
$region0: #{forward.3}
  #allocation0 [shape = 'u32[]', space=smem, size = 0x4, offset = 0x4, fixed_abs, tag = 'smem constant byte address 0x4 - core index']
  #allocation1 [shape = 'u32[72,128]{1,0:T(1,128)}', space=vmem, size = 0x9000, scoped, tag = 'internal scratch']
  %s0 = inlined_call_operand.vmem [shape: f32[9,32,16], index: 0, kind: input, shape index: {}]
  %s1 = inlined_call_operand.vmem [shape: f32[32,16], index: 1, kind: input, shape index: {}]
  %s2 = inlined_call_operand.vmem [shape: f32[4,9], index: 2, kind: input, shape index: {}]
  %s3 = inlined_call_operand.vmem [shape: f32[5,4], index: 3, kind: input, shape index: {}]
  %s4 = inlined_call_operand.hbm [shape: f32[32,16], index: 4, kind: output, shape index: {}]
  %s5 = sld [smem:[#allocation0]]
  $region34: #{forward.3} parent=0
    _
  %s7 = ssub.s32 1, %s5
  %s8 = scalar_select 0, %s7, %s5
  $region1: #{forward.3} parent=0
    #allocation2 [shape = 'u8[2048]{0}', space=smem, size = 0x800, scoped, tag = 'input window, operand 2, single buffered']
    #allocation3 [shape = 's32[1]{0}', space=sflag, size = 0x4, scoped, tag = 'scoped memory for forward.3']
    #allocation4 [shape = 's32[1]{0}', space=sflag, size = 0x4, scoped, tag = 'scoped memory for forward.3']
    #allocation5 [shape = 'u8[4096]{0}', space=smem, size = 0x1000, scoped, tag = 'input window, operand 3, single buffered']
    #allocation6 [shape = 's32[1]{0}', space=sflag, size = 0x4, scoped, tag = 'scoped memory for forward.3']
    #allocation7 [shape = 'u8[16384]{0}', space=vmem, size = 0x4000, scoped, tag = 'output window, operand 0, single buffered']
    %9 = vsyncpa [#allocation4], 0
    %10 = vsyncpa [#allocation6], 0
    %11 = vsyncpa [#allocation3], 0
    // Predicated region
    $region2: #{forward.3} parent=1 // pred_check
      _
    $region3: #{forward.3} parent=1 // pred_check_branch
      %13 = sbr.rel (0) target = $region5
    $region4: #{forward.3} parent=1 // pred_region
      _
    $region5: #{forward.3} parent=1 // pred_fallthru
      _
    // Predicated region
    $region6: #{forward.3} parent=1 // pred_check
      _
    $region7: #{forward.3} parent=1 // pred_check_branch
      %15 = sbr.rel (0) target = $region9
    $region8: #{forward.3} parent=1 // pred_region
      _
    $region9: #{forward.3} parent=1 // pred_fallthru
      _
    // Predicated region
    $region10: #{forward.3} parent=1 // pred_check
      _
    $region11: #{forward.3} parent=1 // pred_check_branch
      %17 = sbr.rel (0) target = $region13
    $region12: #{forward.3} parent=1 // pred_region
      %19 = vsyncadd [#allocation4], 0
      %s21 = sshll.u32 %s2, 4
      %s22 = int_to_ptr.vmem [resolvable:$true] %s21
      %24 = dma.vmem_to_smem %s22, 64, [#allocation2], [#allocation4]
    $region13: #{forward.3} parent=1 // pred_fallthru
      _
    // Predicated region
    $region14: #{forward.3} parent=1 // pred_check
      _
    $region15: #{forward.3} parent=1 // pred_check_branch
      %26 = sbr.rel (0) target = $region17
    $region16: #{forward.3} parent=1 // pred_region
      %28 = vsyncadd [#allocation6], 0
      %s30 = sshll.u32 %s3, 4
      %s31 = int_to_ptr.vmem [resolvable:$true] %s30
      %33 = dma.vmem_to_smem %s31, 128, [#allocation5], [#allocation6]
    $region17: #{forward.3} parent=1 // pred_fallthru
      _
    // Predicated region
    $region18: #{forward.3} parent=1 // pred_check
      _
    $region19: #{forward.3} parent=1 // pred_check_branch
      %35 = sbr.rel (0) target = $region21
    $region20: #{forward.3} parent=1 // pred_region
      %37 = dma.done [#allocation4], 64
    $region21: #{forward.3} parent=1 // pred_fallthru
      _
    // Predicated region
    $region22: #{forward.3} parent=1 // pred_check
      _
    $region23: #{forward.3} parent=1 // pred_check_branch
      %39 = sbr.rel (0) target = $region25
    $region24: #{forward.3} parent=1 // pred_region
      %41 = dma.done [#allocation6], 128
    $region25: #{forward.3} parent=1 // pred_fallthru
      _
    %42 = sfence
    %v43 = vld [vmem:[%s1] sm:$0xff]
    %v44 = vld [vmem:[%s1 + $0x8] sm:$0xff]
    %v45 = vld [vmem:[%s1 + $0x10] sm:$0xff]
    %v46 = vld [vmem:[%s1 + $0x18] sm:$0xff]
    %s47 = sld [smem:[#allocation5 + $0x200]]
    %v48 = vstv %s47
    %v49 = vadd.f32 %v43, %v48
    %v50 = vadd.f32 %v44, %v48
    %v51 = vadd.f32 %v45, %v48
    %v52 = vadd.f32 %v46, %v48
    %s53 = sld [smem:[#allocation2]]
    %v54 = vld [vmem:[%s0] sm:$0xff]
    %v55 = vld [vmem:[%s0 + $0x8] sm:$0xff]
    %v56 = vld [vmem:[%s0 + $0x10] sm:$0xff]
    %v57 = vld [vmem:[%s0 + $0x18] sm:$0xff]
    %v58 = vstv %s53
    %v59 = vmul.f32 %v58, %v54
    %v60 = vmul.f32 %v58, %v55
    %v61 = vmul.f32 %v58, %v56
    %v62 = vmul.f32 %v58, %v57
    %s63 = sld [smem:[#allocation2 + $0x1]]
    %s64 = scalar_lea.vmem %s0, 32
    %v65 = vld [vmem:[%s64] sm:$0xff]
    %v66 = vld [vmem:[%s64 + $0x8] sm:$0xff]
    %v67 = vld [vmem:[%s64 + $0x10] sm:$0xff]
    %v68 = vld [vmem:[%s64 + $0x18] sm:$0xff]
    %v69 = vstv %s63
    %v70 = vmul.f32 %v69, %v65
    %v71 = vmul.f32 %v69, %v66
    %v72 = vmul.f32 %v69, %v67
    %v73 = vmul.f32 %v69, %v68
    %v74 = vadd.f32 %v59, %v70
    %v75 = vadd.f32 %v60, %v71
    %v76 = vadd.f32 %v61, %v72
    %v77 = vadd.f32 %v62, %v73
    %s78 = sld [smem:[#allocation2 + $0x2]]
    %s79 = scalar_lea.vmem %s0, 64
    %v80 = vld [vmem:[%s79] sm:$0xff]
    %v81 = vld [vmem:[%s79 + $0x8] sm:$0xff]
    %v82 = vld [vmem:[%s79 + $0x10] sm:$0xff]
    %v83 = vld [vmem:[%s79 + $0x18] sm:$0xff]
    %v84 = vstv %s78
    %v85 = vmul.f32 %v84, %v80
    %v86 = vmul.f32 %v84, %v81
    %v87 = vmul.f32 %v84, %v82
    %v88 = vmul.f32 %v84, %v83
    %v89 = vadd.f32 %v74, %v85
    %v90 = vadd.f32 %v75, %v86
    %v91 = vadd.f32 %v76, %v87
    %v92 = vadd.f32 %v77, %v88
    %s93 = sld [smem:[#allocation2 + $0x3]]
    %s94 = scalar_lea.vmem %s0, 96
    %v95 = vld [vmem:[%s94] sm:$0xff]
    %v96 = vld [vmem:[%s94 + $0x8] sm:$0xff]
    %v97 = vld [vmem:[%s94 + $0x10] sm:$0xff]
    %v98 = vld [vmem:[%s94 + $0x18] sm:$0xff]
    %v99 = vstv %s93
    %v100 = vmul.f32 %v99, %v95
    %v101 = vmul.f32 %v99, %v96
    %v102 = vmul.f32 %v99, %v97
    %v103 = vmul.f32 %v99, %v98
    %v104 = vadd.f32 %v89, %v100
    %v105 = vadd.f32 %v90, %v101
    %v106 = vadd.f32 %v91, %v102
    %v107 = vadd.f32 %v92, %v103
    %s108 = sld [smem:[#allocation2 + $0x4]]
    %s109 = scalar_lea.vmem %s0, 128
    %v110 = vld [vmem:[%s109] sm:$0xff]
    %v111 = vld [vmem:[%s109 + $0x8] sm:$0xff]
    %v112 = vld [vmem:[%s109 + $0x10] sm:$0xff]
    %v113 = vld [vmem:[%s109 + $0x18] sm:$0xff]
    %v114 = vstv %s108
    %v115 = vmul.f32 %v114, %v110
    %v116 = vmul.f32 %v114, %v111
    %v117 = vmul.f32 %v114, %v112
    %v118 = vmul.f32 %v114, %v113
    %v119 = vadd.f32 %v104, %v115
    %v120 = vadd.f32 %v105, %v116
    %v121 = vadd.f32 %v106, %v117
    %v122 = vadd.f32 %v107, %v118
    %s123 = sld [smem:[#allocation2 + $0x5]]
    %s124 = scalar_lea.vmem %s0, 160
    %v125 = vld [vmem:[%s124] sm:$0xff]
    %v126 = vld [vmem:[%s124 + $0x8] sm:$0xff]
    %v127 = vld [vmem:[%s124 + $0x10] sm:$0xff]
    %v128 = vld [vmem:[%s124 + $0x18] sm:$0xff]
    %v129 = vstv %s123
    %v130 = vmul.f32 %v129, %v125
    %v131 = vmul.f32 %v129, %v126
    %v132 = vmul.f32 %v129, %v127
    %v133 = vmul.f32 %v129, %v128
    %v134 = vadd.f32 %v119, %v130
    %v135 = vadd.f32 %v120, %v131
    %v136 = vadd.f32 %v121, %v132
    %v137 = vadd.f32 %v122, %v133
    %s138 = sld [smem:[#allocation2 + $0x6]]
    %s139 = scalar_lea.vmem %s0, 192
    %v140 = vld [vmem:[%s139] sm:$0xff]
    %v141 = vld [vmem:[%s139 + $0x8] sm:$0xff]
    %v142 = vld [vmem:[%s139 + $0x10] sm:$0xff]
    %v143 = vld [vmem:[%s139 + $0x18] sm:$0xff]
    %v144 = vstv %s138
    %v145 = vmul.f32 %v144, %v140
    %v146 = vmul.f32 %v144, %v141
    %v147 = vmul.f32 %v144, %v142
    %v148 = vmul.f32 %v144, %v143
    %v149 = vadd.f32 %v134, %v145
    %v150 = vadd.f32 %v135, %v146
    %v151 = vadd.f32 %v136, %v147
    %v152 = vadd.f32 %v137, %v148
    %s153 = sld [smem:[#allocation2 + $0x7]]
    %s154 = scalar_lea.vmem %s0, 224
    %v155 = vld [vmem:[%s154] sm:$0xff]
    %v156 = vld [vmem:[%s154 + $0x8] sm:$0xff]
    %v157 = vld [vmem:[%s154 + $0x10] sm:$0xff]
    %v158 = vld [vmem:[%s154 + $0x18] sm:$0xff]
    %v159 = vstv %s153
    %v160 = vmul.f32 %v159, %v155
    %v161 = vmul.f32 %v159, %v156
    %v162 = vmul.f32 %v159, %v157
    %v163 = vmul.f32 %v159, %v158
    %v164 = vadd.f32 %v149, %v160
    %v165 = vadd.f32 %v150, %v161
    %v166 = vadd.f32 %v151, %v162
    %v167 = vadd.f32 %v152, %v163
    %s168 = sld [smem:[#allocation2 + $0x8]]
    %s169 = scalar_lea.vmem %s0, 256
    %v170 = vld [vmem:[%s169] sm:$0xff]
    %v171 = vld [vmem:[%s169 + $0x8] sm:$0xff]
    %v172 = vld [vmem:[%s169 + $0x10] sm:$0xff]
    %v173 = vld [vmem:[%s169 + $0x18] sm:$0xff]
    %v174 = vstv %s168
    %v175 = vmul.f32 %v174, %v170
    %v176 = vmul.f32 %v174, %v171
    %v177 = vmul.f32 %v174, %v172
    %v178 = vmul.f32 %v174, %v173
    %v179 = vadd.f32 %v164, %v175
    %v180 = vadd.f32 %v165, %v176
    %v181 = vadd.f32 %v166, %v177
    %v182 = vadd.f32 %v167, %v178
    %s183 = sld [smem:[#allocation5]]
    %v184 = vstv %s183
    %v185 = vadd.f32 %v179, %v184
    %v186 = vadd.f32 %v180, %v184
    %v187 = vadd.f32 %v181, %v184
    %v188 = vadd.f32 %v182, %v184
    %v189 = vmax.f32 %v185, 0.0
    %v190 = vmax.f32 %v186, 0.0
    %v191 = vmax.f32 %v187, 0.0
    %v192 = vmax.f32 %v188, 0.0
    %vm193 = vcmask 130048
    %v194 = vsel %vm193, %v189, 0.0
    %v195 = vsel %vm193, %v190, 0.0
    %v196 = vadd.f32 %v194, %v195
    %v197 = vsel %vm193, %v191, 0.0
    %v198 = vadd.f32 %v196, %v197
    %v199 = vsel %vm193, %v192, 0.0
    %v200 = vadd.f32 %v198, %v199
    %201 = vadd.xlane.f32.xlu0 %v200
    %v202 = vpop.xlane.xlu0 %201
    %v203 = vrot.slane %v202, 4
    %v204 = vadd.f32 %v202, %v203
    %v205 = vrot.slane %v204, 2
    %v206 = vadd.f32 %v204, %v205
    %v207 = vrot.slane %v206, 1
    %v208 = vadd.f32 %v206, %v207
    %s209 = vtos %v208
    %s210 = smul.f32 %s209, 0.001953125
    %v211 = vmul.f32 %v189, %v189
    %v212 = vmul.f32 %v190, %v190
    %v213 = vmul.f32 %v191, %v191
    %v214 = vmul.f32 %v192, %v192
    %v215 = vsel %vm193, %v211, 0.0
    %v216 = vsel %vm193, %v212, 0.0
    %v217 = vadd.f32 %v215, %v216
    %v218 = vsel %vm193, %v213, 0.0
    %v219 = vadd.f32 %v217, %v218
    %v220 = vsel %vm193, %v214, 0.0
    %v221 = vadd.f32 %v219, %v220
    %222 = vadd.xlane.f32.xlu0 %v221
    %v223 = vpop.xlane.xlu0 %222
    %v224 = vrot.slane %v223, 4
    %v225 = vadd.f32 %v223, %v224
    %v226 = vrot.slane %v225, 2
    %v227 = vadd.f32 %v225, %v226
    %v228 = vrot.slane %v227, 1
    %v229 = vadd.f32 %v227, %v228
    %s230 = vtos %v229
    %s231 = smul.f32 %s230, 0.001953125
    %s232 = smul.f32 %s210, %s210
    %s233 = ssub.f32 %s231, %s232
    %v234 = vstv %s210
    %v235 = vsub.f32 %v189, %v234
    %v236 = vsub.f32 %v190, %v234
    %v237 = vsub.f32 %v191, %v234
    %v238 = vsub.f32 %v192, %v234
    %s239 = sadd.f32 %s233, 1e-05
    %v240 = vstv %s239
    %v241 = vrsqrt.pop %v240
    %v242 = vmul.f32 %v241, %v240
    %v243 = vmul.f32 %v242, %v241
    %v244 = vmul.f32 0.5, %v243
    %v245 = vsub.f32 1.5, %v244
    %v246 = vmul.f32 %v241, %v245
    %vm247 = vweird.f32 %v240
    %vm248 = vweird.f32 %v241
    %vm249 = vmor %vm247, %vm248
    %v250 = vsel %vm249, %v241, %v246
    %s251 = vtos %v250
    %v252 = vstv %s251
    %v253 = vmul.f32 %v235, %v252
    %v254 = vmul.f32 %v236, %v252
    %v255 = vmul.f32 %v237, %v252
    %v256 = vmul.f32 %v238, %v252
    %s257 = sld [smem:[#allocation5 + $0x80]]
    %v258 = vstv %s257
    %v259 = vmul.f32 %v253, %v258
    %v260 = vmul.f32 %v254, %v258
    %v261 = vmul.f32 %v255, %v258
    %v262 = vmul.f32 %v256, %v258
    %s263 = sld [smem:[#allocation5 + $0x100]]
    %v264 = vstv %s263
    %v265 = vadd.f32 %v259, %v264
    %v266 = vadd.f32 %v260, %v264
    %v267 = vadd.f32 %v261, %v264
    %v268 = vadd.f32 %v262, %v264
    %s269 = sld [smem:[#allocation5 + $0x180]]
    %v270 = vstv %s269
    %v271 = vmul.f32 %v270, %v265
    %v272 = vmul.f32 %v270, %v266
    %v273 = vmul.f32 %v270, %v267
    %v274 = vmul.f32 %v270, %v268
    %v275 = vadd.f32 %v49, %v271
    %v276 = vadd.f32 %v50, %v272
    %v277 = vadd.f32 %v51, %v273
    %v278 = vadd.f32 %v52, %v274
    %s279 = sld [smem:[#allocation2 + $0x80]]
    %v280 = vstv %s279
    %v281 = vmul.f32 %v280, %v54
    %v282 = vmul.f32 %v280, %v55
    %v283 = vmul.f32 %v280, %v56
    %v284 = vmul.f32 %v280, %v57
    %s285 = sld [smem:[#allocation2 + $0x81]]
    %v286 = vstv %s285
    %v287 = vmul.f32 %v286, %v65
    %v288 = vmul.f32 %v286, %v66
    %v289 = vmul.f32 %v286, %v67
    %v290 = vmul.f32 %v286, %v68
    %v291 = vadd.f32 %v281, %v287
    %v292 = vadd.f32 %v282, %v288
    %v293 = vadd.f32 %v283, %v289
    %v294 = vadd.f32 %v284, %v290
    %s295 = sld [smem:[#allocation2 + $0x82]]
    %v296 = vstv %s295
    %v297 = vmul.f32 %v296, %v80
    %v298 = vmul.f32 %v296, %v81
    %v299 = vmul.f32 %v296, %v82
    %v300 = vmul.f32 %v296, %v83
    %v301 = vadd.f32 %v291, %v297
    %v302 = vadd.f32 %v292, %v298
    %v303 = vadd.f32 %v293, %v299
    %v304 = vadd.f32 %v294, %v300
    %s305 = sld [smem:[#allocation2 + $0x83]]
    %v306 = vstv %s305
    %v307 = vmul.f32 %v306, %v95
    %v308 = vmul.f32 %v306, %v96
    %v309 = vmul.f32 %v306, %v97
    %v310 = vmul.f32 %v306, %v98
    %v311 = vadd.f32 %v301, %v307
    %v312 = vadd.f32 %v302, %v308
    %v313 = vadd.f32 %v303, %v309
    %v314 = vadd.f32 %v304, %v310
    %s315 = sld [smem:[#allocation2 + $0x84]]
    %v316 = vstv %s315
    %v317 = vmul.f32 %v316, %v110
    %v318 = vmul.f32 %v316, %v111
    %v319 = vmul.f32 %v316, %v112
    %v320 = vmul.f32 %v316, %v113
    %v321 = vadd.f32 %v311, %v317
    %v322 = vadd.f32 %v312, %v318
    %v323 = vadd.f32 %v313, %v319
    %v324 = vadd.f32 %v314, %v320
    %s325 = sld [smem:[#allocation2 + $0x85]]
    %v326 = vstv %s325
    %v327 = vmul.f32 %v326, %v125
    %v328 = vmul.f32 %v326, %v126
    %v329 = vmul.f32 %v326, %v127
    %v330 = vmul.f32 %v326, %v128
    %v331 = vadd.f32 %v321, %v327
    %v332 = vadd.f32 %v322, %v328
    %v333 = vadd.f32 %v323, %v329
    %v334 = vadd.f32 %v324, %v330
    %s335 = sld [smem:[#allocation2 + $0x86]]
    %v336 = vstv %s335
    %v337 = vmul.f32 %v336, %v140
    %v338 = vmul.f32 %v336, %v141
    %v339 = vmul.f32 %v336, %v142
    %v340 = vmul.f32 %v336, %v143
    %v341 = vadd.f32 %v331, %v337
    %v342 = vadd.f32 %v332, %v338
    %v343 = vadd.f32 %v333, %v339
    %v344 = vadd.f32 %v334, %v340
    %s345 = sld [smem:[#allocation2 + $0x87]]
    %v346 = vstv %s345
    %v347 = vmul.f32 %v346, %v155
    %v348 = vmul.f32 %v346, %v156
    %v349 = vmul.f32 %v346, %v157
    %v350 = vmul.f32 %v346, %v158
    %v351 = vadd.f32 %v341, %v347
    %v352 = vadd.f32 %v342, %v348
    %v353 = vadd.f32 %v343, %v349
    %v354 = vadd.f32 %v344, %v350
    %s355 = sld [smem:[#allocation2 + $0x88]]
    %v356 = vstv %s355
    %v357 = vmul.f32 %v356, %v170
    %v358 = vmul.f32 %v356, %v171
    %v359 = vmul.f32 %v356, %v172
    %v360 = vmul.f32 %v356, %v173
    %v361 = vadd.f32 %v351, %v357
    %v362 = vadd.f32 %v352, %v358
    %v363 = vadd.f32 %v353, %v359
    %v364 = vadd.f32 %v354, %v360
    %s365 = sld [smem:[#allocation5 + $0x1]]
    %v366 = vstv %s365
    %v367 = vadd.f32 %v361, %v366
    %v368 = vadd.f32 %v362, %v366
    %v369 = vadd.f32 %v363, %v366
    %v370 = vadd.f32 %v364, %v366
    %v371 = vmax.f32 %v367, 0.0
    %v372 = vmax.f32 %v368, 0.0
    %v373 = vmax.f32 %v369, 0.0
    %v374 = vmax.f32 %v370, 0.0
    %v375 = vsel %vm193, %v371, 0.0
    %v376 = vsel %vm193, %v372, 0.0
    %v377 = vadd.f32 %v375, %v376
    %v378 = vsel %vm193, %v373, 0.0
    %v379 = vadd.f32 %v377, %v378
    %v380 = vsel %vm193, %v374, 0.0
    %v381 = vadd.f32 %v379, %v380
    %382 = vadd.xlane.f32.xlu0 %v381
    %v383 = vpop.xlane.xlu0 %382
    %v384 = vrot.slane %v383, 4
    %v385 = vadd.f32 %v383, %v384
    %v386 = vrot.slane %v385, 2
    %v387 = vadd.f32 %v385, %v386
    %v388 = vrot.slane %v387, 1
    %v389 = vadd.f32 %v387, %v388
    %s390 = vtos %v389
    %s391 = smul.f32 %s390, 0.001953125
    %v392 = vmul.f32 %v371, %v371
    %v393 = vmul.f32 %v372, %v372
    %v394 = vmul.f32 %v373, %v373
    %v395 = vmul.f32 %v374, %v374
    %v396 = vsel %vm193, %v392, 0.0
    %v397 = vsel %vm193, %v393, 0.0
    %v398 = vadd.f32 %v396, %v397
    %v399 = vsel %vm193, %v394, 0.0
    %v400 = vadd.f32 %v398, %v399
    %v401 = vsel %vm193, %v395, 0.0
    %v402 = vadd.f32 %v400, %v401
    %403 = vadd.xlane.f32.xlu0 %v402
    %v404 = vpop.xlane.xlu0 %403
    %v405 = vrot.slane %v404, 4
    %v406 = vadd.f32 %v404, %v405
    %v407 = vrot.slane %v406, 2
    %v408 = vadd.f32 %v406, %v407
    %v409 = vrot.slane %v408, 1
    %v410 = vadd.f32 %v408, %v409
    %s411 = vtos %v410
    %s412 = smul.f32 %s411, 0.001953125
    %s413 = smul.f32 %s391, %s391
    %s414 = ssub.f32 %s412, %s413
    %v415 = vstv %s391
    %v416 = vsub.f32 %v371, %v415
    %v417 = vsub.f32 %v372, %v415
    %v418 = vsub.f32 %v373, %v415
    %v419 = vsub.f32 %v374, %v415
    %s420 = sadd.f32 %s414, 1e-05
    %v421 = vstv %s420
    %v422 = vrsqrt.pop %v421
    %v423 = vmul.f32 %v422, %v421
    %v424 = vmul.f32 %v423, %v422
    %v425 = vmul.f32 0.5, %v424
    %v426 = vsub.f32 1.5, %v425
    %v427 = vmul.f32 %v422, %v426
    %vm428 = vweird.f32 %v421
    %vm429 = vweird.f32 %v422
    %vm430 = vmor %vm428, %vm429
    %v431 = vsel %vm430, %v422, %v427
    %s432 = vtos %v431
    %v433 = vstv %s432
    %v434 = vmul.f32 %v416, %v433
    %v435 = vmul.f32 %v417, %v433
    %v436 = vmul.f32 %v418, %v433
    %v437 = vmul.f32 %v419, %v433
    %s438 = sld [smem:[#allocation5 + $0x81]]
    %v439 = vstv %s438
    %v440 = vmul.f32 %v434, %v439
    %v441 = vmul.f32 %v435, %v439
    %v442 = vmul.f32 %v436, %v439
    %v443 = vmul.f32 %v437, %v439
    %s444 = sld [smem:[#allocation5 + $0x101]]
    %v445 = vstv %s444
    %v446 = vadd.f32 %v440, %v445
    %v447 = vadd.f32 %v441, %v445
    %v448 = vadd.f32 %v442, %v445
    %v449 = vadd.f32 %v443, %v445
    %s450 = sld [smem:[#allocation5 + $0x181]]
    %v451 = vstv %s450
    %v452 = vmul.f32 %v451, %v446
    %v453 = vmul.f32 %v451, %v447
    %v454 = vmul.f32 %v451, %v448
    %v455 = vmul.f32 %v451, %v449
    %v456 = vadd.f32 %v275, %v452
    %v457 = vadd.f32 %v276, %v453
    %v458 = vadd.f32 %v277, %v454
    %v459 = vadd.f32 %v278, %v455
    %s460 = sld [smem:[#allocation2 + $0x100]]
    %v461 = vstv %s460
    %v462 = vmul.f32 %v461, %v54
    %v463 = vmul.f32 %v461, %v55
    %v464 = vmul.f32 %v461, %v56
    %v465 = vmul.f32 %v461, %v57
    %s466 = sld [smem:[#allocation2 + $0x101]]
    %v467 = vstv %s466
    %v468 = vmul.f32 %v467, %v65
    %v469 = vmul.f32 %v467, %v66
    %v470 = vmul.f32 %v467, %v67
    %v471 = vmul.f32 %v467, %v68
    %v472 = vadd.f32 %v462, %v468
    %v473 = vadd.f32 %v463, %v469
    %v474 = vadd.f32 %v464, %v470
    %v475 = vadd.f32 %v465, %v471
    %s476 = sld [smem:[#allocation2 + $0x102]]
    %v477 = vstv %s476
    %v478 = vmul.f32 %v477, %v80
    %v479 = vmul.f32 %v477, %v81
    %v480 = vmul.f32 %v477, %v82
    %v481 = vmul.f32 %v477, %v83
    %v482 = vadd.f32 %v472, %v478
    %v483 = vadd.f32 %v473, %v479
    %v484 = vadd.f32 %v474, %v480
    %v485 = vadd.f32 %v475, %v481
    %s486 = sld [smem:[#allocation2 + $0x103]]
    %v487 = vstv %s486
    %v488 = vmul.f32 %v487, %v95
    %v489 = vmul.f32 %v487, %v96
    %v490 = vmul.f32 %v487, %v97
    %v491 = vmul.f32 %v487, %v98
    %v492 = vadd.f32 %v482, %v488
    %v493 = vadd.f32 %v483, %v489
    %v494 = vadd.f32 %v484, %v490
    %v495 = vadd.f32 %v485, %v491
    %s496 = sld [smem:[#allocation2 + $0x104]]
    %v497 = vstv %s496
    %v498 = vmul.f32 %v497, %v110
    %v499 = vmul.f32 %v497, %v111
    %v500 = vmul.f32 %v497, %v112
    %v501 = vmul.f32 %v497, %v113
    %v502 = vadd.f32 %v492, %v498
    %v503 = vadd.f32 %v493, %v499
    %v504 = vadd.f32 %v494, %v500
    %v505 = vadd.f32 %v495, %v501
    %s506 = sld [smem:[#allocation2 + $0x105]]
    %v507 = vstv %s506
    %v508 = vmul.f32 %v507, %v125
    %v509 = vmul.f32 %v507, %v126
    %v510 = vmul.f32 %v507, %v127
    %v511 = vmul.f32 %v507, %v128
    %v512 = vadd.f32 %v502, %v508
    %v513 = vadd.f32 %v503, %v509
    %v514 = vadd.f32 %v504, %v510
    %v515 = vadd.f32 %v505, %v511
    %s516 = sld [smem:[#allocation2 + $0x106]]
    %v517 = vstv %s516
    %v518 = vmul.f32 %v517, %v140
    %v519 = vmul.f32 %v517, %v141
    %v520 = vmul.f32 %v517, %v142
    %v521 = vmul.f32 %v517, %v143
    %v522 = vadd.f32 %v512, %v518
    %v523 = vadd.f32 %v513, %v519
    %v524 = vadd.f32 %v514, %v520
    %v525 = vadd.f32 %v515, %v521
    %s526 = sld [smem:[#allocation2 + $0x107]]
    %v527 = vstv %s526
    %v528 = vmul.f32 %v527, %v155
    %v529 = vmul.f32 %v527, %v156
    %v530 = vmul.f32 %v527, %v157
    %v531 = vmul.f32 %v527, %v158
    %v532 = vadd.f32 %v522, %v528
    %v533 = vadd.f32 %v523, %v529
    %v534 = vadd.f32 %v524, %v530
    %v535 = vadd.f32 %v525, %v531
    %s536 = sld [smem:[#allocation2 + $0x108]]
    %v537 = vstv %s536
    %v538 = vmul.f32 %v537, %v170
    %v539 = vmul.f32 %v537, %v171
    %v540 = vmul.f32 %v537, %v172
    %v541 = vmul.f32 %v537, %v173
    %v542 = vadd.f32 %v532, %v538
    %v543 = vadd.f32 %v533, %v539
    %v544 = vadd.f32 %v534, %v540
    %v545 = vadd.f32 %v535, %v541
    %s546 = sld [smem:[#allocation5 + $0x2]]
    %v547 = vstv %s546
    %v548 = vadd.f32 %v542, %v547
    %v549 = vadd.f32 %v543, %v547
    %v550 = vadd.f32 %v544, %v547
    %v551 = vadd.f32 %v545, %v547
    %v552 = vmax.f32 %v548, 0.0
    %v553 = vmax.f32 %v549, 0.0
    %v554 = vmax.f32 %v550, 0.0
    %v555 = vmax.f32 %v551, 0.0
    %v556 = vsel %vm193, %v552, 0.0
    %v557 = vsel %vm193, %v553, 0.0
    %v558 = vadd.f32 %v556, %v557
    %v559 = vsel %vm193, %v554, 0.0
    %v560 = vadd.f32 %v558, %v559
    %v561 = vsel %vm193, %v555, 0.0
    %v562 = vadd.f32 %v560, %v561
    %563 = vadd.xlane.f32.xlu0 %v562
    %v564 = vpop.xlane.xlu0 %563
    %v565 = vrot.slane %v564, 4
    %v566 = vadd.f32 %v564, %v565
    %v567 = vrot.slane %v566, 2
    %v568 = vadd.f32 %v566, %v567
    %v569 = vrot.slane %v568, 1
    %v570 = vadd.f32 %v568, %v569
    %s571 = vtos %v570
    %s572 = smul.f32 %s571, 0.001953125
    %v573 = vmul.f32 %v552, %v552
    %v574 = vmul.f32 %v553, %v553
    %v575 = vmul.f32 %v554, %v554
    %v576 = vmul.f32 %v555, %v555
    %v577 = vsel %vm193, %v573, 0.0
    %v578 = vsel %vm193, %v574, 0.0
    %v579 = vadd.f32 %v577, %v578
    %v580 = vsel %vm193, %v575, 0.0
    %v581 = vadd.f32 %v579, %v580
    %v582 = vsel %vm193, %v576, 0.0
    %v583 = vadd.f32 %v581, %v582
    %584 = vadd.xlane.f32.xlu0 %v583
    %v585 = vpop.xlane.xlu0 %584
    %v586 = vrot.slane %v585, 4
    %v587 = vadd.f32 %v585, %v586
    %v588 = vrot.slane %v587, 2
    %v589 = vadd.f32 %v587, %v588
    %v590 = vrot.slane %v589, 1
    %v591 = vadd.f32 %v589, %v590
    %s592 = vtos %v591
    %s593 = smul.f32 %s592, 0.001953125
    %s594 = smul.f32 %s572, %s572
    %s595 = ssub.f32 %s593, %s594
    %v596 = vstv %s572
    %v597 = vsub.f32 %v552, %v596
    %v598 = vsub.f32 %v553, %v596
    %v599 = vsub.f32 %v554, %v596
    %v600 = vsub.f32 %v555, %v596
    %s601 = sadd.f32 %s595, 1e-05
    %v602 = vstv %s601
    %v603 = vrsqrt.pop %v602
    %v604 = vmul.f32 %v603, %v602
    %v605 = vmul.f32 %v604, %v603
    %v606 = vmul.f32 0.5, %v605
    %v607 = vsub.f32 1.5, %v606
    %v608 = vmul.f32 %v603, %v607
    %vm609 = vweird.f32 %v602
    %vm610 = vweird.f32 %v603
    %vm611 = vmor %vm609, %vm610
    %v612 = vsel %vm611, %v603, %v608
    %s613 = vtos %v612
    %v614 = vstv %s613
    %v615 = vmul.f32 %v597, %v614
    %v616 = vmul.f32 %v598, %v614
    %v617 = vmul.f32 %v599, %v614
    %v618 = vmul.f32 %v600, %v614
    %s619 = sld [smem:[#allocation5 + $0x82]]
    %v620 = vstv %s619
    %v621 = vmul.f32 %v615, %v620
    %v622 = vmul.f32 %v616, %v620
    %v623 = vmul.f32 %v617, %v620
    %v624 = vmul.f32 %v618, %v620
    %s625 = sld [smem:[#allocation5 + $0x102]]
    %v626 = vstv %s625
    %v627 = vadd.f32 %v621, %v626
    %v628 = vadd.f32 %v622, %v626
    %v629 = vadd.f32 %v623, %v626
    %v630 = vadd.f32 %v624, %v626
    %s631 = sld [smem:[#allocation5 + $0x182]]
    %v632 = vstv %s631
    %v633 = vmul.f32 %v632, %v627
    %v634 = vmul.f32 %v632, %v628
    %v635 = vmul.f32 %v632, %v629
    %v636 = vmul.f32 %v632, %v630
    %v637 = vadd.f32 %v456, %v633
    %v638 = vadd.f32 %v457, %v634
    %v639 = vadd.f32 %v458, %v635
    %v640 = vadd.f32 %v459, %v636
    %s641 = sld [smem:[#allocation2 + $0x180]]
    %v642 = vstv %s641
    %v643 = vmul.f32 %v642, %v54
    %v644 = vmul.f32 %v642, %v55
    %v645 = vmul.f32 %v642, %v56
    %v646 = vmul.f32 %v642, %v57
    %s647 = sld [smem:[#allocation2 + $0x181]]
    %v648 = vstv %s647
    %v649 = vmul.f32 %v648, %v65
    %v650 = vmul.f32 %v648, %v66
    %v651 = vmul.f32 %v648, %v67
    %v652 = vmul.f32 %v648, %v68
    %v653 = vadd.f32 %v643, %v649
    %v654 = vadd.f32 %v644, %v650
    %v655 = vadd.f32 %v645, %v651
    %v656 = vadd.f32 %v646, %v652
    %s657 = sld [smem:[#allocation2 + $0x182]]
    %v658 = vstv %s657
    %v659 = vmul.f32 %v658, %v80
    %v660 = vmul.f32 %v658, %v81
    %v661 = vmul.f32 %v658, %v82
    %v662 = vmul.f32 %v658, %v83
    %v663 = vadd.f32 %v653, %v659
    %v664 = vadd.f32 %v654, %v660
    %v665 = vadd.f32 %v655, %v661
    %v666 = vadd.f32 %v656, %v662
    %s667 = sld [smem:[#allocation2 + $0x183]]
    %v668 = vstv %s667
    %v669 = vmul.f32 %v668, %v95
    %v670 = vmul.f32 %v668, %v96
    %v671 = vmul.f32 %v668, %v97
    %v672 = vmul.f32 %v668, %v98
    %v673 = vadd.f32 %v663, %v669
    %v674 = vadd.f32 %v664, %v670
    %v675 = vadd.f32 %v665, %v671
    %v676 = vadd.f32 %v666, %v672
    %s677 = sld [smem:[#allocation2 + $0x184]]
    %v678 = vstv %s677
    %v679 = vmul.f32 %v678, %v110
    %v680 = vmul.f32 %v678, %v111
    %v681 = vmul.f32 %v678, %v112
    %v682 = vmul.f32 %v678, %v113
    %v683 = vadd.f32 %v673, %v679
    %v684 = vadd.f32 %v674, %v680
    %v685 = vadd.f32 %v675, %v681
    %v686 = vadd.f32 %v676, %v682
    %s687 = sld [smem:[#allocation2 + $0x185]]
    %v688 = vstv %s687
    %v689 = vmul.f32 %v688, %v125
    %v690 = vmul.f32 %v688, %v126
    %v691 = vmul.f32 %v688, %v127
    %v692 = vmul.f32 %v688, %v128
    %v693 = vadd.f32 %v683, %v689
    %v694 = vadd.f32 %v684, %v690
    %v695 = vadd.f32 %v685, %v691
    %v696 = vadd.f32 %v686, %v692
    %s697 = sld [smem:[#allocation2 + $0x186]]
    %v698 = vstv %s697
    %v699 = vmul.f32 %v698, %v140
    %v700 = vmul.f32 %v698, %v141
    %v701 = vmul.f32 %v698, %v142
    %v702 = vmul.f32 %v698, %v143
    %v703 = vadd.f32 %v693, %v699
    %v704 = vadd.f32 %v694, %v700
    %v705 = vadd.f32 %v695, %v701
    %v706 = vadd.f32 %v696, %v702
    %s707 = sld [smem:[#allocation2 + $0x187]]
    %v708 = vstv %s707
    %v709 = vmul.f32 %v708, %v155
    %v710 = vmul.f32 %v708, %v156
    %v711 = vmul.f32 %v708, %v157
    %v712 = vmul.f32 %v708, %v158
    %v713 = vadd.f32 %v703, %v709
    %v714 = vadd.f32 %v704, %v710
    %v715 = vadd.f32 %v705, %v711
    %v716 = vadd.f32 %v706, %v712
    %s717 = sld [smem:[#allocation2 + $0x188]]
    %v718 = vstv %s717
    %v719 = vmul.f32 %v718, %v170
    %v720 = vmul.f32 %v718, %v171
    %v721 = vmul.f32 %v718, %v172
    %v722 = vmul.f32 %v718, %v173
    %v723 = vadd.f32 %v713, %v719
    %v724 = vadd.f32 %v714, %v720
    %v725 = vadd.f32 %v715, %v721
    %v726 = vadd.f32 %v716, %v722
    %s727 = sld [smem:[#allocation5 + $0x3]]
    %v728 = vstv %s727
    %v729 = vadd.f32 %v723, %v728
    %v730 = vadd.f32 %v724, %v728
    %v731 = vadd.f32 %v725, %v728
    %v732 = vadd.f32 %v726, %v728
    %v733 = vmax.f32 %v729, 0.0
    %v734 = vmax.f32 %v730, 0.0
    %v735 = vmax.f32 %v731, 0.0
    %v736 = vmax.f32 %v732, 0.0
    %v737 = vsel %vm193, %v733, 0.0
    %v738 = vsel %vm193, %v734, 0.0
    %v739 = vadd.f32 %v737, %v738
    %v740 = vsel %vm193, %v735, 0.0
    %v741 = vadd.f32 %v739, %v740
    %v742 = vsel %vm193, %v736, 0.0
    %v743 = vadd.f32 %v741, %v742
    %744 = vadd.xlane.f32.xlu0 %v743
    %v745 = vpop.xlane.xlu0 %744
    %v746 = vrot.slane %v745, 4
    %v747 = vadd.f32 %v745, %v746
    %v748 = vrot.slane %v747, 2
    %v749 = vadd.f32 %v747, %v748
    %v750 = vrot.slane %v749, 1
    %v751 = vadd.f32 %v749, %v750
    %s752 = vtos %v751
    %s753 = smul.f32 %s752, 0.001953125
    %v754 = vmul.f32 %v733, %v733
    %v755 = vmul.f32 %v734, %v734
    %v756 = vmul.f32 %v735, %v735
    %v757 = vmul.f32 %v736, %v736
    %v758 = vsel %vm193, %v754, 0.0
    %v759 = vsel %vm193, %v755, 0.0
    %v760 = vadd.f32 %v758, %v759
    %v761 = vsel %vm193, %v756, 0.0
    %v762 = vadd.f32 %v760, %v761
    %v763 = vsel %vm193, %v757, 0.0
    %v764 = vadd.f32 %v762, %v763
    %765 = vadd.xlane.f32.xlu0 %v764
    %v766 = vpop.xlane.xlu0 %765
    %v767 = vrot.slane %v766, 4
    %v768 = vadd.f32 %v766, %v767
    %v769 = vrot.slane %v768, 2
    %v770 = vadd.f32 %v768, %v769
    %v771 = vrot.slane %v770, 1
    %v772 = vadd.f32 %v770, %v771
    %s773 = vtos %v772
    %s774 = smul.f32 %s773, 0.001953125
    %s775 = smul.f32 %s753, %s753
    %s776 = ssub.f32 %s774, %s775
    %v777 = vstv %s753
    %v778 = vsub.f32 %v733, %v777
    %v779 = vsub.f32 %v734, %v777
    %v780 = vsub.f32 %v735, %v777
    %v781 = vsub.f32 %v736, %v777
    %s782 = sadd.f32 %s776, 1e-05
    %v783 = vstv %s782
    %v784 = vrsqrt.pop %v783
    %v785 = vmul.f32 %v784, %v783
    %v786 = vmul.f32 %v785, %v784
    %v787 = vmul.f32 0.5, %v786
    %v788 = vsub.f32 1.5, %v787
    %v789 = vmul.f32 %v784, %v788
    %vm790 = vweird.f32 %v783
    %vm791 = vweird.f32 %v784
    %vm792 = vmor %vm790, %vm791
    %v793 = vsel %vm792, %v784, %v789
    %s794 = vtos %v793
    %v795 = vstv %s794
    %v796 = vmul.f32 %v778, %v795
    %v797 = vmul.f32 %v779, %v795
    %v798 = vmul.f32 %v780, %v795
    %v799 = vmul.f32 %v781, %v795
    %s800 = sld [smem:[#allocation5 + $0x83]]
    %v801 = vstv %s800
    %v802 = vmul.f32 %v796, %v801
    %v803 = vmul.f32 %v797, %v801
    %v804 = vmul.f32 %v798, %v801
    %v805 = vmul.f32 %v799, %v801
    %s806 = sld [smem:[#allocation5 + $0x103]]
    %v807 = vstv %s806
    %v808 = vadd.f32 %v802, %v807
    %v809 = vadd.f32 %v803, %v807
    %v810 = vadd.f32 %v804, %v807
    %v811 = vadd.f32 %v805, %v807
    %s812 = sld [smem:[#allocation5 + $0x183]]
    %v813 = vstv %s812
    %v814 = vmul.f32 %v813, %v808
    %v815 = vmul.f32 %v813, %v809
    %v816 = vmul.f32 %v813, %v810
    %v817 = vmul.f32 %v813, %v811
    %v818 = vadd.f32 %v637, %v814
    %v819 = vadd.f32 %v638, %v815
    %v820 = vadd.f32 %v639, %v816
    %v821 = vadd.f32 %v640, %v817
    %822 = vst.msk [vmem:[#allocation7] sm:$0xff] %vm193, %v818
    %823 = vst.msk [vmem:[#allocation7 + $0x8] sm:$0xff] %vm193, %v819
    %824 = vst.msk [vmem:[#allocation7 + $0x10] sm:$0xff] %vm193, %v820
    %825 = vst.msk [vmem:[#allocation7 + $0x18] sm:$0xff] %vm193, %v821
    // Predicated region
    $region26: #{forward.3} parent=1 // pred_check
      _
    $region27: #{forward.3} parent=1 // pred_check_branch
      %827 = sbr.rel (0) target = $region29
    $region28: #{forward.3} parent=1 // pred_region
      %829 = vsyncadd [#allocation3], 0
      %s830 = sshll.u32 [#allocation7], 4
      %s831 = int_to_ptr.vmem [resolvable:$true] %s830
      %s832 = sshll.u32 %s4, 4
      %s833 = int_to_ptr.hbm [resolvable:$true] %s832
      %838 = dma.vmem_to_hbm [thread:$0]  %s831, 512, %s833, [#allocation3], 128, 128, 8
    $region29: #{forward.3} parent=1 // pred_fallthru
      _
    // Predicated region
    $region30: #{forward.3} parent=1 // pred_check
      _
    $region31: #{forward.3} parent=1 // pred_check_branch
      %840 = sbr.rel (0) target = $region33
    $region32: #{forward.3} parent=1 // pred_region
      %842 = dma.done [#allocation3], 512
    $region33: #{forward.3} parent=1 // pred_fallthru
      _
    %843 = vsyncpa [#allocation3], 1
    %844 = vsyncpa [#allocation4], 1
    %845 = vsyncpa [#allocation6], 1

// kernel: forward.2
$region0: #{forward.2}
  #allocation0 [shape = 'u32[]', space=smem, size = 0x4, offset = 0x4, fixed_abs, tag = 'smem constant byte address 0x4 - core index']
  #allocation1 [shape = 'u32[72,128]{1,0:T(1,128)}', space=vmem, size = 0x9000, scoped, tag = 'internal scratch']
  %s0 = inlined_call_operand.vmem [shape: f32[64,2], index: 0, kind: input, shape index: {}]
  %s1 = inlined_call_operand.vmem [shape: f32[64,32], index: 1, kind: input, shape index: {}]
  %s2 = inlined_call_operand.vmem [shape: f32[2,32], index: 2, kind: input, shape index: {}]
  %s3 = inlined_call_operand.vmem [shape: f32[1,32], index: 3, kind: input, shape index: {}]
  %s4 = inlined_call_operand.vmem [shape: f32[2,32,96], index: 4, kind: input, shape index: {}]
  %s5 = inlined_call_operand.vmem [shape: f32[2,1,96], index: 5, kind: input, shape index: {}]
  %s6 = inlined_call_operand.vmem [shape: f32[2,32,32], index: 6, kind: input, shape index: {}]
  %s7 = inlined_call_operand.vmem [shape: f32[2,1,32], index: 7, kind: input, shape index: {}]
  %s8 = inlined_call_operand.vmem [shape: f32[2,1,32], index: 8, kind: input, shape index: {}]
  %s9 = inlined_call_operand.vmem [shape: f32[2,1,32], index: 9, kind: input, shape index: {}]
  %s10 = inlined_call_operand.vmem [shape: f32[2,32,128], index: 10, kind: input, shape index: {}]
  %s11 = inlined_call_operand.vmem [shape: f32[2,1,128], index: 11, kind: input, shape index: {}]
  %s12 = inlined_call_operand.vmem [shape: f32[2,128,32], index: 12, kind: input, shape index: {}]
  %s13 = inlined_call_operand.vmem [shape: f32[2,1,32], index: 13, kind: input, shape index: {}]
  %s14 = inlined_call_operand.vmem [shape: f32[2,1,32], index: 14, kind: input, shape index: {}]
  %s15 = inlined_call_operand.vmem [shape: f32[2,1,32], index: 15, kind: input, shape index: {}]
  %s16 = inlined_call_operand.vmem [shape: f32[1,32], index: 16, kind: input, shape index: {}]
  %s17 = inlined_call_operand.vmem [shape: f32[1,32], index: 17, kind: input, shape index: {}]
  %s18 = inlined_call_operand.vmem [shape: f32[32,2], index: 18, kind: input, shape index: {}]
  %s19 = inlined_call_operand.vmem [shape: f32[1,2], index: 19, kind: input, shape index: {}]
  %s20 = inlined_call_operand.vmem [shape: f32[32,32], index: 20, kind: input, shape index: {}]
  %s21 = inlined_call_operand.vmem [shape: f32[64,144], index: 21, kind: input, shape index: {}]
  %s22 = inlined_call_operand.vmem [shape: f32[1,2], index: 22, kind: input, shape index: {}]
  %s23 = inlined_call_operand.vmem [shape: f32[64,2], index: 23, kind: output, shape index: {0}]
  %s24 = inlined_call_operand.vmem [shape: f32[2,144], index: 24, kind: output, shape index: {1}]
  %s25 = inlined_call_operand.vmem [shape: f32[2,144], index: 25, kind: output, shape index: {2}]
  %26 = xla_tuple %s23, %s24, %s25
  %s27 = sld [smem:[#allocation0]]
  $region122: #{forward.2} parent=0
    _
  %s29 = ssub.s32 1, %s27
  %s30 = scalar_select 0, %s29, %s27
  $region1: #{forward.2} parent=0
    #allocation2 [shape = 'u8[512]{0}', space=smem, size = 0x200, scoped, tag = 'input window, operand 22, single buffered']
    #allocation3 [shape = 's32[1]{0}', space=sflag, size = 0x4, scoped, tag = 'scoped memory for forward.2']
    %31 = vsyncpa [#allocation3], 0
    // Predicated region
    $region2: #{forward.2} parent=1 // pred_check
      _
    $region3: #{forward.2} parent=1 // pred_check_branch
      %33 = sbr.rel (0) target = $region5
    $region4: #{forward.2} parent=1 // pred_region
      _
    $region5: #{forward.2} parent=1 // pred_fallthru
      _
    // Predicated region
    $region6: #{forward.2} parent=1 // pred_check
      _
    $region7: #{forward.2} parent=1 // pred_check_branch
      %35 = sbr.rel (0) target = $region9
    $region8: #{forward.2} parent=1 // pred_region
      _
    $region9: #{forward.2} parent=1 // pred_fallthru
      _
    // Predicated region
    $region10: #{forward.2} parent=1 // pred_check
      _
    $region11: #{forward.2} parent=1 // pred_check_branch
      %37 = sbr.rel (0) target = $region13
    $region12: #{forward.2} parent=1 // pred_region
      _
    $region13: #{forward.2} parent=1 // pred_fallthru
      _
    // Predicated region
    $region14: #{forward.2} parent=1 // pred_check
      _
    $region15: #{forward.2} parent=1 // pred_check_branch
      %39 = sbr.rel (0) target = $region17
    $region16: #{forward.2} parent=1 // pred_region
      _
    $region17: #{forward.2} parent=1 // pred_fallthru
      _
    // Predicated region
    $region18: #{forward.2} parent=1 // pred_check
      _
    $region19: #{forward.2} parent=1 // pred_check_branch
      %41 = sbr.rel (0) target = $region21
    $region20: #{forward.2} parent=1 // pred_region
      _
    $region21: #{forward.2} parent=1 // pred_fallthru
      _
    // Predicated region
    $region22: #{forward.2} parent=1 // pred_check
      _
    $region23: #{forward.2} parent=1 // pred_check_branch
      %43 = sbr.rel (0) target = $region25
    $region24: #{forward.2} parent=1 // pred_region
      _
    $region25: #{forward.2} parent=1 // pred_fallthru
      _
    // Predicated region
    $region26: #{forward.2} parent=1 // pred_check
      _
    $region27: #{forward.2} parent=1 // pred_check_branch
      %45 = sbr.rel (0) target = $region29
    $region28: #{forward.2} parent=1 // pred_region
      _
    $region29: #{forward.2} parent=1 // pred_fallthru
      _
    // Predicated region
    $region30: #{forward.2} parent=1 // pred_check
      _
    $region31: #{forward.2} parent=1 // pred_check_branch
      %47 = sbr.rel (0) target = $region33
    $region32: #{forward.2} parent=1 // pred_region
      _
    $region33: #{forward.2} parent=1 // pred_fallthru
      _
    // Predicated region
    $region34: #{forward.2} parent=1 // pred_check
      _
    $region35: #{forward.2} parent=1 // pred_check_branch
      %49 = sbr.rel (0) target = $region37
    $region36: #{forward.2} parent=1 // pred_region
      _
    $region37: #{forward.2} parent=1 // pred_fallthru
      _
    // Predicated region
    $region38: #{forward.2} parent=1 // pred_check
      _
    $region39: #{forward.2} parent=1 // pred_check_branch
      %51 = sbr.rel (0) target = $region41
    $region40: #{forward.2} parent=1 // pred_region
      _
    $region41: #{forward.2} parent=1 // pred_fallthru
      _
    // Predicated region
    $region42: #{forward.2} parent=1 // pred_check
      _
    $region43: #{forward.2} parent=1 // pred_check_branch
      %53 = sbr.rel (0) target = $region45
    $region44: #{forward.2} parent=1 // pred_region
      _
    $region45: #{forward.2} parent=1 // pred_fallthru
      _
    // Predicated region
    $region46: #{forward.2} parent=1 // pred_check
      _
    $region47: #{forward.2} parent=1 // pred_check_branch
      %55 = sbr.rel (0) target = $region49
    $region48: #{forward.2} parent=1 // pred_region
      _
    $region49: #{forward.2} parent=1 // pred_fallthru
      _
    // Predicated region
    $region50: #{forward.2} parent=1 // pred_check
      _
    $region51: #{forward.2} parent=1 // pred_check_branch
      %57 = sbr.rel (0) target = $region53
    $region52: #{forward.2} parent=1 // pred_region
      _
    $region53: #{forward.2} parent=1 // pred_fallthru
      _
    // Predicated region
    $region54: #{forward.2} parent=1 // pred_check
      _
    $region55: #{forward.2} parent=1 // pred_check_branch
      %59 = sbr.rel (0) target = $region57
    $region56: #{forward.2} parent=1 // pred_region
      _
    $region57: #{forward.2} parent=1 // pred_fallthru
      _
    // Predicated region
    $region58: #{forward.2} parent=1 // pred_check
      _
    $region59: #{forward.2} parent=1 // pred_check_branch
      %61 = sbr.rel (0) target = $region61
    $region60: #{forward.2} parent=1 // pred_region
      _
    $region61: #{forward.2} parent=1 // pred_fallthru
      _
    // Predicated region
    $region62: #{forward.2} parent=1 // pred_check
      _
    $region63: #{forward.2} parent=1 // pred_check_branch
      %63 = sbr.rel (0) target = $region65
    $region64: #{forward.2} parent=1 // pred_region
      _
    $region65: #{forward.2} parent=1 // pred_fallthru
      _
    // Predicated region
    $region66: #{forward.2} parent=1 // pred_check
      _
    $region67: #{forward.2} parent=1 // pred_check_branch
      %65 = sbr.rel (0) target = $region69
    $region68: #{forward.2} parent=1 // pred_region
      _
    $region69: #{forward.2} parent=1 // pred_fallthru
      _
    // Predicated region
    $region70: #{forward.2} parent=1 // pred_check
      _
    $region71: #{forward.2} parent=1 // pred_check_branch
      %67 = sbr.rel (0) target = $region73
    $region72: #{forward.2} parent=1 // pred_region
      _
    $region73: #{forward.2} parent=1 // pred_fallthru
      _
    // Predicated region
    $region74: #{forward.2} parent=1 // pred_check
      _
    $region75: #{forward.2} parent=1 // pred_check_branch
      %69 = sbr.rel (0) target = $region77
    $region76: #{forward.2} parent=1 // pred_region
      _
    $region77: #{forward.2} parent=1 // pred_fallthru
      _
    // Predicated region
    $region78: #{forward.2} parent=1 // pred_check
      _
    $region79: #{forward.2} parent=1 // pred_check_branch
      %71 = sbr.rel (0) target = $region81
    $region80: #{forward.2} parent=1 // pred_region
      _
    $region81: #{forward.2} parent=1 // pred_fallthru
      _
    // Predicated region
    $region82: #{forward.2} parent=1 // pred_check
      _
    $region83: #{forward.2} parent=1 // pred_check_branch
      %73 = sbr.rel (0) target = $region85
    $region84: #{forward.2} parent=1 // pred_region
      _
    $region85: #{forward.2} parent=1 // pred_fallthru
      _
    // Predicated region
    $region86: #{forward.2} parent=1 // pred_check
      _
    $region87: #{forward.2} parent=1 // pred_check_branch
      %75 = sbr.rel (0) target = $region89
    $region88: #{forward.2} parent=1 // pred_region
      _
    $region89: #{forward.2} parent=1 // pred_fallthru
      _
    // Predicated region
    $region90: #{forward.2} parent=1 // pred_check
      _
    $region91: #{forward.2} parent=1 // pred_check_branch
      %77 = sbr.rel (0) target = $region93
    $region92: #{forward.2} parent=1 // pred_region
      %79 = vsyncadd [#allocation3], 0
      %s81 = sshll.u32 %s22, 4
      %s82 = int_to_ptr.vmem [resolvable:$true] %s81
      %84 = dma.vmem_to_smem %s82, 16, [#allocation2], [#allocation3]
    $region93: #{forward.2} parent=1 // pred_fallthru
      _
    // Predicated region
    $region94: #{forward.2} parent=1 // pred_check
      _
    $region95: #{forward.2} parent=1 // pred_check_branch
      %86 = sbr.rel (0) target = $region97
    $region96: #{forward.2} parent=1 // pred_region
      %88 = dma.done [#allocation3], 16
    $region97: #{forward.2} parent=1 // pred_fallthru
      _
    %89 = sfence
    %v90 = vld [vmem:[%s0] sm:$0xff]
    %v91 = vld [vmem:[%s0 + $0x8] sm:$0xff]
    %v92 = vld [vmem:[%s0 + $0x10] sm:$0xff]
    %v93 = vld [vmem:[%s0 + $0x18] sm:$0xff]
    %v94 = vld [vmem:[%s0 + $0x20] sm:$0xff]
    %v95 = vld [vmem:[%s0 + $0x28] sm:$0xff]
    %v96 = vld [vmem:[%s0 + $0x30] sm:$0xff]
    %v97 = vld [vmem:[%s0 + $0x38] sm:$0xff]
    %v98 = vld [vmem:[%s2] sm:$0x1]
    %100 = vset.pattern.permute.xlu0 0
    %101 = vperm.xlu0 %100, %v90
    %v102 = vpop.permute.xlu0 %101
    %105 = vset.pattern.permute.xlu0 0
    %106 = vperm.xlu0 %105, %v91
    %v107 = vpop.permute.xlu0 %106
    %110 = vset.pattern.permute.xlu0 0
    %111 = vperm.xlu0 %110, %v92
    %v112 = vpop.permute.xlu0 %111
    %115 = vset.pattern.permute.xlu0 0
    %116 = vperm.xlu0 %115, %v93
    %v117 = vpop.permute.xlu0 %116
    %120 = vset.pattern.permute.xlu0 0
    %121 = vperm.xlu0 %120, %v94
    %v122 = vpop.permute.xlu0 %121
    %125 = vset.pattern.permute.xlu0 0
    %126 = vperm.xlu0 %125, %v95
    %v127 = vpop.permute.xlu0 %126
    %130 = vset.pattern.permute.xlu0 0
    %131 = vperm.xlu0 %130, %v96
    %v132 = vpop.permute.xlu0 %131
    %135 = vset.pattern.permute.xlu0 0
    %136 = vperm.xlu0 %135, %v97
    %v137 = vpop.permute.xlu0 %136
    %v139 = vperm.slane %v98, 0
    %v140 = vmul.f32 %v102, %v139
    %v141 = vmul.f32 %v107, %v139
    %v142 = vmul.f32 %v112, %v139
    %v143 = vmul.f32 %v117, %v139
    %v144 = vmul.f32 %v122, %v139
    %v145 = vmul.f32 %v127, %v139
    %v146 = vmul.f32 %v132, %v139
    %v147 = vmul.f32 %v137, %v139
    %v148 = vld [vmem:[%s2 + $0x1] sm:$0x1]
    %149 = vset.pattern.permute.xlu0 1
    %150 = vperm.xlu0 %149, %v90
    %v151 = vpop.permute.xlu0 %150
    %153 = vset.pattern.permute.xlu0 1
    %154 = vperm.xlu0 %153, %v91
    %v155 = vpop.permute.xlu0 %154
    %157 = vset.pattern.permute.xlu0 1
    %158 = vperm.xlu0 %157, %v92
    %v159 = vpop.permute.xlu0 %158
    %161 = vset.pattern.permute.xlu0 1
    %162 = vperm.xlu0 %161, %v93
    %v163 = vpop.permute.xlu0 %162
    %165 = vset.pattern.permute.xlu0 1
    %166 = vperm.xlu0 %165, %v94
    %v167 = vpop.permute.xlu0 %166
    %169 = vset.pattern.permute.xlu0 1
    %170 = vperm.xlu0 %169, %v95
    %v171 = vpop.permute.xlu0 %170
    %173 = vset.pattern.permute.xlu0 1
    %174 = vperm.xlu0 %173, %v96
    %v175 = vpop.permute.xlu0 %174
    %177 = vset.pattern.permute.xlu0 1
    %178 = vperm.xlu0 %177, %v97
    %v179 = vpop.permute.xlu0 %178
    %v181 = vperm.slane %v148, 0
    %v182 = vmul.f32 %v151, %v181
    %v183 = vmul.f32 %v155, %v181
    %v184 = vmul.f32 %v159, %v181
    %v185 = vmul.f32 %v163, %v181
    %v186 = vmul.f32 %v167, %v181
    %v187 = vmul.f32 %v171, %v181
    %v188 = vmul.f32 %v175, %v181
    %v189 = vmul.f32 %v179, %v181
    %v190 = vadd.f32 %v140, %v182
    %v191 = vadd.f32 %v141, %v183
    %v192 = vadd.f32 %v142, %v184
    %v193 = vadd.f32 %v143, %v185
    %v194 = vadd.f32 %v144, %v186
    %v195 = vadd.f32 %v145, %v187
    %v196 = vadd.f32 %v146, %v188
    %v197 = vadd.f32 %v147, %v189
    %v198 = vld [vmem:[%s3] sm:$0x1]
    %v200 = vperm.slane %v198, 0
    %v202 = vadd.f32 %v190, %v200
    %v203 = vadd.f32 %v191, %v200
    %v204 = vadd.f32 %v192, %v200
    %v205 = vadd.f32 %v193, %v200
    %v206 = vadd.f32 %v194, %v200
    %v207 = vadd.f32 %v195, %v200
    %v208 = vadd.f32 %v196, %v200
    %v209 = vadd.f32 %v197, %v200
    %v210 = vld [vmem:[%s1] sm:$0xff]
    %v211 = vld [vmem:[%s1 + $0x8] sm:$0xff]
    %v212 = vld [vmem:[%s1 + $0x10] sm:$0xff]
    %v213 = vld [vmem:[%s1 + $0x18] sm:$0xff]
    %v214 = vld [vmem:[%s1 + $0x20] sm:$0xff]
    %v215 = vld [vmem:[%s1 + $0x28] sm:$0xff]
    %v216 = vld [vmem:[%s1 + $0x30] sm:$0xff]
    %v217 = vld [vmem:[%s1 + $0x38] sm:$0xff]
    %v218 = vadd.f32 %v202, %v210
    %v219 = vadd.f32 %v203, %v211
    %v220 = vadd.f32 %v204, %v212
    %v221 = vadd.f32 %v205, %v213
    %v222 = vadd.f32 %v206, %v214
    %v223 = vadd.f32 %v207, %v215
    %v224 = vadd.f32 %v208, %v216
    %v225 = vadd.f32 %v209, %v217
    %v226 = vld [vmem:[%s20] sm:$0xff]
    %v227 = vld [vmem:[%s20 + $0x8] sm:$0xff]
    %v228 = vld [vmem:[%s20 + $0x10] sm:$0xff]
    %v229 = vld [vmem:[%s20 + $0x18] sm:$0xff]
    %v230 = vld [vmem:[%s4] sm:$0xff]
    %v231 = vld [vmem:[%s4 + $0x8] sm:$0xff]
    %v232 = vld [vmem:[%s4 + $0x10] sm:$0xff]
    %v233 = vld [vmem:[%s4 + $0x18] sm:$0xff]
    %v234 = vld [vmem:[%s5] sm:$0x1]
    %v236 = vperm.slane %v234, 0
    %vm238 = vcmask 261120
    %v240 = vsel %vm238, %v218, 0
    %v243 = vsel %vm238, %v219, 0
    %v246 = vsel %vm238, %v220, 0
    %v249 = vsel %vm238, %v221, 0
    %v252 = vsel %vm238, %v222, 0
    %v255 = vsel %vm238, %v223, 0
    %v258 = vsel %vm238, %v224, 0
    %v261 = vsel %vm238, %v225, 0
    %263 = vmatpush.msra.mxu0 0.0
    %264 = vmatpush.msra.mxu0 0.0
    %265 = vmatpush.msra.mxu0 0.0
    %266 = vmatpush.msra.mxu0 0.0
    %267 = vmatpush.msra.mxu0 0.0
    %268 = vmatpush.msra.mxu0 0.0
    %269 = vmatpush.msra.mxu0 0.0
    %270 = vmatpush.msra.mxu0 0.0
    %271 = vmatpush.msra.mxu0 0.0
    %272 = vmatpush.msra.mxu0 0.0
    %273 = vmatpush.msra.mxu0 0.0
    %274 = vmatpush.msra.mxu0 0.0
    %275 = vmatpush.msra.mxu0 %v233
    %276 = vmatpush.msra.mxu0 %v232
    %277 = vmatpush.msra.mxu0 %v231
    %278 = vmatpush.msra.mxu0 %v230
    %279 = vmatmul.f32.gmra.mxu0 %v240
    %v280 = vpop.f32.mrf.mxu0
    %v281 = vadd.f32 %v236, %v280
    %282 = vmatmul.f32.gmra.mxu0 %v243
    %v283 = vpop.f32.mrf.mxu0
    %v284 = vadd.f32 %v236, %v283
    %285 = vmatmul.f32.gmra.mxu0 %v246
    %v286 = vpop.f32.mrf.mxu0
    %v287 = vadd.f32 %v236, %v286
    %288 = vmatmul.f32.gmra.mxu0 %v249
    %v289 = vpop.f32.mrf.mxu0
    %v290 = vadd.f32 %v236, %v289
    %291 = vmatmul.f32.gmra.mxu0 %v252
    %v292 = vpop.f32.mrf.mxu0
    %v293 = vadd.f32 %v236, %v292
    %294 = vmatmul.f32.gmra.mxu0 %v255
    %v295 = vpop.f32.mrf.mxu0
    %v296 = vadd.f32 %v236, %v295
    %297 = vmatmul.f32.gmra.mxu0 %v258
    %v298 = vpop.f32.mrf.mxu0
    %v299 = vadd.f32 %v236, %v298
    %300 = vmatmul.f32.gmra.mxu0 %v261
    %v301 = vpop.f32.mrf.mxu0
    %v302 = vadd.f32 %v236, %v301
    %303 = vdwg.mxu0
    %vm304 = vcmp.gt.f32.partialorder %v281, 0.0
    %vm305 = vcmp.gt.f32.partialorder %v284, 0.0
    %vm306 = vcmp.gt.f32.partialorder %v287, 0.0
    %vm307 = vcmp.gt.f32.partialorder %v290, 0.0
    %vm308 = vcmp.gt.f32.partialorder %v293, 0.0
    %vm309 = vcmp.gt.f32.partialorder %v296, 0.0
    %vm310 = vcmp.gt.f32.partialorder %v299, 0.0
    %vm311 = vcmp.gt.f32.partialorder %v302, 0.0
    %v312 = vadd.f32 %v281, 1.0
    %v313 = vadd.f32 %v284, 1.0
    %v314 = vadd.f32 %v287, 1.0
    %v315 = vadd.f32 %v290, 1.0
    %v316 = vadd.f32 %v293, 1.0
    %v317 = vadd.f32 %v296, 1.0
    %v318 = vadd.f32 %v299, 1.0
    %v319 = vadd.f32 %v302, 1.0
    %v320 = vmul.f32 %v281, 1.442695
    %v321 = vpow.pop %v320
    %v322 = vmul.f32 %v284, 1.442695
    %v323 = vpow.pop %v322
    %v324 = vmul.f32 %v287, 1.442695
    %v325 = vpow.pop %v324
    %v326 = vmul.f32 %v290, 1.442695
    %v327 = vpow.pop %v326
    %v328 = vmul.f32 %v293, 1.442695
    %v329 = vpow.pop %v328
    %v330 = vmul.f32 %v296, 1.442695
    %v331 = vpow.pop %v330
    %v332 = vmul.f32 %v299, 1.442695
    %v333 = vpow.pop %v332
    %v334 = vmul.f32 %v302, 1.442695
    %v335 = vpow.pop %v334
    %v336 = vsel %vm304, %v312, %v321
    %v337 = vsel %vm305, %v313, %v323
    %v338 = vsel %vm306, %v314, %v325
    %v339 = vsel %vm307, %v315, %v327
    %v340 = vsel %vm308, %v316, %v329
    %v341 = vsel %vm309, %v317, %v331
    %v342 = vsel %vm310, %v318, %v333
    %v343 = vsel %vm311, %v319, %v335
    %348 = vrot.lane.b32.xlu0 %v336, 96
    %v349 = vpop.permute.xlu0 %348
    %350 = vrot.lane.b32.xlu0 %v337, 96
    %v351 = vpop.permute.xlu0 %350
    %352 = vrot.lane.b32.xlu0 %v338, 96
    %v353 = vpop.permute.xlu0 %352
    %354 = vrot.lane.b32.xlu0 %v339, 96
    %v355 = vpop.permute.xlu0 %354
    %360 = vxpose.xlu0.b32.start [1/16] %v349, 128
    %361 = vxpose.xlu0.b32.cont [2/16] %v351, 128
    %362 = vxpose.xlu0.b32.cont [3/16] %v353, 128
    %363 = vxpose.xlu0.b32.cont [4/16] %v355, 128
    %364 = vxpose.xlu0.b32.cont [5/16] 0.0, 128
    %365 = vxpose.xlu0.b32.cont [6/16] 0.0, 128
    %366 = vxpose.xlu0.b32.cont [7/16] 0.0, 128
    %367 = vxpose.xlu0.b32.cont [8/16] 0.0, 128
    %368 = vxpose.xlu0.b32.cont [9/16] 0.0, 128
    %369 = vxpose.xlu0.b32.cont [10/16] 0.0, 128
    %370 = vxpose.xlu0.b32.cont [11/16] 0.0, 128
    %371 = vxpose.xlu0.b32.cont [12/16] 0.0, 128
    %372 = vxpose.xlu0.b32.cont [13/16] 0.0, 128
    %373 = vxpose.xlu0.b32.cont [14/16] 0.0, 128
    %374 = vxpose.xlu0.b32.cont [15/16] 0.0, 128
    %375 = vxpose.xlu0.b32.end [16/16] 0.0, 128
    %v376 = vpop.trf.xlu0
    %v377 = vpop.trf.xlu0
    %v378 = vpop.trf.xlu0
    %v379 = vpop.trf.xlu0
    %v380 = vpop.trf.xlu0
    %v381 = vpop.trf.xlu0
    %v382 = vpop.trf.xlu0
    %v383 = vpop.trf.xlu0
    %v384 = vpop.trf.xlu0
    %v385 = vpop.trf.xlu0
    %v386 = vpop.trf.xlu0
    %v387 = vpop.trf.xlu0
    %v388 = vpop.trf.xlu0
    %v389 = vpop.trf.xlu0
    %v390 = vpop.trf.xlu0
    %v391 = vpop.trf.xlu0
    %396 = vrot.lane.b32.xlu0 %v281, 64
    %v397 = vpop.permute.xlu0 %396
    %398 = vrot.lane.b32.xlu0 %v284, 64
    %v399 = vpop.permute.xlu0 %398
    %400 = vrot.lane.b32.xlu0 %v287, 64
    %v401 = vpop.permute.xlu0 %400
    %402 = vrot.lane.b32.xlu0 %v290, 64
    %v403 = vpop.permute.xlu0 %402
    %v409 = vsel %vm238, %v376, 0
    %v412 = vsel %vm238, %v377, 0
    %v415 = vsel %vm238, %v378, 0
    %v418 = vsel %vm238, %v379, 0
    %420 = vmatpush.msra.mxu0 0.0
    %421 = vmatpush.msra.mxu0 0.0
    %422 = vmatpush.msra.mxu0 0.0
    %423 = vmatpush.msra.mxu0 0.0
    %424 = vmatpush.msra.mxu0 0.0
    %425 = vmatpush.msra.mxu0 0.0
    %426 = vmatpush.msra.mxu0 0.0
    %427 = vmatpush.msra.mxu0 0.0
    %428 = vmatpush.msra.mxu0 0.0
    %429 = vmatpush.msra.mxu0 0.0
    %430 = vmatpush.msra.mxu0 0.0
    %431 = vmatpush.msra.mxu0 0.0
    %432 = vmatpush.msra.mxu0 %v403
    %433 = vmatpush.msra.mxu0 %v401
    %434 = vmatpush.msra.mxu0 %v399
    %435 = vmatpush.msra.mxu0 %v397
    %436 = vmatmul.f32.gmra.mxu0 %v409
    %v437 = vpop.f32.mrf.mxu0
    %v438 = vadd.f32 0.0, %v437
    %439 = vmatmul.f32.gmra.mxu0 %v412
    %v440 = vpop.f32.mrf.mxu0
    %v441 = vadd.f32 0.0, %v440
    %442 = vmatmul.f32.gmra.mxu0 %v415
    %v443 = vpop.f32.mrf.mxu0
    %v444 = vadd.f32 0.0, %v443
    %445 = vmatmul.f32.gmra.mxu0 %v418
    %v446 = vpop.f32.mrf.mxu0
    %v447 = vadd.f32 0.0, %v446
    %448 = vdwg.mxu0
    %v449 = vmul.f32 %v438, %v226
    %v450 = vmul.f32 %v441, %v227
    %v451 = vmul.f32 %v444, %v228
    %v452 = vmul.f32 %v447, %v229
    %v453 = vsel %vm238, %v336, 0
    %v455 = vsel %vm238, %v337, 0
    %v457 = vsel %vm238, %v338, 0
    %v459 = vsel %vm238, %v339, 0
    %461 = vmatpush.msra.mxu0 0.0
    %462 = vmatpush.msra.mxu0 0.0
    %463 = vmatpush.msra.mxu0 0.0
    %464 = vmatpush.msra.mxu0 0.0
    %465 = vmatpush.msra.mxu0 0.0
    %466 = vmatpush.msra.mxu0 0.0
    %467 = vmatpush.msra.mxu0 0.0
    %468 = vmatpush.msra.mxu0 0.0
    %469 = vmatpush.msra.mxu0 0.0
    %470 = vmatpush.msra.mxu0 0.0
    %471 = vmatpush.msra.mxu0 0.0
    %472 = vmatpush.msra.mxu0 0.0
    %473 = vmatpush.msra.mxu0 %v452
    %474 = vmatpush.msra.mxu0 %v451
    %475 = vmatpush.msra.mxu0 %v450
    %476 = vmatpush.msra.mxu0 %v449
    %477 = vmatmul.f32.gmra.mxu0 %v453
    %v478 = vpop.f32.mrf.mxu0
    %v479 = vadd.f32 0.0, %v478
    %480 = vmatmul.f32.gmra.mxu0 %v455
    %v481 = vpop.f32.mrf.mxu0
    %v482 = vadd.f32 0.0, %v481
    %483 = vmatmul.f32.gmra.mxu0 %v457
    %v484 = vpop.f32.mrf.mxu0
    %v485 = vadd.f32 0.0, %v484
    %486 = vmatmul.f32.gmra.mxu0 %v459
    %v487 = vpop.f32.mrf.mxu0
    %v488 = vadd.f32 0.0, %v487
    %489 = vdwg.mxu0
    %vm490 = vcmask 523520
    %v491 = vsel %vm490, %v336, 0.0
    %v492 = vsel %vm490, %v337, 0.0
    %v493 = vadd.f32 %v491, %v492
    %v494 = vsel %vm490, %v338, 0.0
    %v495 = vadd.f32 %v493, %v494
    %v496 = vsel %vm490, %v339, 0.0
    %v497 = vadd.f32 %v495, %v496
    %v498 = vrot.slane %v497, 4
    %v499 = vadd.f32 %v497, %v498
    %v500 = vrot.slane %v499, 2
    %v501 = vadd.f32 %v499, %v500
    %v502 = vrot.slane %v501, 1
    %v503 = vadd.f32 %v501, %v502
    %505 = vrot.lane.b32.xlu0 %v503, 96
    %v506 = vpop.permute.xlu0 %505
    %v508 = vmul.f32 %v336, %v506
    %v509 = vmul.f32 %v337, %v506
    %v510 = vmul.f32 %v338, %v506
    %v511 = vmul.f32 %v339, %v506
    %v513 = vsel %vm238, %v508, 0
    %v516 = vsel %vm238, %v509, 0
    %v519 = vsel %vm238, %v510, 0
    %v522 = vsel %vm238, %v511, 0
    %524 = vmatpush.msra.mxu0 0.0
    %525 = vmatpush.msra.mxu0 0.0
    %526 = vmatpush.msra.mxu0 0.0
    %527 = vmatpush.msra.mxu0 0.0
    %528 = vmatpush.msra.mxu0 0.0
    %529 = vmatpush.msra.mxu0 0.0
    %530 = vmatpush.msra.mxu0 0.0
    %531 = vmatpush.msra.mxu0 0.0
    %532 = vmatpush.msra.mxu0 0.0
    %533 = vmatpush.msra.mxu0 0.0
    %534 = vmatpush.msra.mxu0 0.0
    %535 = vmatpush.msra.mxu0 0.0
    %536 = vmatpush.msra.mxu0 %v229
    %537 = vmatpush.msra.mxu0 %v228
    %538 = vmatpush.msra.mxu0 %v227
    %539 = vmatpush.msra.mxu0 %v226
    %540 = vmatmul.f32.gmra.mxu0 %v513
    %v541 = vpop.f32.mrf.mxu0
    %v542 = vadd.f32 1e-06, %v541
    %543 = vmatmul.f32.gmra.mxu0 %v516
    %v544 = vpop.f32.mrf.mxu0
    %v545 = vadd.f32 1e-06, %v544
    %546 = vmatmul.f32.gmra.mxu0 %v519
    %v547 = vpop.f32.mrf.mxu0
    %v548 = vadd.f32 1e-06, %v547
    %549 = vmatmul.f32.gmra.mxu0 %v522
    %v550 = vpop.f32.mrf.mxu0
    %v551 = vadd.f32 1e-06, %v550
    %552 = vdwg.mxu0
    %v553 = vrcp.pop %v542
    %v554 = vmul.f32 %v542, %v553
    %v555 = vsub.f32 1.0, %v554
    %v556 = vmul.f32 %v553, %v555
    %v557 = vadd.f32 %v553, %v556
    %vm558 = vweird.f32 %v542
    %vm559 = vweird.f32 %v553
    %vm560 = vmor %vm558, %vm559
    %v561 = vsel %vm560, %v553, %v557
    %v562 = vand.u32 2147483647, %v542
    %vm563 = vcmp.eq.f32.partialorder %v562, 8.507059e+37
    %v564 = vand.u32 %v542, 2147483648
    %v565 = vor.u32 1.1754944e-38, %v564
    %v566 = vsel %vm563, %v565, %v561
    %v567 = vmul.f32 %v479, %v566
    %v568 = vrcp.pop %v545
    %v569 = vmul.f32 %v545, %v568
    %v570 = vsub.f32 1.0, %v569
    %v571 = vmul.f32 %v568, %v570
    %v572 = vadd.f32 %v568, %v571
    %vm573 = vweird.f32 %v545
    %vm574 = vweird.f32 %v568
    %vm575 = vmor %vm573, %vm574
    %v576 = vsel %vm575, %v568, %v572
    %v577 = vand.u32 2147483647, %v545
    %vm578 = vcmp.eq.f32.partialorder %v577, 8.507059e+37
    %v579 = vand.u32 %v545, 2147483648
    %v580 = vor.u32 1.1754944e-38, %v579
    %v581 = vsel %vm578, %v580, %v576
    %v582 = vmul.f32 %v482, %v581
    %v583 = vrcp.pop %v548
    %v584 = vmul.f32 %v548, %v583
    %v585 = vsub.f32 1.0, %v584
    %v586 = vmul.f32 %v583, %v585
    %v587 = vadd.f32 %v583, %v586
    %vm588 = vweird.f32 %v548
    %vm589 = vweird.f32 %v583
    %vm590 = vmor %vm588, %vm589
    %v591 = vsel %vm590, %v583, %v587
    %v592 = vand.u32 2147483647, %v548
    %vm593 = vcmp.eq.f32.partialorder %v592, 8.507059e+37
    %v594 = vand.u32 %v548, 2147483648
    %v595 = vor.u32 1.1754944e-38, %v594
    %v596 = vsel %vm593, %v595, %v591
    %v597 = vmul.f32 %v485, %v596
    %v598 = vrcp.pop %v551
    %v599 = vmul.f32 %v551, %v598
    %v600 = vsub.f32 1.0, %v599
    %v601 = vmul.f32 %v598, %v600
    %v602 = vadd.f32 %v598, %v601
    %vm603 = vweird.f32 %v551
    %vm604 = vweird.f32 %v598
    %vm605 = vmor %vm603, %vm604
    %v606 = vsel %vm605, %v598, %v602
    %v607 = vand.u32 2147483647, %v551
    %vm608 = vcmp.eq.f32.partialorder %v607, 8.507059e+37
    %v609 = vand.u32 %v551, 2147483648
    %v610 = vor.u32 1.1754944e-38, %v609
    %v611 = vsel %vm608, %v610, %v606
    %v612 = vmul.f32 %v488, %v611
    %617 = vrot.lane.b32.xlu0 %v340, 96
    %v618 = vpop.permute.xlu0 %617
    %619 = vrot.lane.b32.xlu0 %v341, 96
    %v620 = vpop.permute.xlu0 %619
    %621 = vrot.lane.b32.xlu0 %v342, 96
    %v622 = vpop.permute.xlu0 %621
    %623 = vrot.lane.b32.xlu0 %v343, 96
    %v624 = vpop.permute.xlu0 %623
    %629 = vxpose.xlu0.b32.start [1/16] %v618, 128
    %630 = vxpose.xlu0.b32.cont [2/16] %v620, 128
    %631 = vxpose.xlu0.b32.cont [3/16] %v622, 128
    %632 = vxpose.xlu0.b32.cont [4/16] %v624, 128
    %633 = vxpose.xlu0.b32.cont [5/16] 0.0, 128
    %634 = vxpose.xlu0.b32.cont [6/16] 0.0, 128
    %635 = vxpose.xlu0.b32.cont [7/16] 0.0, 128
    %636 = vxpose.xlu0.b32.cont [8/16] 0.0, 128
    %637 = vxpose.xlu0.b32.cont [9/16] 0.0, 128
    %638 = vxpose.xlu0.b32.cont [10/16] 0.0, 128
    %639 = vxpose.xlu0.b32.cont [11/16] 0.0, 128
    %640 = vxpose.xlu0.b32.cont [12/16] 0.0, 128
    %641 = vxpose.xlu0.b32.cont [13/16] 0.0, 128
    %642 = vxpose.xlu0.b32.cont [14/16] 0.0, 128
    %643 = vxpose.xlu0.b32.cont [15/16] 0.0, 128
    %644 = vxpose.xlu0.b32.end [16/16] 0.0, 128
    %v645 = vpop.trf.xlu0
    %v646 = vpop.trf.xlu0
    %v647 = vpop.trf.xlu0
    %v648 = vpop.trf.xlu0
    %v649 = vpop.trf.xlu0
    %v650 = vpop.trf.xlu0
    %v651 = vpop.trf.xlu0
    %v652 = vpop.trf.xlu0
    %v653 = vpop.trf.xlu0
    %v654 = vpop.trf.xlu0
    %v655 = vpop.trf.xlu0
    %v656 = vpop.trf.xlu0
    %v657 = vpop.trf.xlu0
    %v658 = vpop.trf.xlu0
    %v659 = vpop.trf.xlu0
    %v660 = vpop.trf.xlu0
    %665 = vrot.lane.b32.xlu0 %v293, 64
    %v666 = vpop.permute.xlu0 %665
    %667 = vrot.lane.b32.xlu0 %v296, 64
    %v668 = vpop.permute.xlu0 %667
    %669 = vrot.lane.b32.xlu0 %v299, 64
    %v670 = vpop.permute.xlu0 %669
    %671 = vrot.lane.b32.xlu0 %v302, 64
    %v672 = vpop.permute.xlu0 %671
    %v678 = vsel %vm238, %v645, 0
    %v681 = vsel %vm238, %v646, 0
    %v684 = vsel %vm238, %v647, 0
    %v687 = vsel %vm238, %v648, 0
    %689 = vmatpush.msra.mxu0 0.0
    %690 = vmatpush.msra.mxu0 0.0
    %691 = vmatpush.msra.mxu0 0.0
    %692 = vmatpush.msra.mxu0 0.0
    %693 = vmatpush.msra.mxu0 0.0
    %694 = vmatpush.msra.mxu0 0.0
    %695 = vmatpush.msra.mxu0 0.0
    %696 = vmatpush.msra.mxu0 0.0
    %697 = vmatpush.msra.mxu0 0.0
    %698 = vmatpush.msra.mxu0 0.0
    %699 = vmatpush.msra.mxu0 0.0
    %700 = vmatpush.msra.mxu0 0.0
    %701 = vmatpush.msra.mxu0 %v672
    %702 = vmatpush.msra.mxu0 %v670
    %703 = vmatpush.msra.mxu0 %v668
    %704 = vmatpush.msra.mxu0 %v666
    %705 = vmatmul.f32.gmra.mxu0 %v678
    %v706 = vpop.f32.mrf.mxu0
    %v707 = vadd.f32 0.0, %v706
    %708 = vmatmul.f32.gmra.mxu0 %v681
    %v709 = vpop.f32.mrf.mxu0
    %v710 = vadd.f32 0.0, %v709
    %711 = vmatmul.f32.gmra.mxu0 %v684
    %v712 = vpop.f32.mrf.mxu0
    %v713 = vadd.f32 0.0, %v712
    %714 = vmatmul.f32.gmra.mxu0 %v687
    %v715 = vpop.f32.mrf.mxu0
    %v716 = vadd.f32 0.0, %v715
    %717 = vdwg.mxu0
    %v718 = vmul.f32 %v707, %v226
    %v719 = vmul.f32 %v710, %v227
    %v720 = vmul.f32 %v713, %v228
    %v721 = vmul.f32 %v716, %v229
    %v722 = vsel %vm238, %v340, 0
    %v724 = vsel %vm238, %v341, 0
    %v726 = vsel %vm238, %v342, 0
    %v728 = vsel %vm238, %v343, 0
    %730 = vmatpush.msra.mxu0 0.0
    %731 = vmatpush.msra.mxu0 0.0
    %732 = vmatpush.msra.mxu0 0.0
    %733 = vmatpush.msra.mxu0 0.0
    %734 = vmatpush.msra.mxu0 0.0
    %735 = vmatpush.msra.mxu0 0.0
    %736 = vmatpush.msra.mxu0 0.0
    %737 = vmatpush.msra.mxu0 0.0
    %738 = vmatpush.msra.mxu0 0.0
    %739 = vmatpush.msra.mxu0 0.0
    %740 = vmatpush.msra.mxu0 0.0
    %741 = vmatpush.msra.mxu0 0.0
    %742 = vmatpush.msra.mxu0 %v721
    %743 = vmatpush.msra.mxu0 %v720
    %744 = vmatpush.msra.mxu0 %v719
    %745 = vmatpush.msra.mxu0 %v718
    %746 = vmatmul.f32.gmra.mxu0 %v722
    %v747 = vpop.f32.mrf.mxu0
    %v748 = vadd.f32 0.0, %v747
    %749 = vmatmul.f32.gmra.mxu0 %v724
    %v750 = vpop.f32.mrf.mxu0
    %v751 = vadd.f32 0.0, %v750
    %752 = vmatmul.f32.gmra.mxu0 %v726
    %v753 = vpop.f32.mrf.mxu0
    %v754 = vadd.f32 0.0, %v753
    %755 = vmatmul.f32.gmra.mxu0 %v728
    %v756 = vpop.f32.mrf.mxu0
    %v757 = vadd.f32 0.0, %v756
    %758 = vdwg.mxu0
    %v759 = vsel %vm490, %v340, 0.0
    %v760 = vsel %vm490, %v341, 0.0
    %v761 = vadd.f32 %v759, %v760
    %v762 = vsel %vm490, %v342, 0.0
    %v763 = vadd.f32 %v761, %v762
    %v764 = vsel %vm490, %v343, 0.0
    %v765 = vadd.f32 %v763, %v764
    %v766 = vrot.slane %v765, 4
    %v767 = vadd.f32 %v765, %v766
    %v768 = vrot.slane %v767, 2
    %v769 = vadd.f32 %v767, %v768
    %v770 = vrot.slane %v769, 1
    %v771 = vadd.f32 %v769, %v770
    %773 = vrot.lane.b32.xlu0 %v771, 96
    %v774 = vpop.permute.xlu0 %773
    %v776 = vmul.f32 %v340, %v774
    %v777 = vmul.f32 %v341, %v774
    %v778 = vmul.f32 %v342, %v774
    %v779 = vmul.f32 %v343, %v774
    %v781 = vsel %vm238, %v776, 0
    %v784 = vsel %vm238, %v777, 0
    %v787 = vsel %vm238, %v778, 0
    %v790 = vsel %vm238, %v779, 0
    %792 = vmatpush.msra.mxu0 0.0
    %793 = vmatpush.msra.mxu0 0.0
    %794 = vmatpush.msra.mxu0 0.0
    %795 = vmatpush.msra.mxu0 0.0
    %796 = vmatpush.msra.mxu0 0.0
    %797 = vmatpush.msra.mxu0 0.0
    %798 = vmatpush.msra.mxu0 0.0
    %799 = vmatpush.msra.mxu0 0.0
    %800 = vmatpush.msra.mxu0 0.0
    %801 = vmatpush.msra.mxu0 0.0
    %802 = vmatpush.msra.mxu0 0.0
    %803 = vmatpush.msra.mxu0 0.0
    %804 = vmatpush.msra.mxu0 %v229
    %805 = vmatpush.msra.mxu0 %v228
    %806 = vmatpush.msra.mxu0 %v227
    %807 = vmatpush.msra.mxu0 %v226
    %808 = vmatmul.f32.gmra.mxu0 %v781
    %v809 = vpop.f32.mrf.mxu0
    %v810 = vadd.f32 1e-06, %v809
    %811 = vmatmul.f32.gmra.mxu0 %v784
    %v812 = vpop.f32.mrf.mxu0
    %v813 = vadd.f32 1e-06, %v812
    %814 = vmatmul.f32.gmra.mxu0 %v787
    %v815 = vpop.f32.mrf.mxu0
    %v816 = vadd.f32 1e-06, %v815
    %817 = vmatmul.f32.gmra.mxu0 %v790
    %v818 = vpop.f32.mrf.mxu0
    %v819 = vadd.f32 1e-06, %v818
    %820 = vdwg.mxu0
    %v821 = vrcp.pop %v810
    %v822 = vmul.f32 %v810, %v821
    %v823 = vsub.f32 1.0, %v822
    %v824 = vmul.f32 %v821, %v823
    %v825 = vadd.f32 %v821, %v824
    %vm826 = vweird.f32 %v810
    %vm827 = vweird.f32 %v821
    %vm828 = vmor %vm826, %vm827
    %v829 = vsel %vm828, %v821, %v825
    %v830 = vand.u32 2147483647, %v810
    %vm831 = vcmp.eq.f32.partialorder %v830, 8.507059e+37
    %v832 = vand.u32 %v810, 2147483648
    %v833 = vor.u32 1.1754944e-38, %v832
    %v834 = vsel %vm831, %v833, %v829
    %v835 = vmul.f32 %v748, %v834
    %v836 = vrcp.pop %v813
    %v837 = vmul.f32 %v813, %v836
    %v838 = vsub.f32 1.0, %v837
    %v839 = vmul.f32 %v836, %v838
    %v840 = vadd.f32 %v836, %v839
    %vm841 = vweird.f32 %v813
    %vm842 = vweird.f32 %v836
    %vm843 = vmor %vm841, %vm842
    %v844 = vsel %vm843, %v836, %v840
    %v845 = vand.u32 2147483647, %v813
    %vm846 = vcmp.eq.f32.partialorder %v845, 8.507059e+37
    %v847 = vand.u32 %v813, 2147483648
    %v848 = vor.u32 1.1754944e-38, %v847
    %v849 = vsel %vm846, %v848, %v844
    %v850 = vmul.f32 %v751, %v849
    %v851 = vrcp.pop %v816
    %v852 = vmul.f32 %v816, %v851
    %v853 = vsub.f32 1.0, %v852
    %v854 = vmul.f32 %v851, %v853
    %v855 = vadd.f32 %v851, %v854
    %vm856 = vweird.f32 %v816
    %vm857 = vweird.f32 %v851
    %vm858 = vmor %vm856, %vm857
    %v859 = vsel %vm858, %v851, %v855
    %v860 = vand.u32 2147483647, %v816
    %vm861 = vcmp.eq.f32.partialorder %v860, 8.507059e+37
    %v862 = vand.u32 %v816, 2147483648
    %v863 = vor.u32 1.1754944e-38, %v862
    %v864 = vsel %vm861, %v863, %v859
    %v865 = vmul.f32 %v754, %v864
    %v866 = vrcp.pop %v819
    %v867 = vmul.f32 %v819, %v866
    %v868 = vsub.f32 1.0, %v867
    %v869 = vmul.f32 %v866, %v868
    %v870 = vadd.f32 %v866, %v869
    %vm871 = vweird.f32 %v819
    %vm872 = vweird.f32 %v866
    %vm873 = vmor %vm871, %vm872
    %v874 = vsel %vm873, %v866, %v870
    %v875 = vand.u32 2147483647, %v819
    %vm876 = vcmp.eq.f32.partialorder %v875, 8.507059e+37
    %v877 = vand.u32 %v819, 2147483648
    %v878 = vor.u32 1.1754944e-38, %v877
    %v879 = vsel %vm876, %v878, %v874
    %v880 = vmul.f32 %v757, %v879
    %v881 = vld [vmem:[%s6] sm:$0xff]
    %v882 = vld [vmem:[%s6 + $0x8] sm:$0xff]
    %v883 = vld [vmem:[%s6 + $0x10] sm:$0xff]
    %v884 = vld [vmem:[%s6 + $0x18] sm:$0xff]
    %v885 = vld [vmem:[%s7] sm:$0x1]
    %v887 = vperm.slane %v885, 0
    %v890 = vsel %vm238, %v567, 0
    %v893 = vsel %vm238, %v582, 0
    %v896 = vsel %vm238, %v597, 0
    %v899 = vsel %vm238, %v612, 0
    %v902 = vsel %vm238, %v835, 0
    %v905 = vsel %vm238, %v850, 0
    %v908 = vsel %vm238, %v865, 0
    %v911 = vsel %vm238, %v880, 0
    %913 = vmatpush.msra.mxu0 0.0
    %914 = vmatpush.msra.mxu0 0.0
    %915 = vmatpush.msra.mxu0 0.0
    %916 = vmatpush.msra.mxu0 0.0
    %917 = vmatpush.msra.mxu0 0.0
    %918 = vmatpush.msra.mxu0 0.0
    %919 = vmatpush.msra.mxu0 0.0
    %920 = vmatpush.msra.mxu0 0.0
    %921 = vmatpush.msra.mxu0 0.0
    %922 = vmatpush.msra.mxu0 0.0
    %923 = vmatpush.msra.mxu0 0.0
    %924 = vmatpush.msra.mxu0 0.0
    %925 = vmatpush.msra.mxu0 %v884
    %926 = vmatpush.msra.mxu0 %v883
    %927 = vmatpush.msra.mxu0 %v882
    %928 = vmatpush.msra.mxu0 %v881
    %929 = vmatmul.f32.gmra.mxu0 %v890
    %v930 = vpop.f32.mrf.mxu0
    %v931 = vadd.f32 %v887, %v930
    %932 = vmatmul.f32.gmra.mxu0 %v893
    %v933 = vpop.f32.mrf.mxu0
    %v934 = vadd.f32 %v887, %v933
    %935 = vmatmul.f32.gmra.mxu0 %v896
    %v936 = vpop.f32.mrf.mxu0
    %v937 = vadd.f32 %v887, %v936
    %938 = vmatmul.f32.gmra.mxu0 %v899
    %v939 = vpop.f32.mrf.mxu0
    %v940 = vadd.f32 %v887, %v939
    %941 = vmatmul.f32.gmra.mxu0 %v902
    %v942 = vpop.f32.mrf.mxu0
    %v943 = vadd.f32 %v887, %v942
    %944 = vmatmul.f32.gmra.mxu0 %v905
    %v945 = vpop.f32.mrf.mxu0
    %v946 = vadd.f32 %v887, %v945
    %947 = vmatmul.f32.gmra.mxu0 %v908
    %v948 = vpop.f32.mrf.mxu0
    %v949 = vadd.f32 %v887, %v948
    %950 = vmatmul.f32.gmra.mxu0 %v911
    %v951 = vpop.f32.mrf.mxu0
    %v952 = vadd.f32 %v887, %v951
    %953 = vdwg.mxu0
    %v954 = vadd.f32 %v218, %v931
    %v955 = vadd.f32 %v219, %v934
    %v956 = vadd.f32 %v220, %v937
    %v957 = vadd.f32 %v221, %v940
    %v958 = vadd.f32 %v222, %v943
    %v959 = vadd.f32 %v223, %v946
    %v960 = vadd.f32 %v224, %v949
    %v961 = vadd.f32 %v225, %v952
    %v962 = vsel %vm238, %v954, 0.0
    %963 = vadd.xlane.f32.xlu0 %v962
    %v964 = vpop.xlane.xlu0 %963
    %v965 = vsel %vm238, %v955, 0.0
    %966 = vadd.xlane.f32.xlu0 %v965
    %v967 = vpop.xlane.xlu0 %966
    %v968 = vsel %vm238, %v956, 0.0
    %969 = vadd.xlane.f32.xlu0 %v968
    %v970 = vpop.xlane.xlu0 %969
    %v971 = vsel %vm238, %v957, 0.0
    %972 = vadd.xlane.f32.xlu0 %v971
    %v973 = vpop.xlane.xlu0 %972
    %v974 = vsel %vm238, %v958, 0.0
    %975 = vadd.xlane.f32.xlu0 %v974
    %v976 = vpop.xlane.xlu0 %975
    %v977 = vsel %vm238, %v959, 0.0
    %978 = vadd.xlane.f32.xlu0 %v977
    %v979 = vpop.xlane.xlu0 %978
    %v980 = vsel %vm238, %v960, 0.0
    %981 = vadd.xlane.f32.xlu0 %v980
    %v982 = vpop.xlane.xlu0 %981
    %v983 = vsel %vm238, %v961, 0.0
    %984 = vadd.xlane.f32.xlu0 %v983
    %v985 = vpop.xlane.xlu0 %984
    %v986 = vrcp.pop 32.0
    %v987 = vmul.f32 32.0, %v986
    %v988 = vsub.f32 1.0, %v987
    %v989 = vmul.f32 %v986, %v988
    %v990 = vadd.f32 %v986, %v989
    %vm991 = vweird.f32 %v986
    %v992 = vsel %vm991, %v986, %v990
    %v993 = vmul.f32 %v964, %v992
    %v994 = vmul.f32 %v967, %v992
    %v995 = vmul.f32 %v970, %v992
    %v996 = vmul.f32 %v973, %v992
    %v997 = vmul.f32 %v976, %v992
    %v998 = vmul.f32 %v979, %v992
    %v999 = vmul.f32 %v982, %v992
    %v1000 = vmul.f32 %v985, %v992
    %v1001 = vsub.f32 %v954, %v993
    %v1002 = vsub.f32 %v955, %v994
    %v1003 = vsub.f32 %v956, %v995
    %v1004 = vsub.f32 %v957, %v996
    %v1005 = vsub.f32 %v958, %v997
    %v1006 = vsub.f32 %v959, %v998
    %v1007 = vsub.f32 %v960, %v999
    %v1008 = vsub.f32 %v961, %v1000
    %v1009 = vmul.f32 %v1001, %v1001
    %v1010 = vmul.f32 %v1002, %v1002
    %v1011 = vmul.f32 %v1003, %v1003
    %v1012 = vmul.f32 %v1004, %v1004
    %v1013 = vmul.f32 %v1005, %v1005
    %v1014 = vmul.f32 %v1006, %v1006
    %v1015 = vmul.f32 %v1007, %v1007
    %v1016 = vmul.f32 %v1008, %v1008
    %v1017 = vsel %vm238, %v1009, 0.0
    %1018 = vadd.xlane.f32.xlu0 %v1017
    %v1019 = vpop.xlane.xlu0 %1018
    %v1020 = vsel %vm238, %v1010, 0.0
    %1021 = vadd.xlane.f32.xlu0 %v1020
    %v1022 = vpop.xlane.xlu0 %1021
    %v1023 = vsel %vm238, %v1011, 0.0
    %1024 = vadd.xlane.f32.xlu0 %v1023
    %v1025 = vpop.xlane.xlu0 %1024
    %v1026 = vsel %vm238, %v1012, 0.0
    %1027 = vadd.xlane.f32.xlu0 %v1026
    %v1028 = vpop.xlane.xlu0 %1027
    %v1029 = vsel %vm238, %v1013, 0.0
    %1030 = vadd.xlane.f32.xlu0 %v1029
    %v1031 = vpop.xlane.xlu0 %1030
    %v1032 = vsel %vm238, %v1014, 0.0
    %1033 = vadd.xlane.f32.xlu0 %v1032
    %v1034 = vpop.xlane.xlu0 %1033
    %v1035 = vsel %vm238, %v1015, 0.0
    %1036 = vadd.xlane.f32.xlu0 %v1035
    %v1037 = vpop.xlane.xlu0 %1036
    %v1038 = vsel %vm238, %v1016, 0.0
    %1039 = vadd.xlane.f32.xlu0 %v1038
    %v1040 = vpop.xlane.xlu0 %1039
    %v1041 = vmul.f32 %v1019, %v992
    %v1042 = vmul.f32 %v1022, %v992
    %v1043 = vmul.f32 %v1025, %v992
    %v1044 = vmul.f32 %v1028, %v992
    %v1045 = vmul.f32 %v1031, %v992
    %v1046 = vmul.f32 %v1034, %v992
    %v1047 = vmul.f32 %v1037, %v992
    %v1048 = vmul.f32 %v1040, %v992
    %v1049 = vadd.f32 %v1041, 1e-05
    %v1050 = vadd.f32 %v1042, 1e-05
    %v1051 = vadd.f32 %v1043, 1e-05
    %v1052 = vadd.f32 %v1044, 1e-05
    %v1053 = vadd.f32 %v1045, 1e-05
    %v1054 = vadd.f32 %v1046, 1e-05
    %v1055 = vadd.f32 %v1047, 1e-05
    %v1056 = vadd.f32 %v1048, 1e-05
    %v1057 = vrsqrt.pop %v1049
    %v1058 = vmul.f32 %v1057, %v1049
    %v1059 = vmul.f32 %v1058, %v1057
    %v1060 = vmul.f32 0.5, %v1059
    %v1061 = vsub.f32 1.5, %v1060
    %v1062 = vmul.f32 %v1057, %v1061
    %vm1063 = vweird.f32 %v1049
    %vm1064 = vweird.f32 %v1057
    %vm1065 = vmor %vm1063, %vm1064
    %v1066 = vsel %vm1065, %v1057, %v1062
    %v1067 = vrsqrt.pop %v1050
    %v1068 = vmul.f32 %v1067, %v1050
    %v1069 = vmul.f32 %v1068, %v1067
    %v1070 = vmul.f32 0.5, %v1069
    %v1071 = vsub.f32 1.5, %v1070
    %v1072 = vmul.f32 %v1067, %v1071
    %vm1073 = vweird.f32 %v1050
    %vm1074 = vweird.f32 %v1067
    %vm1075 = vmor %vm1073, %vm1074
    %v1076 = vsel %vm1075, %v1067, %v1072
    %v1077 = vrsqrt.pop %v1051
    %v1078 = vmul.f32 %v1077, %v1051
    %v1079 = vmul.f32 %v1078, %v1077
    %v1080 = vmul.f32 0.5, %v1079
    %v1081 = vsub.f32 1.5, %v1080
    %v1082 = vmul.f32 %v1077, %v1081
    %vm1083 = vweird.f32 %v1051
    %vm1084 = vweird.f32 %v1077
    %vm1085 = vmor %vm1083, %vm1084
    %v1086 = vsel %vm1085, %v1077, %v1082
    %v1087 = vrsqrt.pop %v1052
    %v1088 = vmul.f32 %v1087, %v1052
    %v1089 = vmul.f32 %v1088, %v1087
    %v1090 = vmul.f32 0.5, %v1089
    %v1091 = vsub.f32 1.5, %v1090
    %v1092 = vmul.f32 %v1087, %v1091
    %vm1093 = vweird.f32 %v1052
    %vm1094 = vweird.f32 %v1087
    %vm1095 = vmor %vm1093, %vm1094
    %v1096 = vsel %vm1095, %v1087, %v1092
    %v1097 = vrsqrt.pop %v1053
    %v1098 = vmul.f32 %v1097, %v1053
    %v1099 = vmul.f32 %v1098, %v1097
    %v1100 = vmul.f32 0.5, %v1099
    %v1101 = vsub.f32 1.5, %v1100
    %v1102 = vmul.f32 %v1097, %v1101
    %vm1103 = vweird.f32 %v1053
    %vm1104 = vweird.f32 %v1097
    %vm1105 = vmor %vm1103, %vm1104
    %v1106 = vsel %vm1105, %v1097, %v1102
    %v1107 = vrsqrt.pop %v1054
    %v1108 = vmul.f32 %v1107, %v1054
    %v1109 = vmul.f32 %v1108, %v1107
    %v1110 = vmul.f32 0.5, %v1109
    %v1111 = vsub.f32 1.5, %v1110
    %v1112 = vmul.f32 %v1107, %v1111
    %vm1113 = vweird.f32 %v1054
    %vm1114 = vweird.f32 %v1107
    %vm1115 = vmor %vm1113, %vm1114
    %v1116 = vsel %vm1115, %v1107, %v1112
    %v1117 = vrsqrt.pop %v1055
    %v1118 = vmul.f32 %v1117, %v1055
    %v1119 = vmul.f32 %v1118, %v1117
    %v1120 = vmul.f32 0.5, %v1119
    %v1121 = vsub.f32 1.5, %v1120
    %v1122 = vmul.f32 %v1117, %v1121
    %vm1123 = vweird.f32 %v1055
    %vm1124 = vweird.f32 %v1117
    %vm1125 = vmor %vm1123, %vm1124
    %v1126 = vsel %vm1125, %v1117, %v1122
    %v1127 = vrsqrt.pop %v1056
    %v1128 = vmul.f32 %v1127, %v1056
    %v1129 = vmul.f32 %v1128, %v1127
    %v1130 = vmul.f32 0.5, %v1129
    %v1131 = vsub.f32 1.5, %v1130
    %v1132 = vmul.f32 %v1127, %v1131
    %vm1133 = vweird.f32 %v1056
    %vm1134 = vweird.f32 %v1127
    %vm1135 = vmor %vm1133, %vm1134
    %v1136 = vsel %vm1135, %v1127, %v1132
    %v1137 = vmul.f32 %v1001, %v1066
    %v1138 = vmul.f32 %v1002, %v1076
    %v1139 = vmul.f32 %v1003, %v1086
    %v1140 = vmul.f32 %v1004, %v1096
    %v1141 = vmul.f32 %v1005, %v1106
    %v1142 = vmul.f32 %v1006, %v1116
    %v1143 = vmul.f32 %v1007, %v1126
    %v1144 = vmul.f32 %v1008, %v1136
    %v1145 = vld [vmem:[%s8] sm:$0x1]
    %v1147 = vperm.slane %v1145, 0
    %v1149 = vmul.f32 %v1137, %v1147
    %v1150 = vmul.f32 %v1138, %v1147
    %v1151 = vmul.f32 %v1139, %v1147
    %v1152 = vmul.f32 %v1140, %v1147
    %v1153 = vmul.f32 %v1141, %v1147
    %v1154 = vmul.f32 %v1142, %v1147
    %v1155 = vmul.f32 %v1143, %v1147
    %v1156 = vmul.f32 %v1144, %v1147
    %v1157 = vld [vmem:[%s9] sm:$0x1]
    %v1159 = vperm.slane %v1157, 0
    %v1161 = vadd.f32 %v1149, %v1159
    %v1162 = vadd.f32 %v1150, %v1159
    %v1163 = vadd.f32 %v1151, %v1159
    %v1164 = vadd.f32 %v1152, %v1159
    %v1165 = vadd.f32 %v1153, %v1159
    %v1166 = vadd.f32 %v1154, %v1159
    %v1167 = vadd.f32 %v1155, %v1159
    %v1168 = vadd.f32 %v1156, %v1159
    %v1169 = vld [vmem:[%s10] sm:$0xff]
    %v1170 = vld [vmem:[%s10 + $0x8] sm:$0xff]
    %v1171 = vld [vmem:[%s10 + $0x10] sm:$0xff]
    %v1172 = vld [vmem:[%s10 + $0x18] sm:$0xff]
    %v1173 = vld [vmem:[%s11] sm:$0x1]
    %v1175 = vperm.slane %v1173, 0
    %v1178 = vsel %vm238, %v1161, 0
    %v1181 = vsel %vm238, %v1162, 0
    %v1184 = vsel %vm238, %v1163, 0
    %v1187 = vsel %vm238, %v1164, 0
    %v1190 = vsel %vm238, %v1165, 0
    %v1193 = vsel %vm238, %v1166, 0
    %v1196 = vsel %vm238, %v1167, 0
    %v1199 = vsel %vm238, %v1168, 0
    %1201 = vmatpush.msra.mxu0 0.0
    %1202 = vmatpush.msra.mxu0 0.0
    %1203 = vmatpush.msra.mxu0 0.0
    %1204 = vmatpush.msra.mxu0 0.0
    %1205 = vmatpush.msra.mxu0 0.0
    %1206 = vmatpush.msra.mxu0 0.0
    %1207 = vmatpush.msra.mxu0 0.0
    %1208 = vmatpush.msra.mxu0 0.0
    %1209 = vmatpush.msra.mxu0 0.0
    %1210 = vmatpush.msra.mxu0 0.0
    %1211 = vmatpush.msra.mxu0 0.0
    %1212 = vmatpush.msra.mxu0 0.0
    %1213 = vmatpush.msra.mxu0 %v1172
    %1214 = vmatpush.msra.mxu0 %v1171
    %1215 = vmatpush.msra.mxu0 %v1170
    %1216 = vmatpush.msra.mxu0 %v1169
    %1217 = vmatmul.f32.gmra.mxu0 %v1178
    %v1218 = vpop.f32.mrf.mxu0
    %v1219 = vadd.f32 %v1175, %v1218
    %1220 = vmatmul.f32.gmra.mxu0 %v1181
    %v1221 = vpop.f32.mrf.mxu0
    %v1222 = vadd.f32 %v1175, %v1221
    %1223 = vmatmul.f32.gmra.mxu0 %v1184
    %v1224 = vpop.f32.mrf.mxu0
    %v1225 = vadd.f32 %v1175, %v1224
    %1226 = vmatmul.f32.gmra.mxu0 %v1187
    %v1227 = vpop.f32.mrf.mxu0
    %v1228 = vadd.f32 %v1175, %v1227
    %1229 = vmatmul.f32.gmra.mxu0 %v1190
    %v1230 = vpop.f32.mrf.mxu0
    %v1231 = vadd.f32 %v1175, %v1230
    %1232 = vmatmul.f32.gmra.mxu0 %v1193
    %v1233 = vpop.f32.mrf.mxu0
    %v1234 = vadd.f32 %v1175, %v1233
    %1235 = vmatmul.f32.gmra.mxu0 %v1196
    %v1236 = vpop.f32.mrf.mxu0
    %v1237 = vadd.f32 %v1175, %v1236
    %1238 = vmatmul.f32.gmra.mxu0 %v1199
    %v1239 = vpop.f32.mrf.mxu0
    %v1240 = vadd.f32 %v1175, %v1239
    %1241 = vdwg.mxu0
    %v1242 = vmax.f32 %v1219, 0.0
    %v1243 = vmax.f32 %v1222, 0.0
    %v1244 = vmax.f32 %v1225, 0.0
    %v1245 = vmax.f32 %v1228, 0.0
    %v1246 = vmax.f32 %v1231, 0.0
    %v1247 = vmax.f32 %v1234, 0.0
    %v1248 = vmax.f32 %v1237, 0.0
    %v1249 = vmax.f32 %v1240, 0.0
    %v1250 = vld [vmem:[%s12] sm:$0xff]
    %v1251 = vld [vmem:[%s12 + $0x8] sm:$0xff]
    %v1252 = vld [vmem:[%s12 + $0x10] sm:$0xff]
    %v1253 = vld [vmem:[%s12 + $0x18] sm:$0xff]
    %v1254 = vld [vmem:[%s12 + $0x20] sm:$0xff]
    %v1255 = vld [vmem:[%s12 + $0x28] sm:$0xff]
    %v1256 = vld [vmem:[%s12 + $0x30] sm:$0xff]
    %v1257 = vld [vmem:[%s12 + $0x38] sm:$0xff]
    %v1258 = vld [vmem:[%s12 + $0x40] sm:$0xff]
    %v1259 = vld [vmem:[%s12 + $0x48] sm:$0xff]
    %v1260 = vld [vmem:[%s12 + $0x50] sm:$0xff]
    %v1261 = vld [vmem:[%s12 + $0x58] sm:$0xff]
    %v1262 = vld [vmem:[%s12 + $0x60] sm:$0xff]
    %v1263 = vld [vmem:[%s12 + $0x68] sm:$0xff]
    %v1264 = vld [vmem:[%s12 + $0x70] sm:$0xff]
    %v1265 = vld [vmem:[%s12 + $0x78] sm:$0xff]
    %v1266 = vld [vmem:[%s13] sm:$0x1]
    %v1268 = vperm.slane %v1266, 0
    %1270 = vmatpush.msra.mxu0 %v1265
    %1271 = vmatpush.msra.mxu0 %v1264
    %1272 = vmatpush.msra.mxu0 %v1263
    %1273 = vmatpush.msra.mxu0 %v1262
    %1274 = vmatpush.msra.mxu0 %v1261
    %1275 = vmatpush.msra.mxu0 %v1260
    %1276 = vmatpush.msra.mxu0 %v1259
    %1277 = vmatpush.msra.mxu0 %v1258
    %1278 = vmatpush.msra.mxu0 %v1257
    %1279 = vmatpush.msra.mxu0 %v1256
    %1280 = vmatpush.msra.mxu0 %v1255
    %1281 = vmatpush.msra.mxu0 %v1254
    %1282 = vmatpush.msra.mxu0 %v1253
    %1283 = vmatpush.msra.mxu0 %v1252
    %1284 = vmatpush.msra.mxu0 %v1251
    %1285 = vmatpush.msra.mxu0 %v1250
    %1286 = vmatmul.f32.gmra.mxu0 %v1242
    %v1287 = vpop.f32.mrf.mxu0
    %v1288 = vadd.f32 %v1268, %v1287
    %1289 = vmatmul.f32.gmra.mxu0 %v1243
    %v1290 = vpop.f32.mrf.mxu0
    %v1291 = vadd.f32 %v1268, %v1290
    %1292 = vmatmul.f32.gmra.mxu0 %v1244
    %v1293 = vpop.f32.mrf.mxu0
    %v1294 = vadd.f32 %v1268, %v1293
    %1295 = vmatmul.f32.gmra.mxu0 %v1245
    %v1296 = vpop.f32.mrf.mxu0
    %v1297 = vadd.f32 %v1268, %v1296
    %1298 = vmatmul.f32.gmra.mxu0 %v1246
    %v1299 = vpop.f32.mrf.mxu0
    %v1300 = vadd.f32 %v1268, %v1299
    %1301 = vmatmul.f32.gmra.mxu0 %v1247
    %v1302 = vpop.f32.mrf.mxu0
    %v1303 = vadd.f32 %v1268, %v1302
    %1304 = vmatmul.f32.gmra.mxu0 %v1248
    %v1305 = vpop.f32.mrf.mxu0
    %v1306 = vadd.f32 %v1268, %v1305
    %1307 = vmatmul.f32.gmra.mxu0 %v1249
    %v1308 = vpop.f32.mrf.mxu0
    %v1309 = vadd.f32 %v1268, %v1308
    %1310 = vdwg.mxu0
    %v1311 = vadd.f32 %v1161, %v1288
    %v1312 = vadd.f32 %v1162, %v1291
    %v1313 = vadd.f32 %v1163, %v1294
    %v1314 = vadd.f32 %v1164, %v1297
    %v1315 = vadd.f32 %v1165, %v1300
    %v1316 = vadd.f32 %v1166, %v1303
    %v1317 = vadd.f32 %v1167, %v1306
    %v1318 = vadd.f32 %v1168, %v1309
    %v1319 = vsel %vm238, %v1311, 0.0
    %1320 = vadd.xlane.f32.xlu0 %v1319
    %v1321 = vpop.xlane.xlu0 %1320
    %v1322 = vsel %vm238, %v1312, 0.0
    %1323 = vadd.xlane.f32.xlu0 %v1322
    %v1324 = vpop.xlane.xlu0 %1323
    %v1325 = vsel %vm238, %v1313, 0.0
    %1326 = vadd.xlane.f32.xlu0 %v1325
    %v1327 = vpop.xlane.xlu0 %1326
    %v1328 = vsel %vm238, %v1314, 0.0
    %1329 = vadd.xlane.f32.xlu0 %v1328
    %v1330 = vpop.xlane.xlu0 %1329
    %v1331 = vsel %vm238, %v1315, 0.0
    %1332 = vadd.xlane.f32.xlu0 %v1331
    %v1333 = vpop.xlane.xlu0 %1332
    %v1334 = vsel %vm238, %v1316, 0.0
    %1335 = vadd.xlane.f32.xlu0 %v1334
    %v1336 = vpop.xlane.xlu0 %1335
    %v1337 = vsel %vm238, %v1317, 0.0
    %1338 = vadd.xlane.f32.xlu0 %v1337
    %v1339 = vpop.xlane.xlu0 %1338
    %v1340 = vsel %vm238, %v1318, 0.0
    %1341 = vadd.xlane.f32.xlu0 %v1340
    %v1342 = vpop.xlane.xlu0 %1341
    %v1343 = vmul.f32 %v1321, %v992
    %v1344 = vmul.f32 %v1324, %v992
    %v1345 = vmul.f32 %v1327, %v992
    %v1346 = vmul.f32 %v1330, %v992
    %v1347 = vmul.f32 %v1333, %v992
    %v1348 = vmul.f32 %v1336, %v992
    %v1349 = vmul.f32 %v1339, %v992
    %v1350 = vmul.f32 %v1342, %v992
    %v1351 = vsub.f32 %v1311, %v1343
    %v1352 = vsub.f32 %v1312, %v1344
    %v1353 = vsub.f32 %v1313, %v1345
    %v1354 = vsub.f32 %v1314, %v1346
    %v1355 = vsub.f32 %v1315, %v1347
    %v1356 = vsub.f32 %v1316, %v1348
    %v1357 = vsub.f32 %v1317, %v1349
    %v1358 = vsub.f32 %v1318, %v1350
    %v1359 = vmul.f32 %v1351, %v1351
    %v1360 = vmul.f32 %v1352, %v1352
    %v1361 = vmul.f32 %v1353, %v1353
    %v1362 = vmul.f32 %v1354, %v1354
    %v1363 = vmul.f32 %v1355, %v1355
    %v1364 = vmul.f32 %v1356, %v1356
    %v1365 = vmul.f32 %v1357, %v1357
    %v1366 = vmul.f32 %v1358, %v1358
    %v1367 = vsel %vm238, %v1359, 0.0
    %1368 = vadd.xlane.f32.xlu0 %v1367
    %v1369 = vpop.xlane.xlu0 %1368
    %v1370 = vsel %vm238, %v1360, 0.0
    %1371 = vadd.xlane.f32.xlu0 %v1370
    %v1372 = vpop.xlane.xlu0 %1371
    %v1373 = vsel %vm238, %v1361, 0.0
    %1374 = vadd.xlane.f32.xlu0 %v1373
    %v1375 = vpop.xlane.xlu0 %1374
    %v1376 = vsel %vm238, %v1362, 0.0
    %1377 = vadd.xlane.f32.xlu0 %v1376
    %v1378 = vpop.xlane.xlu0 %1377
    %v1379 = vsel %vm238, %v1363, 0.0
    %1380 = vadd.xlane.f32.xlu0 %v1379
    %v1381 = vpop.xlane.xlu0 %1380
    %v1382 = vsel %vm238, %v1364, 0.0
    %1383 = vadd.xlane.f32.xlu0 %v1382
    %v1384 = vpop.xlane.xlu0 %1383
    %v1385 = vsel %vm238, %v1365, 0.0
    %1386 = vadd.xlane.f32.xlu0 %v1385
    %v1387 = vpop.xlane.xlu0 %1386
    %v1388 = vsel %vm238, %v1366, 0.0
    %1389 = vadd.xlane.f32.xlu0 %v1388
    %v1390 = vpop.xlane.xlu0 %1389
    %v1391 = vmul.f32 %v1369, %v992
    %v1392 = vmul.f32 %v1372, %v992
    %v1393 = vmul.f32 %v1375, %v992
    %v1394 = vmul.f32 %v1378, %v992
    %v1395 = vmul.f32 %v1381, %v992
    %v1396 = vmul.f32 %v1384, %v992
    %v1397 = vmul.f32 %v1387, %v992
    %v1398 = vmul.f32 %v1390, %v992
    %v1399 = vadd.f32 %v1391, 1e-05
    %v1400 = vadd.f32 %v1392, 1e-05
    %v1401 = vadd.f32 %v1393, 1e-05
    %v1402 = vadd.f32 %v1394, 1e-05
    %v1403 = vadd.f32 %v1395, 1e-05
    %v1404 = vadd.f32 %v1396, 1e-05
    %v1405 = vadd.f32 %v1397, 1e-05
    %v1406 = vadd.f32 %v1398, 1e-05
    %v1407 = vrsqrt.pop %v1399
    %v1408 = vmul.f32 %v1407, %v1399
    %v1409 = vmul.f32 %v1408, %v1407
    %v1410 = vmul.f32 0.5, %v1409
    %v1411 = vsub.f32 1.5, %v1410
    %v1412 = vmul.f32 %v1407, %v1411
    %vm1413 = vweird.f32 %v1399
    %vm1414 = vweird.f32 %v1407
    %vm1415 = vmor %vm1413, %vm1414
    %v1416 = vsel %vm1415, %v1407, %v1412
    %v1417 = vrsqrt.pop %v1400
    %v1418 = vmul.f32 %v1417, %v1400
    %v1419 = vmul.f32 %v1418, %v1417
    %v1420 = vmul.f32 0.5, %v1419
    %v1421 = vsub.f32 1.5, %v1420
    %v1422 = vmul.f32 %v1417, %v1421
    %vm1423 = vweird.f32 %v1400
    %vm1424 = vweird.f32 %v1417
    %vm1425 = vmor %vm1423, %vm1424
    %v1426 = vsel %vm1425, %v1417, %v1422
    %v1427 = vrsqrt.pop %v1401
    %v1428 = vmul.f32 %v1427, %v1401
    %v1429 = vmul.f32 %v1428, %v1427
    %v1430 = vmul.f32 0.5, %v1429
    %v1431 = vsub.f32 1.5, %v1430
    %v1432 = vmul.f32 %v1427, %v1431
    %vm1433 = vweird.f32 %v1401
    %vm1434 = vweird.f32 %v1427
    %vm1435 = vmor %vm1433, %vm1434
    %v1436 = vsel %vm1435, %v1427, %v1432
    %v1437 = vrsqrt.pop %v1402
    %v1438 = vmul.f32 %v1437, %v1402
    %v1439 = vmul.f32 %v1438, %v1437
    %v1440 = vmul.f32 0.5, %v1439
    %v1441 = vsub.f32 1.5, %v1440
    %v1442 = vmul.f32 %v1437, %v1441
    %vm1443 = vweird.f32 %v1402
    %vm1444 = vweird.f32 %v1437
    %vm1445 = vmor %vm1443, %vm1444
    %v1446 = vsel %vm1445, %v1437, %v1442
    %v1447 = vrsqrt.pop %v1403
    %v1448 = vmul.f32 %v1447, %v1403
    %v1449 = vmul.f32 %v1448, %v1447
    %v1450 = vmul.f32 0.5, %v1449
    %v1451 = vsub.f32 1.5, %v1450
    %v1452 = vmul.f32 %v1447, %v1451
    %vm1453 = vweird.f32 %v1403
    %vm1454 = vweird.f32 %v1447
    %vm1455 = vmor %vm1453, %vm1454
    %v1456 = vsel %vm1455, %v1447, %v1452
    %v1457 = vrsqrt.pop %v1404
    %v1458 = vmul.f32 %v1457, %v1404
    %v1459 = vmul.f32 %v1458, %v1457
    %v1460 = vmul.f32 0.5, %v1459
    %v1461 = vsub.f32 1.5, %v1460
    %v1462 = vmul.f32 %v1457, %v1461
    %vm1463 = vweird.f32 %v1404
    %vm1464 = vweird.f32 %v1457
    %vm1465 = vmor %vm1463, %vm1464
    %v1466 = vsel %vm1465, %v1457, %v1462
    %v1467 = vrsqrt.pop %v1405
    %v1468 = vmul.f32 %v1467, %v1405
    %v1469 = vmul.f32 %v1468, %v1467
    %v1470 = vmul.f32 0.5, %v1469
    %v1471 = vsub.f32 1.5, %v1470
    %v1472 = vmul.f32 %v1467, %v1471
    %vm1473 = vweird.f32 %v1405
    %vm1474 = vweird.f32 %v1467
    %vm1475 = vmor %vm1473, %vm1474
    %v1476 = vsel %vm1475, %v1467, %v1472
    %v1477 = vrsqrt.pop %v1406
    %v1478 = vmul.f32 %v1477, %v1406
    %v1479 = vmul.f32 %v1478, %v1477
    %v1480 = vmul.f32 0.5, %v1479
    %v1481 = vsub.f32 1.5, %v1480
    %v1482 = vmul.f32 %v1477, %v1481
    %vm1483 = vweird.f32 %v1406
    %vm1484 = vweird.f32 %v1477
    %vm1485 = vmor %vm1483, %vm1484
    %v1486 = vsel %vm1485, %v1477, %v1482
    %v1487 = vmul.f32 %v1351, %v1416
    %v1488 = vmul.f32 %v1352, %v1426
    %v1489 = vmul.f32 %v1353, %v1436
    %v1490 = vmul.f32 %v1354, %v1446
    %v1491 = vmul.f32 %v1355, %v1456
    %v1492 = vmul.f32 %v1356, %v1466
    %v1493 = vmul.f32 %v1357, %v1476
    %v1494 = vmul.f32 %v1358, %v1486
    %v1495 = vld [vmem:[%s14] sm:$0x1]
    %v1497 = vperm.slane %v1495, 0
    %v1499 = vmul.f32 %v1487, %v1497
    %v1500 = vmul.f32 %v1488, %v1497
    %v1501 = vmul.f32 %v1489, %v1497
    %v1502 = vmul.f32 %v1490, %v1497
    %v1503 = vmul.f32 %v1491, %v1497
    %v1504 = vmul.f32 %v1492, %v1497
    %v1505 = vmul.f32 %v1493, %v1497
    %v1506 = vmul.f32 %v1494, %v1497
    %v1507 = vld [vmem:[%s15] sm:$0x1]
    %v1509 = vperm.slane %v1507, 0
    %v1511 = vadd.f32 %v1499, %v1509
    %v1512 = vadd.f32 %v1500, %v1509
    %v1513 = vadd.f32 %v1501, %v1509
    %v1514 = vadd.f32 %v1502, %v1509
    %v1515 = vadd.f32 %v1503, %v1509
    %v1516 = vadd.f32 %v1504, %v1509
    %v1517 = vadd.f32 %v1505, %v1509
    %v1518 = vadd.f32 %v1506, %v1509
    %s1519 = scalar_lea.vmem %s4, 32
    %v1520 = vld [vmem:[%s1519] sm:$0xff]
    %v1521 = vld [vmem:[%s1519 + $0x8] sm:$0xff]
    %v1522 = vld [vmem:[%s1519 + $0x10] sm:$0xff]
    %v1523 = vld [vmem:[%s1519 + $0x18] sm:$0xff]
    %s1524 = scalar_lea.vmem %s5, 1
    %v1525 = vld [vmem:[%s1524] sm:$0x1]
    %v1527 = vperm.slane %v1525, 0
    %v1530 = vsel %vm238, %v1511, 0
    %v1533 = vsel %vm238, %v1512, 0
    %v1536 = vsel %vm238, %v1513, 0
    %v1539 = vsel %vm238, %v1514, 0
    %v1542 = vsel %vm238, %v1515, 0
    %v1545 = vsel %vm238, %v1516, 0
    %v1548 = vsel %vm238, %v1517, 0
    %v1551 = vsel %vm238, %v1518, 0
    %1553 = vmatpush.msra.mxu0 0.0
    %1554 = vmatpush.msra.mxu0 0.0
    %1555 = vmatpush.msra.mxu0 0.0
    %1556 = vmatpush.msra.mxu0 0.0
    %1557 = vmatpush.msra.mxu0 0.0
    %1558 = vmatpush.msra.mxu0 0.0
    %1559 = vmatpush.msra.mxu0 0.0
    %1560 = vmatpush.msra.mxu0 0.0
    %1561 = vmatpush.msra.mxu0 0.0
    %1562 = vmatpush.msra.mxu0 0.0
    %1563 = vmatpush.msra.mxu0 0.0
    %1564 = vmatpush.msra.mxu0 0.0
    %1565 = vmatpush.msra.mxu0 %v1523
    %1566 = vmatpush.msra.mxu0 %v1522
    %1567 = vmatpush.msra.mxu0 %v1521
    %1568 = vmatpush.msra.mxu0 %v1520
    %1569 = vmatmul.f32.gmra.mxu0 %v1530
    %v1570 = vpop.f32.mrf.mxu0
    %v1571 = vadd.f32 %v1527, %v1570
    %1572 = vmatmul.f32.gmra.mxu0 %v1533
    %v1573 = vpop.f32.mrf.mxu0
    %v1574 = vadd.f32 %v1527, %v1573
    %1575 = vmatmul.f32.gmra.mxu0 %v1536
    %v1576 = vpop.f32.mrf.mxu0
    %v1577 = vadd.f32 %v1527, %v1576
    %1578 = vmatmul.f32.gmra.mxu0 %v1539
    %v1579 = vpop.f32.mrf.mxu0
    %v1580 = vadd.f32 %v1527, %v1579
    %1581 = vmatmul.f32.gmra.mxu0 %v1542
    %v1582 = vpop.f32.mrf.mxu0
    %v1583 = vadd.f32 %v1527, %v1582
    %1584 = vmatmul.f32.gmra.mxu0 %v1545
    %v1585 = vpop.f32.mrf.mxu0
    %v1586 = vadd.f32 %v1527, %v1585
    %1587 = vmatmul.f32.gmra.mxu0 %v1548
    %v1588 = vpop.f32.mrf.mxu0
    %v1589 = vadd.f32 %v1527, %v1588
    %1590 = vmatmul.f32.gmra.mxu0 %v1551
    %v1591 = vpop.f32.mrf.mxu0
    %v1592 = vadd.f32 %v1527, %v1591
    %1593 = vdwg.mxu0
    %vm1594 = vcmp.gt.f32.partialorder %v1571, 0.0
    %vm1595 = vcmp.gt.f32.partialorder %v1574, 0.0
    %vm1596 = vcmp.gt.f32.partialorder %v1577, 0.0
    %vm1597 = vcmp.gt.f32.partialorder %v1580, 0.0
    %vm1598 = vcmp.gt.f32.partialorder %v1583, 0.0
    %vm1599 = vcmp.gt.f32.partialorder %v1586, 0.0
    %vm1600 = vcmp.gt.f32.partialorder %v1589, 0.0
    %vm1601 = vcmp.gt.f32.partialorder %v1592, 0.0
    %v1602 = vadd.f32 %v1571, 1.0
    %v1603 = vadd.f32 %v1574, 1.0
    %v1604 = vadd.f32 %v1577, 1.0
    %v1605 = vadd.f32 %v1580, 1.0
    %v1606 = vadd.f32 %v1583, 1.0
    %v1607 = vadd.f32 %v1586, 1.0
    %v1608 = vadd.f32 %v1589, 1.0
    %v1609 = vadd.f32 %v1592, 1.0
    %v1610 = vmul.f32 %v1571, 1.442695
    %v1611 = vpow.pop %v1610
    %v1612 = vmul.f32 %v1574, 1.442695
    %v1613 = vpow.pop %v1612
    %v1614 = vmul.f32 %v1577, 1.442695
    %v1615 = vpow.pop %v1614
    %v1616 = vmul.f32 %v1580, 1.442695
    %v1617 = vpow.pop %v1616
    %v1618 = vmul.f32 %v1583, 1.442695
    %v1619 = vpow.pop %v1618
    %v1620 = vmul.f32 %v1586, 1.442695
    %v1621 = vpow.pop %v1620
    %v1622 = vmul.f32 %v1589, 1.442695
    %v1623 = vpow.pop %v1622
    %v1624 = vmul.f32 %v1592, 1.442695
    %v1625 = vpow.pop %v1624
    %v1626 = vsel %vm1594, %v1602, %v1611
    %v1627 = vsel %vm1595, %v1603, %v1613
    %v1628 = vsel %vm1596, %v1604, %v1615
    %v1629 = vsel %vm1597, %v1605, %v1617
    %v1630 = vsel %vm1598, %v1606, %v1619
    %v1631 = vsel %vm1599, %v1607, %v1621
    %v1632 = vsel %vm1600, %v1608, %v1623
    %v1633 = vsel %vm1601, %v1609, %v1625
    %1638 = vrot.lane.b32.xlu0 %v1626, 96
    %v1639 = vpop.permute.xlu0 %1638
    %1640 = vrot.lane.b32.xlu0 %v1627, 96
    %v1641 = vpop.permute.xlu0 %1640
    %1642 = vrot.lane.b32.xlu0 %v1628, 96
    %v1643 = vpop.permute.xlu0 %1642
    %1644 = vrot.lane.b32.xlu0 %v1629, 96
    %v1645 = vpop.permute.xlu0 %1644
    %1650 = vxpose.xlu0.b32.start [1/16] %v1639, 128
    %1651 = vxpose.xlu0.b32.cont [2/16] %v1641, 128
    %1652 = vxpose.xlu0.b32.cont [3/16] %v1643, 128
    %1653 = vxpose.xlu0.b32.cont [4/16] %v1645, 128
    %1654 = vxpose.xlu0.b32.cont [5/16] 0.0, 128
    %1655 = vxpose.xlu0.b32.cont [6/16] 0.0, 128
    %1656 = vxpose.xlu0.b32.cont [7/16] 0.0, 128
    %1657 = vxpose.xlu0.b32.cont [8/16] 0.0, 128
    %1658 = vxpose.xlu0.b32.cont [9/16] 0.0, 128
    %1659 = vxpose.xlu0.b32.cont [10/16] 0.0, 128
    %1660 = vxpose.xlu0.b32.cont [11/16] 0.0, 128
    %1661 = vxpose.xlu0.b32.cont [12/16] 0.0, 128
    %1662 = vxpose.xlu0.b32.cont [13/16] 0.0, 128
    %1663 = vxpose.xlu0.b32.cont [14/16] 0.0, 128
    %1664 = vxpose.xlu0.b32.cont [15/16] 0.0, 128
    %1665 = vxpose.xlu0.b32.end [16/16] 0.0, 128
    %v1666 = vpop.trf.xlu0
    %v1667 = vpop.trf.xlu0
    %v1668 = vpop.trf.xlu0
    %v1669 = vpop.trf.xlu0
    %v1670 = vpop.trf.xlu0
    %v1671 = vpop.trf.xlu0
    %v1672 = vpop.trf.xlu0
    %v1673 = vpop.trf.xlu0
    %v1674 = vpop.trf.xlu0
    %v1675 = vpop.trf.xlu0
    %v1676 = vpop.trf.xlu0
    %v1677 = vpop.trf.xlu0
    %v1678 = vpop.trf.xlu0
    %v1679 = vpop.trf.xlu0
    %v1680 = vpop.trf.xlu0
    %v1681 = vpop.trf.xlu0
    %1686 = vrot.lane.b32.xlu0 %v1571, 64
    %v1687 = vpop.permute.xlu0 %1686
    %1688 = vrot.lane.b32.xlu0 %v1574, 64
    %v1689 = vpop.permute.xlu0 %1688
    %1690 = vrot.lane.b32.xlu0 %v1577, 64
    %v1691 = vpop.permute.xlu0 %1690
    %1692 = vrot.lane.b32.xlu0 %v1580, 64
    %v1693 = vpop.permute.xlu0 %1692
    %v1699 = vsel %vm238, %v1666, 0
    %v1702 = vsel %vm238, %v1667, 0
    %v1705 = vsel %vm238, %v1668, 0
    %v1708 = vsel %vm238, %v1669, 0
    %1710 = vmatpush.msra.mxu0 0.0
    %1711 = vmatpush.msra.mxu0 0.0
    %1712 = vmatpush.msra.mxu0 0.0
    %1713 = vmatpush.msra.mxu0 0.0
    %1714 = vmatpush.msra.mxu0 0.0
    %1715 = vmatpush.msra.mxu0 0.0
    %1716 = vmatpush.msra.mxu0 0.0
    %1717 = vmatpush.msra.mxu0 0.0
    %1718 = vmatpush.msra.mxu0 0.0
    %1719 = vmatpush.msra.mxu0 0.0
    %1720 = vmatpush.msra.mxu0 0.0
    %1721 = vmatpush.msra.mxu0 0.0
    %1722 = vmatpush.msra.mxu0 %v1693
    %1723 = vmatpush.msra.mxu0 %v1691
    %1724 = vmatpush.msra.mxu0 %v1689
    %1725 = vmatpush.msra.mxu0 %v1687
    %1726 = vmatmul.f32.gmra.mxu0 %v1699
    %v1727 = vpop.f32.mrf.mxu0
    %v1728 = vadd.f32 0.0, %v1727
    %1729 = vmatmul.f32.gmra.mxu0 %v1702
    %v1730 = vpop.f32.mrf.mxu0
    %v1731 = vadd.f32 0.0, %v1730
    %1732 = vmatmul.f32.gmra.mxu0 %v1705
    %v1733 = vpop.f32.mrf.mxu0
    %v1734 = vadd.f32 0.0, %v1733
    %1735 = vmatmul.f32.gmra.mxu0 %v1708
    %v1736 = vpop.f32.mrf.mxu0
    %v1737 = vadd.f32 0.0, %v1736
    %1738 = vdwg.mxu0
    %v1739 = vmul.f32 %v1728, %v226
    %v1740 = vmul.f32 %v1731, %v227
    %v1741 = vmul.f32 %v1734, %v228
    %v1742 = vmul.f32 %v1737, %v229
    %v1743 = vsel %vm238, %v1626, 0
    %v1745 = vsel %vm238, %v1627, 0
    %v1747 = vsel %vm238, %v1628, 0
    %v1749 = vsel %vm238, %v1629, 0
    %1751 = vmatpush.msra.mxu0 0.0
    %1752 = vmatpush.msra.mxu0 0.0
    %1753 = vmatpush.msra.mxu0 0.0
    %1754 = vmatpush.msra.mxu0 0.0
    %1755 = vmatpush.msra.mxu0 0.0
    %1756 = vmatpush.msra.mxu0 0.0
    %1757 = vmatpush.msra.mxu0 0.0
    %1758 = vmatpush.msra.mxu0 0.0
    %1759 = vmatpush.msra.mxu0 0.0
    %1760 = vmatpush.msra.mxu0 0.0
    %1761 = vmatpush.msra.mxu0 0.0
    %1762 = vmatpush.msra.mxu0 0.0
    %1763 = vmatpush.msra.mxu0 %v1742
    %1764 = vmatpush.msra.mxu0 %v1741
    %1765 = vmatpush.msra.mxu0 %v1740
    %1766 = vmatpush.msra.mxu0 %v1739
    %1767 = vmatmul.f32.gmra.mxu0 %v1743
    %v1768 = vpop.f32.mrf.mxu0
    %v1769 = vadd.f32 0.0, %v1768
    %1770 = vmatmul.f32.gmra.mxu0 %v1745
    %v1771 = vpop.f32.mrf.mxu0
    %v1772 = vadd.f32 0.0, %v1771
    %1773 = vmatmul.f32.gmra.mxu0 %v1747
    %v1774 = vpop.f32.mrf.mxu0
    %v1775 = vadd.f32 0.0, %v1774
    %1776 = vmatmul.f32.gmra.mxu0 %v1749
    %v1777 = vpop.f32.mrf.mxu0
    %v1778 = vadd.f32 0.0, %v1777
    %1779 = vdwg.mxu0
    %v1780 = vsel %vm490, %v1626, 0.0
    %v1781 = vsel %vm490, %v1627, 0.0
    %v1782 = vadd.f32 %v1780, %v1781
    %v1783 = vsel %vm490, %v1628, 0.0
    %v1784 = vadd.f32 %v1782, %v1783
    %v1785 = vsel %vm490, %v1629, 0.0
    %v1786 = vadd.f32 %v1784, %v1785
    %v1787 = vrot.slane %v1786, 4
    %v1788 = vadd.f32 %v1786, %v1787
    %v1789 = vrot.slane %v1788, 2
    %v1790 = vadd.f32 %v1788, %v1789
    %v1791 = vrot.slane %v1790, 1
    %v1792 = vadd.f32 %v1790, %v1791
    %1794 = vrot.lane.b32.xlu0 %v1792, 96
    %v1795 = vpop.permute.xlu0 %1794
    %v1797 = vmul.f32 %v1626, %v1795
    %v1798 = vmul.f32 %v1627, %v1795
    %v1799 = vmul.f32 %v1628, %v1795
    %v1800 = vmul.f32 %v1629, %v1795
    %v1802 = vsel %vm238, %v1797, 0
    %v1805 = vsel %vm238, %v1798, 0
    %v1808 = vsel %vm238, %v1799, 0
    %v1811 = vsel %vm238, %v1800, 0
    %1813 = vmatpush.msra.mxu0 0.0
    %1814 = vmatpush.msra.mxu0 0.0
    %1815 = vmatpush.msra.mxu0 0.0
    %1816 = vmatpush.msra.mxu0 0.0
    %1817 = vmatpush.msra.mxu0 0.0
    %1818 = vmatpush.msra.mxu0 0.0
    %1819 = vmatpush.msra.mxu0 0.0
    %1820 = vmatpush.msra.mxu0 0.0
    %1821 = vmatpush.msra.mxu0 0.0
    %1822 = vmatpush.msra.mxu0 0.0
    %1823 = vmatpush.msra.mxu0 0.0
    %1824 = vmatpush.msra.mxu0 0.0
    %1825 = vmatpush.msra.mxu0 %v229
    %1826 = vmatpush.msra.mxu0 %v228
    %1827 = vmatpush.msra.mxu0 %v227
    %1828 = vmatpush.msra.mxu0 %v226
    %1829 = vmatmul.f32.gmra.mxu0 %v1802
    %v1830 = vpop.f32.mrf.mxu0
    %v1831 = vadd.f32 1e-06, %v1830
    %1832 = vmatmul.f32.gmra.mxu0 %v1805
    %v1833 = vpop.f32.mrf.mxu0
    %v1834 = vadd.f32 1e-06, %v1833
    %1835 = vmatmul.f32.gmra.mxu0 %v1808
    %v1836 = vpop.f32.mrf.mxu0
    %v1837 = vadd.f32 1e-06, %v1836
    %1838 = vmatmul.f32.gmra.mxu0 %v1811
    %v1839 = vpop.f32.mrf.mxu0
    %v1840 = vadd.f32 1e-06, %v1839
    %1841 = vdwg.mxu0
    %v1842 = vrcp.pop %v1831
    %v1843 = vmul.f32 %v1831, %v1842
    %v1844 = vsub.f32 1.0, %v1843
    %v1845 = vmul.f32 %v1842, %v1844
    %v1846 = vadd.f32 %v1842, %v1845
    %vm1847 = vweird.f32 %v1831
    %vm1848 = vweird.f32 %v1842
    %vm1849 = vmor %vm1847, %vm1848
    %v1850 = vsel %vm1849, %v1842, %v1846
    %v1851 = vand.u32 2147483647, %v1831
    %vm1852 = vcmp.eq.f32.partialorder %v1851, 8.507059e+37
    %v1853 = vand.u32 %v1831, 2147483648
    %v1854 = vor.u32 1.1754944e-38, %v1853
    %v1855 = vsel %vm1852, %v1854, %v1850
    %v1856 = vmul.f32 %v1769, %v1855
    %v1857 = vrcp.pop %v1834
    %v1858 = vmul.f32 %v1834, %v1857
    %v1859 = vsub.f32 1.0, %v1858
    %v1860 = vmul.f32 %v1857, %v1859
    %v1861 = vadd.f32 %v1857, %v1860
    %vm1862 = vweird.f32 %v1834
    %vm1863 = vweird.f32 %v1857
    %vm1864 = vmor %vm1862, %vm1863
    %v1865 = vsel %vm1864, %v1857, %v1861
    %v1866 = vand.u32 2147483647, %v1834
    %vm1867 = vcmp.eq.f32.partialorder %v1866, 8.507059e+37
    %v1868 = vand.u32 %v1834, 2147483648
    %v1869 = vor.u32 1.1754944e-38, %v1868
    %v1870 = vsel %vm1867, %v1869, %v1865
    %v1871 = vmul.f32 %v1772, %v1870
    %v1872 = vrcp.pop %v1837
    %v1873 = vmul.f32 %v1837, %v1872
    %v1874 = vsub.f32 1.0, %v1873
    %v1875 = vmul.f32 %v1872, %v1874
    %v1876 = vadd.f32 %v1872, %v1875
    %vm1877 = vweird.f32 %v1837
    %vm1878 = vweird.f32 %v1872
    %vm1879 = vmor %vm1877, %vm1878
    %v1880 = vsel %vm1879, %v1872, %v1876
    %v1881 = vand.u32 2147483647, %v1837
    %vm1882 = vcmp.eq.f32.partialorder %v1881, 8.507059e+37
    %v1883 = vand.u32 %v1837, 2147483648
    %v1884 = vor.u32 1.1754944e-38, %v1883
    %v1885 = vsel %vm1882, %v1884, %v1880
    %v1886 = vmul.f32 %v1775, %v1885
    %v1887 = vrcp.pop %v1840
    %v1888 = vmul.f32 %v1840, %v1887
    %v1889 = vsub.f32 1.0, %v1888
    %v1890 = vmul.f32 %v1887, %v1889
    %v1891 = vadd.f32 %v1887, %v1890
    %vm1892 = vweird.f32 %v1840
    %vm1893 = vweird.f32 %v1887
    %vm1894 = vmor %vm1892, %vm1893
    %v1895 = vsel %vm1894, %v1887, %v1891
    %v1896 = vand.u32 2147483647, %v1840
    %vm1897 = vcmp.eq.f32.partialorder %v1896, 8.507059e+37
    %v1898 = vand.u32 %v1840, 2147483648
    %v1899 = vor.u32 1.1754944e-38, %v1898
    %v1900 = vsel %vm1897, %v1899, %v1895
    %v1901 = vmul.f32 %v1778, %v1900
    %1906 = vrot.lane.b32.xlu0 %v1630, 96
    %v1907 = vpop.permute.xlu0 %1906
    %1908 = vrot.lane.b32.xlu0 %v1631, 96
    %v1909 = vpop.permute.xlu0 %1908
    %1910 = vrot.lane.b32.xlu0 %v1632, 96
    %v1911 = vpop.permute.xlu0 %1910
    %1912 = vrot.lane.b32.xlu0 %v1633, 96
    %v1913 = vpop.permute.xlu0 %1912
    %1918 = vxpose.xlu0.b32.start [1/16] %v1907, 128
    %1919 = vxpose.xlu0.b32.cont [2/16] %v1909, 128
    %1920 = vxpose.xlu0.b32.cont [3/16] %v1911, 128
    %1921 = vxpose.xlu0.b32.cont [4/16] %v1913, 128
    %1922 = vxpose.xlu0.b32.cont [5/16] 0.0, 128
    %1923 = vxpose.xlu0.b32.cont [6/16] 0.0, 128
    %1924 = vxpose.xlu0.b32.cont [7/16] 0.0, 128
    %1925 = vxpose.xlu0.b32.cont [8/16] 0.0, 128
    %1926 = vxpose.xlu0.b32.cont [9/16] 0.0, 128
    %1927 = vxpose.xlu0.b32.cont [10/16] 0.0, 128
    %1928 = vxpose.xlu0.b32.cont [11/16] 0.0, 128
    %1929 = vxpose.xlu0.b32.cont [12/16] 0.0, 128
    %1930 = vxpose.xlu0.b32.cont [13/16] 0.0, 128
    %1931 = vxpose.xlu0.b32.cont [14/16] 0.0, 128
    %1932 = vxpose.xlu0.b32.cont [15/16] 0.0, 128
    %1933 = vxpose.xlu0.b32.end [16/16] 0.0, 128
    %v1934 = vpop.trf.xlu0
    %v1935 = vpop.trf.xlu0
    %v1936 = vpop.trf.xlu0
    %v1937 = vpop.trf.xlu0
    %v1938 = vpop.trf.xlu0
    %v1939 = vpop.trf.xlu0
    %v1940 = vpop.trf.xlu0
    %v1941 = vpop.trf.xlu0
    %v1942 = vpop.trf.xlu0
    %v1943 = vpop.trf.xlu0
    %v1944 = vpop.trf.xlu0
    %v1945 = vpop.trf.xlu0
    %v1946 = vpop.trf.xlu0
    %v1947 = vpop.trf.xlu0
    %v1948 = vpop.trf.xlu0
    %v1949 = vpop.trf.xlu0
    %1954 = vrot.lane.b32.xlu0 %v1583, 64
    %v1955 = vpop.permute.xlu0 %1954
    %1956 = vrot.lane.b32.xlu0 %v1586, 64
    %v1957 = vpop.permute.xlu0 %1956
    %1958 = vrot.lane.b32.xlu0 %v1589, 64
    %v1959 = vpop.permute.xlu0 %1958
    %1960 = vrot.lane.b32.xlu0 %v1592, 64
    %v1961 = vpop.permute.xlu0 %1960
    %v1967 = vsel %vm238, %v1934, 0
    %v1970 = vsel %vm238, %v1935, 0
    %v1973 = vsel %vm238, %v1936, 0
    %v1976 = vsel %vm238, %v1937, 0
    %1978 = vmatpush.msra.mxu0 0.0
    %1979 = vmatpush.msra.mxu0 0.0
    %1980 = vmatpush.msra.mxu0 0.0
    %1981 = vmatpush.msra.mxu0 0.0
    %1982 = vmatpush.msra.mxu0 0.0
    %1983 = vmatpush.msra.mxu0 0.0
    %1984 = vmatpush.msra.mxu0 0.0
    %1985 = vmatpush.msra.mxu0 0.0
    %1986 = vmatpush.msra.mxu0 0.0
    %1987 = vmatpush.msra.mxu0 0.0
    %1988 = vmatpush.msra.mxu0 0.0
    %1989 = vmatpush.msra.mxu0 0.0
    %1990 = vmatpush.msra.mxu0 %v1961
    %1991 = vmatpush.msra.mxu0 %v1959
    %1992 = vmatpush.msra.mxu0 %v1957
    %1993 = vmatpush.msra.mxu0 %v1955
    %1994 = vmatmul.f32.gmra.mxu0 %v1967
    %v1995 = vpop.f32.mrf.mxu0
    %v1996 = vadd.f32 0.0, %v1995
    %1997 = vmatmul.f32.gmra.mxu0 %v1970
    %v1998 = vpop.f32.mrf.mxu0
    %v1999 = vadd.f32 0.0, %v1998
    %2000 = vmatmul.f32.gmra.mxu0 %v1973
    %v2001 = vpop.f32.mrf.mxu0
    %v2002 = vadd.f32 0.0, %v2001
    %2003 = vmatmul.f32.gmra.mxu0 %v1976
    %v2004 = vpop.f32.mrf.mxu0
    %v2005 = vadd.f32 0.0, %v2004
    %2006 = vdwg.mxu0
    %v2007 = vmul.f32 %v1996, %v226
    %v2008 = vmul.f32 %v1999, %v227
    %v2009 = vmul.f32 %v2002, %v228
    %v2010 = vmul.f32 %v2005, %v229
    %v2011 = vsel %vm238, %v1630, 0
    %v2013 = vsel %vm238, %v1631, 0
    %v2015 = vsel %vm238, %v1632, 0
    %v2017 = vsel %vm238, %v1633, 0
    %2019 = vmatpush.msra.mxu0 0.0
    %2020 = vmatpush.msra.mxu0 0.0
    %2021 = vmatpush.msra.mxu0 0.0
    %2022 = vmatpush.msra.mxu0 0.0
    %2023 = vmatpush.msra.mxu0 0.0
    %2024 = vmatpush.msra.mxu0 0.0
    %2025 = vmatpush.msra.mxu0 0.0
    %2026 = vmatpush.msra.mxu0 0.0
    %2027 = vmatpush.msra.mxu0 0.0
    %2028 = vmatpush.msra.mxu0 0.0
    %2029 = vmatpush.msra.mxu0 0.0
    %2030 = vmatpush.msra.mxu0 0.0
    %2031 = vmatpush.msra.mxu0 %v2010
    %2032 = vmatpush.msra.mxu0 %v2009
    %2033 = vmatpush.msra.mxu0 %v2008
    %2034 = vmatpush.msra.mxu0 %v2007
    %2035 = vmatmul.f32.gmra.mxu0 %v2011
    %v2036 = vpop.f32.mrf.mxu0
    %v2037 = vadd.f32 0.0, %v2036
    %2038 = vmatmul.f32.gmra.mxu0 %v2013
    %v2039 = vpop.f32.mrf.mxu0
    %v2040 = vadd.f32 0.0, %v2039
    %2041 = vmatmul.f32.gmra.mxu0 %v2015
    %v2042 = vpop.f32.mrf.mxu0
    %v2043 = vadd.f32 0.0, %v2042
    %2044 = vmatmul.f32.gmra.mxu0 %v2017
    %v2045 = vpop.f32.mrf.mxu0
    %v2046 = vadd.f32 0.0, %v2045
    %2047 = vdwg.mxu0
    %v2048 = vsel %vm490, %v1630, 0.0
    %v2049 = vsel %vm490, %v1631, 0.0
    %v2050 = vadd.f32 %v2048, %v2049
    %v2051 = vsel %vm490, %v1632, 0.0
    %v2052 = vadd.f32 %v2050, %v2051
    %v2053 = vsel %vm490, %v1633, 0.0
    %v2054 = vadd.f32 %v2052, %v2053
    %v2055 = vrot.slane %v2054, 4
    %v2056 = vadd.f32 %v2054, %v2055
    %v2057 = vrot.slane %v2056, 2
    %v2058 = vadd.f32 %v2056, %v2057
    %v2059 = vrot.slane %v2058, 1
    %v2060 = vadd.f32 %v2058, %v2059
    %2062 = vrot.lane.b32.xlu0 %v2060, 96
    %v2063 = vpop.permute.xlu0 %2062
    %v2065 = vmul.f32 %v1630, %v2063
    %v2066 = vmul.f32 %v1631, %v2063
    %v2067 = vmul.f32 %v1632, %v2063
    %v2068 = vmul.f32 %v1633, %v2063
    %v2070 = vsel %vm238, %v2065, 0
    %v2073 = vsel %vm238, %v2066, 0
    %v2076 = vsel %vm238, %v2067, 0
    %v2079 = vsel %vm238, %v2068, 0
    %2081 = vmatpush.msra.mxu0 0.0
    %2082 = vmatpush.msra.mxu0 0.0
    %2083 = vmatpush.msra.mxu0 0.0
    %2084 = vmatpush.msra.mxu0 0.0
    %2085 = vmatpush.msra.mxu0 0.0
    %2086 = vmatpush.msra.mxu0 0.0
    %2087 = vmatpush.msra.mxu0 0.0
    %2088 = vmatpush.msra.mxu0 0.0
    %2089 = vmatpush.msra.mxu0 0.0
    %2090 = vmatpush.msra.mxu0 0.0
    %2091 = vmatpush.msra.mxu0 0.0
    %2092 = vmatpush.msra.mxu0 0.0
    %2093 = vmatpush.msra.mxu0 %v229
    %2094 = vmatpush.msra.mxu0 %v228
    %2095 = vmatpush.msra.mxu0 %v227
    %2096 = vmatpush.msra.mxu0 %v226
    %2097 = vmatmul.f32.gmra.mxu0 %v2070
    %v2098 = vpop.f32.mrf.mxu0
    %v2099 = vadd.f32 1e-06, %v2098
    %2100 = vmatmul.f32.gmra.mxu0 %v2073
    %v2101 = vpop.f32.mrf.mxu0
    %v2102 = vadd.f32 1e-06, %v2101
    %2103 = vmatmul.f32.gmra.mxu0 %v2076
    %v2104 = vpop.f32.mrf.mxu0
    %v2105 = vadd.f32 1e-06, %v2104
    %2106 = vmatmul.f32.gmra.mxu0 %v2079
    %v2107 = vpop.f32.mrf.mxu0
    %v2108 = vadd.f32 1e-06, %v2107
    %2109 = vdwg.mxu0
    %v2110 = vrcp.pop %v2099
    %v2111 = vmul.f32 %v2099, %v2110
    %v2112 = vsub.f32 1.0, %v2111
    %v2113 = vmul.f32 %v2110, %v2112
    %v2114 = vadd.f32 %v2110, %v2113
    %vm2115 = vweird.f32 %v2099
    %vm2116 = vweird.f32 %v2110
    %vm2117 = vmor %vm2115, %vm2116
    %v2118 = vsel %vm2117, %v2110, %v2114
    %v2119 = vand.u32 2147483647, %v2099
    %vm2120 = vcmp.eq.f32.partialorder %v2119, 8.507059e+37
    %v2121 = vand.u32 %v2099, 2147483648
    %v2122 = vor.u32 1.1754944e-38, %v2121
    %v2123 = vsel %vm2120, %v2122, %v2118
    %v2124 = vmul.f32 %v2037, %v2123
    %v2125 = vrcp.pop %v2102
    %v2126 = vmul.f32 %v2102, %v2125
    %v2127 = vsub.f32 1.0, %v2126
    %v2128 = vmul.f32 %v2125, %v2127
    %v2129 = vadd.f32 %v2125, %v2128
    %vm2130 = vweird.f32 %v2102
    %vm2131 = vweird.f32 %v2125
    %vm2132 = vmor %vm2130, %vm2131
    %v2133 = vsel %vm2132, %v2125, %v2129
    %v2134 = vand.u32 2147483647, %v2102
    %vm2135 = vcmp.eq.f32.partialorder %v2134, 8.507059e+37
    %v2136 = vand.u32 %v2102, 2147483648
    %v2137 = vor.u32 1.1754944e-38, %v2136
    %v2138 = vsel %vm2135, %v2137, %v2133
    %v2139 = vmul.f32 %v2040, %v2138
    %v2140 = vrcp.pop %v2105
    %v2141 = vmul.f32 %v2105, %v2140
    %v2142 = vsub.f32 1.0, %v2141
    %v2143 = vmul.f32 %v2140, %v2142
    %v2144 = vadd.f32 %v2140, %v2143
    %vm2145 = vweird.f32 %v2105
    %vm2146 = vweird.f32 %v2140
    %vm2147 = vmor %vm2145, %vm2146
    %v2148 = vsel %vm2147, %v2140, %v2144
    %v2149 = vand.u32 2147483647, %v2105
    %vm2150 = vcmp.eq.f32.partialorder %v2149, 8.507059e+37
    %v2151 = vand.u32 %v2105, 2147483648
    %v2152 = vor.u32 1.1754944e-38, %v2151
    %v2153 = vsel %vm2150, %v2152, %v2148
    %v2154 = vmul.f32 %v2043, %v2153
    %v2155 = vrcp.pop %v2108
    %v2156 = vmul.f32 %v2108, %v2155
    %v2157 = vsub.f32 1.0, %v2156
    %v2158 = vmul.f32 %v2155, %v2157
    %v2159 = vadd.f32 %v2155, %v2158
    %vm2160 = vweird.f32 %v2108
    %vm2161 = vweird.f32 %v2155
    %vm2162 = vmor %vm2160, %vm2161
    %v2163 = vsel %vm2162, %v2155, %v2159
    %v2164 = vand.u32 2147483647, %v2108
    %vm2165 = vcmp.eq.f32.partialorder %v2164, 8.507059e+37
    %v2166 = vand.u32 %v2108, 2147483648
    %v2167 = vor.u32 1.1754944e-38, %v2166
    %v2168 = vsel %vm2165, %v2167, %v2163
    %v2169 = vmul.f32 %v2046, %v2168
    %s2170 = scalar_lea.vmem %s6, 32
    %v2171 = vld [vmem:[%s2170] sm:$0xff]
    %v2172 = vld [vmem:[%s2170 + $0x8] sm:$0xff]
    %v2173 = vld [vmem:[%s2170 + $0x10] sm:$0xff]
    %v2174 = vld [vmem:[%s2170 + $0x18] sm:$0xff]
    %s2175 = scalar_lea.vmem %s7, 1
    %v2176 = vld [vmem:[%s2175] sm:$0x1]
    %v2178 = vperm.slane %v2176, 0
    %v2181 = vsel %vm238, %v1856, 0
    %v2184 = vsel %vm238, %v1871, 0
    %v2187 = vsel %vm238, %v1886, 0
    %v2190 = vsel %vm238, %v1901, 0
    %v2193 = vsel %vm238, %v2124, 0
    %v2196 = vsel %vm238, %v2139, 0
    %v2199 = vsel %vm238, %v2154, 0
    %v2202 = vsel %vm238, %v2169, 0
    %2204 = vmatpush.msra.mxu0 0.0
    %2205 = vmatpush.msra.mxu0 0.0
    %2206 = vmatpush.msra.mxu0 0.0
    %2207 = vmatpush.msra.mxu0 0.0
    %2208 = vmatpush.msra.mxu0 0.0
    %2209 = vmatpush.msra.mxu0 0.0
    %2210 = vmatpush.msra.mxu0 0.0
    %2211 = vmatpush.msra.mxu0 0.0
    %2212 = vmatpush.msra.mxu0 0.0
    %2213 = vmatpush.msra.mxu0 0.0
    %2214 = vmatpush.msra.mxu0 0.0
    %2215 = vmatpush.msra.mxu0 0.0
    %2216 = vmatpush.msra.mxu0 %v2174
    %2217 = vmatpush.msra.mxu0 %v2173
    %2218 = vmatpush.msra.mxu0 %v2172
    %2219 = vmatpush.msra.mxu0 %v2171
    %2220 = vmatmul.f32.gmra.mxu0 %v2181
    %v2221 = vpop.f32.mrf.mxu0
    %v2222 = vadd.f32 %v2178, %v2221
    %2223 = vmatmul.f32.gmra.mxu0 %v2184
    %v2224 = vpop.f32.mrf.mxu0
    %v2225 = vadd.f32 %v2178, %v2224
    %2226 = vmatmul.f32.gmra.mxu0 %v2187
    %v2227 = vpop.f32.mrf.mxu0
    %v2228 = vadd.f32 %v2178, %v2227
    %2229 = vmatmul.f32.gmra.mxu0 %v2190
    %v2230 = vpop.f32.mrf.mxu0
    %v2231 = vadd.f32 %v2178, %v2230
    %2232 = vmatmul.f32.gmra.mxu0 %v2193
    %v2233 = vpop.f32.mrf.mxu0
    %v2234 = vadd.f32 %v2178, %v2233
    %2235 = vmatmul.f32.gmra.mxu0 %v2196
    %v2236 = vpop.f32.mrf.mxu0
    %v2237 = vadd.f32 %v2178, %v2236
    %2238 = vmatmul.f32.gmra.mxu0 %v2199
    %v2239 = vpop.f32.mrf.mxu0
    %v2240 = vadd.f32 %v2178, %v2239
    %2241 = vmatmul.f32.gmra.mxu0 %v2202
    %v2242 = vpop.f32.mrf.mxu0
    %v2243 = vadd.f32 %v2178, %v2242
    %2244 = vdwg.mxu0
    %v2245 = vadd.f32 %v1511, %v2222
    %v2246 = vadd.f32 %v1512, %v2225
    %v2247 = vadd.f32 %v1513, %v2228
    %v2248 = vadd.f32 %v1514, %v2231
    %v2249 = vadd.f32 %v1515, %v2234
    %v2250 = vadd.f32 %v1516, %v2237
    %v2251 = vadd.f32 %v1517, %v2240
    %v2252 = vadd.f32 %v1518, %v2243
    %v2253 = vsel %vm238, %v2245, 0.0
    %2254 = vadd.xlane.f32.xlu0 %v2253
    %v2255 = vpop.xlane.xlu0 %2254
    %v2256 = vsel %vm238, %v2246, 0.0
    %2257 = vadd.xlane.f32.xlu0 %v2256
    %v2258 = vpop.xlane.xlu0 %2257
    %v2259 = vsel %vm238, %v2247, 0.0
    %2260 = vadd.xlane.f32.xlu0 %v2259
    %v2261 = vpop.xlane.xlu0 %2260
    %v2262 = vsel %vm238, %v2248, 0.0
    %2263 = vadd.xlane.f32.xlu0 %v2262
    %v2264 = vpop.xlane.xlu0 %2263
    %v2265 = vsel %vm238, %v2249, 0.0
    %2266 = vadd.xlane.f32.xlu0 %v2265
    %v2267 = vpop.xlane.xlu0 %2266
    %v2268 = vsel %vm238, %v2250, 0.0
    %2269 = vadd.xlane.f32.xlu0 %v2268
    %v2270 = vpop.xlane.xlu0 %2269
    %v2271 = vsel %vm238, %v2251, 0.0
    %2272 = vadd.xlane.f32.xlu0 %v2271
    %v2273 = vpop.xlane.xlu0 %2272
    %v2274 = vsel %vm238, %v2252, 0.0
    %2275 = vadd.xlane.f32.xlu0 %v2274
    %v2276 = vpop.xlane.xlu0 %2275
    %v2277 = vmul.f32 %v2255, %v992
    %v2278 = vmul.f32 %v2258, %v992
    %v2279 = vmul.f32 %v2261, %v992
    %v2280 = vmul.f32 %v2264, %v992
    %v2281 = vmul.f32 %v2267, %v992
    %v2282 = vmul.f32 %v2270, %v992
    %v2283 = vmul.f32 %v2273, %v992
    %v2284 = vmul.f32 %v2276, %v992
    %v2285 = vsub.f32 %v2245, %v2277
    %v2286 = vsub.f32 %v2246, %v2278
    %v2287 = vsub.f32 %v2247, %v2279
    %v2288 = vsub.f32 %v2248, %v2280
    %v2289 = vsub.f32 %v2249, %v2281
    %v2290 = vsub.f32 %v2250, %v2282
    %v2291 = vsub.f32 %v2251, %v2283
    %v2292 = vsub.f32 %v2252, %v2284
    %v2293 = vmul.f32 %v2285, %v2285
    %v2294 = vmul.f32 %v2286, %v2286
    %v2295 = vmul.f32 %v2287, %v2287
    %v2296 = vmul.f32 %v2288, %v2288
    %v2297 = vmul.f32 %v2289, %v2289
    %v2298 = vmul.f32 %v2290, %v2290
    %v2299 = vmul.f32 %v2291, %v2291
    %v2300 = vmul.f32 %v2292, %v2292
    %v2301 = vsel %vm238, %v2293, 0.0
    %2302 = vadd.xlane.f32.xlu0 %v2301
    %v2303 = vpop.xlane.xlu0 %2302
    %v2304 = vsel %vm238, %v2294, 0.0
    %2305 = vadd.xlane.f32.xlu0 %v2304
    %v2306 = vpop.xlane.xlu0 %2305
    %v2307 = vsel %vm238, %v2295, 0.0
    %2308 = vadd.xlane.f32.xlu0 %v2307
    %v2309 = vpop.xlane.xlu0 %2308
    %v2310 = vsel %vm238, %v2296, 0.0
    %2311 = vadd.xlane.f32.xlu0 %v2310
    %v2312 = vpop.xlane.xlu0 %2311
    %v2313 = vsel %vm238, %v2297, 0.0
    %2314 = vadd.xlane.f32.xlu0 %v2313
    %v2315 = vpop.xlane.xlu0 %2314
    %v2316 = vsel %vm238, %v2298, 0.0
    %2317 = vadd.xlane.f32.xlu0 %v2316
    %v2318 = vpop.xlane.xlu0 %2317
    %v2319 = vsel %vm238, %v2299, 0.0
    %2320 = vadd.xlane.f32.xlu0 %v2319
    %v2321 = vpop.xlane.xlu0 %2320
    %v2322 = vsel %vm238, %v2300, 0.0
    %2323 = vadd.xlane.f32.xlu0 %v2322
    %v2324 = vpop.xlane.xlu0 %2323
    %v2325 = vmul.f32 %v2303, %v992
    %v2326 = vmul.f32 %v2306, %v992
    %v2327 = vmul.f32 %v2309, %v992
    %v2328 = vmul.f32 %v2312, %v992
    %v2329 = vmul.f32 %v2315, %v992
    %v2330 = vmul.f32 %v2318, %v992
    %v2331 = vmul.f32 %v2321, %v992
    %v2332 = vmul.f32 %v2324, %v992
    %v2333 = vadd.f32 %v2325, 1e-05
    %v2334 = vadd.f32 %v2326, 1e-05
    %v2335 = vadd.f32 %v2327, 1e-05
    %v2336 = vadd.f32 %v2328, 1e-05
    %v2337 = vadd.f32 %v2329, 1e-05
    %v2338 = vadd.f32 %v2330, 1e-05
    %v2339 = vadd.f32 %v2331, 1e-05
    %v2340 = vadd.f32 %v2332, 1e-05
    %v2341 = vrsqrt.pop %v2333
    %v2342 = vmul.f32 %v2341, %v2333
    %v2343 = vmul.f32 %v2342, %v2341
    %v2344 = vmul.f32 0.5, %v2343
    %v2345 = vsub.f32 1.5, %v2344
    %v2346 = vmul.f32 %v2341, %v2345
    %vm2347 = vweird.f32 %v2333
    %vm2348 = vweird.f32 %v2341
    %vm2349 = vmor %vm2347, %vm2348
    %v2350 = vsel %vm2349, %v2341, %v2346
    %v2351 = vrsqrt.pop %v2334
    %v2352 = vmul.f32 %v2351, %v2334
    %v2353 = vmul.f32 %v2352, %v2351
    %v2354 = vmul.f32 0.5, %v2353
    %v2355 = vsub.f32 1.5, %v2354
    %v2356 = vmul.f32 %v2351, %v2355
    %vm2357 = vweird.f32 %v2334
    %vm2358 = vweird.f32 %v2351
    %vm2359 = vmor %vm2357, %vm2358
    %v2360 = vsel %vm2359, %v2351, %v2356
    %v2361 = vrsqrt.pop %v2335
    %v2362 = vmul.f32 %v2361, %v2335
    %v2363 = vmul.f32 %v2362, %v2361
    %v2364 = vmul.f32 0.5, %v2363
    %v2365 = vsub.f32 1.5, %v2364
    %v2366 = vmul.f32 %v2361, %v2365
    %vm2367 = vweird.f32 %v2335
    %vm2368 = vweird.f32 %v2361
    %vm2369 = vmor %vm2367, %vm2368
    %v2370 = vsel %vm2369, %v2361, %v2366
    %v2371 = vrsqrt.pop %v2336
    %v2372 = vmul.f32 %v2371, %v2336
    %v2373 = vmul.f32 %v2372, %v2371
    %v2374 = vmul.f32 0.5, %v2373
    %v2375 = vsub.f32 1.5, %v2374
    %v2376 = vmul.f32 %v2371, %v2375
    %vm2377 = vweird.f32 %v2336
    %vm2378 = vweird.f32 %v2371
    %vm2379 = vmor %vm2377, %vm2378
    %v2380 = vsel %vm2379, %v2371, %v2376
    %v2381 = vrsqrt.pop %v2337
    %v2382 = vmul.f32 %v2381, %v2337
    %v2383 = vmul.f32 %v2382, %v2381
    %v2384 = vmul.f32 0.5, %v2383
    %v2385 = vsub.f32 1.5, %v2384
    %v2386 = vmul.f32 %v2381, %v2385
    %vm2387 = vweird.f32 %v2337
    %vm2388 = vweird.f32 %v2381
    %vm2389 = vmor %vm2387, %vm2388
    %v2390 = vsel %vm2389, %v2381, %v2386
    %v2391 = vrsqrt.pop %v2338
    %v2392 = vmul.f32 %v2391, %v2338
    %v2393 = vmul.f32 %v2392, %v2391
    %v2394 = vmul.f32 0.5, %v2393
    %v2395 = vsub.f32 1.5, %v2394
    %v2396 = vmul.f32 %v2391, %v2395
    %vm2397 = vweird.f32 %v2338
    %vm2398 = vweird.f32 %v2391
    %vm2399 = vmor %vm2397, %vm2398
    %v2400 = vsel %vm2399, %v2391, %v2396
    %v2401 = vrsqrt.pop %v2339
    %v2402 = vmul.f32 %v2401, %v2339
    %v2403 = vmul.f32 %v2402, %v2401
    %v2404 = vmul.f32 0.5, %v2403
    %v2405 = vsub.f32 1.5, %v2404
    %v2406 = vmul.f32 %v2401, %v2405
    %vm2407 = vweird.f32 %v2339
    %vm2408 = vweird.f32 %v2401
    %vm2409 = vmor %vm2407, %vm2408
    %v2410 = vsel %vm2409, %v2401, %v2406
    %v2411 = vrsqrt.pop %v2340
    %v2412 = vmul.f32 %v2411, %v2340
    %v2413 = vmul.f32 %v2412, %v2411
    %v2414 = vmul.f32 0.5, %v2413
    %v2415 = vsub.f32 1.5, %v2414
    %v2416 = vmul.f32 %v2411, %v2415
    %vm2417 = vweird.f32 %v2340
    %vm2418 = vweird.f32 %v2411
    %vm2419 = vmor %vm2417, %vm2418
    %v2420 = vsel %vm2419, %v2411, %v2416
    %v2421 = vmul.f32 %v2285, %v2350
    %v2422 = vmul.f32 %v2286, %v2360
    %v2423 = vmul.f32 %v2287, %v2370
    %v2424 = vmul.f32 %v2288, %v2380
    %v2425 = vmul.f32 %v2289, %v2390
    %v2426 = vmul.f32 %v2290, %v2400
    %v2427 = vmul.f32 %v2291, %v2410
    %v2428 = vmul.f32 %v2292, %v2420
    %s2429 = scalar_lea.vmem %s8, 1
    %v2430 = vld [vmem:[%s2429] sm:$0x1]
    %v2432 = vperm.slane %v2430, 0
    %v2434 = vmul.f32 %v2421, %v2432
    %v2435 = vmul.f32 %v2422, %v2432
    %v2436 = vmul.f32 %v2423, %v2432
    %v2437 = vmul.f32 %v2424, %v2432
    %v2438 = vmul.f32 %v2425, %v2432
    %v2439 = vmul.f32 %v2426, %v2432
    %v2440 = vmul.f32 %v2427, %v2432
    %v2441 = vmul.f32 %v2428, %v2432
    %s2442 = scalar_lea.vmem %s9, 1
    %v2443 = vld [vmem:[%s2442] sm:$0x1]
    %v2445 = vperm.slane %v2443, 0
    %v2447 = vadd.f32 %v2434, %v2445
    %v2448 = vadd.f32 %v2435, %v2445
    %v2449 = vadd.f32 %v2436, %v2445
    %v2450 = vadd.f32 %v2437, %v2445
    %v2451 = vadd.f32 %v2438, %v2445
    %v2452 = vadd.f32 %v2439, %v2445
    %v2453 = vadd.f32 %v2440, %v2445
    %v2454 = vadd.f32 %v2441, %v2445
    %s2455 = scalar_lea.vmem %s10, 32
    %v2456 = vld [vmem:[%s2455] sm:$0xff]
    %v2457 = vld [vmem:[%s2455 + $0x8] sm:$0xff]
    %v2458 = vld [vmem:[%s2455 + $0x10] sm:$0xff]
    %v2459 = vld [vmem:[%s2455 + $0x18] sm:$0xff]
    %s2460 = scalar_lea.vmem %s11, 1
    %v2461 = vld [vmem:[%s2460] sm:$0x1]
    %v2463 = vperm.slane %v2461, 0
    %v2466 = vsel %vm238, %v2447, 0
    %v2469 = vsel %vm238, %v2448, 0
    %v2472 = vsel %vm238, %v2449, 0
    %v2475 = vsel %vm238, %v2450, 0
    %v2478 = vsel %vm238, %v2451, 0
    %v2481 = vsel %vm238, %v2452, 0
    %v2484 = vsel %vm238, %v2453, 0
    %v2487 = vsel %vm238, %v2454, 0
    %2489 = vmatpush.msra.mxu0 0.0
    %2490 = vmatpush.msra.mxu0 0.0
    %2491 = vmatpush.msra.mxu0 0.0
    %2492 = vmatpush.msra.mxu0 0.0
    %2493 = vmatpush.msra.mxu0 0.0
    %2494 = vmatpush.msra.mxu0 0.0
    %2495 = vmatpush.msra.mxu0 0.0
    %2496 = vmatpush.msra.mxu0 0.0
    %2497 = vmatpush.msra.mxu0 0.0
    %2498 = vmatpush.msra.mxu0 0.0
    %2499 = vmatpush.msra.mxu0 0.0
    %2500 = vmatpush.msra.mxu0 0.0
    %2501 = vmatpush.msra.mxu0 %v2459
    %2502 = vmatpush.msra.mxu0 %v2458
    %2503 = vmatpush.msra.mxu0 %v2457
    %2504 = vmatpush.msra.mxu0 %v2456
    %2505 = vmatmul.f32.gmra.mxu0 %v2466
    %v2506 = vpop.f32.mrf.mxu0
    %v2507 = vadd.f32 %v2463, %v2506
    %2508 = vmatmul.f32.gmra.mxu0 %v2469
    %v2509 = vpop.f32.mrf.mxu0
    %v2510 = vadd.f32 %v2463, %v2509
    %2511 = vmatmul.f32.gmra.mxu0 %v2472
    %v2512 = vpop.f32.mrf.mxu0
    %v2513 = vadd.f32 %v2463, %v2512
    %2514 = vmatmul.f32.gmra.mxu0 %v2475
    %v2515 = vpop.f32.mrf.mxu0
    %v2516 = vadd.f32 %v2463, %v2515
    %2517 = vmatmul.f32.gmra.mxu0 %v2478
    %v2518 = vpop.f32.mrf.mxu0
    %v2519 = vadd.f32 %v2463, %v2518
    %2520 = vmatmul.f32.gmra.mxu0 %v2481
    %v2521 = vpop.f32.mrf.mxu0
    %v2522 = vadd.f32 %v2463, %v2521
    %2523 = vmatmul.f32.gmra.mxu0 %v2484
    %v2524 = vpop.f32.mrf.mxu0
    %v2525 = vadd.f32 %v2463, %v2524
    %2526 = vmatmul.f32.gmra.mxu0 %v2487
    %v2527 = vpop.f32.mrf.mxu0
    %v2528 = vadd.f32 %v2463, %v2527
    %2529 = vdwg.mxu0
    %v2530 = vmax.f32 %v2507, 0.0
    %v2531 = vmax.f32 %v2510, 0.0
    %v2532 = vmax.f32 %v2513, 0.0
    %v2533 = vmax.f32 %v2516, 0.0
    %v2534 = vmax.f32 %v2519, 0.0
    %v2535 = vmax.f32 %v2522, 0.0
    %v2536 = vmax.f32 %v2525, 0.0
    %v2537 = vmax.f32 %v2528, 0.0
    %s2538 = scalar_lea.vmem %s12, 128
    %v2539 = vld [vmem:[%s2538] sm:$0xff]
    %v2540 = vld [vmem:[%s2538 + $0x8] sm:$0xff]
    %v2541 = vld [vmem:[%s2538 + $0x10] sm:$0xff]
    %v2542 = vld [vmem:[%s2538 + $0x18] sm:$0xff]
    %v2543 = vld [vmem:[%s2538 + $0x20] sm:$0xff]
    %v2544 = vld [vmem:[%s2538 + $0x28] sm:$0xff]
    %v2545 = vld [vmem:[%s2538 + $0x30] sm:$0xff]
    %v2546 = vld [vmem:[%s2538 + $0x38] sm:$0xff]
    %v2547 = vld [vmem:[%s2538 + $0x40] sm:$0xff]
    %v2548 = vld [vmem:[%s2538 + $0x48] sm:$0xff]
    %v2549 = vld [vmem:[%s2538 + $0x50] sm:$0xff]
    %v2550 = vld [vmem:[%s2538 + $0x58] sm:$0xff]
    %v2551 = vld [vmem:[%s2538 + $0x60] sm:$0xff]
    %v2552 = vld [vmem:[%s2538 + $0x68] sm:$0xff]
    %v2553 = vld [vmem:[%s2538 + $0x70] sm:$0xff]
    %v2554 = vld [vmem:[%s2538 + $0x78] sm:$0xff]
    %s2555 = scalar_lea.vmem %s13, 1
    %v2556 = vld [vmem:[%s2555] sm:$0x1]
    %v2558 = vperm.slane %v2556, 0
    %2560 = vmatpush.msra.mxu0 %v2554
    %2561 = vmatpush.msra.mxu0 %v2553
    %2562 = vmatpush.msra.mxu0 %v2552
    %2563 = vmatpush.msra.mxu0 %v2551
    %2564 = vmatpush.msra.mxu0 %v2550
    %2565 = vmatpush.msra.mxu0 %v2549
    %2566 = vmatpush.msra.mxu0 %v2548
    %2567 = vmatpush.msra.mxu0 %v2547
    %2568 = vmatpush.msra.mxu0 %v2546
    %2569 = vmatpush.msra.mxu0 %v2545
    %2570 = vmatpush.msra.mxu0 %v2544
    %2571 = vmatpush.msra.mxu0 %v2543
    %2572 = vmatpush.msra.mxu0 %v2542
    %2573 = vmatpush.msra.mxu0 %v2541
    %2574 = vmatpush.msra.mxu0 %v2540
    %2575 = vmatpush.msra.mxu0 %v2539
    %2576 = vmatmul.f32.gmra.mxu0 %v2530
    %v2577 = vpop.f32.mrf.mxu0
    %v2578 = vadd.f32 %v2558, %v2577
    %2579 = vmatmul.f32.gmra.mxu0 %v2531
    %v2580 = vpop.f32.mrf.mxu0
    %v2581 = vadd.f32 %v2558, %v2580
    %2582 = vmatmul.f32.gmra.mxu0 %v2532
    %v2583 = vpop.f32.mrf.mxu0
    %v2584 = vadd.f32 %v2558, %v2583
    %2585 = vmatmul.f32.gmra.mxu0 %v2533
    %v2586 = vpop.f32.mrf.mxu0
    %v2587 = vadd.f32 %v2558, %v2586
    %2588 = vmatmul.f32.gmra.mxu0 %v2534
    %v2589 = vpop.f32.mrf.mxu0
    %v2590 = vadd.f32 %v2558, %v2589
    %2591 = vmatmul.f32.gmra.mxu0 %v2535
    %v2592 = vpop.f32.mrf.mxu0
    %v2593 = vadd.f32 %v2558, %v2592
    %2594 = vmatmul.f32.gmra.mxu0 %v2536
    %v2595 = vpop.f32.mrf.mxu0
    %v2596 = vadd.f32 %v2558, %v2595
    %2597 = vmatmul.f32.gmra.mxu0 %v2537
    %v2598 = vpop.f32.mrf.mxu0
    %v2599 = vadd.f32 %v2558, %v2598
    %2600 = vdwg.mxu0
    %v2601 = vadd.f32 %v2447, %v2578
    %v2602 = vadd.f32 %v2448, %v2581
    %v2603 = vadd.f32 %v2449, %v2584
    %v2604 = vadd.f32 %v2450, %v2587
    %v2605 = vadd.f32 %v2451, %v2590
    %v2606 = vadd.f32 %v2452, %v2593
    %v2607 = vadd.f32 %v2453, %v2596
    %v2608 = vadd.f32 %v2454, %v2599
    %v2609 = vsel %vm238, %v2601, 0.0
    %2610 = vadd.xlane.f32.xlu0 %v2609
    %v2611 = vpop.xlane.xlu0 %2610
    %v2612 = vsel %vm238, %v2602, 0.0
    %2613 = vadd.xlane.f32.xlu0 %v2612
    %v2614 = vpop.xlane.xlu0 %2613
    %v2615 = vsel %vm238, %v2603, 0.0
    %2616 = vadd.xlane.f32.xlu0 %v2615
    %v2617 = vpop.xlane.xlu0 %2616
    %v2618 = vsel %vm238, %v2604, 0.0
    %2619 = vadd.xlane.f32.xlu0 %v2618
    %v2620 = vpop.xlane.xlu0 %2619
    %v2621 = vsel %vm238, %v2605, 0.0
    %2622 = vadd.xlane.f32.xlu0 %v2621
    %v2623 = vpop.xlane.xlu0 %2622
    %v2624 = vsel %vm238, %v2606, 0.0
    %2625 = vadd.xlane.f32.xlu0 %v2624
    %v2626 = vpop.xlane.xlu0 %2625
    %v2627 = vsel %vm238, %v2607, 0.0
    %2628 = vadd.xlane.f32.xlu0 %v2627
    %v2629 = vpop.xlane.xlu0 %2628
    %v2630 = vsel %vm238, %v2608, 0.0
    %2631 = vadd.xlane.f32.xlu0 %v2630
    %v2632 = vpop.xlane.xlu0 %2631
    %v2633 = vmul.f32 %v2611, %v992
    %v2634 = vmul.f32 %v2614, %v992
    %v2635 = vmul.f32 %v2617, %v992
    %v2636 = vmul.f32 %v2620, %v992
    %v2637 = vmul.f32 %v2623, %v992
    %v2638 = vmul.f32 %v2626, %v992
    %v2639 = vmul.f32 %v2629, %v992
    %v2640 = vmul.f32 %v2632, %v992
    %v2641 = vsub.f32 %v2601, %v2633
    %v2642 = vsub.f32 %v2602, %v2634
    %v2643 = vsub.f32 %v2603, %v2635
    %v2644 = vsub.f32 %v2604, %v2636
    %v2645 = vsub.f32 %v2605, %v2637
    %v2646 = vsub.f32 %v2606, %v2638
    %v2647 = vsub.f32 %v2607, %v2639
    %v2648 = vsub.f32 %v2608, %v2640
    %v2649 = vmul.f32 %v2641, %v2641
    %v2650 = vmul.f32 %v2642, %v2642
    %v2651 = vmul.f32 %v2643, %v2643
    %v2652 = vmul.f32 %v2644, %v2644
    %v2653 = vmul.f32 %v2645, %v2645
    %v2654 = vmul.f32 %v2646, %v2646
    %v2655 = vmul.f32 %v2647, %v2647
    %v2656 = vmul.f32 %v2648, %v2648
    %v2657 = vsel %vm238, %v2649, 0.0
    %2658 = vadd.xlane.f32.xlu0 %v2657
    %v2659 = vpop.xlane.xlu0 %2658
    %v2660 = vsel %vm238, %v2650, 0.0
    %2661 = vadd.xlane.f32.xlu0 %v2660
    %v2662 = vpop.xlane.xlu0 %2661
    %v2663 = vsel %vm238, %v2651, 0.0
    %2664 = vadd.xlane.f32.xlu0 %v2663
    %v2665 = vpop.xlane.xlu0 %2664
    %v2666 = vsel %vm238, %v2652, 0.0
    %2667 = vadd.xlane.f32.xlu0 %v2666
    %v2668 = vpop.xlane.xlu0 %2667
    %v2669 = vsel %vm238, %v2653, 0.0
    %2670 = vadd.xlane.f32.xlu0 %v2669
    %v2671 = vpop.xlane.xlu0 %2670
    %v2672 = vsel %vm238, %v2654, 0.0
    %2673 = vadd.xlane.f32.xlu0 %v2672
    %v2674 = vpop.xlane.xlu0 %2673
    %v2675 = vsel %vm238, %v2655, 0.0
    %2676 = vadd.xlane.f32.xlu0 %v2675
    %v2677 = vpop.xlane.xlu0 %2676
    %v2678 = vsel %vm238, %v2656, 0.0
    %2679 = vadd.xlane.f32.xlu0 %v2678
    %v2680 = vpop.xlane.xlu0 %2679
    %v2681 = vmul.f32 %v2659, %v992
    %v2682 = vmul.f32 %v2662, %v992
    %v2683 = vmul.f32 %v2665, %v992
    %v2684 = vmul.f32 %v2668, %v992
    %v2685 = vmul.f32 %v2671, %v992
    %v2686 = vmul.f32 %v2674, %v992
    %v2687 = vmul.f32 %v2677, %v992
    %v2688 = vmul.f32 %v2680, %v992
    %v2689 = vadd.f32 %v2681, 1e-05
    %v2690 = vadd.f32 %v2682, 1e-05
    %v2691 = vadd.f32 %v2683, 1e-05
    %v2692 = vadd.f32 %v2684, 1e-05
    %v2693 = vadd.f32 %v2685, 1e-05
    %v2694 = vadd.f32 %v2686, 1e-05
    %v2695 = vadd.f32 %v2687, 1e-05
    %v2696 = vadd.f32 %v2688, 1e-05
    %v2697 = vrsqrt.pop %v2689
    %v2698 = vmul.f32 %v2697, %v2689
    %v2699 = vmul.f32 %v2698, %v2697
    %v2700 = vmul.f32 0.5, %v2699
    %v2701 = vsub.f32 1.5, %v2700
    %v2702 = vmul.f32 %v2697, %v2701
    %vm2703 = vweird.f32 %v2689
    %vm2704 = vweird.f32 %v2697
    %vm2705 = vmor %vm2703, %vm2704
    %v2706 = vsel %vm2705, %v2697, %v2702
    %v2707 = vrsqrt.pop %v2690
    %v2708 = vmul.f32 %v2707, %v2690
    %v2709 = vmul.f32 %v2708, %v2707
    %v2710 = vmul.f32 0.5, %v2709
    %v2711 = vsub.f32 1.5, %v2710
    %v2712 = vmul.f32 %v2707, %v2711
    %vm2713 = vweird.f32 %v2690
    %vm2714 = vweird.f32 %v2707
    %vm2715 = vmor %vm2713, %vm2714
    %v2716 = vsel %vm2715, %v2707, %v2712
    %v2717 = vrsqrt.pop %v2691
    %v2718 = vmul.f32 %v2717, %v2691
    %v2719 = vmul.f32 %v2718, %v2717
    %v2720 = vmul.f32 0.5, %v2719
    %v2721 = vsub.f32 1.5, %v2720
    %v2722 = vmul.f32 %v2717, %v2721
    %vm2723 = vweird.f32 %v2691
    %vm2724 = vweird.f32 %v2717
    %vm2725 = vmor %vm2723, %vm2724
    %v2726 = vsel %vm2725, %v2717, %v2722
    %v2727 = vrsqrt.pop %v2692
    %v2728 = vmul.f32 %v2727, %v2692
    %v2729 = vmul.f32 %v2728, %v2727
    %v2730 = vmul.f32 0.5, %v2729
    %v2731 = vsub.f32 1.5, %v2730
    %v2732 = vmul.f32 %v2727, %v2731
    %vm2733 = vweird.f32 %v2692
    %vm2734 = vweird.f32 %v2727
    %vm2735 = vmor %vm2733, %vm2734
    %v2736 = vsel %vm2735, %v2727, %v2732
    %v2737 = vrsqrt.pop %v2693
    %v2738 = vmul.f32 %v2737, %v2693
    %v2739 = vmul.f32 %v2738, %v2737
    %v2740 = vmul.f32 0.5, %v2739
    %v2741 = vsub.f32 1.5, %v2740
    %v2742 = vmul.f32 %v2737, %v2741
    %vm2743 = vweird.f32 %v2693
    %vm2744 = vweird.f32 %v2737
    %vm2745 = vmor %vm2743, %vm2744
    %v2746 = vsel %vm2745, %v2737, %v2742
    %v2747 = vrsqrt.pop %v2694
    %v2748 = vmul.f32 %v2747, %v2694
    %v2749 = vmul.f32 %v2748, %v2747
    %v2750 = vmul.f32 0.5, %v2749
    %v2751 = vsub.f32 1.5, %v2750
    %v2752 = vmul.f32 %v2747, %v2751
    %vm2753 = vweird.f32 %v2694
    %vm2754 = vweird.f32 %v2747
    %vm2755 = vmor %vm2753, %vm2754
    %v2756 = vsel %vm2755, %v2747, %v2752
    %v2757 = vrsqrt.pop %v2695
    %v2758 = vmul.f32 %v2757, %v2695
    %v2759 = vmul.f32 %v2758, %v2757
    %v2760 = vmul.f32 0.5, %v2759
    %v2761 = vsub.f32 1.5, %v2760
    %v2762 = vmul.f32 %v2757, %v2761
    %vm2763 = vweird.f32 %v2695
    %vm2764 = vweird.f32 %v2757
    %vm2765 = vmor %vm2763, %vm2764
    %v2766 = vsel %vm2765, %v2757, %v2762
    %v2767 = vrsqrt.pop %v2696
    %v2768 = vmul.f32 %v2767, %v2696
    %v2769 = vmul.f32 %v2768, %v2767
    %v2770 = vmul.f32 0.5, %v2769
    %v2771 = vsub.f32 1.5, %v2770
    %v2772 = vmul.f32 %v2767, %v2771
    %vm2773 = vweird.f32 %v2696
    %vm2774 = vweird.f32 %v2767
    %vm2775 = vmor %vm2773, %vm2774
    %v2776 = vsel %vm2775, %v2767, %v2772
    %v2777 = vmul.f32 %v2641, %v2706
    %v2778 = vmul.f32 %v2642, %v2716
    %v2779 = vmul.f32 %v2643, %v2726
    %v2780 = vmul.f32 %v2644, %v2736
    %v2781 = vmul.f32 %v2645, %v2746
    %v2782 = vmul.f32 %v2646, %v2756
    %v2783 = vmul.f32 %v2647, %v2766
    %v2784 = vmul.f32 %v2648, %v2776
    %s2785 = scalar_lea.vmem %s14, 1
    %v2786 = vld [vmem:[%s2785] sm:$0x1]
    %v2788 = vperm.slane %v2786, 0
    %v2790 = vmul.f32 %v2777, %v2788
    %v2791 = vmul.f32 %v2778, %v2788
    %v2792 = vmul.f32 %v2779, %v2788
    %v2793 = vmul.f32 %v2780, %v2788
    %v2794 = vmul.f32 %v2781, %v2788
    %v2795 = vmul.f32 %v2782, %v2788
    %v2796 = vmul.f32 %v2783, %v2788
    %v2797 = vmul.f32 %v2784, %v2788
    %s2798 = scalar_lea.vmem %s15, 1
    %v2799 = vld [vmem:[%s2798] sm:$0x1]
    %v2801 = vperm.slane %v2799, 0
    %v2803 = vadd.f32 %v2790, %v2801
    %v2804 = vadd.f32 %v2791, %v2801
    %v2805 = vadd.f32 %v2792, %v2801
    %v2806 = vadd.f32 %v2793, %v2801
    %v2807 = vadd.f32 %v2794, %v2801
    %v2808 = vadd.f32 %v2795, %v2801
    %v2809 = vadd.f32 %v2796, %v2801
    %v2810 = vadd.f32 %v2797, %v2801
    %v2811 = vsel %vm238, %v2803, 0.0
    %2812 = vadd.xlane.f32.xlu0 %v2811
    %v2813 = vpop.xlane.xlu0 %2812
    %v2814 = vsel %vm238, %v2804, 0.0
    %2815 = vadd.xlane.f32.xlu0 %v2814
    %v2816 = vpop.xlane.xlu0 %2815
    %v2817 = vsel %vm238, %v2805, 0.0
    %2818 = vadd.xlane.f32.xlu0 %v2817
    %v2819 = vpop.xlane.xlu0 %2818
    %v2820 = vsel %vm238, %v2806, 0.0
    %2821 = vadd.xlane.f32.xlu0 %v2820
    %v2822 = vpop.xlane.xlu0 %2821
    %v2823 = vsel %vm238, %v2807, 0.0
    %2824 = vadd.xlane.f32.xlu0 %v2823
    %v2825 = vpop.xlane.xlu0 %2824
    %v2826 = vsel %vm238, %v2808, 0.0
    %2827 = vadd.xlane.f32.xlu0 %v2826
    %v2828 = vpop.xlane.xlu0 %2827
    %v2829 = vsel %vm238, %v2809, 0.0
    %2830 = vadd.xlane.f32.xlu0 %v2829
    %v2831 = vpop.xlane.xlu0 %2830
    %v2832 = vsel %vm238, %v2810, 0.0
    %2833 = vadd.xlane.f32.xlu0 %v2832
    %v2834 = vpop.xlane.xlu0 %2833
    %v2835 = vmul.f32 %v2813, %v992
    %v2836 = vmul.f32 %v2816, %v992
    %v2837 = vmul.f32 %v2819, %v992
    %v2838 = vmul.f32 %v2822, %v992
    %v2839 = vmul.f32 %v2825, %v992
    %v2840 = vmul.f32 %v2828, %v992
    %v2841 = vmul.f32 %v2831, %v992
    %v2842 = vmul.f32 %v2834, %v992
    %v2843 = vsub.f32 %v2803, %v2835
    %v2844 = vsub.f32 %v2804, %v2836
    %v2845 = vsub.f32 %v2805, %v2837
    %v2846 = vsub.f32 %v2806, %v2838
    %v2847 = vsub.f32 %v2807, %v2839
    %v2848 = vsub.f32 %v2808, %v2840
    %v2849 = vsub.f32 %v2809, %v2841
    %v2850 = vsub.f32 %v2810, %v2842
    %v2851 = vmul.f32 %v2843, %v2843
    %v2852 = vmul.f32 %v2844, %v2844
    %v2853 = vmul.f32 %v2845, %v2845
    %v2854 = vmul.f32 %v2846, %v2846
    %v2855 = vmul.f32 %v2847, %v2847
    %v2856 = vmul.f32 %v2848, %v2848
    %v2857 = vmul.f32 %v2849, %v2849
    %v2858 = vmul.f32 %v2850, %v2850
    %v2859 = vsel %vm238, %v2851, 0.0
    %2860 = vadd.xlane.f32.xlu0 %v2859
    %v2861 = vpop.xlane.xlu0 %2860
    %v2862 = vsel %vm238, %v2852, 0.0
    %2863 = vadd.xlane.f32.xlu0 %v2862
    %v2864 = vpop.xlane.xlu0 %2863
    %v2865 = vsel %vm238, %v2853, 0.0
    %2866 = vadd.xlane.f32.xlu0 %v2865
    %v2867 = vpop.xlane.xlu0 %2866
    %v2868 = vsel %vm238, %v2854, 0.0
    %2869 = vadd.xlane.f32.xlu0 %v2868
    %v2870 = vpop.xlane.xlu0 %2869
    %v2871 = vsel %vm238, %v2855, 0.0
    %2872 = vadd.xlane.f32.xlu0 %v2871
    %v2873 = vpop.xlane.xlu0 %2872
    %v2874 = vsel %vm238, %v2856, 0.0
    %2875 = vadd.xlane.f32.xlu0 %v2874
    %v2876 = vpop.xlane.xlu0 %2875
    %v2877 = vsel %vm238, %v2857, 0.0
    %2878 = vadd.xlane.f32.xlu0 %v2877
    %v2879 = vpop.xlane.xlu0 %2878
    %v2880 = vsel %vm238, %v2858, 0.0
    %2881 = vadd.xlane.f32.xlu0 %v2880
    %v2882 = vpop.xlane.xlu0 %2881
    %v2883 = vmul.f32 %v2861, %v992
    %v2884 = vmul.f32 %v2864, %v992
    %v2885 = vmul.f32 %v2867, %v992
    %v2886 = vmul.f32 %v2870, %v992
    %v2887 = vmul.f32 %v2873, %v992
    %v2888 = vmul.f32 %v2876, %v992
    %v2889 = vmul.f32 %v2879, %v992
    %v2890 = vmul.f32 %v2882, %v992
    %v2891 = vadd.f32 %v2883, 1e-05
    %v2892 = vadd.f32 %v2884, 1e-05
    %v2893 = vadd.f32 %v2885, 1e-05
    %v2894 = vadd.f32 %v2886, 1e-05
    %v2895 = vadd.f32 %v2887, 1e-05
    %v2896 = vadd.f32 %v2888, 1e-05
    %v2897 = vadd.f32 %v2889, 1e-05
    %v2898 = vadd.f32 %v2890, 1e-05
    %v2899 = vrsqrt.pop %v2891
    %v2900 = vmul.f32 %v2899, %v2891
    %v2901 = vmul.f32 %v2900, %v2899
    %v2902 = vmul.f32 0.5, %v2901
    %v2903 = vsub.f32 1.5, %v2902
    %v2904 = vmul.f32 %v2899, %v2903
    %vm2905 = vweird.f32 %v2891
    %vm2906 = vweird.f32 %v2899
    %vm2907 = vmor %vm2905, %vm2906
    %v2908 = vsel %vm2907, %v2899, %v2904
    %v2909 = vrsqrt.pop %v2892
    %v2910 = vmul.f32 %v2909, %v2892
    %v2911 = vmul.f32 %v2910, %v2909
    %v2912 = vmul.f32 0.5, %v2911
    %v2913 = vsub.f32 1.5, %v2912
    %v2914 = vmul.f32 %v2909, %v2913
    %vm2915 = vweird.f32 %v2892
    %vm2916 = vweird.f32 %v2909
    %vm2917 = vmor %vm2915, %vm2916
    %v2918 = vsel %vm2917, %v2909, %v2914
    %v2919 = vrsqrt.pop %v2893
    %v2920 = vmul.f32 %v2919, %v2893
    %v2921 = vmul.f32 %v2920, %v2919
    %v2922 = vmul.f32 0.5, %v2921
    %v2923 = vsub.f32 1.5, %v2922
    %v2924 = vmul.f32 %v2919, %v2923
    %vm2925 = vweird.f32 %v2893
    %vm2926 = vweird.f32 %v2919
    %vm2927 = vmor %vm2925, %vm2926
    %v2928 = vsel %vm2927, %v2919, %v2924
    %v2929 = vrsqrt.pop %v2894
    %v2930 = vmul.f32 %v2929, %v2894
    %v2931 = vmul.f32 %v2930, %v2929
    %v2932 = vmul.f32 0.5, %v2931
    %v2933 = vsub.f32 1.5, %v2932
    %v2934 = vmul.f32 %v2929, %v2933
    %vm2935 = vweird.f32 %v2894
    %vm2936 = vweird.f32 %v2929
    %vm2937 = vmor %vm2935, %vm2936
    %v2938 = vsel %vm2937, %v2929, %v2934
    %v2939 = vrsqrt.pop %v2895
    %v2940 = vmul.f32 %v2939, %v2895
    %v2941 = vmul.f32 %v2940, %v2939
    %v2942 = vmul.f32 0.5, %v2941
    %v2943 = vsub.f32 1.5, %v2942
    %v2944 = vmul.f32 %v2939, %v2943
    %vm2945 = vweird.f32 %v2895
    %vm2946 = vweird.f32 %v2939
    %vm2947 = vmor %vm2945, %vm2946
    %v2948 = vsel %vm2947, %v2939, %v2944
    %v2949 = vrsqrt.pop %v2896
    %v2950 = vmul.f32 %v2949, %v2896
    %v2951 = vmul.f32 %v2950, %v2949
    %v2952 = vmul.f32 0.5, %v2951
    %v2953 = vsub.f32 1.5, %v2952
    %v2954 = vmul.f32 %v2949, %v2953
    %vm2955 = vweird.f32 %v2896
    %vm2956 = vweird.f32 %v2949
    %vm2957 = vmor %vm2955, %vm2956
    %v2958 = vsel %vm2957, %v2949, %v2954
    %v2959 = vrsqrt.pop %v2897
    %v2960 = vmul.f32 %v2959, %v2897
    %v2961 = vmul.f32 %v2960, %v2959
    %v2962 = vmul.f32 0.5, %v2961
    %v2963 = vsub.f32 1.5, %v2962
    %v2964 = vmul.f32 %v2959, %v2963
    %vm2965 = vweird.f32 %v2897
    %vm2966 = vweird.f32 %v2959
    %vm2967 = vmor %vm2965, %vm2966
    %v2968 = vsel %vm2967, %v2959, %v2964
    %v2969 = vrsqrt.pop %v2898
    %v2970 = vmul.f32 %v2969, %v2898
    %v2971 = vmul.f32 %v2970, %v2969
    %v2972 = vmul.f32 0.5, %v2971
    %v2973 = vsub.f32 1.5, %v2972
    %v2974 = vmul.f32 %v2969, %v2973
    %vm2975 = vweird.f32 %v2898
    %vm2976 = vweird.f32 %v2969
    %vm2977 = vmor %vm2975, %vm2976
    %v2978 = vsel %vm2977, %v2969, %v2974
    %v2979 = vmul.f32 %v2843, %v2908
    %v2980 = vmul.f32 %v2844, %v2918
    %v2981 = vmul.f32 %v2845, %v2928
    %v2982 = vmul.f32 %v2846, %v2938
    %v2983 = vmul.f32 %v2847, %v2948
    %v2984 = vmul.f32 %v2848, %v2958
    %v2985 = vmul.f32 %v2849, %v2968
    %v2986 = vmul.f32 %v2850, %v2978
    %v2987 = vld [vmem:[%s16] sm:$0x1]
    %v2989 = vperm.slane %v2987, 0
    %v2991 = vmul.f32 %v2979, %v2989
    %v2992 = vmul.f32 %v2980, %v2989
    %v2993 = vmul.f32 %v2981, %v2989
    %v2994 = vmul.f32 %v2982, %v2989
    %v2995 = vmul.f32 %v2983, %v2989
    %v2996 = vmul.f32 %v2984, %v2989
    %v2997 = vmul.f32 %v2985, %v2989
    %v2998 = vmul.f32 %v2986, %v2989
    %v2999 = vld [vmem:[%s17] sm:$0x1]
    %v3001 = vperm.slane %v2999, 0
    %v3003 = vadd.f32 %v2991, %v3001
    %v3004 = vadd.f32 %v2992, %v3001
    %v3005 = vadd.f32 %v2993, %v3001
    %v3006 = vadd.f32 %v2994, %v3001
    %v3007 = vadd.f32 %v2995, %v3001
    %v3008 = vadd.f32 %v2996, %v3001
    %v3009 = vadd.f32 %v2997, %v3001
    %v3010 = vadd.f32 %v2998, %v3001
    %v3011 = vld [vmem:[%s18] sm:$0xff]
    %v3012 = vld [vmem:[%s18 + $0x8] sm:$0xff]
    %v3013 = vld [vmem:[%s18 + $0x10] sm:$0xff]
    %v3014 = vld [vmem:[%s18 + $0x18] sm:$0xff]
    %v3015 = vld [vmem:[%s19] sm:$0x1]
    %v3017 = vperm.slane %v3015, 0
    %v3020 = vsel %vm238, %v3003, 0
    %v3023 = vsel %vm238, %v3004, 0
    %v3026 = vsel %vm238, %v3005, 0
    %v3029 = vsel %vm238, %v3006, 0
    %v3032 = vsel %vm238, %v3007, 0
    %v3035 = vsel %vm238, %v3008, 0
    %v3038 = vsel %vm238, %v3009, 0
    %v3041 = vsel %vm238, %v3010, 0
    %3043 = vmatpush.msra.mxu0 0.0
    %3044 = vmatpush.msra.mxu0 0.0
    %3045 = vmatpush.msra.mxu0 0.0
    %3046 = vmatpush.msra.mxu0 0.0
    %3047 = vmatpush.msra.mxu0 0.0
    %3048 = vmatpush.msra.mxu0 0.0
    %3049 = vmatpush.msra.mxu0 0.0
    %3050 = vmatpush.msra.mxu0 0.0
    %3051 = vmatpush.msra.mxu0 0.0
    %3052 = vmatpush.msra.mxu0 0.0
    %3053 = vmatpush.msra.mxu0 0.0
    %3054 = vmatpush.msra.mxu0 0.0
    %3055 = vmatpush.msra.mxu0 %v3014
    %3056 = vmatpush.msra.mxu0 %v3013
    %3057 = vmatpush.msra.mxu0 %v3012
    %3058 = vmatpush.msra.mxu0 %v3011
    %3059 = vmatmul.f32.gmra.mxu0 %v3020
    %v3060 = vpop.f32.mrf.mxu0
    %v3061 = vadd.f32 %v3017, %v3060
    %3062 = vmatmul.f32.gmra.mxu0 %v3023
    %v3063 = vpop.f32.mrf.mxu0
    %v3064 = vadd.f32 %v3017, %v3063
    %3065 = vmatmul.f32.gmra.mxu0 %v3026
    %v3066 = vpop.f32.mrf.mxu0
    %v3067 = vadd.f32 %v3017, %v3066
    %3068 = vmatmul.f32.gmra.mxu0 %v3029
    %v3069 = vpop.f32.mrf.mxu0
    %v3070 = vadd.f32 %v3017, %v3069
    %3071 = vmatmul.f32.gmra.mxu0 %v3032
    %v3072 = vpop.f32.mrf.mxu0
    %v3073 = vadd.f32 %v3017, %v3072
    %3074 = vmatmul.f32.gmra.mxu0 %v3035
    %v3075 = vpop.f32.mrf.mxu0
    %v3076 = vadd.f32 %v3017, %v3075
    %3077 = vmatmul.f32.gmra.mxu0 %v3038
    %v3078 = vpop.f32.mrf.mxu0
    %v3079 = vadd.f32 %v3017, %v3078
    %3080 = vmatmul.f32.gmra.mxu0 %v3041
    %v3081 = vpop.f32.mrf.mxu0
    %v3082 = vadd.f32 %v3017, %v3081
    %3083 = vdwg.mxu0
    %v3084 = vlaneseq
    %v3085 = vand.u32 %v3084, 127
    %vm3086 = vcmp.eq.s32.totalorder %v3085, 0
    %v3087 = vtanh.pop %v3061
    %v3088 = vtanh.pop %v3064
    %v3089 = vtanh.pop %v3067
    %v3090 = vtanh.pop %v3070
    %v3091 = vtanh.pop %v3073
    %v3092 = vtanh.pop %v3076
    %v3093 = vtanh.pop %v3079
    %v3094 = vtanh.pop %v3082
    %v3095 = vsel %vm3086, %v3061, %v3087
    %v3096 = vsel %vm3086, %v3064, %v3088
    %v3097 = vsel %vm3086, %v3067, %v3089
    %v3098 = vsel %vm3086, %v3070, %v3090
    %v3099 = vsel %vm3086, %v3073, %v3091
    %v3100 = vsel %vm3086, %v3076, %v3092
    %v3101 = vsel %vm3086, %v3079, %v3093
    %v3102 = vsel %vm3086, %v3082, %v3094
    %vm3103 = vcmask 15360
    %3104 = vst.msk [vmem:[%s23] sm:$0xff] %vm3103, %v3095
    %3105 = vst.msk [vmem:[%s23 + $0x8] sm:$0xff] %vm3103, %v3096
    %3106 = vst.msk [vmem:[%s23 + $0x10] sm:$0xff] %vm3103, %v3097
    %3107 = vst.msk [vmem:[%s23 + $0x18] sm:$0xff] %vm3103, %v3098
    %3108 = vst.msk [vmem:[%s23 + $0x20] sm:$0xff] %vm3103, %v3099
    %3109 = vst.msk [vmem:[%s23 + $0x28] sm:$0xff] %vm3103, %v3100
    %3110 = vst.msk [vmem:[%s23 + $0x30] sm:$0xff] %vm3103, %v3101
    %3111 = vst.msk [vmem:[%s23 + $0x38] sm:$0xff] %vm3103, %v3102
    %s3112 = sld [smem:[#allocation2]]
    %s3113 = sld [smem:[#allocation2 + $0x1]]
    %v3114 = vadd.f32 %v3095, 1.0
    %v3115 = vadd.f32 %v3096, 1.0
    %v3116 = vadd.f32 %v3097, 1.0
    %v3117 = vadd.f32 %v3098, 1.0
    %v3118 = vadd.f32 %v3099, 1.0
    %v3119 = vadd.f32 %v3100, 1.0
    %v3120 = vadd.f32 %v3101, 1.0
    %v3121 = vadd.f32 %v3102, 1.0
    %v3122 = vmul.f32 %v3114, 0.5
    %v3123 = vmul.f32 %v3115, 0.5
    %v3124 = vmul.f32 %v3116, 0.5
    %v3125 = vmul.f32 %v3117, 0.5
    %v3126 = vmul.f32 %v3118, 0.5
    %v3127 = vmul.f32 %v3119, 0.5
    %v3128 = vmul.f32 %v3120, 0.5
    %v3129 = vmul.f32 %v3121, 0.5
    %s3130 = ssub.f32 %s3113, %s3112
    %v3131 = vstv %s3130
    %v3132 = vmul.f32 %v3122, %v3131
    %v3133 = vmul.f32 %v3123, %v3131
    %v3134 = vmul.f32 %v3124, %v3131
    %v3135 = vmul.f32 %v3125, %v3131
    %v3136 = vmul.f32 %v3126, %v3131
    %v3137 = vmul.f32 %v3127, %v3131
    %v3138 = vmul.f32 %v3128, %v3131
    %v3139 = vmul.f32 %v3129, %v3131
    %v3140 = vstv %s3112
    %v3141 = vadd.f32 %v3132, %v3140
    %v3142 = vadd.f32 %v3133, %v3140
    %v3143 = vadd.f32 %v3134, %v3140
    %v3144 = vadd.f32 %v3135, %v3140
    %v3145 = vadd.f32 %v3136, %v3140
    %v3146 = vadd.f32 %v3137, %v3140
    %v3147 = vadd.f32 %v3138, %v3140
    %v3148 = vadd.f32 %v3139, %v3140
    %v3149 = vmul.f32 %v3141, 1.442695
    %v3150 = vpow.pop %v3149
    %v3151 = vmul.f32 %v3142, 1.442695
    %v3152 = vpow.pop %v3151
    %v3153 = vmul.f32 %v3143, 1.442695
    %v3154 = vpow.pop %v3153
    %v3155 = vmul.f32 %v3144, 1.442695
    %v3156 = vpow.pop %v3155
    %v3157 = vmul.f32 %v3145, 1.442695
    %v3158 = vpow.pop %v3157
    %v3159 = vmul.f32 %v3146, 1.442695
    %v3160 = vpow.pop %v3159
    %v3161 = vmul.f32 %v3147, 1.442695
    %v3162 = vpow.pop %v3161
    %v3163 = vmul.f32 %v3148, 1.442695
    %v3164 = vpow.pop %v3163
    %v3165 = vmul.f32 %v3095, 3.1415927
    %v3166 = vmul.f32 %v3096, 3.1415927
    %v3167 = vmul.f32 %v3097, 3.1415927
    %v3168 = vmul.f32 %v3098, 3.1415927
    %v3169 = vmul.f32 %v3099, 3.1415927
    %v3170 = vmul.f32 %v3100, 3.1415927
    %v3171 = vmul.f32 %v3101, 3.1415927
    %v3172 = vmul.f32 %v3102, 3.1415927
    %v3173 = vand.u32 2147483647, %v3165
    %vm3174 = vcmp.le.f32.partialorder %v3173, 0.7853982
    %vm3175 = vcmp.lt.s32.totalorder %v3165, 0
    %v3176 = vand.u32 %v3165, 2139095040
    %v3177 = vshrl.u32 %v3176, 23
    %v3178 = vsub.s32 %v3177, 127
    %v3179 = vand.u32 2147483647, %v3165
    %v3180 = vand.u32 %v3179, 8388607
    %v3181 = vor.u32 %v3180, 8388608
    %v3182 = vsub.s32 0, %v3181
    %v3183 = vadd.s32 %v3178, 1
    %vm3184 = vcmp.gt.s32.totalorder %v3183, 0
    %v3185 = vsel %vm3184, %v3183, 0
    %v3186 = vshrl.u32 %v3185, 5
    %v3187 = vand.u32 %v3185, 31
    %v3188 = vsub.s32 32, %v3187
    %v3189 = vshrl.u32 683565275, %v3188
    %v3190 = vshll.u32 683565275, %v3187
    %v3191 = vshrl.u32 2475754826, %v3188
    %v3192 = vor.u32 %v3190, %v3191
    %v3193 = vshll.u32 2475754826, %v3187
    %v3194 = vshrl.u32 2131351028, %v3188
    %v3195 = vor.u32 %v3193, %v3194
    %v3196 = vshll.u32 2131351028, %v3187
    %v3197 = vshrl.u32 2102212464, %v3188
    %v3198 = vor.u32 %v3196, %v3197
    %v3199 = vshll.u32 2102212464, %v3187
    %v3200 = vshrl.u32 920167782, %v3188
    %v3201 = vor.u32 %v3199, %v3200
    %v3202 = vshll.u32 920167782, %v3187
    %v3203 = vshrl.u32 1326507024, %v3188
    %v3204 = vor.u32 %v3202, %v3203
    %vm3205 = vcmp.lt.s32.totalorder %v3186, 1
    %vm3206 = vcmp.lt.s32.totalorder %v3186, 2
    %vm3207 = vcmp.lt.s32.totalorder %v3186, 3
    %vm3208 = vcmp.lt.s32.totalorder %v3186, 4
    %v3209 = vsel %vm3205, %v3189, %v3192
    %v3210 = vsel %vm3208, %v3198, 2102212464
    %v3211 = vsel %vm3207, %v3195, %v3210
    %v3212 = vsel %vm3206, %v3209, %v3211
    %v3213 = vsel %vm3205, %v3192, %v3195
    %v3214 = vsel %vm3208, %v3201, 920167782
    %v3215 = vsel %vm3207, %v3198, %v3214
    %v3216 = vsel %vm3206, %v3213, %v3215
    %v3217 = vsel %vm3205, %v3195, %v3198
    %v3218 = vsel %vm3208, %v3204, 1326507024
    %v3219 = vsel %vm3207, %v3201, %v3218
    %v3220 = vsel %vm3206, %v3217, %v3219
    %v3221 = vshll.u32 %v3181, 8
    %v3222 = vand.u32 %v3221, 65535
    %v3223 = vshrl.u32 %v3221, 16
    %v3224 = vand.u32 %v3220, 65535
    %v3225 = vshrl.u32 %v3220, 16
    %v3226 = vmul.u32 %v3222, %v3224
    %v3227 = vmul.u32 %v3222, %v3225
    %v3228 = vmul.u32 %v3223, %v3224
    %v3229 = vmul.u32 %v3223, %v3225
    %v3230 = vshll.u32 %v3227, 16
    %v3231 = vshrl.u32 %v3227, 16
    %v3232 = vshll.u32 %v3228, 16
    %v3233 = vshrl.u32 %v3228, 16
    %vm3234 = vc.u32 %v3226, %v3230
    %v3235 = vsel %vm3234, 1, 0
    %v3236 = vadd.s32 %v3226, %v3230
    %v3237 = vadd.s32 %v3229, %v3235
    %vm3238 = vc.u32 %v3236, %v3232
    %v3239 = vsel %vm3238, 1, 0
    %v3240 = vadd.s32 %v3236, %v3232
    %v3241 = vadd.s32 %v3237, %v3239
    %v3242 = vadd.s32 %v3241, %v3231
    %v3243 = vadd.s32 %v3242, %v3233
    %v3244 = vand.u32 %v3221, 65535
    %v3245 = vshrl.u32 %v3221, 16
    %v3246 = vand.u32 %v3216, 65535
    %v3247 = vshrl.u32 %v3216, 16
    %v3248 = vmul.u32 %v3244, %v3246
    %v3249 = vmul.u32 %v3244, %v3247
    %v3250 = vmul.u32 %v3245, %v3246
    %v3251 = vmul.u32 %v3245, %v3247
    %v3252 = vshll.u32 %v3249, 16
    %v3253 = vshrl.u32 %v3249, 16
    %v3254 = vshll.u32 %v3250, 16
    %v3255 = vshrl.u32 %v3250, 16
    %vm3256 = vc.u32 %v3248, %v3252
    %v3257 = vsel %vm3256, 1, 0
    %v3258 = vadd.s32 %v3248, %v3252
    %v3259 = vadd.s32 %v3251, %v3257
    %vm3260 = vc.u32 %v3258, %v3254
    %v3261 = vsel %vm3260, 1, 0
    %v3262 = vadd.s32 %v3258, %v3254
    %v3263 = vadd.s32 %v3259, %v3261
    %v3264 = vadd.s32 %v3263, %v3253
    %v3265 = vadd.s32 %v3264, %v3255
    %v3266 = vmul.u32 %v3221, %v3212
    %v3267 = vadd.s32 %v3243, %v3262
    %vm3268 = vc.u32 %v3243, %v3262
    %v3269 = vadd.s32 %v3265, 1
    %v3270 = vsel %vm3268, %v3269, %v3265
    %v3271 = vadd.s32 %v3266, %v3270
    %v3272 = vadd.s32 %v3271, 536870912
    %v3273 = vshrl.u32 %v3272, 30
    %v3274 = vshll.u32 %v3273, 30
    %v3275 = vsub.s32 %v3271, %v3274
    %vm3276 = vcmp.lt.s32.totalorder %v3275, 0
    %v3277 = vsub.s32 0, %v3275
    %v3278 = vsel %vm3276, %v3277, %v3275
    %v3279 = vclz %v3278
    %v3280 = vsub.s32 %v3279, 2
    %vm3281 = vcmp.gt.s32.totalorder 0, %v3280
    %v3282 = vsel %vm3281, 0, %v3280
    %v3283 = vsub.s32 32, %v3282
    %v3284 = vshll.u32 %v3275, %v3282
    %v3285 = vshrl.u32 %v3267, %v3283
    %v3286 = vor.u32 %v3284, %v3285
    %v3287 = vsub.s32 4294967266, %v3282
    %v3288 = vadd.s32 %v3287, 127
    %v3289 = vshll.u32 %v3288, 23
    %v3290 = vor.u32 4788187, %v3289
    %v3291 = vand.u32 2147483647, %v3290
    %v3293 = vcvt.s32.f32 %v3286
    %v3294 = vmul.f32 %v3293, %v3291
    %v3295 = vxor.u32 %v3294, 2147483648
    %v3296 = vsel %vm3175, %v3295, %v3294
    %v3297 = vsub.s32 4, %v3273
    %v3298 = vsel %vm3175, %v3297, %v3273
    %v3299 = vsel %vm3174, %v3165, %v3296
    %v3300 = vsel %vm3174, 0, %v3298
    %v3301 = vmul.f32 %v3299, %v3299
    %v3302 = vmul.f32 %v3301, -0.001358992
    %v3303 = vadd.f32 %v3302, 0.041655596
    %v3304 = vmul.f32 %v3301, %v3303
    %v3305 = vadd.f32 %v3304, -0.4999988
    %v3306 = vmul.f32 %v3301, %v3305
    %v3307 = vadd.f32 1.0, %v3306
    %v3308 = vmul.f32 %v3299, %v3299
    %v3309 = vmul.f32 %v3308, -0.00019511016
    %v3310 = vadd.f32 %v3309, 0.008332121
    %v3311 = vmul.f32 %v3308, %v3310
    %v3312 = vadd.f32 %v3311, -0.16666654
    %v3313 = vmul.f32 %v3308, %v3312
    %v3314 = vadd.f32 %v3313, 1.0
    %v3315 = vmul.f32 %v3314, %v3299
    %vm3316 = vweird.f32 %v3165
    %v3317 = vand.u32 %v3300, 3
    %vm3318 = vcmp.lt.s32.totalorder %v3317, 2
    %vm3319 = vcmp.eq.s32.totalorder %v3317, 0
    %v3320 = vxor.u32 %v3315, 2147483648
    %v3321 = vsel %vm3319, %v3307, %v3320
    %vm3322 = vcmp.eq.s32.totalorder %v3317, 2
    %v3323 = vxor.u32 %v3307, 2147483648
    %v3324 = vsel %vm3322, %v3323, %v3315
    %v3325 = vsel %vm3318, %v3321, %v3324
    %v3326 = vsel %vm3316, nan, %v3325
    %v3327 = vand.u32 2147483647, %v3166
    %vm3328 = vcmp.le.f32.partialorder %v3327, 0.7853982
    %vm3329 = vcmp.lt.s32.totalorder %v3166, 0
    %v3330 = vand.u32 %v3166, 2139095040
    %v3331 = vshrl.u32 %v3330, 23
    %v3332 = vsub.s32 %v3331, 127
    %v3333 = vand.u32 2147483647, %v3166
    %v3334 = vand.u32 %v3333, 8388607
    %v3335 = vor.u32 %v3334, 8388608
    %v3336 = vsub.s32 0, %v3335
    %v3337 = vadd.s32 %v3332, 1
    %vm3338 = vcmp.gt.s32.totalorder %v3337, 0
    %v3339 = vsel %vm3338, %v3337, 0
    %v3340 = vshrl.u32 %v3339, 5
    %v3341 = vand.u32 %v3339, 31
    %v3342 = vsub.s32 32, %v3341
    %v3343 = vshrl.u32 683565275, %v3342
    %v3344 = vshll.u32 683565275, %v3341
    %v3345 = vshrl.u32 2475754826, %v3342
    %v3346 = vor.u32 %v3344, %v3345
    %v3347 = vshll.u32 2475754826, %v3341
    %v3348 = vshrl.u32 2131351028, %v3342
    %v3349 = vor.u32 %v3347, %v3348
    %v3350 = vshll.u32 2131351028, %v3341
    %v3351 = vshrl.u32 2102212464, %v3342
    %v3352 = vor.u32 %v3350, %v3351
    %v3353 = vshll.u32 2102212464, %v3341
    %v3354 = vshrl.u32 920167782, %v3342
    %v3355 = vor.u32 %v3353, %v3354
    %v3356 = vshll.u32 920167782, %v3341
    %v3357 = vshrl.u32 1326507024, %v3342
    %v3358 = vor.u32 %v3356, %v3357
    %vm3359 = vcmp.lt.s32.totalorder %v3340, 1
    %vm3360 = vcmp.lt.s32.totalorder %v3340, 2
    %vm3361 = vcmp.lt.s32.totalorder %v3340, 3
    %vm3362 = vcmp.lt.s32.totalorder %v3340, 4
    %v3363 = vsel %vm3359, %v3343, %v3346
    %v3364 = vsel %vm3362, %v3352, 2102212464
    %v3365 = vsel %vm3361, %v3349, %v3364
    %v3366 = vsel %vm3360, %v3363, %v3365
    %v3367 = vsel %vm3359, %v3346, %v3349
    %v3368 = vsel %vm3362, %v3355, 920167782
    %v3369 = vsel %vm3361, %v3352, %v3368
    %v3370 = vsel %vm3360, %v3367, %v3369
    %v3371 = vsel %vm3359, %v3349, %v3352
    %v3372 = vsel %vm3362, %v3358, 1326507024
    %v3373 = vsel %vm3361, %v3355, %v3372
    %v3374 = vsel %vm3360, %v3371, %v3373
    %v3375 = vshll.u32 %v3335, 8
    %v3376 = vand.u32 %v3375, 65535
    %v3377 = vshrl.u32 %v3375, 16
    %v3378 = vand.u32 %v3374, 65535
    %v3379 = vshrl.u32 %v3374, 16
    %v3380 = vmul.u32 %v3376, %v3378
    %v3381 = vmul.u32 %v3376, %v3379
    %v3382 = vmul.u32 %v3377, %v3378
    %v3383 = vmul.u32 %v3377, %v3379
    %v3384 = vshll.u32 %v3381, 16
    %v3385 = vshrl.u32 %v3381, 16
    %v3386 = vshll.u32 %v3382, 16
    %v3387 = vshrl.u32 %v3382, 16
    %vm3388 = vc.u32 %v3380, %v3384
    %v3389 = vsel %vm3388, 1, 0
    %v3390 = vadd.s32 %v3380, %v3384
    %v3391 = vadd.s32 %v3383, %v3389
    %vm3392 = vc.u32 %v3390, %v3386
    %v3393 = vsel %vm3392, 1, 0
    %v3394 = vadd.s32 %v3390, %v3386
    %v3395 = vadd.s32 %v3391, %v3393
    %v3396 = vadd.s32 %v3395, %v3385
    %v3397 = vadd.s32 %v3396, %v3387
    %v3398 = vand.u32 %v3375, 65535
    %v3399 = vshrl.u32 %v3375, 16
    %v3400 = vand.u32 %v3370, 65535
    %v3401 = vshrl.u32 %v3370, 16
    %v3402 = vmul.u32 %v3398, %v3400
    %v3403 = vmul.u32 %v3398, %v3401
    %v3404 = vmul.u32 %v3399, %v3400
    %v3405 = vmul.u32 %v3399, %v3401
    %v3406 = vshll.u32 %v3403, 16
    %v3407 = vshrl.u32 %v3403, 16
    %v3408 = vshll.u32 %v3404, 16
    %v3409 = vshrl.u32 %v3404, 16
    %vm3410 = vc.u32 %v3402, %v3406
    %v3411 = vsel %vm3410, 1, 0
    %v3412 = vadd.s32 %v3402, %v3406
    %v3413 = vadd.s32 %v3405, %v3411
    %vm3414 = vc.u32 %v3412, %v3408
    %v3415 = vsel %vm3414, 1, 0
    %v3416 = vadd.s32 %v3412, %v3408
    %v3417 = vadd.s32 %v3413, %v3415
    %v3418 = vadd.s32 %v3417, %v3407
    %v3419 = vadd.s32 %v3418, %v3409
    %v3420 = vmul.u32 %v3375, %v3366
    %v3421 = vadd.s32 %v3397, %v3416
    %vm3422 = vc.u32 %v3397, %v3416
    %v3423 = vadd.s32 %v3419, 1
    %v3424 = vsel %vm3422, %v3423, %v3419
    %v3425 = vadd.s32 %v3420, %v3424
    %v3426 = vadd.s32 %v3425, 536870912
    %v3427 = vshrl.u32 %v3426, 30
    %v3428 = vshll.u32 %v3427, 30
    %v3429 = vsub.s32 %v3425, %v3428
    %vm3430 = vcmp.lt.s32.totalorder %v3429, 0
    %v3431 = vsub.s32 0, %v3429
    %v3432 = vsel %vm3430, %v3431, %v3429
    %v3433 = vclz %v3432
    %v3434 = vsub.s32 %v3433, 2
    %vm3435 = vcmp.gt.s32.totalorder 0, %v3434
    %v3436 = vsel %vm3435, 0, %v3434
    %v3437 = vsub.s32 32, %v3436
    %v3438 = vshll.u32 %v3429, %v3436
    %v3439 = vshrl.u32 %v3421, %v3437
    %v3440 = vor.u32 %v3438, %v3439
    %v3441 = vsub.s32 4294967266, %v3436
    %v3442 = vadd.s32 %v3441, 127
    %v3443 = vshll.u32 %v3442, 23
    %v3444 = vor.u32 4788187, %v3443
    %v3445 = vand.u32 2147483647, %v3444
    %v3447 = vcvt.s32.f32 %v3440
    %v3448 = vmul.f32 %v3447, %v3445
    %v3449 = vxor.u32 %v3448, 2147483648
    %v3450 = vsel %vm3329, %v3449, %v3448
    %v3451 = vsub.s32 4, %v3427
    %v3452 = vsel %vm3329, %v3451, %v3427
    %v3453 = vsel %vm3328, %v3166, %v3450
    %v3454 = vsel %vm3328, 0, %v3452
    %v3455 = vmul.f32 %v3453, %v3453
    %v3456 = vmul.f32 %v3455, -0.001358992
    %v3457 = vadd.f32 %v3456, 0.041655596
    %v3458 = vmul.f32 %v3455, %v3457
    %v3459 = vadd.f32 %v3458, -0.4999988
    %v3460 = vmul.f32 %v3455, %v3459
    %v3461 = vadd.f32 1.0, %v3460
    %v3462 = vmul.f32 %v3453, %v3453
    %v3463 = vmul.f32 %v3462, -0.00019511016
    %v3464 = vadd.f32 %v3463, 0.008332121
    %v3465 = vmul.f32 %v3462, %v3464
    %v3466 = vadd.f32 %v3465, -0.16666654
    %v3467 = vmul.f32 %v3462, %v3466
    %v3468 = vadd.f32 %v3467, 1.0
    %v3469 = vmul.f32 %v3468, %v3453
    %vm3470 = vweird.f32 %v3166
    %v3471 = vand.u32 %v3454, 3
    %vm3472 = vcmp.lt.s32.totalorder %v3471, 2
    %vm3473 = vcmp.eq.s32.totalorder %v3471, 0
    %v3474 = vxor.u32 %v3469, 2147483648
    %v3475 = vsel %vm3473, %v3461, %v3474
    %vm3476 = vcmp.eq.s32.totalorder %v3471, 2
    %v3477 = vxor.u32 %v3461, 2147483648
    %v3478 = vsel %vm3476, %v3477, %v3469
    %v3479 = vsel %vm3472, %v3475, %v3478
    %v3480 = vsel %vm3470, nan, %v3479
    %v3481 = vand.u32 2147483647, %v3167
    %vm3482 = vcmp.le.f32.partialorder %v3481, 0.7853982
    %vm3483 = vcmp.lt.s32.totalorder %v3167, 0
    %v3484 = vand.u32 %v3167, 2139095040
    %v3485 = vshrl.u32 %v3484, 23
    %v3486 = vsub.s32 %v3485, 127
    %v3487 = vand.u32 2147483647, %v3167
    %v3488 = vand.u32 %v3487, 8388607
    %v3489 = vor.u32 %v3488, 8388608
    %v3490 = vsub.s32 0, %v3489
    %v3491 = vadd.s32 %v3486, 1
    %vm3492 = vcmp.gt.s32.totalorder %v3491, 0
    %v3493 = vsel %vm3492, %v3491, 0
    %v3494 = vshrl.u32 %v3493, 5
    %v3495 = vand.u32 %v3493, 31
    %v3496 = vsub.s32 32, %v3495
    %v3497 = vshrl.u32 683565275, %v3496
    %v3498 = vshll.u32 683565275, %v3495
    %v3499 = vshrl.u32 2475754826, %v3496
    %v3500 = vor.u32 %v3498, %v3499
    %v3501 = vshll.u32 2475754826, %v3495
    %v3502 = vshrl.u32 2131351028, %v3496
    %v3503 = vor.u32 %v3501, %v3502
    %v3504 = vshll.u32 2131351028, %v3495
    %v3505 = vshrl.u32 2102212464, %v3496
    %v3506 = vor.u32 %v3504, %v3505
    %v3507 = vshll.u32 2102212464, %v3495
    %v3508 = vshrl.u32 920167782, %v3496
    %v3509 = vor.u32 %v3507, %v3508
    %v3510 = vshll.u32 920167782, %v3495
    %v3511 = vshrl.u32 1326507024, %v3496
    %v3512 = vor.u32 %v3510, %v3511
    %vm3513 = vcmp.lt.s32.totalorder %v3494, 1
    %vm3514 = vcmp.lt.s32.totalorder %v3494, 2
    %vm3515 = vcmp.lt.s32.totalorder %v3494, 3
    %vm3516 = vcmp.lt.s32.totalorder %v3494, 4
    %v3517 = vsel %vm3513, %v3497, %v3500
    %v3518 = vsel %vm3516, %v3506, 2102212464
    %v3519 = vsel %vm3515, %v3503, %v3518
    %v3520 = vsel %vm3514, %v3517, %v3519
    %v3521 = vsel %vm3513, %v3500, %v3503
    %v3522 = vsel %vm3516, %v3509, 920167782
    %v3523 = vsel %vm3515, %v3506, %v3522
    %v3524 = vsel %vm3514, %v3521, %v3523
    %v3525 = vsel %vm3513, %v3503, %v3506
    %v3526 = vsel %vm3516, %v3512, 1326507024
    %v3527 = vsel %vm3515, %v3509, %v3526
    %v3528 = vsel %vm3514, %v3525, %v3527
    %v3529 = vshll.u32 %v3489, 8
    %v3530 = vand.u32 %v3529, 65535
    %v3531 = vshrl.u32 %v3529, 16
    %v3532 = vand.u32 %v3528, 65535
    %v3533 = vshrl.u32 %v3528, 16
    %v3534 = vmul.u32 %v3530, %v3532
    %v3535 = vmul.u32 %v3530, %v3533
    %v3536 = vmul.u32 %v3531, %v3532
    %v3537 = vmul.u32 %v3531, %v3533
    %v3538 = vshll.u32 %v3535, 16
    %v3539 = vshrl.u32 %v3535, 16
    %v3540 = vshll.u32 %v3536, 16
    %v3541 = vshrl.u32 %v3536, 16
    %vm3542 = vc.u32 %v3534, %v3538
    %v3543 = vsel %vm3542, 1, 0
    %v3544 = vadd.s32 %v3534, %v3538
    %v3545 = vadd.s32 %v3537, %v3543
    %vm3546 = vc.u32 %v3544, %v3540
    %v3547 = vsel %vm3546, 1, 0
    %v3548 = vadd.s32 %v3544, %v3540
    %v3549 = vadd.s32 %v3545, %v3547
    %v3550 = vadd.s32 %v3549, %v3539
    %v3551 = vadd.s32 %v3550, %v3541
    %v3552 = vand.u32 %v3529, 65535
    %v3553 = vshrl.u32 %v3529, 16
    %v3554 = vand.u32 %v3524, 65535
    %v3555 = vshrl.u32 %v3524, 16
    %v3556 = vmul.u32 %v3552, %v3554
    %v3557 = vmul.u32 %v3552, %v3555
    %v3558 = vmul.u32 %v3553, %v3554
    %v3559 = vmul.u32 %v3553, %v3555
    %v3560 = vshll.u32 %v3557, 16
    %v3561 = vshrl.u32 %v3557, 16
    %v3562 = vshll.u32 %v3558, 16
    %v3563 = vshrl.u32 %v3558, 16
    %vm3564 = vc.u32 %v3556, %v3560
    %v3565 = vsel %vm3564, 1, 0
    %v3566 = vadd.s32 %v3556, %v3560
    %v3567 = vadd.s32 %v3559, %v3565
    %vm3568 = vc.u32 %v3566, %v3562
    %v3569 = vsel %vm3568, 1, 0
    %v3570 = vadd.s32 %v3566, %v3562
    %v3571 = vadd.s32 %v3567, %v3569
    %v3572 = vadd.s32 %v3571, %v3561
    %v3573 = vadd.s32 %v3572, %v3563
    %v3574 = vmul.u32 %v3529, %v3520
    %v3575 = vadd.s32 %v3551, %v3570
    %vm3576 = vc.u32 %v3551, %v3570
    %v3577 = vadd.s32 %v3573, 1
    %v3578 = vsel %vm3576, %v3577, %v3573
    %v3579 = vadd.s32 %v3574, %v3578
    %v3580 = vadd.s32 %v3579, 536870912
    %v3581 = vshrl.u32 %v3580, 30
    %v3582 = vshll.u32 %v3581, 30
    %v3583 = vsub.s32 %v3579, %v3582
    %vm3584 = vcmp.lt.s32.totalorder %v3583, 0
    %v3585 = vsub.s32 0, %v3583
    %v3586 = vsel %vm3584, %v3585, %v3583
    %v3587 = vclz %v3586
    %v3588 = vsub.s32 %v3587, 2
    %vm3589 = vcmp.gt.s32.totalorder 0, %v3588
    %v3590 = vsel %vm3589, 0, %v3588
    %v3591 = vsub.s32 32, %v3590
    %v3592 = vshll.u32 %v3583, %v3590
    %v3593 = vshrl.u32 %v3575, %v3591
    %v3594 = vor.u32 %v3592, %v3593
    %v3595 = vsub.s32 4294967266, %v3590
    %v3596 = vadd.s32 %v3595, 127
    %v3597 = vshll.u32 %v3596, 23
    %v3598 = vor.u32 4788187, %v3597
    %v3599 = vand.u32 2147483647, %v3598
    %v3601 = vcvt.s32.f32 %v3594
    %v3602 = vmul.f32 %v3601, %v3599
    %v3603 = vxor.u32 %v3602, 2147483648
    %v3604 = vsel %vm3483, %v3603, %v3602
    %v3605 = vsub.s32 4, %v3581
    %v3606 = vsel %vm3483, %v3605, %v3581
    %v3607 = vsel %vm3482, %v3167, %v3604
    %v3608 = vsel %vm3482, 0, %v3606
    %v3609 = vmul.f32 %v3607, %v3607
    %v3610 = vmul.f32 %v3609, -0.001358992
    %v3611 = vadd.f32 %v3610, 0.041655596
    %v3612 = vmul.f32 %v3609, %v3611
    %v3613 = vadd.f32 %v3612, -0.4999988
    %v3614 = vmul.f32 %v3609, %v3613
    %v3615 = vadd.f32 1.0, %v3614
    %v3616 = vmul.f32 %v3607, %v3607
    %v3617 = vmul.f32 %v3616, -0.00019511016
    %v3618 = vadd.f32 %v3617, 0.008332121
    %v3619 = vmul.f32 %v3616, %v3618
    %v3620 = vadd.f32 %v3619, -0.16666654
    %v3621 = vmul.f32 %v3616, %v3620
    %v3622 = vadd.f32 %v3621, 1.0
    %v3623 = vmul.f32 %v3622, %v3607
    %vm3624 = vweird.f32 %v3167
    %v3625 = vand.u32 %v3608, 3
    %vm3626 = vcmp.lt.s32.totalorder %v3625, 2
    %vm3627 = vcmp.eq.s32.totalorder %v3625, 0
    %v3628 = vxor.u32 %v3623, 2147483648
    %v3629 = vsel %vm3627, %v3615, %v3628
    %vm3630 = vcmp.eq.s32.totalorder %v3625, 2
    %v3631 = vxor.u32 %v3615, 2147483648
    %v3632 = vsel %vm3630, %v3631, %v3623
    %v3633 = vsel %vm3626, %v3629, %v3632
    %v3634 = vsel %vm3624, nan, %v3633
    %v3635 = vand.u32 2147483647, %v3168
    %vm3636 = vcmp.le.f32.partialorder %v3635, 0.7853982
    %vm3637 = vcmp.lt.s32.totalorder %v3168, 0
    %v3638 = vand.u32 %v3168, 2139095040
    %v3639 = vshrl.u32 %v3638, 23
    %v3640 = vsub.s32 %v3639, 127
    %v3641 = vand.u32 2147483647, %v3168
    %v3642 = vand.u32 %v3641, 8388607
    %v3643 = vor.u32 %v3642, 8388608
    %v3644 = vsub.s32 0, %v3643
    %v3645 = vadd.s32 %v3640, 1
    %vm3646 = vcmp.gt.s32.totalorder %v3645, 0
    %v3647 = vsel %vm3646, %v3645, 0
    %v3648 = vshrl.u32 %v3647, 5
    %v3649 = vand.u32 %v3647, 31
    %v3650 = vsub.s32 32, %v3649
    %v3651 = vshrl.u32 683565275, %v3650
    %v3652 = vshll.u32 683565275, %v3649
    %v3653 = vshrl.u32 2475754826, %v3650
    %v3654 = vor.u32 %v3652, %v3653
    %v3655 = vshll.u32 2475754826, %v3649
    %v3656 = vshrl.u32 2131351028, %v3650
    %v3657 = vor.u32 %v3655, %v3656
    %v3658 = vshll.u32 2131351028, %v3649
    %v3659 = vshrl.u32 2102212464, %v3650
    %v3660 = vor.u32 %v3658, %v3659
    %v3661 = vshll.u32 2102212464, %v3649
    %v3662 = vshrl.u32 920167782, %v3650
    %v3663 = vor.u32 %v3661, %v3662
    %v3664 = vshll.u32 920167782, %v3649
    %v3665 = vshrl.u32 1326507024, %v3650
    %v3666 = vor.u32 %v3664, %v3665
    %vm3667 = vcmp.lt.s32.totalorder %v3648, 1
    %vm3668 = vcmp.lt.s32.totalorder %v3648, 2
    %vm3669 = vcmp.lt.s32.totalorder %v3648, 3
    %vm3670 = vcmp.lt.s32.totalorder %v3648, 4
    %v3671 = vsel %vm3667, %v3651, %v3654
    %v3672 = vsel %vm3670, %v3660, 2102212464
    %v3673 = vsel %vm3669, %v3657, %v3672
    %v3674 = vsel %vm3668, %v3671, %v3673
    %v3675 = vsel %vm3667, %v3654, %v3657
    %v3676 = vsel %vm3670, %v3663, 920167782
    %v3677 = vsel %vm3669, %v3660, %v3676
    %v3678 = vsel %vm3668, %v3675, %v3677
    %v3679 = vsel %vm3667, %v3657, %v3660
    %v3680 = vsel %vm3670, %v3666, 1326507024
    %v3681 = vsel %vm3669, %v3663, %v3680
    %v3682 = vsel %vm3668, %v3679, %v3681
    %v3683 = vshll.u32 %v3643, 8
    %v3684 = vand.u32 %v3683, 65535
    %v3685 = vshrl.u32 %v3683, 16
    %v3686 = vand.u32 %v3682, 65535
    %v3687 = vshrl.u32 %v3682, 16
    %v3688 = vmul.u32 %v3684, %v3686
    %v3689 = vmul.u32 %v3684, %v3687
    %v3690 = vmul.u32 %v3685, %v3686
    %v3691 = vmul.u32 %v3685, %v3687
    %v3692 = vshll.u32 %v3689, 16
    %v3693 = vshrl.u32 %v3689, 16
    %v3694 = vshll.u32 %v3690, 16
    %v3695 = vshrl.u32 %v3690, 16
    %vm3696 = vc.u32 %v3688, %v3692
    %v3697 = vsel %vm3696, 1, 0
    %v3698 = vadd.s32 %v3688, %v3692
    %v3699 = vadd.s32 %v3691, %v3697
    %vm3700 = vc.u32 %v3698, %v3694
    %v3701 = vsel %vm3700, 1, 0
    %v3702 = vadd.s32 %v3698, %v3694
    %v3703 = vadd.s32 %v3699, %v3701
    %v3704 = vadd.s32 %v3703, %v3693
    %v3705 = vadd.s32 %v3704, %v3695
    %v3706 = vand.u32 %v3683, 65535
    %v3707 = vshrl.u32 %v3683, 16
    %v3708 = vand.u32 %v3678, 65535
    %v3709 = vshrl.u32 %v3678, 16
    %v3710 = vmul.u32 %v3706, %v3708
    %v3711 = vmul.u32 %v3706, %v3709
    %v3712 = vmul.u32 %v3707, %v3708
    %v3713 = vmul.u32 %v3707, %v3709
    %v3714 = vshll.u32 %v3711, 16
    %v3715 = vshrl.u32 %v3711, 16
    %v3716 = vshll.u32 %v3712, 16
    %v3717 = vshrl.u32 %v3712, 16
    %vm3718 = vc.u32 %v3710, %v3714
    %v3719 = vsel %vm3718, 1, 0
    %v3720 = vadd.s32 %v3710, %v3714
    %v3721 = vadd.s32 %v3713, %v3719
    %vm3722 = vc.u32 %v3720, %v3716
    %v3723 = vsel %vm3722, 1, 0
    %v3724 = vadd.s32 %v3720, %v3716
    %v3725 = vadd.s32 %v3721, %v3723
    %v3726 = vadd.s32 %v3725, %v3715
    %v3727 = vadd.s32 %v3726, %v3717
    %v3728 = vmul.u32 %v3683, %v3674
    %v3729 = vadd.s32 %v3705, %v3724
    %vm3730 = vc.u32 %v3705, %v3724
    %v3731 = vadd.s32 %v3727, 1
    %v3732 = vsel %vm3730, %v3731, %v3727
    %v3733 = vadd.s32 %v3728, %v3732
    %v3734 = vadd.s32 %v3733, 536870912
    %v3735 = vshrl.u32 %v3734, 30
    %v3736 = vshll.u32 %v3735, 30
    %v3737 = vsub.s32 %v3733, %v3736
    %vm3738 = vcmp.lt.s32.totalorder %v3737, 0
    %v3739 = vsub.s32 0, %v3737
    %v3740 = vsel %vm3738, %v3739, %v3737
    %v3741 = vclz %v3740
    %v3742 = vsub.s32 %v3741, 2
    %vm3743 = vcmp.gt.s32.totalorder 0, %v3742
    %v3744 = vsel %vm3743, 0, %v3742
    %v3745 = vsub.s32 32, %v3744
    %v3746 = vshll.u32 %v3737, %v3744
    %v3747 = vshrl.u32 %v3729, %v3745
    %v3748 = vor.u32 %v3746, %v3747
    %v3749 = vsub.s32 4294967266, %v3744
    %v3750 = vadd.s32 %v3749, 127
    %v3751 = vshll.u32 %v3750, 23
    %v3752 = vor.u32 4788187, %v3751
    %v3753 = vand.u32 2147483647, %v3752
    %v3755 = vcvt.s32.f32 %v3748
    %v3756 = vmul.f32 %v3755, %v3753
    %v3757 = vxor.u32 %v3756, 2147483648
    %v3758 = vsel %vm3637, %v3757, %v3756
    %v3759 = vsub.s32 4, %v3735
    %v3760 = vsel %vm3637, %v3759, %v3735
    %v3761 = vsel %vm3636, %v3168, %v3758
    %v3762 = vsel %vm3636, 0, %v3760
    %v3763 = vmul.f32 %v3761, %v3761
    %v3764 = vmul.f32 %v3763, -0.001358992
    %v3765 = vadd.f32 %v3764, 0.041655596
    %v3766 = vmul.f32 %v3763, %v3765
    %v3767 = vadd.f32 %v3766, -0.4999988
    %v3768 = vmul.f32 %v3763, %v3767
    %v3769 = vadd.f32 1.0, %v3768
    %v3770 = vmul.f32 %v3761, %v3761
    %v3771 = vmul.f32 %v3770, -0.00019511016
    %v3772 = vadd.f32 %v3771, 0.008332121
    %v3773 = vmul.f32 %v3770, %v3772
    %v3774 = vadd.f32 %v3773, -0.16666654
    %v3775 = vmul.f32 %v3770, %v3774
    %v3776 = vadd.f32 %v3775, 1.0
    %v3777 = vmul.f32 %v3776, %v3761
    %vm3778 = vweird.f32 %v3168
    %v3779 = vand.u32 %v3762, 3
    %vm3780 = vcmp.lt.s32.totalorder %v3779, 2
    %vm3781 = vcmp.eq.s32.totalorder %v3779, 0
    %v3782 = vxor.u32 %v3777, 2147483648
    %v3783 = vsel %vm3781, %v3769, %v3782
    %vm3784 = vcmp.eq.s32.totalorder %v3779, 2
    %v3785 = vxor.u32 %v3769, 2147483648
    %v3786 = vsel %vm3784, %v3785, %v3777
    %v3787 = vsel %vm3780, %v3783, %v3786
    %v3788 = vsel %vm3778, nan, %v3787
    %v3789 = vand.u32 2147483647, %v3169
    %vm3790 = vcmp.le.f32.partialorder %v3789, 0.7853982
    %vm3791 = vcmp.lt.s32.totalorder %v3169, 0
    %v3792 = vand.u32 %v3169, 2139095040
    %v3793 = vshrl.u32 %v3792, 23
    %v3794 = vsub.s32 %v3793, 127
    %v3795 = vand.u32 2147483647, %v3169
    %v3796 = vand.u32 %v3795, 8388607
    %v3797 = vor.u32 %v3796, 8388608
    %v3798 = vsub.s32 0, %v3797
    %v3799 = vadd.s32 %v3794, 1
    %vm3800 = vcmp.gt.s32.totalorder %v3799, 0
    %v3801 = vsel %vm3800, %v3799, 0
    %v3802 = vshrl.u32 %v3801, 5
    %v3803 = vand.u32 %v3801, 31
    %v3804 = vsub.s32 32, %v3803
    %v3805 = vshrl.u32 683565275, %v3804
    %v3806 = vshll.u32 683565275, %v3803
    %v3807 = vshrl.u32 2475754826, %v3804
    %v3808 = vor.u32 %v3806, %v3807
    %v3809 = vshll.u32 2475754826, %v3803
    %v3810 = vshrl.u32 2131351028, %v3804
    %v3811 = vor.u32 %v3809, %v3810
    %v3812 = vshll.u32 2131351028, %v3803
    %v3813 = vshrl.u32 2102212464, %v3804
    %v3814 = vor.u32 %v3812, %v3813
    %v3815 = vshll.u32 2102212464, %v3803
    %v3816 = vshrl.u32 920167782, %v3804
    %v3817 = vor.u32 %v3815, %v3816
    %v3818 = vshll.u32 920167782, %v3803
    %v3819 = vshrl.u32 1326507024, %v3804
    %v3820 = vor.u32 %v3818, %v3819
    %vm3821 = vcmp.lt.s32.totalorder %v3802, 1
    %vm3822 = vcmp.lt.s32.totalorder %v3802, 2
    %vm3823 = vcmp.lt.s32.totalorder %v3802, 3
    %vm3824 = vcmp.lt.s32.totalorder %v3802, 4
    %v3825 = vsel %vm3821, %v3805, %v3808
    %v3826 = vsel %vm3824, %v3814, 2102212464
    %v3827 = vsel %vm3823, %v3811, %v3826
    %v3828 = vsel %vm3822, %v3825, %v3827
    %v3829 = vsel %vm3821, %v3808, %v3811
    %v3830 = vsel %vm3824, %v3817, 920167782
    %v3831 = vsel %vm3823, %v3814, %v3830
    %v3832 = vsel %vm3822, %v3829, %v3831
    %v3833 = vsel %vm3821, %v3811, %v3814
    %v3834 = vsel %vm3824, %v3820, 1326507024
    %v3835 = vsel %vm3823, %v3817, %v3834
    %v3836 = vsel %vm3822, %v3833, %v3835
    %v3837 = vshll.u32 %v3797, 8
    %v3838 = vand.u32 %v3837, 65535
    %v3839 = vshrl.u32 %v3837, 16
    %v3840 = vand.u32 %v3836, 65535
    %v3841 = vshrl.u32 %v3836, 16
    %v3842 = vmul.u32 %v3838, %v3840
    %v3843 = vmul.u32 %v3838, %v3841
    %v3844 = vmul.u32 %v3839, %v3840
    %v3845 = vmul.u32 %v3839, %v3841
    %v3846 = vshll.u32 %v3843, 16
    %v3847 = vshrl.u32 %v3843, 16
    %v3848 = vshll.u32 %v3844, 16
    %v3849 = vshrl.u32 %v3844, 16
    %vm3850 = vc.u32 %v3842, %v3846
    %v3851 = vsel %vm3850, 1, 0
    %v3852 = vadd.s32 %v3842, %v3846
    %v3853 = vadd.s32 %v3845, %v3851
    %vm3854 = vc.u32 %v3852, %v3848
    %v3855 = vsel %vm3854, 1, 0
    %v3856 = vadd.s32 %v3852, %v3848
    %v3857 = vadd.s32 %v3853, %v3855
    %v3858 = vadd.s32 %v3857, %v3847
    %v3859 = vadd.s32 %v3858, %v3849
    %v3860 = vand.u32 %v3837, 65535
    %v3861 = vshrl.u32 %v3837, 16
    %v3862 = vand.u32 %v3832, 65535
    %v3863 = vshrl.u32 %v3832, 16
    %v3864 = vmul.u32 %v3860, %v3862
    %v3865 = vmul.u32 %v3860, %v3863
    %v3866 = vmul.u32 %v3861, %v3862
    %v3867 = vmul.u32 %v3861, %v3863
    %v3868 = vshll.u32 %v3865, 16
    %v3869 = vshrl.u32 %v3865, 16
    %v3870 = vshll.u32 %v3866, 16
    %v3871 = vshrl.u32 %v3866, 16
    %vm3872 = vc.u32 %v3864, %v3868
    %v3873 = vsel %vm3872, 1, 0
    %v3874 = vadd.s32 %v3864, %v3868
    %v3875 = vadd.s32 %v3867, %v3873
    %vm3876 = vc.u32 %v3874, %v3870
    %v3877 = vsel %vm3876, 1, 0
    %v3878 = vadd.s32 %v3874, %v3870
    %v3879 = vadd.s32 %v3875, %v3877
    %v3880 = vadd.s32 %v3879, %v3869
    %v3881 = vadd.s32 %v3880, %v3871
    %v3882 = vmul.u32 %v3837, %v3828
    %v3883 = vadd.s32 %v3859, %v3878
    %vm3884 = vc.u32 %v3859, %v3878
    %v3885 = vadd.s32 %v3881, 1
    %v3886 = vsel %vm3884, %v3885, %v3881
    %v3887 = vadd.s32 %v3882, %v3886
    %v3888 = vadd.s32 %v3887, 536870912
    %v3889 = vshrl.u32 %v3888, 30
    %v3890 = vshll.u32 %v3889, 30
    %v3891 = vsub.s32 %v3887, %v3890
    %vm3892 = vcmp.lt.s32.totalorder %v3891, 0
    %v3893 = vsub.s32 0, %v3891
    %v3894 = vsel %vm3892, %v3893, %v3891
    %v3895 = vclz %v3894
    %v3896 = vsub.s32 %v3895, 2
    %vm3897 = vcmp.gt.s32.totalorder 0, %v3896
    %v3898 = vsel %vm3897, 0, %v3896
    %v3899 = vsub.s32 32, %v3898
    %v3900 = vshll.u32 %v3891, %v3898
    %v3901 = vshrl.u32 %v3883, %v3899
    %v3902 = vor.u32 %v3900, %v3901
    %v3903 = vsub.s32 4294967266, %v3898
    %v3904 = vadd.s32 %v3903, 127
    %v3905 = vshll.u32 %v3904, 23
    %v3906 = vor.u32 4788187, %v3905
    %v3907 = vand.u32 2147483647, %v3906
    %v3909 = vcvt.s32.f32 %v3902
    %v3910 = vmul.f32 %v3909, %v3907
    %v3911 = vxor.u32 %v3910, 2147483648
    %v3912 = vsel %vm3791, %v3911, %v3910
    %v3913 = vsub.s32 4, %v3889
    %v3914 = vsel %vm3791, %v3913, %v3889
    %v3915 = vsel %vm3790, %v3169, %v3912
    %v3916 = vsel %vm3790, 0, %v3914
    %v3917 = vmul.f32 %v3915, %v3915
    %v3918 = vmul.f32 %v3917, -0.001358992
    %v3919 = vadd.f32 %v3918, 0.041655596
    %v3920 = vmul.f32 %v3917, %v3919
    %v3921 = vadd.f32 %v3920, -0.4999988
    %v3922 = vmul.f32 %v3917, %v3921
    %v3923 = vadd.f32 1.0, %v3922
    %v3924 = vmul.f32 %v3915, %v3915
    %v3925 = vmul.f32 %v3924, -0.00019511016
    %v3926 = vadd.f32 %v3925, 0.008332121
    %v3927 = vmul.f32 %v3924, %v3926
    %v3928 = vadd.f32 %v3927, -0.16666654
    %v3929 = vmul.f32 %v3924, %v3928
    %v3930 = vadd.f32 %v3929, 1.0
    %v3931 = vmul.f32 %v3930, %v3915
    %vm3932 = vweird.f32 %v3169
    %v3933 = vand.u32 %v3916, 3
    %vm3934 = vcmp.lt.s32.totalorder %v3933, 2
    %vm3935 = vcmp.eq.s32.totalorder %v3933, 0
    %v3936 = vxor.u32 %v3931, 2147483648
    %v3937 = vsel %vm3935, %v3923, %v3936
    %vm3938 = vcmp.eq.s32.totalorder %v3933, 2
    %v3939 = vxor.u32 %v3923, 2147483648
    %v3940 = vsel %vm3938, %v3939, %v3931
    %v3941 = vsel %vm3934, %v3937, %v3940
    %v3942 = vsel %vm3932, nan, %v3941
    %v3943 = vand.u32 2147483647, %v3170
    %vm3944 = vcmp.le.f32.partialorder %v3943, 0.7853982
    %vm3945 = vcmp.lt.s32.totalorder %v3170, 0
    %v3946 = vand.u32 %v3170, 2139095040
    %v3947 = vshrl.u32 %v3946, 23
    %v3948 = vsub.s32 %v3947, 127
    %v3949 = vand.u32 2147483647, %v3170
    %v3950 = vand.u32 %v3949, 8388607
    %v3951 = vor.u32 %v3950, 8388608
    %v3952 = vsub.s32 0, %v3951
    %v3953 = vadd.s32 %v3948, 1
    %vm3954 = vcmp.gt.s32.totalorder %v3953, 0
    %v3955 = vsel %vm3954, %v3953, 0
    %v3956 = vshrl.u32 %v3955, 5
    %v3957 = vand.u32 %v3955, 31
    %v3958 = vsub.s32 32, %v3957
    %v3959 = vshrl.u32 683565275, %v3958
    %v3960 = vshll.u32 683565275, %v3957
    %v3961 = vshrl.u32 2475754826, %v3958
    %v3962 = vor.u32 %v3960, %v3961
    %v3963 = vshll.u32 2475754826, %v3957
    %v3964 = vshrl.u32 2131351028, %v3958
    %v3965 = vor.u32 %v3963, %v3964
    %v3966 = vshll.u32 2131351028, %v3957
    %v3967 = vshrl.u32 2102212464, %v3958
    %v3968 = vor.u32 %v3966, %v3967
    %v3969 = vshll.u32 2102212464, %v3957
    %v3970 = vshrl.u32 920167782, %v3958
    %v3971 = vor.u32 %v3969, %v3970
    %v3972 = vshll.u32 920167782, %v3957
    %v3973 = vshrl.u32 1326507024, %v3958
    %v3974 = vor.u32 %v3972, %v3973
    %vm3975 = vcmp.lt.s32.totalorder %v3956, 1
    %vm3976 = vcmp.lt.s32.totalorder %v3956, 2
    %vm3977 = vcmp.lt.s32.totalorder %v3956, 3
    %vm3978 = vcmp.lt.s32.totalorder %v3956, 4
    %v3979 = vsel %vm3975, %v3959, %v3962
    %v3980 = vsel %vm3978, %v3968, 2102212464
    %v3981 = vsel %vm3977, %v3965, %v3980
    %v3982 = vsel %vm3976, %v3979, %v3981
    %v3983 = vsel %vm3975, %v3962, %v3965
    %v3984 = vsel %vm3978, %v3971, 920167782
    %v3985 = vsel %vm3977, %v3968, %v3984
    %v3986 = vsel %vm3976, %v3983, %v3985
    %v3987 = vsel %vm3975, %v3965, %v3968
    %v3988 = vsel %vm3978, %v3974, 1326507024
    %v3989 = vsel %vm3977, %v3971, %v3988
    %v3990 = vsel %vm3976, %v3987, %v3989
    %v3991 = vshll.u32 %v3951, 8
    %v3992 = vand.u32 %v3991, 65535
    %v3993 = vshrl.u32 %v3991, 16
    %v3994 = vand.u32 %v3990, 65535
    %v3995 = vshrl.u32 %v3990, 16
    %v3996 = vmul.u32 %v3992, %v3994
    %v3997 = vmul.u32 %v3992, %v3995
    %v3998 = vmul.u32 %v3993, %v3994
    %v3999 = vmul.u32 %v3993, %v3995
    %v4000 = vshll.u32 %v3997, 16
    %v4001 = vshrl.u32 %v3997, 16
    %v4002 = vshll.u32 %v3998, 16
    %v4003 = vshrl.u32 %v3998, 16
    %vm4004 = vc.u32 %v3996, %v4000
    %v4005 = vsel %vm4004, 1, 0
    %v4006 = vadd.s32 %v3996, %v4000
    %v4007 = vadd.s32 %v3999, %v4005
    %vm4008 = vc.u32 %v4006, %v4002
    %v4009 = vsel %vm4008, 1, 0
    %v4010 = vadd.s32 %v4006, %v4002
    %v4011 = vadd.s32 %v4007, %v4009
    %v4012 = vadd.s32 %v4011, %v4001
    %v4013 = vadd.s32 %v4012, %v4003
    %v4014 = vand.u32 %v3991, 65535
    %v4015 = vshrl.u32 %v3991, 16
    %v4016 = vand.u32 %v3986, 65535
    %v4017 = vshrl.u32 %v3986, 16
    %v4018 = vmul.u32 %v4014, %v4016
    %v4019 = vmul.u32 %v4014, %v4017
    %v4020 = vmul.u32 %v4015, %v4016
    %v4021 = vmul.u32 %v4015, %v4017
    %v4022 = vshll.u32 %v4019, 16
    %v4023 = vshrl.u32 %v4019, 16
    %v4024 = vshll.u32 %v4020, 16
    %v4025 = vshrl.u32 %v4020, 16
    %vm4026 = vc.u32 %v4018, %v4022
    %v4027 = vsel %vm4026, 1, 0
    %v4028 = vadd.s32 %v4018, %v4022
    %v4029 = vadd.s32 %v4021, %v4027
    %vm4030 = vc.u32 %v4028, %v4024
    %v4031 = vsel %vm4030, 1, 0
    %v4032 = vadd.s32 %v4028, %v4024
    %v4033 = vadd.s32 %v4029, %v4031
    %v4034 = vadd.s32 %v4033, %v4023
    %v4035 = vadd.s32 %v4034, %v4025
    %v4036 = vmul.u32 %v3991, %v3982
    %v4037 = vadd.s32 %v4013, %v4032
    %vm4038 = vc.u32 %v4013, %v4032
    %v4039 = vadd.s32 %v4035, 1
    %v4040 = vsel %vm4038, %v4039, %v4035
    %v4041 = vadd.s32 %v4036, %v4040
    %v4042 = vadd.s32 %v4041, 536870912
    %v4043 = vshrl.u32 %v4042, 30
    %v4044 = vshll.u32 %v4043, 30
    %v4045 = vsub.s32 %v4041, %v4044
    %vm4046 = vcmp.lt.s32.totalorder %v4045, 0
    %v4047 = vsub.s32 0, %v4045
    %v4048 = vsel %vm4046, %v4047, %v4045
    %v4049 = vclz %v4048
    %v4050 = vsub.s32 %v4049, 2
    %vm4051 = vcmp.gt.s32.totalorder 0, %v4050
    %v4052 = vsel %vm4051, 0, %v4050
    %v4053 = vsub.s32 32, %v4052
    %v4054 = vshll.u32 %v4045, %v4052
    %v4055 = vshrl.u32 %v4037, %v4053
    %v4056 = vor.u32 %v4054, %v4055
    %v4057 = vsub.s32 4294967266, %v4052
    %v4058 = vadd.s32 %v4057, 127
    %v4059 = vshll.u32 %v4058, 23
    %v4060 = vor.u32 4788187, %v4059
    %v4061 = vand.u32 2147483647, %v4060
    %v4063 = vcvt.s32.f32 %v4056
    %v4064 = vmul.f32 %v4063, %v4061
    %v4065 = vxor.u32 %v4064, 2147483648
    %v4066 = vsel %vm3945, %v4065, %v4064
    %v4067 = vsub.s32 4, %v4043
    %v4068 = vsel %vm3945, %v4067, %v4043
    %v4069 = vsel %vm3944, %v3170, %v4066
    %v4070 = vsel %vm3944, 0, %v4068
    %v4071 = vmul.f32 %v4069, %v4069
    %v4072 = vmul.f32 %v4071, -0.001358992
    %v4073 = vadd.f32 %v4072, 0.041655596
    %v4074 = vmul.f32 %v4071, %v4073
    %v4075 = vadd.f32 %v4074, -0.4999988
    %v4076 = vmul.f32 %v4071, %v4075
    %v4077 = vadd.f32 1.0, %v4076
    %v4078 = vmul.f32 %v4069, %v4069
    %v4079 = vmul.f32 %v4078, -0.00019511016
    %v4080 = vadd.f32 %v4079, 0.008332121
    %v4081 = vmul.f32 %v4078, %v4080
    %v4082 = vadd.f32 %v4081, -0.16666654
    %v4083 = vmul.f32 %v4078, %v4082
    %v4084 = vadd.f32 %v4083, 1.0
    %v4085 = vmul.f32 %v4084, %v4069
    %vm4086 = vweird.f32 %v3170
    %v4087 = vand.u32 %v4070, 3
    %vm4088 = vcmp.lt.s32.totalorder %v4087, 2
    %vm4089 = vcmp.eq.s32.totalorder %v4087, 0
    %v4090 = vxor.u32 %v4085, 2147483648
    %v4091 = vsel %vm4089, %v4077, %v4090
    %vm4092 = vcmp.eq.s32.totalorder %v4087, 2
    %v4093 = vxor.u32 %v4077, 2147483648
    %v4094 = vsel %vm4092, %v4093, %v4085
    %v4095 = vsel %vm4088, %v4091, %v4094
    %v4096 = vsel %vm4086, nan, %v4095
    %v4097 = vand.u32 2147483647, %v3171
    %vm4098 = vcmp.le.f32.partialorder %v4097, 0.7853982
    %vm4099 = vcmp.lt.s32.totalorder %v3171, 0
    %v4100 = vand.u32 %v3171, 2139095040
    %v4101 = vshrl.u32 %v4100, 23
    %v4102 = vsub.s32 %v4101, 127
    %v4103 = vand.u32 2147483647, %v3171
    %v4104 = vand.u32 %v4103, 8388607
    %v4105 = vor.u32 %v4104, 8388608
    %v4106 = vsub.s32 0, %v4105
    %v4107 = vadd.s32 %v4102, 1
    %vm4108 = vcmp.gt.s32.totalorder %v4107, 0
    %v4109 = vsel %vm4108, %v4107, 0
    %v4110 = vshrl.u32 %v4109, 5
    %v4111 = vand.u32 %v4109, 31
    %v4112 = vsub.s32 32, %v4111
    %v4113 = vshrl.u32 683565275, %v4112
    %v4114 = vshll.u32 683565275, %v4111
    %v4115 = vshrl.u32 2475754826, %v4112
    %v4116 = vor.u32 %v4114, %v4115
    %v4117 = vshll.u32 2475754826, %v4111
    %v4118 = vshrl.u32 2131351028, %v4112
    %v4119 = vor.u32 %v4117, %v4118
    %v4120 = vshll.u32 2131351028, %v4111
    %v4121 = vshrl.u32 2102212464, %v4112
    %v4122 = vor.u32 %v4120, %v4121
    %v4123 = vshll.u32 2102212464, %v4111
    %v4124 = vshrl.u32 920167782, %v4112
    %v4125 = vor.u32 %v4123, %v4124
    %v4126 = vshll.u32 920167782, %v4111
    %v4127 = vshrl.u32 1326507024, %v4112
    %v4128 = vor.u32 %v4126, %v4127
    %vm4129 = vcmp.lt.s32.totalorder %v4110, 1
    %vm4130 = vcmp.lt.s32.totalorder %v4110, 2
    %vm4131 = vcmp.lt.s32.totalorder %v4110, 3
    %vm4132 = vcmp.lt.s32.totalorder %v4110, 4
    %v4133 = vsel %vm4129, %v4113, %v4116
    %v4134 = vsel %vm4132, %v4122, 2102212464
    %v4135 = vsel %vm4131, %v4119, %v4134
    %v4136 = vsel %vm4130, %v4133, %v4135
    %v4137 = vsel %vm4129, %v4116, %v4119
    %v4138 = vsel %vm4132, %v4125, 920167782
    %v4139 = vsel %vm4131, %v4122, %v4138
    %v4140 = vsel %vm4130, %v4137, %v4139
    %v4141 = vsel %vm4129, %v4119, %v4122
    %v4142 = vsel %vm4132, %v4128, 1326507024
    %v4143 = vsel %vm4131, %v4125, %v4142
    %v4144 = vsel %vm4130, %v4141, %v4143
    %v4145 = vshll.u32 %v4105, 8
    %v4146 = vand.u32 %v4145, 65535
    %v4147 = vshrl.u32 %v4145, 16
    %v4148 = vand.u32 %v4144, 65535
    %v4149 = vshrl.u32 %v4144, 16
    %v4150 = vmul.u32 %v4146, %v4148
    %v4151 = vmul.u32 %v4146, %v4149
    %v4152 = vmul.u32 %v4147, %v4148
    %v4153 = vmul.u32 %v4147, %v4149
    %v4154 = vshll.u32 %v4151, 16
    %v4155 = vshrl.u32 %v4151, 16
    %v4156 = vshll.u32 %v4152, 16
    %v4157 = vshrl.u32 %v4152, 16
    %vm4158 = vc.u32 %v4150, %v4154
    %v4159 = vsel %vm4158, 1, 0
    %v4160 = vadd.s32 %v4150, %v4154
    %v4161 = vadd.s32 %v4153, %v4159
    %vm4162 = vc.u32 %v4160, %v4156
    %v4163 = vsel %vm4162, 1, 0
    %v4164 = vadd.s32 %v4160, %v4156
    %v4165 = vadd.s32 %v4161, %v4163
    %v4166 = vadd.s32 %v4165, %v4155
    %v4167 = vadd.s32 %v4166, %v4157
    %v4168 = vand.u32 %v4145, 65535
    %v4169 = vshrl.u32 %v4145, 16
    %v4170 = vand.u32 %v4140, 65535
    %v4171 = vshrl.u32 %v4140, 16
    %v4172 = vmul.u32 %v4168, %v4170
    %v4173 = vmul.u32 %v4168, %v4171
    %v4174 = vmul.u32 %v4169, %v4170
    %v4175 = vmul.u32 %v4169, %v4171
    %v4176 = vshll.u32 %v4173, 16
    %v4177 = vshrl.u32 %v4173, 16
    %v4178 = vshll.u32 %v4174, 16
    %v4179 = vshrl.u32 %v4174, 16
    %vm4180 = vc.u32 %v4172, %v4176
    %v4181 = vsel %vm4180, 1, 0
    %v4182 = vadd.s32 %v4172, %v4176
    %v4183 = vadd.s32 %v4175, %v4181
    %vm4184 = vc.u32 %v4182, %v4178
    %v4185 = vsel %vm4184, 1, 0
    %v4186 = vadd.s32 %v4182, %v4178
    %v4187 = vadd.s32 %v4183, %v4185
    %v4188 = vadd.s32 %v4187, %v4177
    %v4189 = vadd.s32 %v4188, %v4179
    %v4190 = vmul.u32 %v4145, %v4136
    %v4191 = vadd.s32 %v4167, %v4186
    %vm4192 = vc.u32 %v4167, %v4186
    %v4193 = vadd.s32 %v4189, 1
    %v4194 = vsel %vm4192, %v4193, %v4189
    %v4195 = vadd.s32 %v4190, %v4194
    %v4196 = vadd.s32 %v4195, 536870912
    %v4197 = vshrl.u32 %v4196, 30
    %v4198 = vshll.u32 %v4197, 30
    %v4199 = vsub.s32 %v4195, %v4198
    %vm4200 = vcmp.lt.s32.totalorder %v4199, 0
    %v4201 = vsub.s32 0, %v4199
    %v4202 = vsel %vm4200, %v4201, %v4199
    %v4203 = vclz %v4202
    %v4204 = vsub.s32 %v4203, 2
    %vm4205 = vcmp.gt.s32.totalorder 0, %v4204
    %v4206 = vsel %vm4205, 0, %v4204
    %v4207 = vsub.s32 32, %v4206
    %v4208 = vshll.u32 %v4199, %v4206
    %v4209 = vshrl.u32 %v4191, %v4207
    %v4210 = vor.u32 %v4208, %v4209
    %v4211 = vsub.s32 4294967266, %v4206
    %v4212 = vadd.s32 %v4211, 127
    %v4213 = vshll.u32 %v4212, 23
    %v4214 = vor.u32 4788187, %v4213
    %v4215 = vand.u32 2147483647, %v4214
    %v4217 = vcvt.s32.f32 %v4210
    %v4218 = vmul.f32 %v4217, %v4215
    %v4219 = vxor.u32 %v4218, 2147483648
    %v4220 = vsel %vm4099, %v4219, %v4218
    %v4221 = vsub.s32 4, %v4197
    %v4222 = vsel %vm4099, %v4221, %v4197
    %v4223 = vsel %vm4098, %v3171, %v4220
    %v4224 = vsel %vm4098, 0, %v4222
    %v4225 = vmul.f32 %v4223, %v4223
    %v4226 = vmul.f32 %v4225, -0.001358992
    %v4227 = vadd.f32 %v4226, 0.041655596
    %v4228 = vmul.f32 %v4225, %v4227
    %v4229 = vadd.f32 %v4228, -0.4999988
    %v4230 = vmul.f32 %v4225, %v4229
    %v4231 = vadd.f32 1.0, %v4230
    %v4232 = vmul.f32 %v4223, %v4223
    %v4233 = vmul.f32 %v4232, -0.00019511016
    %v4234 = vadd.f32 %v4233, 0.008332121
    %v4235 = vmul.f32 %v4232, %v4234
    %v4236 = vadd.f32 %v4235, -0.16666654
    %v4237 = vmul.f32 %v4232, %v4236
    %v4238 = vadd.f32 %v4237, 1.0
    %v4239 = vmul.f32 %v4238, %v4223
    %vm4240 = vweird.f32 %v3171
    %v4241 = vand.u32 %v4224, 3
    %vm4242 = vcmp.lt.s32.totalorder %v4241, 2
    %vm4243 = vcmp.eq.s32.totalorder %v4241, 0
    %v4244 = vxor.u32 %v4239, 2147483648
    %v4245 = vsel %vm4243, %v4231, %v4244
    %vm4246 = vcmp.eq.s32.totalorder %v4241, 2
    %v4247 = vxor.u32 %v4231, 2147483648
    %v4248 = vsel %vm4246, %v4247, %v4239
    %v4249 = vsel %vm4242, %v4245, %v4248
    %v4250 = vsel %vm4240, nan, %v4249
    %v4251 = vand.u32 2147483647, %v3172
    %vm4252 = vcmp.le.f32.partialorder %v4251, 0.7853982
    %vm4253 = vcmp.lt.s32.totalorder %v3172, 0
    %v4254 = vand.u32 %v3172, 2139095040
    %v4255 = vshrl.u32 %v4254, 23
    %v4256 = vsub.s32 %v4255, 127
    %v4257 = vand.u32 2147483647, %v3172
    %v4258 = vand.u32 %v4257, 8388607
    %v4259 = vor.u32 %v4258, 8388608
    %v4260 = vsub.s32 0, %v4259
    %v4261 = vadd.s32 %v4256, 1
    %vm4262 = vcmp.gt.s32.totalorder %v4261, 0
    %v4263 = vsel %vm4262, %v4261, 0
    %v4264 = vshrl.u32 %v4263, 5
    %v4265 = vand.u32 %v4263, 31
    %v4266 = vsub.s32 32, %v4265
    %v4267 = vshrl.u32 683565275, %v4266
    %v4268 = vshll.u32 683565275, %v4265
    %v4269 = vshrl.u32 2475754826, %v4266
    %v4270 = vor.u32 %v4268, %v4269
    %v4271 = vshll.u32 2475754826, %v4265
    %v4272 = vshrl.u32 2131351028, %v4266
    %v4273 = vor.u32 %v4271, %v4272
    %v4274 = vshll.u32 2131351028, %v4265
    %v4275 = vshrl.u32 2102212464, %v4266
    %v4276 = vor.u32 %v4274, %v4275
    %v4277 = vshll.u32 2102212464, %v4265
    %v4278 = vshrl.u32 920167782, %v4266
    %v4279 = vor.u32 %v4277, %v4278
    %v4280 = vshll.u32 920167782, %v4265
    %v4281 = vshrl.u32 1326507024, %v4266
    %v4282 = vor.u32 %v4280, %v4281
    %vm4283 = vcmp.lt.s32.totalorder %v4264, 1
    %vm4284 = vcmp.lt.s32.totalorder %v4264, 2
    %vm4285 = vcmp.lt.s32.totalorder %v4264, 3
    %vm4286 = vcmp.lt.s32.totalorder %v4264, 4
    %v4287 = vsel %vm4283, %v4267, %v4270
    %v4288 = vsel %vm4286, %v4276, 2102212464
    %v4289 = vsel %vm4285, %v4273, %v4288
    %v4290 = vsel %vm4284, %v4287, %v4289
    %v4291 = vsel %vm4283, %v4270, %v4273
    %v4292 = vsel %vm4286, %v4279, 920167782
    %v4293 = vsel %vm4285, %v4276, %v4292
    %v4294 = vsel %vm4284, %v4291, %v4293
    %v4295 = vsel %vm4283, %v4273, %v4276
    %v4296 = vsel %vm4286, %v4282, 1326507024
    %v4297 = vsel %vm4285, %v4279, %v4296
    %v4298 = vsel %vm4284, %v4295, %v4297
    %v4299 = vshll.u32 %v4259, 8
    %v4300 = vand.u32 %v4299, 65535
    %v4301 = vshrl.u32 %v4299, 16
    %v4302 = vand.u32 %v4298, 65535
    %v4303 = vshrl.u32 %v4298, 16
    %v4304 = vmul.u32 %v4300, %v4302
    %v4305 = vmul.u32 %v4300, %v4303
    %v4306 = vmul.u32 %v4301, %v4302
    %v4307 = vmul.u32 %v4301, %v4303
    %v4308 = vshll.u32 %v4305, 16
    %v4309 = vshrl.u32 %v4305, 16
    %v4310 = vshll.u32 %v4306, 16
    %v4311 = vshrl.u32 %v4306, 16
    %vm4312 = vc.u32 %v4304, %v4308
    %v4313 = vsel %vm4312, 1, 0
    %v4314 = vadd.s32 %v4304, %v4308
    %v4315 = vadd.s32 %v4307, %v4313
    %vm4316 = vc.u32 %v4314, %v4310
    %v4317 = vsel %vm4316, 1, 0
    %v4318 = vadd.s32 %v4314, %v4310
    %v4319 = vadd.s32 %v4315, %v4317
    %v4320 = vadd.s32 %v4319, %v4309
    %v4321 = vadd.s32 %v4320, %v4311
    %v4322 = vand.u32 %v4299, 65535
    %v4323 = vshrl.u32 %v4299, 16
    %v4324 = vand.u32 %v4294, 65535
    %v4325 = vshrl.u32 %v4294, 16
    %v4326 = vmul.u32 %v4322, %v4324
    %v4327 = vmul.u32 %v4322, %v4325
    %v4328 = vmul.u32 %v4323, %v4324
    %v4329 = vmul.u32 %v4323, %v4325
    %v4330 = vshll.u32 %v4327, 16
    %v4331 = vshrl.u32 %v4327, 16
    %v4332 = vshll.u32 %v4328, 16
    %v4333 = vshrl.u32 %v4328, 16
    %vm4334 = vc.u32 %v4326, %v4330
    %v4335 = vsel %vm4334, 1, 0
    %v4336 = vadd.s32 %v4326, %v4330
    %v4337 = vadd.s32 %v4329, %v4335
    %vm4338 = vc.u32 %v4336, %v4332
    %v4339 = vsel %vm4338, 1, 0
    %v4340 = vadd.s32 %v4336, %v4332
    %v4341 = vadd.s32 %v4337, %v4339
    %v4342 = vadd.s32 %v4341, %v4331
    %v4343 = vadd.s32 %v4342, %v4333
    %v4344 = vmul.u32 %v4299, %v4290
    %v4345 = vadd.s32 %v4321, %v4340
    %vm4346 = vc.u32 %v4321, %v4340
    %v4347 = vadd.s32 %v4343, 1
    %v4348 = vsel %vm4346, %v4347, %v4343
    %v4349 = vadd.s32 %v4344, %v4348
    %v4350 = vadd.s32 %v4349, 536870912
    %v4351 = vshrl.u32 %v4350, 30
    %v4352 = vshll.u32 %v4351, 30
    %v4353 = vsub.s32 %v4349, %v4352
    %vm4354 = vcmp.lt.s32.totalorder %v4353, 0
    %v4355 = vsub.s32 0, %v4353
    %v4356 = vsel %vm4354, %v4355, %v4353
    %v4357 = vclz %v4356
    %v4358 = vsub.s32 %v4357, 2
    %vm4359 = vcmp.gt.s32.totalorder 0, %v4358
    %v4360 = vsel %vm4359, 0, %v4358
    %v4361 = vsub.s32 32, %v4360
    %v4362 = vshll.u32 %v4353, %v4360
    %v4363 = vshrl.u32 %v4345, %v4361
    %v4364 = vor.u32 %v4362, %v4363
    %v4365 = vsub.s32 4294967266, %v4360
    %v4366 = vadd.s32 %v4365, 127
    %v4367 = vshll.u32 %v4366, 23
    %v4368 = vor.u32 4788187, %v4367
    %v4369 = vand.u32 2147483647, %v4368
    %v4371 = vcvt.s32.f32 %v4364
    %v4372 = vmul.f32 %v4371, %v4369
    %v4373 = vxor.u32 %v4372, 2147483648
    %v4374 = vsel %vm4253, %v4373, %v4372
    %v4375 = vsub.s32 4, %v4351
    %v4376 = vsel %vm4253, %v4375, %v4351
    %v4377 = vsel %vm4252, %v3172, %v4374
    %v4378 = vsel %vm4252, 0, %v4376
    %v4379 = vmul.f32 %v4377, %v4377
    %v4380 = vmul.f32 %v4379, -0.001358992
    %v4381 = vadd.f32 %v4380, 0.041655596
    %v4382 = vmul.f32 %v4379, %v4381
    %v4383 = vadd.f32 %v4382, -0.4999988
    %v4384 = vmul.f32 %v4379, %v4383
    %v4385 = vadd.f32 1.0, %v4384
    %v4386 = vmul.f32 %v4377, %v4377
    %v4387 = vmul.f32 %v4386, -0.00019511016
    %v4388 = vadd.f32 %v4387, 0.008332121
    %v4389 = vmul.f32 %v4386, %v4388
    %v4390 = vadd.f32 %v4389, -0.16666654
    %v4391 = vmul.f32 %v4386, %v4390
    %v4392 = vadd.f32 %v4391, 1.0
    %v4393 = vmul.f32 %v4392, %v4377
    %vm4394 = vweird.f32 %v3172
    %v4395 = vand.u32 %v4378, 3
    %vm4396 = vcmp.lt.s32.totalorder %v4395, 2
    %vm4397 = vcmp.eq.s32.totalorder %v4395, 0
    %v4398 = vxor.u32 %v4393, 2147483648
    %v4399 = vsel %vm4397, %v4385, %v4398
    %vm4400 = vcmp.eq.s32.totalorder %v4395, 2
    %v4401 = vxor.u32 %v4385, 2147483648
    %v4402 = vsel %vm4400, %v4401, %v4393
    %v4403 = vsel %vm4396, %v4399, %v4402
    %v4404 = vsel %vm4394, nan, %v4403
    %4413 = vrot.lane.b32.xlu0 %v3326, 127
    %v4414 = vpop.permute.xlu0 %4413
    %4415 = vrot.lane.b32.xlu0 %v3480, 127
    %v4416 = vpop.permute.xlu0 %4415
    %4417 = vrot.lane.b32.xlu0 %v3634, 127
    %v4418 = vpop.permute.xlu0 %4417
    %4419 = vrot.lane.b32.xlu0 %v3788, 127
    %v4420 = vpop.permute.xlu0 %4419
    %4421 = vrot.lane.b32.xlu0 %v3942, 127
    %v4422 = vpop.permute.xlu0 %4421
    %4423 = vrot.lane.b32.xlu0 %v4096, 127
    %v4424 = vpop.permute.xlu0 %4423
    %4425 = vrot.lane.b32.xlu0 %v4250, 127
    %v4426 = vpop.permute.xlu0 %4425
    %4427 = vrot.lane.b32.xlu0 %v4404, 127
    %v4428 = vpop.permute.xlu0 %4427
    %v4437 = vmul.f32 %v3150, %v4414
    %v4438 = vmul.f32 %v3152, %v4416
    %v4439 = vmul.f32 %v3154, %v4418
    %v4440 = vmul.f32 %v3156, %v4420
    %v4441 = vmul.f32 %v3158, %v4422
    %v4442 = vmul.f32 %v3160, %v4424
    %v4443 = vmul.f32 %v3162, %v4426
    %v4444 = vmul.f32 %v3164, %v4428
    %v4445 = vld [vmem:[%s21] sm:$0xff]
    %v4446 = vld [vmem:[%s21 + $0x8] sm:$0xff]
    %v4447 = vld [vmem:[%s21 + $0x10] sm:$0xff]
    %v4448 = vld [vmem:[%s21 + $0x18] sm:$0xff]
    %v4449 = vld [vmem:[%s21 + $0x20] sm:$0xff]
    %v4450 = vld [vmem:[%s21 + $0x28] sm:$0xff]
    %v4451 = vld [vmem:[%s21 + $0x30] sm:$0xff]
    %v4452 = vld [vmem:[%s21 + $0x38] sm:$0xff]
    %v4453 = vld [vmem:[%s21 + $0x40] sm:$0xff]
    %v4454 = vld [vmem:[%s21 + $0x48] sm:$0xff]
    %v4455 = vld [vmem:[%s21 + $0x50] sm:$0xff]
    %v4456 = vld [vmem:[%s21 + $0x58] sm:$0xff]
    %v4457 = vld [vmem:[%s21 + $0x60] sm:$0xff]
    %v4458 = vld [vmem:[%s21 + $0x68] sm:$0xff]
    %v4459 = vld [vmem:[%s21 + $0x70] sm:$0xff]
    %v4460 = vld [vmem:[%s21 + $0x78] sm:$0xff]
    %4462 = vset.pattern.permute.xlu0 0
    %4463 = vperm.xlu0 %4462, %v4437
    %v4464 = vpop.permute.xlu0 %4463
    %4467 = vset.pattern.permute.xlu0 0
    %4468 = vperm.xlu0 %4467, %v4438
    %v4469 = vpop.permute.xlu0 %4468
    %4472 = vset.pattern.permute.xlu0 0
    %4473 = vperm.xlu0 %4472, %v4439
    %v4474 = vpop.permute.xlu0 %4473
    %4477 = vset.pattern.permute.xlu0 0
    %4478 = vperm.xlu0 %4477, %v4440
    %v4479 = vpop.permute.xlu0 %4478
    %4482 = vset.pattern.permute.xlu0 0
    %4483 = vperm.xlu0 %4482, %v4441
    %v4484 = vpop.permute.xlu0 %4483
    %4487 = vset.pattern.permute.xlu0 0
    %4488 = vperm.xlu0 %4487, %v4442
    %v4489 = vpop.permute.xlu0 %4488
    %4492 = vset.pattern.permute.xlu0 0
    %4493 = vperm.xlu0 %4492, %v4443
    %v4494 = vpop.permute.xlu0 %4493
    %4497 = vset.pattern.permute.xlu0 0
    %4498 = vperm.xlu0 %4497, %v4444
    %v4499 = vpop.permute.xlu0 %4498
    %v4501 = vmul.f32 %v4464, %v4445
    %v4502 = vmul.f32 %v4464, %v4446
    %v4503 = vmul.f32 %v4469, %v4447
    %v4504 = vmul.f32 %v4469, %v4448
    %v4505 = vmul.f32 %v4474, %v4449
    %v4506 = vmul.f32 %v4474, %v4450
    %v4507 = vmul.f32 %v4479, %v4451
    %v4508 = vmul.f32 %v4479, %v4452
    %v4509 = vmul.f32 %v4484, %v4453
    %v4510 = vmul.f32 %v4484, %v4454
    %v4511 = vmul.f32 %v4489, %v4455
    %v4512 = vmul.f32 %v4489, %v4456
    %v4513 = vmul.f32 %v4494, %v4457
    %v4514 = vmul.f32 %v4494, %v4458
    %v4515 = vmul.f32 %v4499, %v4459
    %v4516 = vmul.f32 %v4499, %v4460
    %v4517 = vand.u32 2147483647, %v3165
    %vm4518 = vcmp.le.f32.partialorder %v4517, 0.7853982
    %vm4519 = vcmp.lt.s32.totalorder %v3165, 0
    %v4520 = vand.u32 %v3165, 2139095040
    %v4521 = vshrl.u32 %v4520, 23
    %v4522 = vsub.s32 %v4521, 127
    %v4523 = vand.u32 2147483647, %v3165
    %v4524 = vand.u32 %v4523, 8388607
    %v4525 = vor.u32 %v4524, 8388608
    %v4526 = vsub.s32 0, %v4525
    %v4527 = vadd.s32 %v4522, 1
    %vm4528 = vcmp.gt.s32.totalorder %v4527, 0
    %v4529 = vsel %vm4528, %v4527, 0
    %v4530 = vshrl.u32 %v4529, 5
    %v4531 = vand.u32 %v4529, 31
    %v4532 = vsub.s32 32, %v4531
    %v4533 = vshrl.u32 683565275, %v4532
    %v4534 = vshll.u32 683565275, %v4531
    %v4535 = vshrl.u32 2475754826, %v4532
    %v4536 = vor.u32 %v4534, %v4535
    %v4537 = vshll.u32 2475754826, %v4531
    %v4538 = vshrl.u32 2131351028, %v4532
    %v4539 = vor.u32 %v4537, %v4538
    %v4540 = vshll.u32 2131351028, %v4531
    %v4541 = vshrl.u32 2102212464, %v4532
    %v4542 = vor.u32 %v4540, %v4541
    %v4543 = vshll.u32 2102212464, %v4531
    %v4544 = vshrl.u32 920167782, %v4532
    %v4545 = vor.u32 %v4543, %v4544
    %v4546 = vshll.u32 920167782, %v4531
    %v4547 = vshrl.u32 1326507024, %v4532
    %v4548 = vor.u32 %v4546, %v4547
    %vm4549 = vcmp.lt.s32.totalorder %v4530, 1
    %vm4550 = vcmp.lt.s32.totalorder %v4530, 2
    %vm4551 = vcmp.lt.s32.totalorder %v4530, 3
    %vm4552 = vcmp.lt.s32.totalorder %v4530, 4
    %v4553 = vsel %vm4549, %v4533, %v4536
    %v4554 = vsel %vm4552, %v4542, 2102212464
    %v4555 = vsel %vm4551, %v4539, %v4554
    %v4556 = vsel %vm4550, %v4553, %v4555
    %v4557 = vsel %vm4549, %v4536, %v4539
    %v4558 = vsel %vm4552, %v4545, 920167782
    %v4559 = vsel %vm4551, %v4542, %v4558
    %v4560 = vsel %vm4550, %v4557, %v4559
    %v4561 = vsel %vm4549, %v4539, %v4542
    %v4562 = vsel %vm4552, %v4548, 1326507024
    %v4563 = vsel %vm4551, %v4545, %v4562
    %v4564 = vsel %vm4550, %v4561, %v4563
    %v4565 = vshll.u32 %v4525, 8
    %v4566 = vand.u32 %v4565, 65535
    %v4567 = vshrl.u32 %v4565, 16
    %v4568 = vand.u32 %v4564, 65535
    %v4569 = vshrl.u32 %v4564, 16
    %v4570 = vmul.u32 %v4566, %v4568
    %v4571 = vmul.u32 %v4566, %v4569
    %v4572 = vmul.u32 %v4567, %v4568
    %v4573 = vmul.u32 %v4567, %v4569
    %v4574 = vshll.u32 %v4571, 16
    %v4575 = vshrl.u32 %v4571, 16
    %v4576 = vshll.u32 %v4572, 16
    %v4577 = vshrl.u32 %v4572, 16
    %vm4578 = vc.u32 %v4570, %v4574
    %v4579 = vsel %vm4578, 1, 0
    %v4580 = vadd.s32 %v4570, %v4574
    %v4581 = vadd.s32 %v4573, %v4579
    %vm4582 = vc.u32 %v4580, %v4576
    %v4583 = vsel %vm4582, 1, 0
    %v4584 = vadd.s32 %v4580, %v4576
    %v4585 = vadd.s32 %v4581, %v4583
    %v4586 = vadd.s32 %v4585, %v4575
    %v4587 = vadd.s32 %v4586, %v4577
    %v4588 = vand.u32 %v4565, 65535
    %v4589 = vshrl.u32 %v4565, 16
    %v4590 = vand.u32 %v4560, 65535
    %v4591 = vshrl.u32 %v4560, 16
    %v4592 = vmul.u32 %v4588, %v4590
    %v4593 = vmul.u32 %v4588, %v4591
    %v4594 = vmul.u32 %v4589, %v4590
    %v4595 = vmul.u32 %v4589, %v4591
    %v4596 = vshll.u32 %v4593, 16
    %v4597 = vshrl.u32 %v4593, 16
    %v4598 = vshll.u32 %v4594, 16
    %v4599 = vshrl.u32 %v4594, 16
    %vm4600 = vc.u32 %v4592, %v4596
    %v4601 = vsel %vm4600, 1, 0
    %v4602 = vadd.s32 %v4592, %v4596
    %v4603 = vadd.s32 %v4595, %v4601
    %vm4604 = vc.u32 %v4602, %v4598
    %v4605 = vsel %vm4604, 1, 0
    %v4606 = vadd.s32 %v4602, %v4598
    %v4607 = vadd.s32 %v4603, %v4605
    %v4608 = vadd.s32 %v4607, %v4597
    %v4609 = vadd.s32 %v4608, %v4599
    %v4610 = vmul.u32 %v4565, %v4556
    %v4611 = vadd.s32 %v4587, %v4606
    %vm4612 = vc.u32 %v4587, %v4606
    %v4613 = vadd.s32 %v4609, 1
    %v4614 = vsel %vm4612, %v4613, %v4609
    %v4615 = vadd.s32 %v4610, %v4614
    %v4616 = vadd.s32 %v4615, 536870912
    %v4617 = vshrl.u32 %v4616, 30
    %v4618 = vshll.u32 %v4617, 30
    %v4619 = vsub.s32 %v4615, %v4618
    %vm4620 = vcmp.lt.s32.totalorder %v4619, 0
    %v4621 = vsub.s32 0, %v4619
    %v4622 = vsel %vm4620, %v4621, %v4619
    %v4623 = vclz %v4622
    %v4624 = vsub.s32 %v4623, 2
    %vm4625 = vcmp.gt.s32.totalorder 0, %v4624
    %v4626 = vsel %vm4625, 0, %v4624
    %v4627 = vsub.s32 32, %v4626
    %v4628 = vshll.u32 %v4619, %v4626
    %v4629 = vshrl.u32 %v4611, %v4627
    %v4630 = vor.u32 %v4628, %v4629
    %v4631 = vsub.s32 4294967266, %v4626
    %v4632 = vadd.s32 %v4631, 127
    %v4633 = vshll.u32 %v4632, 23
    %v4634 = vor.u32 4788187, %v4633
    %v4635 = vand.u32 2147483647, %v4634
    %v4637 = vcvt.s32.f32 %v4630
    %v4638 = vmul.f32 %v4637, %v4635
    %v4639 = vxor.u32 %v4638, 2147483648
    %v4640 = vsel %vm4519, %v4639, %v4638
    %v4641 = vsub.s32 4, %v4617
    %v4642 = vsel %vm4519, %v4641, %v4617
    %v4643 = vsel %vm4518, %v3165, %v4640
    %v4644 = vsel %vm4518, 0, %v4642
    %v4645 = vmul.f32 %v4643, %v4643
    %v4646 = vmul.f32 %v4645, -0.001358992
    %v4647 = vadd.f32 %v4646, 0.041655596
    %v4648 = vmul.f32 %v4645, %v4647
    %v4649 = vadd.f32 %v4648, -0.4999988
    %v4650 = vmul.f32 %v4645, %v4649
    %v4651 = vadd.f32 1.0, %v4650
    %v4652 = vmul.f32 %v4643, %v4643
    %v4653 = vmul.f32 %v4652, -0.00019511016
    %v4654 = vadd.f32 %v4653, 0.008332121
    %v4655 = vmul.f32 %v4652, %v4654
    %v4656 = vadd.f32 %v4655, -0.16666654
    %v4657 = vmul.f32 %v4652, %v4656
    %v4658 = vadd.f32 %v4657, 1.0
    %v4659 = vmul.f32 %v4658, %v4643
    %vm4660 = vweird.f32 %v3165
    %v4661 = vadd.s32 %v4644, 3
    %v4662 = vand.u32 %v4661, 3
    %vm4663 = vcmp.lt.s32.totalorder %v4662, 2
    %vm4664 = vcmp.eq.s32.totalorder %v4662, 0
    %v4665 = vxor.u32 %v4659, 2147483648
    %v4666 = vsel %vm4664, %v4651, %v4665
    %vm4667 = vcmp.eq.s32.totalorder %v4662, 2
    %v4668 = vxor.u32 %v4651, 2147483648
    %v4669 = vsel %vm4667, %v4668, %v4659
    %v4670 = vsel %vm4663, %v4666, %v4669
    %v4671 = vsel %vm4660, nan, %v4670
    %v4672 = vand.u32 2147483647, %v3166
    %vm4673 = vcmp.le.f32.partialorder %v4672, 0.7853982
    %vm4674 = vcmp.lt.s32.totalorder %v3166, 0
    %v4675 = vand.u32 %v3166, 2139095040
    %v4676 = vshrl.u32 %v4675, 23
    %v4677 = vsub.s32 %v4676, 127
    %v4678 = vand.u32 2147483647, %v3166
    %v4679 = vand.u32 %v4678, 8388607
    %v4680 = vor.u32 %v4679, 8388608
    %v4681 = vsub.s32 0, %v4680
    %v4682 = vadd.s32 %v4677, 1
    %vm4683 = vcmp.gt.s32.totalorder %v4682, 0
    %v4684 = vsel %vm4683, %v4682, 0
    %v4685 = vshrl.u32 %v4684, 5
    %v4686 = vand.u32 %v4684, 31
    %v4687 = vsub.s32 32, %v4686
    %v4688 = vshrl.u32 683565275, %v4687
    %v4689 = vshll.u32 683565275, %v4686
    %v4690 = vshrl.u32 2475754826, %v4687
    %v4691 = vor.u32 %v4689, %v4690
    %v4692 = vshll.u32 2475754826, %v4686
    %v4693 = vshrl.u32 2131351028, %v4687
    %v4694 = vor.u32 %v4692, %v4693
    %v4695 = vshll.u32 2131351028, %v4686
    %v4696 = vshrl.u32 2102212464, %v4687
    %v4697 = vor.u32 %v4695, %v4696
    %v4698 = vshll.u32 2102212464, %v4686
    %v4699 = vshrl.u32 920167782, %v4687
    %v4700 = vor.u32 %v4698, %v4699
    %v4701 = vshll.u32 920167782, %v4686
    %v4702 = vshrl.u32 1326507024, %v4687
    %v4703 = vor.u32 %v4701, %v4702
    %vm4704 = vcmp.lt.s32.totalorder %v4685, 1
    %vm4705 = vcmp.lt.s32.totalorder %v4685, 2
    %vm4706 = vcmp.lt.s32.totalorder %v4685, 3
    %vm4707 = vcmp.lt.s32.totalorder %v4685, 4
    %v4708 = vsel %vm4704, %v4688, %v4691
    %v4709 = vsel %vm4707, %v4697, 2102212464
    %v4710 = vsel %vm4706, %v4694, %v4709
    %v4711 = vsel %vm4705, %v4708, %v4710
    %v4712 = vsel %vm4704, %v4691, %v4694
    %v4713 = vsel %vm4707, %v4700, 920167782
    %v4714 = vsel %vm4706, %v4697, %v4713
    %v4715 = vsel %vm4705, %v4712, %v4714
    %v4716 = vsel %vm4704, %v4694, %v4697
    %v4717 = vsel %vm4707, %v4703, 1326507024
    %v4718 = vsel %vm4706, %v4700, %v4717
    %v4719 = vsel %vm4705, %v4716, %v4718
    %v4720 = vshll.u32 %v4680, 8
    %v4721 = vand.u32 %v4720, 65535
    %v4722 = vshrl.u32 %v4720, 16
    %v4723 = vand.u32 %v4719, 65535
    %v4724 = vshrl.u32 %v4719, 16
    %v4725 = vmul.u32 %v4721, %v4723
    %v4726 = vmul.u32 %v4721, %v4724
    %v4727 = vmul.u32 %v4722, %v4723
    %v4728 = vmul.u32 %v4722, %v4724
    %v4729 = vshll.u32 %v4726, 16
    %v4730 = vshrl.u32 %v4726, 16
    %v4731 = vshll.u32 %v4727, 16
    %v4732 = vshrl.u32 %v4727, 16
    %vm4733 = vc.u32 %v4725, %v4729
    %v4734 = vsel %vm4733, 1, 0
    %v4735 = vadd.s32 %v4725, %v4729
    %v4736 = vadd.s32 %v4728, %v4734
    %vm4737 = vc.u32 %v4735, %v4731
    %v4738 = vsel %vm4737, 1, 0
    %v4739 = vadd.s32 %v4735, %v4731
    %v4740 = vadd.s32 %v4736, %v4738
    %v4741 = vadd.s32 %v4740, %v4730
    %v4742 = vadd.s32 %v4741, %v4732
    %v4743 = vand.u32 %v4720, 65535
    %v4744 = vshrl.u32 %v4720, 16
    %v4745 = vand.u32 %v4715, 65535
    %v4746 = vshrl.u32 %v4715, 16
    %v4747 = vmul.u32 %v4743, %v4745
    %v4748 = vmul.u32 %v4743, %v4746
    %v4749 = vmul.u32 %v4744, %v4745
    %v4750 = vmul.u32 %v4744, %v4746
    %v4751 = vshll.u32 %v4748, 16
    %v4752 = vshrl.u32 %v4748, 16
    %v4753 = vshll.u32 %v4749, 16
    %v4754 = vshrl.u32 %v4749, 16
    %vm4755 = vc.u32 %v4747, %v4751
    %v4756 = vsel %vm4755, 1, 0
    %v4757 = vadd.s32 %v4747, %v4751
    %v4758 = vadd.s32 %v4750, %v4756
    %vm4759 = vc.u32 %v4757, %v4753
    %v4760 = vsel %vm4759, 1, 0
    %v4761 = vadd.s32 %v4757, %v4753
    %v4762 = vadd.s32 %v4758, %v4760
    %v4763 = vadd.s32 %v4762, %v4752
    %v4764 = vadd.s32 %v4763, %v4754
    %v4765 = vmul.u32 %v4720, %v4711
    %v4766 = vadd.s32 %v4742, %v4761
    %vm4767 = vc.u32 %v4742, %v4761
    %v4768 = vadd.s32 %v4764, 1
    %v4769 = vsel %vm4767, %v4768, %v4764
    %v4770 = vadd.s32 %v4765, %v4769
    %v4771 = vadd.s32 %v4770, 536870912
    %v4772 = vshrl.u32 %v4771, 30
    %v4773 = vshll.u32 %v4772, 30
    %v4774 = vsub.s32 %v4770, %v4773
    %vm4775 = vcmp.lt.s32.totalorder %v4774, 0
    %v4776 = vsub.s32 0, %v4774
    %v4777 = vsel %vm4775, %v4776, %v4774
    %v4778 = vclz %v4777
    %v4779 = vsub.s32 %v4778, 2
    %vm4780 = vcmp.gt.s32.totalorder 0, %v4779
    %v4781 = vsel %vm4780, 0, %v4779
    %v4782 = vsub.s32 32, %v4781
    %v4783 = vshll.u32 %v4774, %v4781
    %v4784 = vshrl.u32 %v4766, %v4782
    %v4785 = vor.u32 %v4783, %v4784
    %v4786 = vsub.s32 4294967266, %v4781
    %v4787 = vadd.s32 %v4786, 127
    %v4788 = vshll.u32 %v4787, 23
    %v4789 = vor.u32 4788187, %v4788
    %v4790 = vand.u32 2147483647, %v4789
    %v4792 = vcvt.s32.f32 %v4785
    %v4793 = vmul.f32 %v4792, %v4790
    %v4794 = vxor.u32 %v4793, 2147483648
    %v4795 = vsel %vm4674, %v4794, %v4793
    %v4796 = vsub.s32 4, %v4772
    %v4797 = vsel %vm4674, %v4796, %v4772
    %v4798 = vsel %vm4673, %v3166, %v4795
    %v4799 = vsel %vm4673, 0, %v4797
    %v4800 = vmul.f32 %v4798, %v4798
    %v4801 = vmul.f32 %v4800, -0.001358992
    %v4802 = vadd.f32 %v4801, 0.041655596
    %v4803 = vmul.f32 %v4800, %v4802
    %v4804 = vadd.f32 %v4803, -0.4999988
    %v4805 = vmul.f32 %v4800, %v4804
    %v4806 = vadd.f32 1.0, %v4805
    %v4807 = vmul.f32 %v4798, %v4798
    %v4808 = vmul.f32 %v4807, -0.00019511016
    %v4809 = vadd.f32 %v4808, 0.008332121
    %v4810 = vmul.f32 %v4807, %v4809
    %v4811 = vadd.f32 %v4810, -0.16666654
    %v4812 = vmul.f32 %v4807, %v4811
    %v4813 = vadd.f32 %v4812, 1.0
    %v4814 = vmul.f32 %v4813, %v4798
    %vm4815 = vweird.f32 %v3166
    %v4816 = vadd.s32 %v4799, 3
    %v4817 = vand.u32 %v4816, 3
    %vm4818 = vcmp.lt.s32.totalorder %v4817, 2
    %vm4819 = vcmp.eq.s32.totalorder %v4817, 0
    %v4820 = vxor.u32 %v4814, 2147483648
    %v4821 = vsel %vm4819, %v4806, %v4820
    %vm4822 = vcmp.eq.s32.totalorder %v4817, 2
    %v4823 = vxor.u32 %v4806, 2147483648
    %v4824 = vsel %vm4822, %v4823, %v4814
    %v4825 = vsel %vm4818, %v4821, %v4824
    %v4826 = vsel %vm4815, nan, %v4825
    %v4827 = vand.u32 2147483647, %v3167
    %vm4828 = vcmp.le.f32.partialorder %v4827, 0.7853982
    %vm4829 = vcmp.lt.s32.totalorder %v3167, 0
    %v4830 = vand.u32 %v3167, 2139095040
    %v4831 = vshrl.u32 %v4830, 23
    %v4832 = vsub.s32 %v4831, 127
    %v4833 = vand.u32 2147483647, %v3167
    %v4834 = vand.u32 %v4833, 8388607
    %v4835 = vor.u32 %v4834, 8388608
    %v4836 = vsub.s32 0, %v4835
    %v4837 = vadd.s32 %v4832, 1
    %vm4838 = vcmp.gt.s32.totalorder %v4837, 0
    %v4839 = vsel %vm4838, %v4837, 0
    %v4840 = vshrl.u32 %v4839, 5
    %v4841 = vand.u32 %v4839, 31
    %v4842 = vsub.s32 32, %v4841
    %v4843 = vshrl.u32 683565275, %v4842
    %v4844 = vshll.u32 683565275, %v4841
    %v4845 = vshrl.u32 2475754826, %v4842
    %v4846 = vor.u32 %v4844, %v4845
    %v4847 = vshll.u32 2475754826, %v4841
    %v4848 = vshrl.u32 2131351028, %v4842
    %v4849 = vor.u32 %v4847, %v4848
    %v4850 = vshll.u32 2131351028, %v4841
    %v4851 = vshrl.u32 2102212464, %v4842
    %v4852 = vor.u32 %v4850, %v4851
    %v4853 = vshll.u32 2102212464, %v4841
    %v4854 = vshrl.u32 920167782, %v4842
    %v4855 = vor.u32 %v4853, %v4854
    %v4856 = vshll.u32 920167782, %v4841
    %v4857 = vshrl.u32 1326507024, %v4842
    %v4858 = vor.u32 %v4856, %v4857
    %vm4859 = vcmp.lt.s32.totalorder %v4840, 1
    %vm4860 = vcmp.lt.s32.totalorder %v4840, 2
    %vm4861 = vcmp.lt.s32.totalorder %v4840, 3
    %vm4862 = vcmp.lt.s32.totalorder %v4840, 4
    %v4863 = vsel %vm4859, %v4843, %v4846
    %v4864 = vsel %vm4862, %v4852, 2102212464
    %v4865 = vsel %vm4861, %v4849, %v4864
    %v4866 = vsel %vm4860, %v4863, %v4865
    %v4867 = vsel %vm4859, %v4846, %v4849
    %v4868 = vsel %vm4862, %v4855, 920167782
    %v4869 = vsel %vm4861, %v4852, %v4868
    %v4870 = vsel %vm4860, %v4867, %v4869
    %v4871 = vsel %vm4859, %v4849, %v4852
    %v4872 = vsel %vm4862, %v4858, 1326507024
    %v4873 = vsel %vm4861, %v4855, %v4872
    %v4874 = vsel %vm4860, %v4871, %v4873
    %v4875 = vshll.u32 %v4835, 8
    %v4876 = vand.u32 %v4875, 65535
    %v4877 = vshrl.u32 %v4875, 16
    %v4878 = vand.u32 %v4874, 65535
    %v4879 = vshrl.u32 %v4874, 16
    %v4880 = vmul.u32 %v4876, %v4878
    %v4881 = vmul.u32 %v4876, %v4879
    %v4882 = vmul.u32 %v4877, %v4878
    %v4883 = vmul.u32 %v4877, %v4879
    %v4884 = vshll.u32 %v4881, 16
    %v4885 = vshrl.u32 %v4881, 16
    %v4886 = vshll.u32 %v4882, 16
    %v4887 = vshrl.u32 %v4882, 16
    %vm4888 = vc.u32 %v4880, %v4884
    %v4889 = vsel %vm4888, 1, 0
    %v4890 = vadd.s32 %v4880, %v4884
    %v4891 = vadd.s32 %v4883, %v4889
    %vm4892 = vc.u32 %v4890, %v4886
    %v4893 = vsel %vm4892, 1, 0
    %v4894 = vadd.s32 %v4890, %v4886
    %v4895 = vadd.s32 %v4891, %v4893
    %v4896 = vadd.s32 %v4895, %v4885
    %v4897 = vadd.s32 %v4896, %v4887
    %v4898 = vand.u32 %v4875, 65535
    %v4899 = vshrl.u32 %v4875, 16
    %v4900 = vand.u32 %v4870, 65535
    %v4901 = vshrl.u32 %v4870, 16
    %v4902 = vmul.u32 %v4898, %v4900
    %v4903 = vmul.u32 %v4898, %v4901
    %v4904 = vmul.u32 %v4899, %v4900
    %v4905 = vmul.u32 %v4899, %v4901
    %v4906 = vshll.u32 %v4903, 16
    %v4907 = vshrl.u32 %v4903, 16
    %v4908 = vshll.u32 %v4904, 16
    %v4909 = vshrl.u32 %v4904, 16
    %vm4910 = vc.u32 %v4902, %v4906
    %v4911 = vsel %vm4910, 1, 0
    %v4912 = vadd.s32 %v4902, %v4906
    %v4913 = vadd.s32 %v4905, %v4911
    %vm4914 = vc.u32 %v4912, %v4908
    %v4915 = vsel %vm4914, 1, 0
    %v4916 = vadd.s32 %v4912, %v4908
    %v4917 = vadd.s32 %v4913, %v4915
    %v4918 = vadd.s32 %v4917, %v4907
    %v4919 = vadd.s32 %v4918, %v4909
    %v4920 = vmul.u32 %v4875, %v4866
    %v4921 = vadd.s32 %v4897, %v4916
    %vm4922 = vc.u32 %v4897, %v4916
    %v4923 = vadd.s32 %v4919, 1
    %v4924 = vsel %vm4922, %v4923, %v4919
    %v4925 = vadd.s32 %v4920, %v4924
    %v4926 = vadd.s32 %v4925, 536870912
    %v4927 = vshrl.u32 %v4926, 30
    %v4928 = vshll.u32 %v4927, 30
    %v4929 = vsub.s32 %v4925, %v4928
    %vm4930 = vcmp.lt.s32.totalorder %v4929, 0
    %v4931 = vsub.s32 0, %v4929
    %v4932 = vsel %vm4930, %v4931, %v4929
    %v4933 = vclz %v4932
    %v4934 = vsub.s32 %v4933, 2
    %vm4935 = vcmp.gt.s32.totalorder 0, %v4934
    %v4936 = vsel %vm4935, 0, %v4934
    %v4937 = vsub.s32 32, %v4936
    %v4938 = vshll.u32 %v4929, %v4936
    %v4939 = vshrl.u32 %v4921, %v4937
    %v4940 = vor.u32 %v4938, %v4939
    %v4941 = vsub.s32 4294967266, %v4936
    %v4942 = vadd.s32 %v4941, 127
    %v4943 = vshll.u32 %v4942, 23
    %v4944 = vor.u32 4788187, %v4943
    %v4945 = vand.u32 2147483647, %v4944
    %v4947 = vcvt.s32.f32 %v4940
    %v4948 = vmul.f32 %v4947, %v4945
    %v4949 = vxor.u32 %v4948, 2147483648
    %v4950 = vsel %vm4829, %v4949, %v4948
    %v4951 = vsub.s32 4, %v4927
    %v4952 = vsel %vm4829, %v4951, %v4927
    %v4953 = vsel %vm4828, %v3167, %v4950
    %v4954 = vsel %vm4828, 0, %v4952
    %v4955 = vmul.f32 %v4953, %v4953
    %v4956 = vmul.f32 %v4955, -0.001358992
    %v4957 = vadd.f32 %v4956, 0.041655596
    %v4958 = vmul.f32 %v4955, %v4957
    %v4959 = vadd.f32 %v4958, -0.4999988
    %v4960 = vmul.f32 %v4955, %v4959
    %v4961 = vadd.f32 1.0, %v4960
    %v4962 = vmul.f32 %v4953, %v4953
    %v4963 = vmul.f32 %v4962, -0.00019511016
    %v4964 = vadd.f32 %v4963, 0.008332121
    %v4965 = vmul.f32 %v4962, %v4964
    %v4966 = vadd.f32 %v4965, -0.16666654
    %v4967 = vmul.f32 %v4962, %v4966
    %v4968 = vadd.f32 %v4967, 1.0
    %v4969 = vmul.f32 %v4968, %v4953
    %vm4970 = vweird.f32 %v3167
    %v4971 = vadd.s32 %v4954, 3
    %v4972 = vand.u32 %v4971, 3
    %vm4973 = vcmp.lt.s32.totalorder %v4972, 2
    %vm4974 = vcmp.eq.s32.totalorder %v4972, 0
    %v4975 = vxor.u32 %v4969, 2147483648
    %v4976 = vsel %vm4974, %v4961, %v4975
    %vm4977 = vcmp.eq.s32.totalorder %v4972, 2
    %v4978 = vxor.u32 %v4961, 2147483648
    %v4979 = vsel %vm4977, %v4978, %v4969
    %v4980 = vsel %vm4973, %v4976, %v4979
    %v4981 = vsel %vm4970, nan, %v4980
    %v4982 = vand.u32 2147483647, %v3168
    %vm4983 = vcmp.le.f32.partialorder %v4982, 0.7853982
    %vm4984 = vcmp.lt.s32.totalorder %v3168, 0
    %v4985 = vand.u32 %v3168, 2139095040
    %v4986 = vshrl.u32 %v4985, 23
    %v4987 = vsub.s32 %v4986, 127
    %v4988 = vand.u32 2147483647, %v3168
    %v4989 = vand.u32 %v4988, 8388607
    %v4990 = vor.u32 %v4989, 8388608
    %v4991 = vsub.s32 0, %v4990
    %v4992 = vadd.s32 %v4987, 1
    %vm4993 = vcmp.gt.s32.totalorder %v4992, 0
    %v4994 = vsel %vm4993, %v4992, 0
    %v4995 = vshrl.u32 %v4994, 5
    %v4996 = vand.u32 %v4994, 31
    %v4997 = vsub.s32 32, %v4996
    %v4998 = vshrl.u32 683565275, %v4997
    %v4999 = vshll.u32 683565275, %v4996
    %v5000 = vshrl.u32 2475754826, %v4997
    %v5001 = vor.u32 %v4999, %v5000
    %v5002 = vshll.u32 2475754826, %v4996
    %v5003 = vshrl.u32 2131351028, %v4997
    %v5004 = vor.u32 %v5002, %v5003
    %v5005 = vshll.u32 2131351028, %v4996
    %v5006 = vshrl.u32 2102212464, %v4997
    %v5007 = vor.u32 %v5005, %v5006
    %v5008 = vshll.u32 2102212464, %v4996
    %v5009 = vshrl.u32 920167782, %v4997
    %v5010 = vor.u32 %v5008, %v5009
    %v5011 = vshll.u32 920167782, %v4996
    %v5012 = vshrl.u32 1326507024, %v4997
    %v5013 = vor.u32 %v5011, %v5012
    %vm5014 = vcmp.lt.s32.totalorder %v4995, 1
    %vm5015 = vcmp.lt.s32.totalorder %v4995, 2
    %vm5016 = vcmp.lt.s32.totalorder %v4995, 3
    %vm5017 = vcmp.lt.s32.totalorder %v4995, 4
    %v5018 = vsel %vm5014, %v4998, %v5001
    %v5019 = vsel %vm5017, %v5007, 2102212464
    %v5020 = vsel %vm5016, %v5004, %v5019
    %v5021 = vsel %vm5015, %v5018, %v5020
    %v5022 = vsel %vm5014, %v5001, %v5004
    %v5023 = vsel %vm5017, %v5010, 920167782
    %v5024 = vsel %vm5016, %v5007, %v5023
    %v5025 = vsel %vm5015, %v5022, %v5024
    %v5026 = vsel %vm5014, %v5004, %v5007
    %v5027 = vsel %vm5017, %v5013, 1326507024
    %v5028 = vsel %vm5016, %v5010, %v5027
    %v5029 = vsel %vm5015, %v5026, %v5028
    %v5030 = vshll.u32 %v4990, 8
    %v5031 = vand.u32 %v5030, 65535
    %v5032 = vshrl.u32 %v5030, 16
    %v5033 = vand.u32 %v5029, 65535
    %v5034 = vshrl.u32 %v5029, 16
    %v5035 = vmul.u32 %v5031, %v5033
    %v5036 = vmul.u32 %v5031, %v5034
    %v5037 = vmul.u32 %v5032, %v5033
    %v5038 = vmul.u32 %v5032, %v5034
    %v5039 = vshll.u32 %v5036, 16
    %v5040 = vshrl.u32 %v5036, 16
    %v5041 = vshll.u32 %v5037, 16
    %v5042 = vshrl.u32 %v5037, 16
    %vm5043 = vc.u32 %v5035, %v5039
    %v5044 = vsel %vm5043, 1, 0
    %v5045 = vadd.s32 %v5035, %v5039
    %v5046 = vadd.s32 %v5038, %v5044
    %vm5047 = vc.u32 %v5045, %v5041
    %v5048 = vsel %vm5047, 1, 0
    %v5049 = vadd.s32 %v5045, %v5041
    %v5050 = vadd.s32 %v5046, %v5048
    %v5051 = vadd.s32 %v5050, %v5040
    %v5052 = vadd.s32 %v5051, %v5042
    %v5053 = vand.u32 %v5030, 65535
    %v5054 = vshrl.u32 %v5030, 16
    %v5055 = vand.u32 %v5025, 65535
    %v5056 = vshrl.u32 %v5025, 16
    %v5057 = vmul.u32 %v5053, %v5055
    %v5058 = vmul.u32 %v5053, %v5056
    %v5059 = vmul.u32 %v5054, %v5055
    %v5060 = vmul.u32 %v5054, %v5056
    %v5061 = vshll.u32 %v5058, 16
    %v5062 = vshrl.u32 %v5058, 16
    %v5063 = vshll.u32 %v5059, 16
    %v5064 = vshrl.u32 %v5059, 16
    %vm5065 = vc.u32 %v5057, %v5061
    %v5066 = vsel %vm5065, 1, 0
    %v5067 = vadd.s32 %v5057, %v5061
    %v5068 = vadd.s32 %v5060, %v5066
    %vm5069 = vc.u32 %v5067, %v5063
    %v5070 = vsel %vm5069, 1, 0
    %v5071 = vadd.s32 %v5067, %v5063
    %v5072 = vadd.s32 %v5068, %v5070
    %v5073 = vadd.s32 %v5072, %v5062
    %v5074 = vadd.s32 %v5073, %v5064
    %v5075 = vmul.u32 %v5030, %v5021
    %v5076 = vadd.s32 %v5052, %v5071
    %vm5077 = vc.u32 %v5052, %v5071
    %v5078 = vadd.s32 %v5074, 1
    %v5079 = vsel %vm5077, %v5078, %v5074
    %v5080 = vadd.s32 %v5075, %v5079
    %v5081 = vadd.s32 %v5080, 536870912
    %v5082 = vshrl.u32 %v5081, 30
    %v5083 = vshll.u32 %v5082, 30
    %v5084 = vsub.s32 %v5080, %v5083
    %vm5085 = vcmp.lt.s32.totalorder %v5084, 0
    %v5086 = vsub.s32 0, %v5084
    %v5087 = vsel %vm5085, %v5086, %v5084
    %v5088 = vclz %v5087
    %v5089 = vsub.s32 %v5088, 2
    %vm5090 = vcmp.gt.s32.totalorder 0, %v5089
    %v5091 = vsel %vm5090, 0, %v5089
    %v5092 = vsub.s32 32, %v5091
    %v5093 = vshll.u32 %v5084, %v5091
    %v5094 = vshrl.u32 %v5076, %v5092
    %v5095 = vor.u32 %v5093, %v5094
    %v5096 = vsub.s32 4294967266, %v5091
    %v5097 = vadd.s32 %v5096, 127
    %v5098 = vshll.u32 %v5097, 23
    %v5099 = vor.u32 4788187, %v5098
    %v5100 = vand.u32 2147483647, %v5099
    %v5102 = vcvt.s32.f32 %v5095
    %v5103 = vmul.f32 %v5102, %v5100
    %v5104 = vxor.u32 %v5103, 2147483648
    %v5105 = vsel %vm4984, %v5104, %v5103
    %v5106 = vsub.s32 4, %v5082
    %v5107 = vsel %vm4984, %v5106, %v5082
    %v5108 = vsel %vm4983, %v3168, %v5105
    %v5109 = vsel %vm4983, 0, %v5107
    %v5110 = vmul.f32 %v5108, %v5108
    %v5111 = vmul.f32 %v5110, -0.001358992
    %v5112 = vadd.f32 %v5111, 0.041655596
    %v5113 = vmul.f32 %v5110, %v5112
    %v5114 = vadd.f32 %v5113, -0.4999988
    %v5115 = vmul.f32 %v5110, %v5114
    %v5116 = vadd.f32 1.0, %v5115
    %v5117 = vmul.f32 %v5108, %v5108
    %v5118 = vmul.f32 %v5117, -0.00019511016
    %v5119 = vadd.f32 %v5118, 0.008332121
    %v5120 = vmul.f32 %v5117, %v5119
    %v5121 = vadd.f32 %v5120, -0.16666654
    %v5122 = vmul.f32 %v5117, %v5121
    %v5123 = vadd.f32 %v5122, 1.0
    %v5124 = vmul.f32 %v5123, %v5108
    %vm5125 = vweird.f32 %v3168
    %v5126 = vadd.s32 %v5109, 3
    %v5127 = vand.u32 %v5126, 3
    %vm5128 = vcmp.lt.s32.totalorder %v5127, 2
    %vm5129 = vcmp.eq.s32.totalorder %v5127, 0
    %v5130 = vxor.u32 %v5124, 2147483648
    %v5131 = vsel %vm5129, %v5116, %v5130
    %vm5132 = vcmp.eq.s32.totalorder %v5127, 2
    %v5133 = vxor.u32 %v5116, 2147483648
    %v5134 = vsel %vm5132, %v5133, %v5124
    %v5135 = vsel %vm5128, %v5131, %v5134
    %v5136 = vsel %vm5125, nan, %v5135
    %v5137 = vand.u32 2147483647, %v3169
    %vm5138 = vcmp.le.f32.partialorder %v5137, 0.7853982
    %vm5139 = vcmp.lt.s32.totalorder %v3169, 0
    %v5140 = vand.u32 %v3169, 2139095040
    %v5141 = vshrl.u32 %v5140, 23
    %v5142 = vsub.s32 %v5141, 127
    %v5143 = vand.u32 2147483647, %v3169
    %v5144 = vand.u32 %v5143, 8388607
    %v5145 = vor.u32 %v5144, 8388608
    %v5146 = vsub.s32 0, %v5145
    %v5147 = vadd.s32 %v5142, 1
    %vm5148 = vcmp.gt.s32.totalorder %v5147, 0
    %v5149 = vsel %vm5148, %v5147, 0
    %v5150 = vshrl.u32 %v5149, 5
    %v5151 = vand.u32 %v5149, 31
    %v5152 = vsub.s32 32, %v5151
    %v5153 = vshrl.u32 683565275, %v5152
    %v5154 = vshll.u32 683565275, %v5151
    %v5155 = vshrl.u32 2475754826, %v5152
    %v5156 = vor.u32 %v5154, %v5155
    %v5157 = vshll.u32 2475754826, %v5151
    %v5158 = vshrl.u32 2131351028, %v5152
    %v5159 = vor.u32 %v5157, %v5158
    %v5160 = vshll.u32 2131351028, %v5151
    %v5161 = vshrl.u32 2102212464, %v5152
    %v5162 = vor.u32 %v5160, %v5161
    %v5163 = vshll.u32 2102212464, %v5151
    %v5164 = vshrl.u32 920167782, %v5152
    %v5165 = vor.u32 %v5163, %v5164
    %v5166 = vshll.u32 920167782, %v5151
    %v5167 = vshrl.u32 1326507024, %v5152
    %v5168 = vor.u32 %v5166, %v5167
    %vm5169 = vcmp.lt.s32.totalorder %v5150, 1
    %vm5170 = vcmp.lt.s32.totalorder %v5150, 2
    %vm5171 = vcmp.lt.s32.totalorder %v5150, 3
    %vm5172 = vcmp.lt.s32.totalorder %v5150, 4
    %v5173 = vsel %vm5169, %v5153, %v5156
    %v5174 = vsel %vm5172, %v5162, 2102212464
    %v5175 = vsel %vm5171, %v5159, %v5174
    %v5176 = vsel %vm5170, %v5173, %v5175
    %v5177 = vsel %vm5169, %v5156, %v5159
    %v5178 = vsel %vm5172, %v5165, 920167782
    %v5179 = vsel %vm5171, %v5162, %v5178
    %v5180 = vsel %vm5170, %v5177, %v5179
    %v5181 = vsel %vm5169, %v5159, %v5162
    %v5182 = vsel %vm5172, %v5168, 1326507024
    %v5183 = vsel %vm5171, %v5165, %v5182
    %v5184 = vsel %vm5170, %v5181, %v5183
    %v5185 = vshll.u32 %v5145, 8
    %v5186 = vand.u32 %v5185, 65535
    %v5187 = vshrl.u32 %v5185, 16
    %v5188 = vand.u32 %v5184, 65535
    %v5189 = vshrl.u32 %v5184, 16
    %v5190 = vmul.u32 %v5186, %v5188
    %v5191 = vmul.u32 %v5186, %v5189
    %v5192 = vmul.u32 %v5187, %v5188
    %v5193 = vmul.u32 %v5187, %v5189
    %v5194 = vshll.u32 %v5191, 16
    %v5195 = vshrl.u32 %v5191, 16
    %v5196 = vshll.u32 %v5192, 16
    %v5197 = vshrl.u32 %v5192, 16
    %vm5198 = vc.u32 %v5190, %v5194
    %v5199 = vsel %vm5198, 1, 0
    %v5200 = vadd.s32 %v5190, %v5194
    %v5201 = vadd.s32 %v5193, %v5199
    %vm5202 = vc.u32 %v5200, %v5196
    %v5203 = vsel %vm5202, 1, 0
    %v5204 = vadd.s32 %v5200, %v5196
    %v5205 = vadd.s32 %v5201, %v5203
    %v5206 = vadd.s32 %v5205, %v5195
    %v5207 = vadd.s32 %v5206, %v5197
    %v5208 = vand.u32 %v5185, 65535
    %v5209 = vshrl.u32 %v5185, 16
    %v5210 = vand.u32 %v5180, 65535
    %v5211 = vshrl.u32 %v5180, 16
    %v5212 = vmul.u32 %v5208, %v5210
    %v5213 = vmul.u32 %v5208, %v5211
    %v5214 = vmul.u32 %v5209, %v5210
    %v5215 = vmul.u32 %v5209, %v5211
    %v5216 = vshll.u32 %v5213, 16
    %v5217 = vshrl.u32 %v5213, 16
    %v5218 = vshll.u32 %v5214, 16
    %v5219 = vshrl.u32 %v5214, 16
    %vm5220 = vc.u32 %v5212, %v5216
    %v5221 = vsel %vm5220, 1, 0
    %v5222 = vadd.s32 %v5212, %v5216
    %v5223 = vadd.s32 %v5215, %v5221
    %vm5224 = vc.u32 %v5222, %v5218
    %v5225 = vsel %vm5224, 1, 0
    %v5226 = vadd.s32 %v5222, %v5218
    %v5227 = vadd.s32 %v5223, %v5225
    %v5228 = vadd.s32 %v5227, %v5217
    %v5229 = vadd.s32 %v5228, %v5219
    %v5230 = vmul.u32 %v5185, %v5176
    %v5231 = vadd.s32 %v5207, %v5226
    %vm5232 = vc.u32 %v5207, %v5226
    %v5233 = vadd.s32 %v5229, 1
    %v5234 = vsel %vm5232, %v5233, %v5229
    %v5235 = vadd.s32 %v5230, %v5234
    %v5236 = vadd.s32 %v5235, 536870912
    %v5237 = vshrl.u32 %v5236, 30
    %v5238 = vshll.u32 %v5237, 30
    %v5239 = vsub.s32 %v5235, %v5238
    %vm5240 = vcmp.lt.s32.totalorder %v5239, 0
    %v5241 = vsub.s32 0, %v5239
    %v5242 = vsel %vm5240, %v5241, %v5239
    %v5243 = vclz %v5242
    %v5244 = vsub.s32 %v5243, 2
    %vm5245 = vcmp.gt.s32.totalorder 0, %v5244
    %v5246 = vsel %vm5245, 0, %v5244
    %v5247 = vsub.s32 32, %v5246
    %v5248 = vshll.u32 %v5239, %v5246
    %v5249 = vshrl.u32 %v5231, %v5247
    %v5250 = vor.u32 %v5248, %v5249
    %v5251 = vsub.s32 4294967266, %v5246
    %v5252 = vadd.s32 %v5251, 127
    %v5253 = vshll.u32 %v5252, 23
    %v5254 = vor.u32 4788187, %v5253
    %v5255 = vand.u32 2147483647, %v5254
    %v5257 = vcvt.s32.f32 %v5250
    %v5258 = vmul.f32 %v5257, %v5255
    %v5259 = vxor.u32 %v5258, 2147483648
    %v5260 = vsel %vm5139, %v5259, %v5258
    %v5261 = vsub.s32 4, %v5237
    %v5262 = vsel %vm5139, %v5261, %v5237
    %v5263 = vsel %vm5138, %v3169, %v5260
    %v5264 = vsel %vm5138, 0, %v5262
    %v5265 = vmul.f32 %v5263, %v5263
    %v5266 = vmul.f32 %v5265, -0.001358992
    %v5267 = vadd.f32 %v5266, 0.041655596
    %v5268 = vmul.f32 %v5265, %v5267
    %v5269 = vadd.f32 %v5268, -0.4999988
    %v5270 = vmul.f32 %v5265, %v5269
    %v5271 = vadd.f32 1.0, %v5270
    %v5272 = vmul.f32 %v5263, %v5263
    %v5273 = vmul.f32 %v5272, -0.00019511016
    %v5274 = vadd.f32 %v5273, 0.008332121
    %v5275 = vmul.f32 %v5272, %v5274
    %v5276 = vadd.f32 %v5275, -0.16666654
    %v5277 = vmul.f32 %v5272, %v5276
    %v5278 = vadd.f32 %v5277, 1.0
    %v5279 = vmul.f32 %v5278, %v5263
    %vm5280 = vweird.f32 %v3169
    %v5281 = vadd.s32 %v5264, 3
    %v5282 = vand.u32 %v5281, 3
    %vm5283 = vcmp.lt.s32.totalorder %v5282, 2
    %vm5284 = vcmp.eq.s32.totalorder %v5282, 0
    %v5285 = vxor.u32 %v5279, 2147483648
    %v5286 = vsel %vm5284, %v5271, %v5285
    %vm5287 = vcmp.eq.s32.totalorder %v5282, 2
    %v5288 = vxor.u32 %v5271, 2147483648
    %v5289 = vsel %vm5287, %v5288, %v5279
    %v5290 = vsel %vm5283, %v5286, %v5289
    %v5291 = vsel %vm5280, nan, %v5290
    %v5292 = vand.u32 2147483647, %v3170
    %vm5293 = vcmp.le.f32.partialorder %v5292, 0.7853982
    %vm5294 = vcmp.lt.s32.totalorder %v3170, 0
    %v5295 = vand.u32 %v3170, 2139095040
    %v5296 = vshrl.u32 %v5295, 23
    %v5297 = vsub.s32 %v5296, 127
    %v5298 = vand.u32 2147483647, %v3170
    %v5299 = vand.u32 %v5298, 8388607
    %v5300 = vor.u32 %v5299, 8388608
    %v5301 = vsub.s32 0, %v5300
    %v5302 = vadd.s32 %v5297, 1
    %vm5303 = vcmp.gt.s32.totalorder %v5302, 0
    %v5304 = vsel %vm5303, %v5302, 0
    %v5305 = vshrl.u32 %v5304, 5
    %v5306 = vand.u32 %v5304, 31
    %v5307 = vsub.s32 32, %v5306
    %v5308 = vshrl.u32 683565275, %v5307
    %v5309 = vshll.u32 683565275, %v5306
    %v5310 = vshrl.u32 2475754826, %v5307
    %v5311 = vor.u32 %v5309, %v5310
    %v5312 = vshll.u32 2475754826, %v5306
    %v5313 = vshrl.u32 2131351028, %v5307
    %v5314 = vor.u32 %v5312, %v5313
    %v5315 = vshll.u32 2131351028, %v5306
    %v5316 = vshrl.u32 2102212464, %v5307
    %v5317 = vor.u32 %v5315, %v5316
    %v5318 = vshll.u32 2102212464, %v5306
    %v5319 = vshrl.u32 920167782, %v5307
    %v5320 = vor.u32 %v5318, %v5319
    %v5321 = vshll.u32 920167782, %v5306
    %v5322 = vshrl.u32 1326507024, %v5307
    %v5323 = vor.u32 %v5321, %v5322
    %vm5324 = vcmp.lt.s32.totalorder %v5305, 1
    %vm5325 = vcmp.lt.s32.totalorder %v5305, 2
    %vm5326 = vcmp.lt.s32.totalorder %v5305, 3
    %vm5327 = vcmp.lt.s32.totalorder %v5305, 4
    %v5328 = vsel %vm5324, %v5308, %v5311
    %v5329 = vsel %vm5327, %v5317, 2102212464
    %v5330 = vsel %vm5326, %v5314, %v5329
    %v5331 = vsel %vm5325, %v5328, %v5330
    %v5332 = vsel %vm5324, %v5311, %v5314
    %v5333 = vsel %vm5327, %v5320, 920167782
    %v5334 = vsel %vm5326, %v5317, %v5333
    %v5335 = vsel %vm5325, %v5332, %v5334
    %v5336 = vsel %vm5324, %v5314, %v5317
    %v5337 = vsel %vm5327, %v5323, 1326507024
    %v5338 = vsel %vm5326, %v5320, %v5337
    %v5339 = vsel %vm5325, %v5336, %v5338
    %v5340 = vshll.u32 %v5300, 8
    %v5341 = vand.u32 %v5340, 65535
    %v5342 = vshrl.u32 %v5340, 16
    %v5343 = vand.u32 %v5339, 65535
    %v5344 = vshrl.u32 %v5339, 16
    %v5345 = vmul.u32 %v5341, %v5343
    %v5346 = vmul.u32 %v5341, %v5344
    %v5347 = vmul.u32 %v5342, %v5343
    %v5348 = vmul.u32 %v5342, %v5344
    %v5349 = vshll.u32 %v5346, 16
    %v5350 = vshrl.u32 %v5346, 16
    %v5351 = vshll.u32 %v5347, 16
    %v5352 = vshrl.u32 %v5347, 16
    %vm5353 = vc.u32 %v5345, %v5349
    %v5354 = vsel %vm5353, 1, 0
    %v5355 = vadd.s32 %v5345, %v5349
    %v5356 = vadd.s32 %v5348, %v5354
    %vm5357 = vc.u32 %v5355, %v5351
    %v5358 = vsel %vm5357, 1, 0
    %v5359 = vadd.s32 %v5355, %v5351
    %v5360 = vadd.s32 %v5356, %v5358
    %v5361 = vadd.s32 %v5360, %v5350
    %v5362 = vadd.s32 %v5361, %v5352
    %v5363 = vand.u32 %v5340, 65535
    %v5364 = vshrl.u32 %v5340, 16
    %v5365 = vand.u32 %v5335, 65535
    %v5366 = vshrl.u32 %v5335, 16
    %v5367 = vmul.u32 %v5363, %v5365
    %v5368 = vmul.u32 %v5363, %v5366
    %v5369 = vmul.u32 %v5364, %v5365
    %v5370 = vmul.u32 %v5364, %v5366
    %v5371 = vshll.u32 %v5368, 16
    %v5372 = vshrl.u32 %v5368, 16
    %v5373 = vshll.u32 %v5369, 16
    %v5374 = vshrl.u32 %v5369, 16
    %vm5375 = vc.u32 %v5367, %v5371
    %v5376 = vsel %vm5375, 1, 0
    %v5377 = vadd.s32 %v5367, %v5371
    %v5378 = vadd.s32 %v5370, %v5376
    %vm5379 = vc.u32 %v5377, %v5373
    %v5380 = vsel %vm5379, 1, 0
    %v5381 = vadd.s32 %v5377, %v5373
    %v5382 = vadd.s32 %v5378, %v5380
    %v5383 = vadd.s32 %v5382, %v5372
    %v5384 = vadd.s32 %v5383, %v5374
    %v5385 = vmul.u32 %v5340, %v5331
    %v5386 = vadd.s32 %v5362, %v5381
    %vm5387 = vc.u32 %v5362, %v5381
    %v5388 = vadd.s32 %v5384, 1
    %v5389 = vsel %vm5387, %v5388, %v5384
    %v5390 = vadd.s32 %v5385, %v5389
    %v5391 = vadd.s32 %v5390, 536870912
    %v5392 = vshrl.u32 %v5391, 30
    %v5393 = vshll.u32 %v5392, 30
    %v5394 = vsub.s32 %v5390, %v5393
    %vm5395 = vcmp.lt.s32.totalorder %v5394, 0
    %v5396 = vsub.s32 0, %v5394
    %v5397 = vsel %vm5395, %v5396, %v5394
    %v5398 = vclz %v5397
    %v5399 = vsub.s32 %v5398, 2
    %vm5400 = vcmp.gt.s32.totalorder 0, %v5399
    %v5401 = vsel %vm5400, 0, %v5399
    %v5402 = vsub.s32 32, %v5401
    %v5403 = vshll.u32 %v5394, %v5401
    %v5404 = vshrl.u32 %v5386, %v5402
    %v5405 = vor.u32 %v5403, %v5404
    %v5406 = vsub.s32 4294967266, %v5401
    %v5407 = vadd.s32 %v5406, 127
    %v5408 = vshll.u32 %v5407, 23
    %v5409 = vor.u32 4788187, %v5408
    %v5410 = vand.u32 2147483647, %v5409
    %v5412 = vcvt.s32.f32 %v5405
    %v5413 = vmul.f32 %v5412, %v5410
    %v5414 = vxor.u32 %v5413, 2147483648
    %v5415 = vsel %vm5294, %v5414, %v5413
    %v5416 = vsub.s32 4, %v5392
    %v5417 = vsel %vm5294, %v5416, %v5392
    %v5418 = vsel %vm5293, %v3170, %v5415
    %v5419 = vsel %vm5293, 0, %v5417
    %v5420 = vmul.f32 %v5418, %v5418
    %v5421 = vmul.f32 %v5420, -0.001358992
    %v5422 = vadd.f32 %v5421, 0.041655596
    %v5423 = vmul.f32 %v5420, %v5422
    %v5424 = vadd.f32 %v5423, -0.4999988
    %v5425 = vmul.f32 %v5420, %v5424
    %v5426 = vadd.f32 1.0, %v5425
    %v5427 = vmul.f32 %v5418, %v5418
    %v5428 = vmul.f32 %v5427, -0.00019511016
    %v5429 = vadd.f32 %v5428, 0.008332121
    %v5430 = vmul.f32 %v5427, %v5429
    %v5431 = vadd.f32 %v5430, -0.16666654
    %v5432 = vmul.f32 %v5427, %v5431
    %v5433 = vadd.f32 %v5432, 1.0
    %v5434 = vmul.f32 %v5433, %v5418
    %vm5435 = vweird.f32 %v3170
    %v5436 = vadd.s32 %v5419, 3
    %v5437 = vand.u32 %v5436, 3
    %vm5438 = vcmp.lt.s32.totalorder %v5437, 2
    %vm5439 = vcmp.eq.s32.totalorder %v5437, 0
    %v5440 = vxor.u32 %v5434, 2147483648
    %v5441 = vsel %vm5439, %v5426, %v5440
    %vm5442 = vcmp.eq.s32.totalorder %v5437, 2
    %v5443 = vxor.u32 %v5426, 2147483648
    %v5444 = vsel %vm5442, %v5443, %v5434
    %v5445 = vsel %vm5438, %v5441, %v5444
    %v5446 = vsel %vm5435, nan, %v5445
    %v5447 = vand.u32 2147483647, %v3171
    %vm5448 = vcmp.le.f32.partialorder %v5447, 0.7853982
    %vm5449 = vcmp.lt.s32.totalorder %v3171, 0
    %v5450 = vand.u32 %v3171, 2139095040
    %v5451 = vshrl.u32 %v5450, 23
    %v5452 = vsub.s32 %v5451, 127
    %v5453 = vand.u32 2147483647, %v3171
    %v5454 = vand.u32 %v5453, 8388607
    %v5455 = vor.u32 %v5454, 8388608
    %v5456 = vsub.s32 0, %v5455
    %v5457 = vadd.s32 %v5452, 1
    %vm5458 = vcmp.gt.s32.totalorder %v5457, 0
    %v5459 = vsel %vm5458, %v5457, 0
    %v5460 = vshrl.u32 %v5459, 5
    %v5461 = vand.u32 %v5459, 31
    %v5462 = vsub.s32 32, %v5461
    %v5463 = vshrl.u32 683565275, %v5462
    %v5464 = vshll.u32 683565275, %v5461
    %v5465 = vshrl.u32 2475754826, %v5462
    %v5466 = vor.u32 %v5464, %v5465
    %v5467 = vshll.u32 2475754826, %v5461
    %v5468 = vshrl.u32 2131351028, %v5462
    %v5469 = vor.u32 %v5467, %v5468
    %v5470 = vshll.u32 2131351028, %v5461
    %v5471 = vshrl.u32 2102212464, %v5462
    %v5472 = vor.u32 %v5470, %v5471
    %v5473 = vshll.u32 2102212464, %v5461
    %v5474 = vshrl.u32 920167782, %v5462
    %v5475 = vor.u32 %v5473, %v5474
    %v5476 = vshll.u32 920167782, %v5461
    %v5477 = vshrl.u32 1326507024, %v5462
    %v5478 = vor.u32 %v5476, %v5477
    %vm5479 = vcmp.lt.s32.totalorder %v5460, 1
    %vm5480 = vcmp.lt.s32.totalorder %v5460, 2
    %vm5481 = vcmp.lt.s32.totalorder %v5460, 3
    %vm5482 = vcmp.lt.s32.totalorder %v5460, 4
    %v5483 = vsel %vm5479, %v5463, %v5466
    %v5484 = vsel %vm5482, %v5472, 2102212464
    %v5485 = vsel %vm5481, %v5469, %v5484
    %v5486 = vsel %vm5480, %v5483, %v5485
    %v5487 = vsel %vm5479, %v5466, %v5469
    %v5488 = vsel %vm5482, %v5475, 920167782
    %v5489 = vsel %vm5481, %v5472, %v5488
    %v5490 = vsel %vm5480, %v5487, %v5489
    %v5491 = vsel %vm5479, %v5469, %v5472
    %v5492 = vsel %vm5482, %v5478, 1326507024
    %v5493 = vsel %vm5481, %v5475, %v5492
    %v5494 = vsel %vm5480, %v5491, %v5493
    %v5495 = vshll.u32 %v5455, 8
    %v5496 = vand.u32 %v5495, 65535
    %v5497 = vshrl.u32 %v5495, 16
    %v5498 = vand.u32 %v5494, 65535
    %v5499 = vshrl.u32 %v5494, 16
    %v5500 = vmul.u32 %v5496, %v5498
    %v5501 = vmul.u32 %v5496, %v5499
    %v5502 = vmul.u32 %v5497, %v5498
    %v5503 = vmul.u32 %v5497, %v5499
    %v5504 = vshll.u32 %v5501, 16
    %v5505 = vshrl.u32 %v5501, 16
    %v5506 = vshll.u32 %v5502, 16
    %v5507 = vshrl.u32 %v5502, 16
    %vm5508 = vc.u32 %v5500, %v5504
    %v5509 = vsel %vm5508, 1, 0
    %v5510 = vadd.s32 %v5500, %v5504
    %v5511 = vadd.s32 %v5503, %v5509
    %vm5512 = vc.u32 %v5510, %v5506
    %v5513 = vsel %vm5512, 1, 0
    %v5514 = vadd.s32 %v5510, %v5506
    %v5515 = vadd.s32 %v5511, %v5513
    %v5516 = vadd.s32 %v5515, %v5505
    %v5517 = vadd.s32 %v5516, %v5507
    %v5518 = vand.u32 %v5495, 65535
    %v5519 = vshrl.u32 %v5495, 16
    %v5520 = vand.u32 %v5490, 65535
    %v5521 = vshrl.u32 %v5490, 16
    %v5522 = vmul.u32 %v5518, %v5520
    %v5523 = vmul.u32 %v5518, %v5521
    %v5524 = vmul.u32 %v5519, %v5520
    %v5525 = vmul.u32 %v5519, %v5521
    %v5526 = vshll.u32 %v5523, 16
    %v5527 = vshrl.u32 %v5523, 16
    %v5528 = vshll.u32 %v5524, 16
    %v5529 = vshrl.u32 %v5524, 16
    %vm5530 = vc.u32 %v5522, %v5526
    %v5531 = vsel %vm5530, 1, 0
    %v5532 = vadd.s32 %v5522, %v5526
    %v5533 = vadd.s32 %v5525, %v5531
    %vm5534 = vc.u32 %v5532, %v5528
    %v5535 = vsel %vm5534, 1, 0
    %v5536 = vadd.s32 %v5532, %v5528
    %v5537 = vadd.s32 %v5533, %v5535
    %v5538 = vadd.s32 %v5537, %v5527
    %v5539 = vadd.s32 %v5538, %v5529
    %v5540 = vmul.u32 %v5495, %v5486
    %v5541 = vadd.s32 %v5517, %v5536
    %vm5542 = vc.u32 %v5517, %v5536
    %v5543 = vadd.s32 %v5539, 1
    %v5544 = vsel %vm5542, %v5543, %v5539
    %v5545 = vadd.s32 %v5540, %v5544
    %v5546 = vadd.s32 %v5545, 536870912
    %v5547 = vshrl.u32 %v5546, 30
    %v5548 = vshll.u32 %v5547, 30
    %v5549 = vsub.s32 %v5545, %v5548
    %vm5550 = vcmp.lt.s32.totalorder %v5549, 0
    %v5551 = vsub.s32 0, %v5549
    %v5552 = vsel %vm5550, %v5551, %v5549
    %v5553 = vclz %v5552
    %v5554 = vsub.s32 %v5553, 2
    %vm5555 = vcmp.gt.s32.totalorder 0, %v5554
    %v5556 = vsel %vm5555, 0, %v5554
    %v5557 = vsub.s32 32, %v5556
    %v5558 = vshll.u32 %v5549, %v5556
    %v5559 = vshrl.u32 %v5541, %v5557
    %v5560 = vor.u32 %v5558, %v5559
    %v5561 = vsub.s32 4294967266, %v5556
    %v5562 = vadd.s32 %v5561, 127
    %v5563 = vshll.u32 %v5562, 23
    %v5564 = vor.u32 4788187, %v5563
    %v5565 = vand.u32 2147483647, %v5564
    %v5567 = vcvt.s32.f32 %v5560
    %v5568 = vmul.f32 %v5567, %v5565
    %v5569 = vxor.u32 %v5568, 2147483648
    %v5570 = vsel %vm5449, %v5569, %v5568
    %v5571 = vsub.s32 4, %v5547
    %v5572 = vsel %vm5449, %v5571, %v5547
    %v5573 = vsel %vm5448, %v3171, %v5570
    %v5574 = vsel %vm5448, 0, %v5572
    %v5575 = vmul.f32 %v5573, %v5573
    %v5576 = vmul.f32 %v5575, -0.001358992
    %v5577 = vadd.f32 %v5576, 0.041655596
    %v5578 = vmul.f32 %v5575, %v5577
    %v5579 = vadd.f32 %v5578, -0.4999988
    %v5580 = vmul.f32 %v5575, %v5579
    %v5581 = vadd.f32 1.0, %v5580
    %v5582 = vmul.f32 %v5573, %v5573
    %v5583 = vmul.f32 %v5582, -0.00019511016
    %v5584 = vadd.f32 %v5583, 0.008332121
    %v5585 = vmul.f32 %v5582, %v5584
    %v5586 = vadd.f32 %v5585, -0.16666654
    %v5587 = vmul.f32 %v5582, %v5586
    %v5588 = vadd.f32 %v5587, 1.0
    %v5589 = vmul.f32 %v5588, %v5573
    %vm5590 = vweird.f32 %v3171
    %v5591 = vadd.s32 %v5574, 3
    %v5592 = vand.u32 %v5591, 3
    %vm5593 = vcmp.lt.s32.totalorder %v5592, 2
    %vm5594 = vcmp.eq.s32.totalorder %v5592, 0
    %v5595 = vxor.u32 %v5589, 2147483648
    %v5596 = vsel %vm5594, %v5581, %v5595
    %vm5597 = vcmp.eq.s32.totalorder %v5592, 2
    %v5598 = vxor.u32 %v5581, 2147483648
    %v5599 = vsel %vm5597, %v5598, %v5589
    %v5600 = vsel %vm5593, %v5596, %v5599
    %v5601 = vsel %vm5590, nan, %v5600
    %v5602 = vand.u32 2147483647, %v3172
    %vm5603 = vcmp.le.f32.partialorder %v5602, 0.7853982
    %vm5604 = vcmp.lt.s32.totalorder %v3172, 0
    %v5605 = vand.u32 %v3172, 2139095040
    %v5606 = vshrl.u32 %v5605, 23
    %v5607 = vsub.s32 %v5606, 127
    %v5608 = vand.u32 2147483647, %v3172
    %v5609 = vand.u32 %v5608, 8388607
    %v5610 = vor.u32 %v5609, 8388608
    %v5611 = vsub.s32 0, %v5610
    %v5612 = vadd.s32 %v5607, 1
    %vm5613 = vcmp.gt.s32.totalorder %v5612, 0
    %v5614 = vsel %vm5613, %v5612, 0
    %v5615 = vshrl.u32 %v5614, 5
    %v5616 = vand.u32 %v5614, 31
    %v5617 = vsub.s32 32, %v5616
    %v5618 = vshrl.u32 683565275, %v5617
    %v5619 = vshll.u32 683565275, %v5616
    %v5620 = vshrl.u32 2475754826, %v5617
    %v5621 = vor.u32 %v5619, %v5620
    %v5622 = vshll.u32 2475754826, %v5616
    %v5623 = vshrl.u32 2131351028, %v5617
    %v5624 = vor.u32 %v5622, %v5623
    %v5625 = vshll.u32 2131351028, %v5616
    %v5626 = vshrl.u32 2102212464, %v5617
    %v5627 = vor.u32 %v5625, %v5626
    %v5628 = vshll.u32 2102212464, %v5616
    %v5629 = vshrl.u32 920167782, %v5617
    %v5630 = vor.u32 %v5628, %v5629
    %v5631 = vshll.u32 920167782, %v5616
    %v5632 = vshrl.u32 1326507024, %v5617
    %v5633 = vor.u32 %v5631, %v5632
    %vm5634 = vcmp.lt.s32.totalorder %v5615, 1
    %vm5635 = vcmp.lt.s32.totalorder %v5615, 2
    %vm5636 = vcmp.lt.s32.totalorder %v5615, 3
    %vm5637 = vcmp.lt.s32.totalorder %v5615, 4
    %v5638 = vsel %vm5634, %v5618, %v5621
    %v5639 = vsel %vm5637, %v5627, 2102212464
    %v5640 = vsel %vm5636, %v5624, %v5639
    %v5641 = vsel %vm5635, %v5638, %v5640
    %v5642 = vsel %vm5634, %v5621, %v5624
    %v5643 = vsel %vm5637, %v5630, 920167782
    %v5644 = vsel %vm5636, %v5627, %v5643
    %v5645 = vsel %vm5635, %v5642, %v5644
    %v5646 = vsel %vm5634, %v5624, %v5627
    %v5647 = vsel %vm5637, %v5633, 1326507024
    %v5648 = vsel %vm5636, %v5630, %v5647
    %v5649 = vsel %vm5635, %v5646, %v5648
    %v5650 = vshll.u32 %v5610, 8
    %v5651 = vand.u32 %v5650, 65535
    %v5652 = vshrl.u32 %v5650, 16
    %v5653 = vand.u32 %v5649, 65535
    %v5654 = vshrl.u32 %v5649, 16
    %v5655 = vmul.u32 %v5651, %v5653
    %v5656 = vmul.u32 %v5651, %v5654
    %v5657 = vmul.u32 %v5652, %v5653
    %v5658 = vmul.u32 %v5652, %v5654
    %v5659 = vshll.u32 %v5656, 16
    %v5660 = vshrl.u32 %v5656, 16
    %v5661 = vshll.u32 %v5657, 16
    %v5662 = vshrl.u32 %v5657, 16
    %vm5663 = vc.u32 %v5655, %v5659
    %v5664 = vsel %vm5663, 1, 0
    %v5665 = vadd.s32 %v5655, %v5659
    %v5666 = vadd.s32 %v5658, %v5664
    %vm5667 = vc.u32 %v5665, %v5661
    %v5668 = vsel %vm5667, 1, 0
    %v5669 = vadd.s32 %v5665, %v5661
    %v5670 = vadd.s32 %v5666, %v5668
    %v5671 = vadd.s32 %v5670, %v5660
    %v5672 = vadd.s32 %v5671, %v5662
    %v5673 = vand.u32 %v5650, 65535
    %v5674 = vshrl.u32 %v5650, 16
    %v5675 = vand.u32 %v5645, 65535
    %v5676 = vshrl.u32 %v5645, 16
    %v5677 = vmul.u32 %v5673, %v5675
    %v5678 = vmul.u32 %v5673, %v5676
    %v5679 = vmul.u32 %v5674, %v5675
    %v5680 = vmul.u32 %v5674, %v5676
    %v5681 = vshll.u32 %v5678, 16
    %v5682 = vshrl.u32 %v5678, 16
    %v5683 = vshll.u32 %v5679, 16
    %v5684 = vshrl.u32 %v5679, 16
    %vm5685 = vc.u32 %v5677, %v5681
    %v5686 = vsel %vm5685, 1, 0
    %v5687 = vadd.s32 %v5677, %v5681
    %v5688 = vadd.s32 %v5680, %v5686
    %vm5689 = vc.u32 %v5687, %v5683
    %v5690 = vsel %vm5689, 1, 0
    %v5691 = vadd.s32 %v5687, %v5683
    %v5692 = vadd.s32 %v5688, %v5690
    %v5693 = vadd.s32 %v5692, %v5682
    %v5694 = vadd.s32 %v5693, %v5684
    %v5695 = vmul.u32 %v5650, %v5641
    %v5696 = vadd.s32 %v5672, %v5691
    %vm5697 = vc.u32 %v5672, %v5691
    %v5698 = vadd.s32 %v5694, 1
    %v5699 = vsel %vm5697, %v5698, %v5694
    %v5700 = vadd.s32 %v5695, %v5699
    %v5701 = vadd.s32 %v5700, 536870912
    %v5702 = vshrl.u32 %v5701, 30
    %v5703 = vshll.u32 %v5702, 30
    %v5704 = vsub.s32 %v5700, %v5703
    %vm5705 = vcmp.lt.s32.totalorder %v5704, 0
    %v5706 = vsub.s32 0, %v5704
    %v5707 = vsel %vm5705, %v5706, %v5704
    %v5708 = vclz %v5707
    %v5709 = vsub.s32 %v5708, 2
    %vm5710 = vcmp.gt.s32.totalorder 0, %v5709
    %v5711 = vsel %vm5710, 0, %v5709
    %v5712 = vsub.s32 32, %v5711
    %v5713 = vshll.u32 %v5704, %v5711
    %v5714 = vshrl.u32 %v5696, %v5712
    %v5715 = vor.u32 %v5713, %v5714
    %v5716 = vsub.s32 4294967266, %v5711
    %v5717 = vadd.s32 %v5716, 127
    %v5718 = vshll.u32 %v5717, 23
    %v5719 = vor.u32 4788187, %v5718
    %v5720 = vand.u32 2147483647, %v5719
    %v5722 = vcvt.s32.f32 %v5715
    %v5723 = vmul.f32 %v5722, %v5720
    %v5724 = vxor.u32 %v5723, 2147483648
    %v5725 = vsel %vm5604, %v5724, %v5723
    %v5726 = vsub.s32 4, %v5702
    %v5727 = vsel %vm5604, %v5726, %v5702
    %v5728 = vsel %vm5603, %v3172, %v5725
    %v5729 = vsel %vm5603, 0, %v5727
    %v5730 = vmul.f32 %v5728, %v5728
    %v5731 = vmul.f32 %v5730, -0.001358992
    %v5732 = vadd.f32 %v5731, 0.041655596
    %v5733 = vmul.f32 %v5730, %v5732
    %v5734 = vadd.f32 %v5733, -0.4999988
    %v5735 = vmul.f32 %v5730, %v5734
    %v5736 = vadd.f32 1.0, %v5735
    %v5737 = vmul.f32 %v5728, %v5728
    %v5738 = vmul.f32 %v5737, -0.00019511016
    %v5739 = vadd.f32 %v5738, 0.008332121
    %v5740 = vmul.f32 %v5737, %v5739
    %v5741 = vadd.f32 %v5740, -0.16666654
    %v5742 = vmul.f32 %v5737, %v5741
    %v5743 = vadd.f32 %v5742, 1.0
    %v5744 = vmul.f32 %v5743, %v5728
    %vm5745 = vweird.f32 %v3172
    %v5746 = vadd.s32 %v5729, 3
    %v5747 = vand.u32 %v5746, 3
    %vm5748 = vcmp.lt.s32.totalorder %v5747, 2
    %vm5749 = vcmp.eq.s32.totalorder %v5747, 0
    %v5750 = vxor.u32 %v5744, 2147483648
    %v5751 = vsel %vm5749, %v5736, %v5750
    %vm5752 = vcmp.eq.s32.totalorder %v5747, 2
    %v5753 = vxor.u32 %v5736, 2147483648
    %v5754 = vsel %vm5752, %v5753, %v5744
    %v5755 = vsel %vm5748, %v5751, %v5754
    %v5756 = vsel %vm5745, nan, %v5755
    %5765 = vrot.lane.b32.xlu0 %v4671, 127
    %v5766 = vpop.permute.xlu0 %5765
    %5767 = vrot.lane.b32.xlu0 %v4826, 127
    %v5768 = vpop.permute.xlu0 %5767
    %5769 = vrot.lane.b32.xlu0 %v4981, 127
    %v5770 = vpop.permute.xlu0 %5769
    %5771 = vrot.lane.b32.xlu0 %v5136, 127
    %v5772 = vpop.permute.xlu0 %5771
    %5773 = vrot.lane.b32.xlu0 %v5291, 127
    %v5774 = vpop.permute.xlu0 %5773
    %5775 = vrot.lane.b32.xlu0 %v5446, 127
    %v5776 = vpop.permute.xlu0 %5775
    %5777 = vrot.lane.b32.xlu0 %v5601, 127
    %v5778 = vpop.permute.xlu0 %5777
    %5779 = vrot.lane.b32.xlu0 %v5756, 127
    %v5780 = vpop.permute.xlu0 %5779
    %v5789 = vmul.f32 %v3150, %v5766
    %v5790 = vmul.f32 %v3152, %v5768
    %v5791 = vmul.f32 %v3154, %v5770
    %v5792 = vmul.f32 %v3156, %v5772
    %v5793 = vmul.f32 %v3158, %v5774
    %v5794 = vmul.f32 %v3160, %v5776
    %v5795 = vmul.f32 %v3162, %v5778
    %v5796 = vmul.f32 %v3164, %v5780
    %5798 = vset.pattern.permute.xlu0 0
    %5799 = vperm.xlu0 %5798, %v5789
    %v5800 = vpop.permute.xlu0 %5799
    %5803 = vset.pattern.permute.xlu0 0
    %5804 = vperm.xlu0 %5803, %v5790
    %v5805 = vpop.permute.xlu0 %5804
    %5808 = vset.pattern.permute.xlu0 0
    %5809 = vperm.xlu0 %5808, %v5791
    %v5810 = vpop.permute.xlu0 %5809
    %5813 = vset.pattern.permute.xlu0 0
    %5814 = vperm.xlu0 %5813, %v5792
    %v5815 = vpop.permute.xlu0 %5814
    %5818 = vset.pattern.permute.xlu0 0
    %5819 = vperm.xlu0 %5818, %v5793
    %v5820 = vpop.permute.xlu0 %5819
    %5823 = vset.pattern.permute.xlu0 0
    %5824 = vperm.xlu0 %5823, %v5794
    %v5825 = vpop.permute.xlu0 %5824
    %5828 = vset.pattern.permute.xlu0 0
    %5829 = vperm.xlu0 %5828, %v5795
    %v5830 = vpop.permute.xlu0 %5829
    %5833 = vset.pattern.permute.xlu0 0
    %5834 = vperm.xlu0 %5833, %v5796
    %v5835 = vpop.permute.xlu0 %5834
    %v5837 = vmul.f32 %v5800, %v4445
    %v5838 = vmul.f32 %v5800, %v4446
    %v5839 = vmul.f32 %v5805, %v4447
    %v5840 = vmul.f32 %v5805, %v4448
    %v5841 = vmul.f32 %v5810, %v4449
    %v5842 = vmul.f32 %v5810, %v4450
    %v5843 = vmul.f32 %v5815, %v4451
    %v5844 = vmul.f32 %v5815, %v4452
    %v5845 = vmul.f32 %v5820, %v4453
    %v5846 = vmul.f32 %v5820, %v4454
    %v5847 = vmul.f32 %v5825, %v4455
    %v5848 = vmul.f32 %v5825, %v4456
    %v5849 = vmul.f32 %v5830, %v4457
    %v5850 = vmul.f32 %v5830, %v4458
    %v5851 = vmul.f32 %v5835, %v4459
    %v5852 = vmul.f32 %v5835, %v4460
    %v5853 = vadd.f32 %v4501, %v4503
    %v5854 = vadd.f32 %v5853, %v4505
    %v5855 = vadd.f32 %v5854, %v4507
    %v5856 = vrot.slane %v5855, 4
    %v5857 = vadd.f32 %v5855, %v5856
    %v5858 = vrot.slane %v5857, 2
    %v5859 = vadd.f32 %v5857, %v5858
    %v5860 = vrot.slane %v5859, 1
    %v5861 = vadd.f32 %v5859, %v5860
    %vm5862 = vcmask 130048
    %v5863 = vsel %vm5862, %v4502, 0.0
    %v5864 = vsel %vm5862, %v4504, 0.0
    %v5865 = vadd.f32 %v5863, %v5864
    %v5866 = vsel %vm5862, %v4506, 0.0
    %v5867 = vadd.f32 %v5865, %v5866
    %v5868 = vsel %vm5862, %v4508, 0.0
    %v5869 = vadd.f32 %v5867, %v5868
    %v5870 = vrot.slane %v5869, 4
    %v5871 = vadd.f32 %v5869, %v5870
    %v5872 = vrot.slane %v5871, 2
    %v5873 = vadd.f32 %v5871, %v5872
    %v5874 = vrot.slane %v5873, 1
    %v5875 = vadd.f32 %v5873, %v5874
    %v5878 = vrot.slane %v5875, 7
    %vm5879 = vcmask 1040384
    %v5880 = vsel %vm5879, %v5861, %v5878
    %v5882 = vlaneseq
    %vm5883 = vcmp.ge.s32.totalorder %v5882, 0
    %vm5884 = vcmp.lt.s32.totalorder %v5882, 144
    %vm5885 = vmand %vm5883, %vm5884
    %5886 = vst.msk [vmem:[%s24] ss:$2 sm:$0x3] %vm5885, %v5880
    %v5887 = vadd.f32 %v5837, %v5839
    %v5888 = vadd.f32 %v5887, %v5841
    %v5889 = vadd.f32 %v5888, %v5843
    %v5890 = vrot.slane %v5889, 4
    %v5891 = vadd.f32 %v5889, %v5890
    %v5892 = vrot.slane %v5891, 2
    %v5893 = vadd.f32 %v5891, %v5892
    %v5894 = vrot.slane %v5893, 1
    %v5895 = vadd.f32 %v5893, %v5894
    %v5896 = vsel %vm5862, %v5838, 0.0
    %v5897 = vsel %vm5862, %v5840, 0.0
    %v5898 = vadd.f32 %v5896, %v5897
    %v5899 = vsel %vm5862, %v5842, 0.0
    %v5900 = vadd.f32 %v5898, %v5899
    %v5901 = vsel %vm5862, %v5844, 0.0
    %v5902 = vadd.f32 %v5900, %v5901
    %v5903 = vrot.slane %v5902, 4
    %v5904 = vadd.f32 %v5902, %v5903
    %v5905 = vrot.slane %v5904, 2
    %v5906 = vadd.f32 %v5904, %v5905
    %v5907 = vrot.slane %v5906, 1
    %v5908 = vadd.f32 %v5906, %v5907
    %v5911 = vrot.slane %v5908, 7
    %v5912 = vsel %vm5879, %v5895, %v5911
    %5914 = vst.msk [vmem:[%s25] ss:$2 sm:$0x3] %vm5885, %v5912
    %v5915 = vadd.f32 %v4509, %v4511
    %v5916 = vadd.f32 %v5915, %v4513
    %v5917 = vadd.f32 %v5916, %v4515
    %v5918 = vrot.slane %v5917, 4
    %v5919 = vadd.f32 %v5917, %v5918
    %v5920 = vrot.slane %v5919, 2
    %v5921 = vadd.f32 %v5919, %v5920
    %v5922 = vrot.slane %v5921, 1
    %v5923 = vadd.f32 %v5921, %v5922
    %v5924 = vsel %vm5862, %v4510, 0.0
    %v5925 = vsel %vm5862, %v4512, 0.0
    %v5926 = vadd.f32 %v5924, %v5925
    %v5927 = vsel %vm5862, %v4514, 0.0
    %v5928 = vadd.f32 %v5926, %v5927
    %v5929 = vsel %vm5862, %v4516, 0.0
    %v5930 = vadd.f32 %v5928, %v5929
    %v5931 = vrot.slane %v5930, 4
    %v5932 = vadd.f32 %v5930, %v5931
    %v5933 = vrot.slane %v5932, 2
    %v5934 = vadd.f32 %v5932, %v5933
    %v5935 = vrot.slane %v5934, 1
    %v5936 = vadd.f32 %v5934, %v5935
    %v5939 = vrot.slane %v5936, 7
    %v5940 = vsel %vm5879, %v5923, %v5939
    %s5942 = scalar_lea.vmem %s24, 1
    %5943 = vst.msk [vmem:[%s5942] ss:$2 sm:$0x3] %vm5885, %v5940
    %v5944 = vadd.f32 %v5845, %v5847
    %v5945 = vadd.f32 %v5944, %v5849
    %v5946 = vadd.f32 %v5945, %v5851
    %v5947 = vrot.slane %v5946, 4
    %v5948 = vadd.f32 %v5946, %v5947
    %v5949 = vrot.slane %v5948, 2
    %v5950 = vadd.f32 %v5948, %v5949
    %v5951 = vrot.slane %v5950, 1
    %v5952 = vadd.f32 %v5950, %v5951
    %v5953 = vsel %vm5862, %v5846, 0.0
    %v5954 = vsel %vm5862, %v5848, 0.0
    %v5955 = vadd.f32 %v5953, %v5954
    %v5956 = vsel %vm5862, %v5850, 0.0
    %v5957 = vadd.f32 %v5955, %v5956
    %v5958 = vsel %vm5862, %v5852, 0.0
    %v5959 = vadd.f32 %v5957, %v5958
    %v5960 = vrot.slane %v5959, 4
    %v5961 = vadd.f32 %v5959, %v5960
    %v5962 = vrot.slane %v5961, 2
    %v5963 = vadd.f32 %v5961, %v5962
    %v5964 = vrot.slane %v5963, 1
    %v5965 = vadd.f32 %v5963, %v5964
    %v5968 = vrot.slane %v5965, 7
    %v5969 = vsel %vm5879, %v5952, %v5968
    %s5971 = scalar_lea.vmem %s25, 1
    %5972 = vst.msk [vmem:[%s5971] ss:$2 sm:$0x3] %vm5885, %v5969
    // Predicated region
    $region98: #{forward.2} parent=1 // pred_check
      _
    $region99: #{forward.2} parent=1 // pred_check_branch
      %5974 = sbr.rel (0) target = $region101
    $region100: #{forward.2} parent=1 // pred_region
      _
    $region101: #{forward.2} parent=1 // pred_fallthru
      _
    // Predicated region
    $region102: #{forward.2} parent=1 // pred_check
      _
    $region103: #{forward.2} parent=1 // pred_check_branch
      %5976 = sbr.rel (0) target = $region105
    $region104: #{forward.2} parent=1 // pred_region
      _
    $region105: #{forward.2} parent=1 // pred_fallthru
      _
    // Predicated region
    $region106: #{forward.2} parent=1 // pred_check
      _
    $region107: #{forward.2} parent=1 // pred_check_branch
      %5978 = sbr.rel (0) target = $region109
    $region108: #{forward.2} parent=1 // pred_region
      _
    $region109: #{forward.2} parent=1 // pred_fallthru
      _
    // Predicated region
    $region110: #{forward.2} parent=1 // pred_check
      _
    $region111: #{forward.2} parent=1 // pred_check_branch
      %5980 = sbr.rel (0) target = $region113
    $region112: #{forward.2} parent=1 // pred_region
      _
    $region113: #{forward.2} parent=1 // pred_fallthru
      _
    // Predicated region
    $region114: #{forward.2} parent=1 // pred_check
      _
    $region115: #{forward.2} parent=1 // pred_check_branch
      %5982 = sbr.rel (0) target = $region117
    $region116: #{forward.2} parent=1 // pred_region
      _
    $region117: #{forward.2} parent=1 // pred_fallthru
      _
    // Predicated region
    $region118: #{forward.2} parent=1 // pred_check
      _
    $region119: #{forward.2} parent=1 // pred_check_branch
      %5984 = sbr.rel (0) target = $region121
    $region120: #{forward.2} parent=1 // pred_region
      _
    $region121: #{forward.2} parent=1 // pred_fallthru
      _
    %5985 = vsyncpa [#allocation3], 1

</llo_original>
